<compile_context>
chip_gen: v7x
topology: tpu7x:2x2x1
jax: 0.10.0
libtpu: 0.0.40
codegen_flags: <defaults>
</compile_context>

<pallas_src>
import jax
import jax.numpy as jnp
from jax.experimental import pallas as pl
from jax.experimental.pallas import tpu as pltpu

_LANE = 128
_CP = 16            # conv output channels padded 3 -> 16  (8 * 16 = 128 lanes)


# ----------------------------------------------------------------- kernel ---
def _decoder_kernel(x_ref, w1_ref, b1_ref, w2_ref, b2_ref, w3_ref, b3_ref,
                    cw_ref, cb_ref, o_ref, s_ref):
    bt, hh, ww, cin = x_ref.shape
    P = 8 * hh                                   # fine rows per image

    def deconv(x, w_ref, b_ref):
        # x: (R, W, U*Cin) bf16 with true col = U*j + u, lane = u*Cin + ci.
        # Merged weight: columns [0:L) -> row parity 0, [L:2L) -> parity 1.
        R, Wd, L_in = x.shape
        y = jnp.dot(x.reshape(R * Wd, L_in), w_ref[...],
                    preferred_element_type=jnp.float32)
        y = jnp.maximum(y + b_ref[...], 0.0).astype(jnp.bfloat16)
        L = y.shape[-1] // 2
        y0 = y[:, :L].reshape(R, 1, Wd, L)       # rows 2r   (aligned lane slice)
        y1 = y[:, L:].reshape(R, 1, Wd, L)       # rows 2r+1
        return jnp.concatenate([y0, y1], axis=1).reshape(2 * R, Wd, L)

    x = x_ref[...].reshape(bt * hh, ww, cin)     # bf16
    a = deconv(x, w1_ref, b1_ref)                # (2*bt*hh, W, 128)   64 ch
    a = deconv(a, w2_ref, b2_ref)                # (4*bt*hh, W, 128)   32 ch
    a = deconv(a, w3_ref, b3_ref)                # (8*bt*hh, W, 128)   16 ch

    # Stage-3 activation -> bf16 scratch with a 1-row halo per image.  Only the
    # halo rows are cleared; the interior is fully overwritten every step.
    s_ref[:, 0:1, :, :] = jnp.zeros((bt, 1, ww, _LANE), jnp.bfloat16)
    s_ref[:, P + 1:P + 2, :, :] = jnp.zeros((bt, 1, ww, _LANE), jnp.bfloat16)
    s_ref[:, 1:P + 1, :, :] = a.reshape(bt, P, ww, _LANE)

    # Conv2d 3x3, padding=1: 9 bf16 block matmuls accumulated in a local f32
    # value, then a single lane-dense bf16 store.
    m = bt * P * ww
    zcol = jnp.zeros((bt * P, 1, _LANE), jnp.float32)
    acc = None
    for ky in range(3):
        win = s_ref[:, ky:ky + P, :, :].reshape(bt * P, ww, _LANE)   # bf16
        winf = win.astype(jnp.float32)
        # col-block j-1 / j+1 source slabs: shift along the col-block axis with
        # a zero column at the image border (32-bit shift, cast back to bf16).
        left = jnp.concatenate([zcol, winf[:, :ww - 1, :]], axis=1)
        right = jnp.concatenate([winf[:, 1:, :], zcol], axis=1)
        taps = (left.astype(jnp.bfloat16), win, right.astype(jnp.bfloat16))
        for jt in range(3):
            d = jnp.dot(taps[jt].reshape(m, _LANE), cw_ref[ky, jt],
                        preferred_element_type=jnp.float32)
            acc = d if acc is None else acc + d
    acc = acc + cb_ref[...]
    o_ref[...] = acc.reshape(bt, P, ww, _LANE).astype(o_ref.dtype)


# ------------------------------------------------- weight re-packing (JAX) ---
def _deconv_block_weights(w, b, u_in):
    """ConvTranspose2d weight (Cin, Cout, 2, 2) -> one merged block matrix.

    Column layout [parity kr=0 | parity kr=1], each half L = 2*u_in*Cout wide:
      M[u*Cin + ci, kr*L + (2u+kc)*Cout + co] = w[ci, co, kr, kc]
    """
    cin, cout = w.shape[0], w.shape[1]
    L = 2 * u_in * cout
    m = jnp.zeros((u_in * cin, 2 * L), jnp.float32)
    for kr in range(2):
        for u in range(u_in):
            for kc in range(2):
                col = kr * L + (2 * u + kc) * cout
                m = m.at[u * cin:(u + 1) * cin, col:col + cout].set(
                    w[:, :, kr, kc])
    bias = jnp.tile(b, 4 * u_in).reshape(1, 2 * L)
    return m, bias


def _conv_tap_weights(w, b, u=8, cp=_CP):
    """Conv2d 3x3 weight (Cout, Cin, 3, 3) -> 9 lane-merged tap matrices.

    T[ky, jt] is (u*Cin, u*cp);  jt selects the source col-block j-1 / j / j+1.
    """
    cout, cin = w.shape[0], w.shape[1]
    t = jnp.zeros((3, 3, u * cin, u * cp), jnp.float32)
    for ky in range(3):
        for kx in range(3):
            dx = kx - 1
            for uu in range(u):
                su = uu + dx
                if su < 0:
                    su, jt = u - 1, 0
                elif su >= u:
                    su, jt = 0, 2
                else:
                    jt = 1
                t = t.at[ky, jt, su * cin:(su + 1) * cin,
                         uu * cp:uu * cp + cout].add(w[:, :, ky, kx].T)
    bias = jnp.tile(jnp.pad(b, (0, cp - cout)), u).reshape(1, u * cp)
    return t, bias


def _pick_block_batch(n, hh, ww):
    """Images folded per grid step: raise matmul M for tiny feature maps while
    keeping >= 2 grid steps so both v7x TensorCores get work."""
    if n <= 1:
        return 1
    limit = 4 if hh * ww <= 256 else 1
    bt = 1
    for cand in range(1, limit + 1):
        if n % cand == 0 and n // cand >= 2:
            bt = cand
    return bt


# ---------------------------------------------------------------- wrapper ---
def vit_decoder_forward(x_nchw, params):
    """x_nchw: (N, emb_dim, H, W) f32  ->  (N, out_channels, 8H, 8W) f32."""
    n, cin, hh, ww = x_nchw.shape
    assert ww % 8 == 0, "width must be a multiple of 8 (sublane packing)"
    cout = params["wc"].shape[0]
    assert cout <= _CP

    bt = _pick_block_batch(n, hh, ww)
    x = jnp.transpose(x_nchw, (0, 2, 3, 1)).astype(jnp.bfloat16)     # NHWC bf16

    w1, b1 = _deconv_block_weights(params["w1"], params["b1"], u_in=1)
    w2, b2 = _deconv_block_weights(params["w2"], params["b2"], u_in=2)
    w3, b3 = _deconv_block_weights(params["w3"], params["b3"], u_in=4)
    cw, cb = _conv_tap_weights(params["wc"], params["bc"])

    p = 8 * hh
    out = pl.pallas_call(
        _decoder_kernel,
        out_shape=jax.ShapeDtypeStruct((n, p, ww, _LANE), jnp.bfloat16),
        grid=(n // bt,),
        in_specs=[
            pl.BlockSpec((bt, hh, ww, cin), lambda i: (i, 0, 0, 0)),
            pl.BlockSpec(w1.shape, lambda i: (0, 0)),
            pl.BlockSpec(b1.shape, lambda i: (0, 0)),
            pl.BlockSpec(w2.shape, lambda i: (0, 0)),
            pl.BlockSpec(b2.shape, lambda i: (0, 0)),
            pl.BlockSpec(w3.shape, lambda i: (0, 0)),
            pl.BlockSpec(b3.shape, lambda i: (0, 0)),
            pl.BlockSpec(cw.shape, lambda i: (0, 0, 0, 0)),
            pl.BlockSpec(cb.shape, lambda i: (0, 0)),
        ],
        out_specs=pl.BlockSpec((bt, p, ww, _LANE), lambda i: (i, 0, 0, 0)),
        scratch_shapes=[pltpu.VMEM((bt, p + 2, ww, _LANE), jnp.bfloat16)],
        compiler_params=pltpu.CompilerParams(
            dimension_semantics=("parallel",),
            vmem_limit_bytes=64 * 1024 * 1024),
    )(x, w1.astype(jnp.bfloat16), b1, w2.astype(jnp.bfloat16), b2,
      w3.astype(jnp.bfloat16), b3, cw.astype(jnp.bfloat16), cb)

    # lane = u*16 + co with true col = 8*j + u: slice the real channels, then a
    # contiguous reshape plus one small transpose gives NCHW (in XLA).
    y = out.reshape(n, p, ww, 8, _CP)[..., :cout]
    y = jnp.transpose(y, (0, 4, 1, 2, 3)).reshape(n, cout, p, 8 * ww)
    return y.astype(jnp.float32)


# -------------------------------------------------------- init & reference ---
def init_params(key, emb_dim=64, out_channels=3):
    ks = jax.random.split(key, 8)

    def u(k, shape, fan_in):
        bound = 1.0 / jnp.sqrt(float(fan_in))
        return jax.random.uniform(k, shape, jnp.float32, -bound, bound)

    return {
        "w1": u(ks[0], (emb_dim, 64, 2, 2), emb_dim * 4),
        "b1": u(ks[1], (64,), emb_dim * 4),
        "w2": u(ks[2], (64, 32, 2, 2), 64 * 4),
        "b2": u(ks[3], (32,), 64 * 4),
        "w3": u(ks[4], (32, 16, 2, 2), 32 * 4),
        "b3": u(ks[5], (16,), 32 * 4),
        "wc": u(ks[6], (out_channels, 16, 3, 3), 16 * 9),
        "bc": u(ks[7], (out_channels,), 16 * 9),
    }


def _ref_forward(x_nchw, p):
    """Pure-jnp reference with the same semantics as the PyTorch module."""
    def deconv(x, w, b):
        y = jnp.einsum("nhwc,cokl->nhwklo", x, w) + b
        nb, h, wd = x.shape[0], x.shape[1], x.shape[2]
        y = y.transpose(0, 1, 3, 2, 4, 5)
        return jnp.maximum(y.reshape(nb, 2 * h, 2 * wd, -1), 0.0)

    x = jnp.transpose(x_nchw, (0, 2, 3, 1))
    x = deconv(x, p["w1"], p["b1"])
    x = deconv(x, p["w2"], p["b2"])
    x = deconv(x, p["w3"], p["b3"])
    xp = jnp.pad(x, ((0, 0), (1, 1), (1, 1), (0, 0)))
    h, w = x.shape[1], x.shape[2]
    patches = jnp.concatenate(
        [xp[:, dy:dy + h, dx:dx + w, :] for dy in range(3) for dx in range(3)],
        axis=-1)
    wr = jnp.transpose(p["wc"], (2, 3, 1, 0)).reshape(-1, p["wc"].shape[0])
    y = patches @ wr + p["bc"]
    return jnp.transpose(y, (0, 3, 1, 2))


if __name__ == "__main__":
    key = jax.random.PRNGKey(0)
    k_x, k_p = jax.random.split(key)

    emb_dim, out_channels = 64, 3
    n, hh, ww = 2, 8, 8
    x = jax.random.normal(k_x, (n, emb_dim, hh, ww), jnp.float32)   # NCHW
    params = init_params(k_p, emb_dim=emb_dim, out_channels=out_channels)

    fwd = jax.jit(vit_decoder_forward)
    out = jax.block_until_ready(fwd(x, params))
    assert out.shape == (n, out_channels, 8 * hh, 8 * ww), out.shape

    ref = jax.block_until_ready(_ref_forward(x, params))
    max_err = jnp.max(jnp.abs(out - ref))
    assert jnp.allclose(out, ref, atol=2e-2, rtol=2e-2), f"mismatch: {max_err}"

    print("KERNEL_OK")
</pallas_src>

<mosaic_0001>
module attributes {stable_mosaic.version = 11 : i64} {
  func.func @_decoder_kernel(%arg0: i32, %arg1: memref<1x8x8x64xbf16, #tpu.memory_space<vmem>>, %arg2: memref<64x256xbf16, #tpu.memory_space<vmem>>, %arg3: memref<1x256xf32, #tpu.memory_space<vmem>>, %arg4: memref<128x256xbf16, #tpu.memory_space<vmem>>, %arg5: memref<1x256xf32, #tpu.memory_space<vmem>>, %arg6: memref<128x256xbf16, #tpu.memory_space<vmem>>, %arg7: memref<1x256xf32, #tpu.memory_space<vmem>>, %arg8: memref<3x3x128x128xbf16, #tpu.memory_space<vmem>>, %arg9: memref<1x128xf32, #tpu.memory_space<vmem>>, %arg10: memref<1x64x8x128xbf16, #tpu.memory_space<vmem>>, %arg11: memref<1x66x8x128xbf16, #tpu.memory_space<vmem>>) attributes {dimension_semantics = [#tpu.dimension_semantics<parallel>], iteration_bounds = array<i64: 2>, scalar_prefetch = 0 : i64, scratch_operands = 1 : i64, tpu.core_type = #tpu.core_type<tc>, window_params = [{transform_indices = @transform_0, window_bounds = array<i64: 1, 8, 8, 64>}, {pipeline_mode = #tpu.pipeline_mode<synchronous>, transform_indices = @transform_1, window_bounds = array<i64: 64, 256>}, {pipeline_mode = #tpu.pipeline_mode<synchronous>, transform_indices = @transform_2, window_bounds = array<i64: 1, 256>}, {pipeline_mode = #tpu.pipeline_mode<synchronous>, transform_indices = @transform_3, window_bounds = array<i64: 128, 256>}, {pipeline_mode = #tpu.pipeline_mode<synchronous>, transform_indices = @transform_4, window_bounds = array<i64: 1, 256>}, {pipeline_mode = #tpu.pipeline_mode<synchronous>, transform_indices = @transform_5, window_bounds = array<i64: 128, 256>}, {pipeline_mode = #tpu.pipeline_mode<synchronous>, transform_indices = @transform_6, window_bounds = array<i64: 1, 256>}, {pipeline_mode = #tpu.pipeline_mode<synchronous>, transform_indices = @transform_7, window_bounds = array<i64: 3, 3, 128, 128>}, {pipeline_mode = #tpu.pipeline_mode<synchronous>, transform_indices = @transform_8, window_bounds = array<i64: 1, 128>}, {transform_indices = @transform_9, window_bounds = array<i64: 1, 64, 8, 128>}]} {
    %c0 = arith.constant 0 : index
    %c0_0 = arith.constant 0 : index
    %c0_1 = arith.constant 0 : index
    %c0_2 = arith.constant 0 : index
    %0 = vector.load %arg1[%c0, %c0_0, %c0_1, %c0_2] : memref<1x8x8x64xbf16, #tpu.memory_space<vmem>>, vector<1x8x8x64xbf16>
    %1 = vector.shape_cast %0 : vector<1x8x8x64xbf16> to vector<8x8x64xbf16>
    %2 = vector.shape_cast %1 : vector<8x8x64xbf16> to vector<64x64xbf16>
    %c0_3 = arith.constant 0 : index
    %c0_4 = arith.constant 0 : index
    %3 = vector.load %arg2[%c0_3, %c0_4] : memref<64x256xbf16, #tpu.memory_space<vmem>>, vector<64x256xbf16>
    %cst = arith.constant dense<0.000000e+00> : vector<64x256xf32>
    %4 = tpu.matmul %2, %3, %cst {dimension_numbers = #tpu.dot_dimension_numbers<[1], [0], [0], [1], [0, 0, 1, 1], [], []>} : vector<64x64xbf16>, vector<64x256xbf16>, vector<64x256xf32> -> vector<64x256xf32>
    %c0_5 = arith.constant 0 : index
    %c0_6 = arith.constant 0 : index
    %5 = vector.load %arg3[%c0_5, %c0_6] : memref<1x256xf32, #tpu.memory_space<vmem>>, vector<1x256xf32>
    %6 = vector.broadcast %5 : vector<1x256xf32> to vector<64x256xf32>
    %7 = arith.addf %4, %6 : vector<64x256xf32>
    %cst_7 = arith.constant 0.000000e+00 : f32
    %8 = vector.broadcast %cst_7 : f32 to vector<64x256xf32>
    %9 = arith.maximumf %7, %8 : vector<64x256xf32>
    %10 = arith.truncf %9 : vector<64x256xf32> to vector<64x256xbf16>
    %11 = vector.extract_strided_slice %10 {offsets = [0, 0], sizes = [64, 128], strides = [1, 1]} : vector<64x256xbf16> to vector<64x128xbf16>
    %12 = vector.shape_cast %11 : vector<64x128xbf16> to vector<8x1x8x128xbf16>
    %13 = vector.extract_strided_slice %10 {offsets = [0, 128], sizes = [64, 128], strides = [1, 1]} : vector<64x256xbf16> to vector<64x128xbf16>
    %14 = vector.shape_cast %13 : vector<64x128xbf16> to vector<8x1x8x128xbf16>
    %15 = tpu.concatenate %12, %14 in 1 : vector<8x1x8x128xbf16>, vector<8x1x8x128xbf16> -> vector<8x2x8x128xbf16>
    %16 = vector.shape_cast %15 : vector<8x2x8x128xbf16> to vector<16x8x128xbf16>
    %17 = vector.shape_cast %16 : vector<16x8x128xbf16> to vector<128x128xbf16>
    %c0_8 = arith.constant 0 : index
    %c0_9 = arith.constant 0 : index
    %18 = vector.load %arg4[%c0_8, %c0_9] : memref<128x256xbf16, #tpu.memory_space<vmem>>, vector<128x256xbf16>
    %cst_10 = arith.constant dense<0.000000e+00> : vector<128x256xf32>
    %19 = tpu.matmul %17, %18, %cst_10 {dimension_numbers = #tpu.dot_dimension_numbers<[1], [0], [0], [1], [0, 0, 1, 1], [], []>} : vector<128x128xbf16>, vector<128x256xbf16>, vector<128x256xf32> -> vector<128x256xf32>
    %c0_11 = arith.constant 0 : index
    %c0_12 = arith.constant 0 : index
    %20 = vector.load %arg5[%c0_11, %c0_12] : memref<1x256xf32, #tpu.memory_space<vmem>>, vector<1x256xf32>
    %21 = vector.broadcast %20 : vector<1x256xf32> to vector<128x256xf32>
    %22 = arith.addf %19, %21 : vector<128x256xf32>
    %cst_13 = arith.constant 0.000000e+00 : f32
    %23 = vector.broadcast %cst_13 : f32 to vector<128x256xf32>
    %24 = arith.maximumf %22, %23 : vector<128x256xf32>
    %25 = arith.truncf %24 : vector<128x256xf32> to vector<128x256xbf16>
    %26 = vector.extract_strided_slice %25 {offsets = [0, 0], sizes = [128, 128], strides = [1, 1]} : vector<128x256xbf16> to vector<128x128xbf16>
    %27 = vector.shape_cast %26 : vector<128x128xbf16> to vector<16x1x8x128xbf16>
    %28 = vector.extract_strided_slice %25 {offsets = [0, 128], sizes = [128, 128], strides = [1, 1]} : vector<128x256xbf16> to vector<128x128xbf16>
    %29 = vector.shape_cast %28 : vector<128x128xbf16> to vector<16x1x8x128xbf16>
    %30 = tpu.concatenate %27, %29 in 1 : vector<16x1x8x128xbf16>, vector<16x1x8x128xbf16> -> vector<16x2x8x128xbf16>
    %31 = vector.shape_cast %30 : vector<16x2x8x128xbf16> to vector<32x8x128xbf16>
    %32 = vector.shape_cast %31 : vector<32x8x128xbf16> to vector<256x128xbf16>
    %c0_14 = arith.constant 0 : index
    %c0_15 = arith.constant 0 : index
    %33 = vector.load %arg6[%c0_14, %c0_15] : memref<128x256xbf16, #tpu.memory_space<vmem>>, vector<128x256xbf16>
    %cst_16 = arith.constant dense<0.000000e+00> : vector<256x256xf32>
    %34 = tpu.matmul %32, %33, %cst_16 {dimension_numbers = #tpu.dot_dimension_numbers<[1], [0], [0], [1], [0, 0, 1, 1], [], []>} : vector<256x128xbf16>, vector<128x256xbf16>, vector<256x256xf32> -> vector<256x256xf32>
    %c0_17 = arith.constant 0 : index
    %c0_18 = arith.constant 0 : index
    %35 = vector.load %arg7[%c0_17, %c0_18] : memref<1x256xf32, #tpu.memory_space<vmem>>, vector<1x256xf32>
    %36 = vector.broadcast %35 : vector<1x256xf32> to vector<256x256xf32>
    %37 = arith.addf %34, %36 : vector<256x256xf32>
    %cst_19 = arith.constant 0.000000e+00 : f32
    %38 = vector.broadcast %cst_19 : f32 to vector<256x256xf32>
    %39 = arith.maximumf %37, %38 : vector<256x256xf32>
    %40 = arith.truncf %39 : vector<256x256xf32> to vector<256x256xbf16>
    %41 = vector.extract_strided_slice %40 {offsets = [0, 0], sizes = [256, 128], strides = [1, 1]} : vector<256x256xbf16> to vector<256x128xbf16>
    %42 = vector.shape_cast %41 : vector<256x128xbf16> to vector<32x1x8x128xbf16>
    %43 = vector.extract_strided_slice %40 {offsets = [0, 128], sizes = [256, 128], strides = [1, 1]} : vector<256x256xbf16> to vector<256x128xbf16>
    %44 = vector.shape_cast %43 : vector<256x128xbf16> to vector<32x1x8x128xbf16>
    %45 = tpu.concatenate %42, %44 in 1 : vector<32x1x8x128xbf16>, vector<32x1x8x128xbf16> -> vector<32x2x8x128xbf16>
    %46 = vector.shape_cast %45 : vector<32x2x8x128xbf16> to vector<64x8x128xbf16>
    %cst_20 = arith.constant 0.000000e+00 : bf16
    %47 = vector.broadcast %cst_20 : bf16 to vector<1x1x8x128xbf16>
    %c0_21 = arith.constant 0 : index
    %c0_22 = arith.constant 0 : index
    %c0_23 = arith.constant 0 : index
    %c0_24 = arith.constant 0 : index
    %48 = vector.load %arg11[%c0_21, %c0_22, %c0_23, %c0_24] : memref<1x66x8x128xbf16, #tpu.memory_space<vmem>>, vector<1x1x8x128xbf16>
    tpu.vector_store %arg11[%c0_21, %c0_22, %c0_23, %c0_24], %47 {strides = array<i32>} : memref<1x66x8x128xbf16, #tpu.memory_space<vmem>>, vector<1x1x8x128xbf16>,
    %cst_25 = arith.constant 0.000000e+00 : bf16
    %49 = vector.broadcast %cst_25 : bf16 to vector<1x1x8x128xbf16>
    %c0_26 = arith.constant 0 : index
    %c65 = arith.constant 65 : index
    %c0_27 = arith.constant 0 : index
    %c0_28 = arith.constant 0 : index
    %50 = vector.load %arg11[%c0_26, %c65, %c0_27, %c0_28] : memref<1x66x8x128xbf16, #tpu.memory_space<vmem>>, vector<1x1x8x128xbf16>
    tpu.vector_store %arg11[%c0_26, %c65, %c0_27, %c0_28], %49 {strides = array<i32>} : memref<1x66x8x128xbf16, #tpu.memory_space<vmem>>, vector<1x1x8x128xbf16>,
    %51 = vector.shape_cast %46 : vector<64x8x128xbf16> to vector<1x64x8x128xbf16>
    %c0_29 = arith.constant 0 : index
    %c1 = arith.constant 1 : index
    %c0_30 = arith.constant 0 : index
    %c0_31 = arith.constant 0 : index
    %52 = vector.load %arg11[%c0_29, %c1, %c0_30, %c0_31] : memref<1x66x8x128xbf16, #tpu.memory_space<vmem>>, vector<1x64x8x128xbf16>
    tpu.vector_store %arg11[%c0_29, %c1, %c0_30, %c0_31], %51 {strides = array<i32>} : memref<1x66x8x128xbf16, #tpu.memory_space<vmem>>, vector<1x64x8x128xbf16>,
    %cst_32 = arith.constant 0.000000e+00 : f32
    %53 = vector.broadcast %cst_32 : f32 to vector<64x1x128xf32>
    %c0_33 = arith.constant 0 : index
    %c0_34 = arith.constant 0 : index
    %c0_35 = arith.constant 0 : index
    %c0_36 = arith.constant 0 : index
    %54 = vector.load %arg11[%c0_33, %c0_34, %c0_35, %c0_36] : memref<1x66x8x128xbf16, #tpu.memory_space<vmem>>, vector<1x64x8x128xbf16>
    %55 = vector.shape_cast %54 : vector<1x64x8x128xbf16> to vector<64x8x128xbf16>
    %56 = arith.extf %55 : vector<64x8x128xbf16> to vector<64x8x128xf32>
    %57 = vector.extract_strided_slice %56 {offsets = [0, 0, 0], sizes = [64, 7, 128], strides = [1, 1, 1]} : vector<64x8x128xf32> to vector<64x7x128xf32>
    %58 = tpu.concatenate %53, %57 in 1 : vector<64x1x128xf32>, vector<64x7x128xf32> -> vector<64x8x128xf32>
    %59 = vector.extract_strided_slice %56 {offsets = [0, 1, 0], sizes = [64, 7, 128], strides = [1, 1, 1]} : vector<64x8x128xf32> to vector<64x7x128xf32>
    %60 = tpu.concatenate %59, %53 in 1 : vector<64x7x128xf32>, vector<64x1x128xf32> -> vector<64x8x128xf32>
    %61 = arith.truncf %58 : vector<64x8x128xf32> to vector<64x8x128xbf16>
    %62 = arith.truncf %60 : vector<64x8x128xf32> to vector<64x8x128xbf16>
    %63 = vector.shape_cast %61 : vector<64x8x128xbf16> to vector<512x128xbf16>
    %c0_37 = arith.constant 0 : index
    %c0_38 = arith.constant 0 : index
    %c0_39 = arith.constant 0 : index
    %c0_40 = arith.constant 0 : index
    %64 = vector.load %arg8[%c0_37, %c0_38, %c0_39, %c0_40] : memref<3x3x128x128xbf16, #tpu.memory_space<vmem>>, vector<1x1x128x128xbf16>
    %65 = vector.shape_cast %64 : vector<1x1x128x128xbf16> to vector<128x128xbf16>
    %cst_41 = arith.constant dense<0.000000e+00> : vector<512x128xf32>
    %66 = tpu.matmul %63, %65, %cst_41 {dimension_numbers = #tpu.dot_dimension_numbers<[1], [0], [0], [1], [0, 0, 1, 1], [], []>} : vector<512x128xbf16>, vector<128x128xbf16>, vector<512x128xf32> -> vector<512x128xf32>
    %67 = vector.shape_cast %55 : vector<64x8x128xbf16> to vector<512x128xbf16>
    %c0_42 = arith.constant 0 : index
    %c1_43 = arith.constant 1 : index
    %c0_44 = arith.constant 0 : index
    %c0_45 = arith.constant 0 : index
    %68 = vector.load %arg8[%c0_42, %c1_43, %c0_44, %c0_45] : memref<3x3x128x128xbf16, #tpu.memory_space<vmem>>, vector<1x1x128x128xbf16>
    %69 = vector.shape_cast %68 : vector<1x1x128x128xbf16> to vector<128x128xbf16>
    %cst_46 = arith.constant dense<0.000000e+00> : vector<512x128xf32>
    %70 = tpu.matmul %67, %69, %cst_46 {dimension_numbers = #tpu.dot_dimension_numbers<[1], [0], [0], [1], [0, 0, 1, 1], [], []>} : vector<512x128xbf16>, vector<128x128xbf16>, vector<512x128xf32> -> vector<512x128xf32>
    %71 = arith.addf %66, %70 : vector<512x128xf32>
    %72 = vector.shape_cast %62 : vector<64x8x128xbf16> to vector<512x128xbf16>
    %c0_47 = arith.constant 0 : index
    %c2 = arith.constant 2 : index
    %c0_48 = arith.constant 0 : index
    %c0_49 = arith.constant 0 : index
    %73 = vector.load %arg8[%c0_47, %c2, %c0_48, %c0_49] : memref<3x3x128x128xbf16, #tpu.memory_space<vmem>>, vector<1x1x128x128xbf16>
    %74 = vector.shape_cast %73 : vector<1x1x128x128xbf16> to vector<128x128xbf16>
    %cst_50 = arith.constant dense<0.000000e+00> : vector<512x128xf32>
    %75 = tpu.matmul %72, %74, %cst_50 {dimension_numbers = #tpu.dot_dimension_numbers<[1], [0], [0], [1], [0, 0, 1, 1], [], []>} : vector<512x128xbf16>, vector<128x128xbf16>, vector<512x128xf32> -> vector<512x128xf32>
    %76 = arith.addf %71, %75 : vector<512x128xf32>
    %c0_51 = arith.constant 0 : index
    %c1_52 = arith.constant 1 : index
    %c0_53 = arith.constant 0 : index
    %c0_54 = arith.constant 0 : index
    %77 = vector.load %arg11[%c0_51, %c1_52, %c0_53, %c0_54] : memref<1x66x8x128xbf16, #tpu.memory_space<vmem>>, vector<1x64x8x128xbf16>
    %78 = vector.shape_cast %77 : vector<1x64x8x128xbf16> to vector<64x8x128xbf16>
    %79 = arith.extf %78 : vector<64x8x128xbf16> to vector<64x8x128xf32>
    %80 = vector.extract_strided_slice %79 {offsets = [0, 0, 0], sizes = [64, 7, 128], strides = [1, 1, 1]} : vector<64x8x128xf32> to vector<64x7x128xf32>
    %81 = tpu.concatenate %53, %80 in 1 : vector<64x1x128xf32>, vector<64x7x128xf32> -> vector<64x8x128xf32>
    %82 = vector.extract_strided_slice %79 {offsets = [0, 1, 0], sizes = [64, 7, 128], strides = [1, 1, 1]} : vector<64x8x128xf32> to vector<64x7x128xf32>
    %83 = tpu.concatenate %82, %53 in 1 : vector<64x7x128xf32>, vector<64x1x128xf32> -> vector<64x8x128xf32>
    %84 = arith.truncf %81 : vector<64x8x128xf32> to vector<64x8x128xbf16>
    %85 = arith.truncf %83 : vector<64x8x128xf32> to vector<64x8x128xbf16>
    %86 = vector.shape_cast %84 : vector<64x8x128xbf16> to vector<512x128xbf16>
    %c1_55 = arith.constant 1 : index
    %c0_56 = arith.constant 0 : index
    %c0_57 = arith.constant 0 : index
    %c0_58 = arith.constant 0 : index
    %87 = vector.load %arg8[%c1_55, %c0_56, %c0_57, %c0_58] : memref<3x3x128x128xbf16, #tpu.memory_space<vmem>>, vector<1x1x128x128xbf16>
    %88 = vector.shape_cast %87 : vector<1x1x128x128xbf16> to vector<128x128xbf16>
    %cst_59 = arith.constant dense<0.000000e+00> : vector<512x128xf32>
    %89 = tpu.matmul %86, %88, %cst_59 {dimension_numbers = #tpu.dot_dimension_numbers<[1], [0], [0], [1], [0, 0, 1, 1], [], []>} : vector<512x128xbf16>, vector<128x128xbf16>, vector<512x128xf32> -> vector<512x128xf32>
    %90 = arith.addf %76, %89 : vector<512x128xf32>
    %91 = vector.shape_cast %78 : vector<64x8x128xbf16> to vector<512x128xbf16>
    %c1_60 = arith.constant 1 : index
    %c1_61 = arith.constant 1 : index
    %c0_62 = arith.constant 0 : index
    %c0_63 = arith.constant 0 : index
    %92 = vector.load %arg8[%c1_60, %c1_61, %c0_62, %c0_63] : memref<3x3x128x128xbf16, #tpu.memory_space<vmem>>, vector<1x1x128x128xbf16>
    %93 = vector.shape_cast %92 : vector<1x1x128x128xbf16> to vector<128x128xbf16>
    %cst_64 = arith.constant dense<0.000000e+00> : vector<512x128xf32>
    %94 = tpu.matmul %91, %93, %cst_64 {dimension_numbers = #tpu.dot_dimension_numbers<[1], [0], [0], [1], [0, 0, 1, 1], [], []>} : vector<512x128xbf16>, vector<128x128xbf16>, vector<512x128xf32> -> vector<512x128xf32>
    %95 = arith.addf %90, %94 : vector<512x128xf32>
    %96 = vector.shape_cast %85 : vector<64x8x128xbf16> to vector<512x128xbf16>
    %c1_65 = arith.constant 1 : index
    %c2_66 = arith.constant 2 : index
    %c0_67 = arith.constant 0 : index
    %c0_68 = arith.constant 0 : index
    %97 = vector.load %arg8[%c1_65, %c2_66, %c0_67, %c0_68] : memref<3x3x128x128xbf16, #tpu.memory_space<vmem>>, vector<1x1x128x128xbf16>
    %98 = vector.shape_cast %97 : vector<1x1x128x128xbf16> to vector<128x128xbf16>
    %cst_69 = arith.constant dense<0.000000e+00> : vector<512x128xf32>
    %99 = tpu.matmul %96, %98, %cst_69 {dimension_numbers = #tpu.dot_dimension_numbers<[1], [0], [0], [1], [0, 0, 1, 1], [], []>} : vector<512x128xbf16>, vector<128x128xbf16>, vector<512x128xf32> -> vector<512x128xf32>
    %100 = arith.addf %95, %99 : vector<512x128xf32>
    %c0_70 = arith.constant 0 : index
    %c2_71 = arith.constant 2 : index
    %c0_72 = arith.constant 0 : index
    %c0_73 = arith.constant 0 : index
    %101 = vector.load %arg11[%c0_70, %c2_71, %c0_72, %c0_73] : memref<1x66x8x128xbf16, #tpu.memory_space<vmem>>, vector<1x64x8x128xbf16>
    %102 = vector.shape_cast %101 : vector<1x64x8x128xbf16> to vector<64x8x128xbf16>
    %103 = arith.extf %102 : vector<64x8x128xbf16> to vector<64x8x128xf32>
    %104 = vector.extract_strided_slice %103 {offsets = [0, 0, 0], sizes = [64, 7, 128], strides = [1, 1, 1]} : vector<64x8x128xf32> to vector<64x7x128xf32>
    %105 = tpu.concatenate %53, %104 in 1 : vector<64x1x128xf32>, vector<64x7x128xf32> -> vector<64x8x128xf32>
    %106 = vector.extract_strided_slice %103 {offsets = [0, 1, 0], sizes = [64, 7, 128], strides = [1, 1, 1]} : vector<64x8x128xf32> to vector<64x7x128xf32>
    %107 = tpu.concatenate %106, %53 in 1 : vector<64x7x128xf32>, vector<64x1x128xf32> -> vector<64x8x128xf32>
    %108 = arith.truncf %105 : vector<64x8x128xf32> to vector<64x8x128xbf16>
    %109 = arith.truncf %107 : vector<64x8x128xf32> to vector<64x8x128xbf16>
    %110 = vector.shape_cast %108 : vector<64x8x128xbf16> to vector<512x128xbf16>
    %c2_74 = arith.constant 2 : index
    %c0_75 = arith.constant 0 : index
    %c0_76 = arith.constant 0 : index
    %c0_77 = arith.constant 0 : index
    %111 = vector.load %arg8[%c2_74, %c0_75, %c0_76, %c0_77] : memref<3x3x128x128xbf16, #tpu.memory_space<vmem>>, vector<1x1x128x128xbf16>
    %112 = vector.shape_cast %111 : vector<1x1x128x128xbf16> to vector<128x128xbf16>
    %cst_78 = arith.constant dense<0.000000e+00> : vector<512x128xf32>
    %113 = tpu.matmul %110, %112, %cst_78 {dimension_numbers = #tpu.dot_dimension_numbers<[1], [0], [0], [1], [0, 0, 1, 1], [], []>} : vector<512x128xbf16>, vector<128x128xbf16>, vector<512x128xf32> -> vector<512x128xf32>
    %114 = arith.addf %100, %113 : vector<512x128xf32>
    %115 = vector.shape_cast %102 : vector<64x8x128xbf16> to vector<512x128xbf16>
    %c2_79 = arith.constant 2 : index
    %c1_80 = arith.constant 1 : index
    %c0_81 = arith.constant 0 : index
    %c0_82 = arith.constant 0 : index
    %116 = vector.load %arg8[%c2_79, %c1_80, %c0_81, %c0_82] : memref<3x3x128x128xbf16, #tpu.memory_space<vmem>>, vector<1x1x128x128xbf16>
    %117 = vector.shape_cast %116 : vector<1x1x128x128xbf16> to vector<128x128xbf16>
    %cst_83 = arith.constant dense<0.000000e+00> : vector<512x128xf32>
    %118 = tpu.matmul %115, %117, %cst_83 {dimension_numbers = #tpu.dot_dimension_numbers<[1], [0], [0], [1], [0, 0, 1, 1], [], []>} : vector<512x128xbf16>, vector<128x128xbf16>, vector<512x128xf32> -> vector<512x128xf32>
    %119 = arith.addf %114, %118 : vector<512x128xf32>
    %120 = vector.shape_cast %109 : vector<64x8x128xbf16> to vector<512x128xbf16>
    %c2_84 = arith.constant 2 : index
    %c2_85 = arith.constant 2 : index
    %c0_86 = arith.constant 0 : index
    %c0_87 = arith.constant 0 : index
    %121 = vector.load %arg8[%c2_84, %c2_85, %c0_86, %c0_87] : memref<3x3x128x128xbf16, #tpu.memory_space<vmem>>, vector<1x1x128x128xbf16>
    %122 = vector.shape_cast %121 : vector<1x1x128x128xbf16> to vector<128x128xbf16>
    %cst_88 = arith.constant dense<0.000000e+00> : vector<512x128xf32>
    %123 = tpu.matmul %120, %122, %cst_88 {dimension_numbers = #tpu.dot_dimension_numbers<[1], [0], [0], [1], [0, 0, 1, 1], [], []>} : vector<512x128xbf16>, vector<128x128xbf16>, vector<512x128xf32> -> vector<512x128xf32>
    %124 = arith.addf %119, %123 : vector<512x128xf32>
    %c0_89 = arith.constant 0 : index
    %c0_90 = arith.constant 0 : index
    %125 = vector.load %arg9[%c0_89, %c0_90] : memref<1x128xf32, #tpu.memory_space<vmem>>, vector<1x128xf32>
    %126 = vector.broadcast %125 : vector<1x128xf32> to vector<512x128xf32>
    %127 = arith.addf %124, %126 : vector<512x128xf32>
    %128 = vector.shape_cast %127 : vector<512x128xf32> to vector<1x64x8x128xf32>
    %129 = arith.truncf %128 : vector<1x64x8x128xf32> to vector<1x64x8x128xbf16>
    %c0_91 = arith.constant 0 : index
    %c0_92 = arith.constant 0 : index
    %c0_93 = arith.constant 0 : index
    %c0_94 = arith.constant 0 : index
    %130 = vector.load %arg10[%c0_91, %c0_92, %c0_93, %c0_94] : memref<1x64x8x128xbf16, #tpu.memory_space<vmem>>, vector<1x64x8x128xbf16>
    tpu.vector_store %arg10[%c0_91, %c0_92, %c0_93, %c0_94], %129 {strides = array<i32>} : memref<1x64x8x128xbf16, #tpu.memory_space<vmem>>, vector<1x64x8x128xbf16>,
    return
  }
  func.func @transform_0(%arg0: i32) -> (i32, i32, i32, i32) {
    %c0_i32 = arith.constant 0 : i32
    %c0_i32_0 = arith.constant 0 : i32
    %c0_i32_1 = arith.constant 0 : i32
    %c0_i32_2 = arith.constant 0 : i32
    return %arg0, %c0_i32, %c0_i32_0, %c0_i32_1 : i32, i32, i32, i32
  }
  func.func @transform_1(%arg0: i32) -> (i32, i32) {
    %c0_i32 = arith.constant 0 : i32
    %c0_i32_0 = arith.constant 0 : i32
    %c0_i32_1 = arith.constant 0 : i32
    return %c0_i32, %c0_i32_0 : i32, i32
  }
  func.func @transform_2(%arg0: i32) -> (i32, i32) {
    %c0_i32 = arith.constant 0 : i32
    %c0_i32_0 = arith.constant 0 : i32
    %c0_i32_1 = arith.constant 0 : i32
    return %c0_i32, %c0_i32_0 : i32, i32
  }
  func.func @transform_3(%arg0: i32) -> (i32, i32) {
    %c0_i32 = arith.constant 0 : i32
    %c0_i32_0 = arith.constant 0 : i32
    %c0_i32_1 = arith.constant 0 : i32
    return %c0_i32, %c0_i32_0 : i32, i32
  }
  func.func @transform_4(%arg0: i32) -> (i32, i32) {
    %c0_i32 = arith.constant 0 : i32
    %c0_i32_0 = arith.constant 0 : i32
    %c0_i32_1 = arith.constant 0 : i32
    return %c0_i32, %c0_i32_0 : i32, i32
  }
  func.func @transform_5(%arg0: i32) -> (i32, i32) {
    %c0_i32 = arith.constant 0 : i32
    %c0_i32_0 = arith.constant 0 : i32
    %c0_i32_1 = arith.constant 0 : i32
    return %c0_i32, %c0_i32_0 : i32, i32
  }
  func.func @transform_6(%arg0: i32) -> (i32, i32) {
    %c0_i32 = arith.constant 0 : i32
    %c0_i32_0 = arith.constant 0 : i32
    %c0_i32_1 = arith.constant 0 : i32
    return %c0_i32, %c0_i32_0 : i32, i32
  }
  func.func @transform_7(%arg0: i32) -> (i32, i32, i32, i32) {
    %c0_i32 = arith.constant 0 : i32
    %c0_i32_0 = arith.constant 0 : i32
    %c0_i32_1 = arith.constant 0 : i32
    %c0_i32_2 = arith.constant 0 : i32
    %c0_i32_3 = arith.constant 0 : i32
    return %c0_i32, %c0_i32_0, %c0_i32_1, %c0_i32_2 : i32, i32, i32, i32
  }
  func.func @transform_8(%arg0: i32) -> (i32, i32) {
    %c0_i32 = arith.constant 0 : i32
    %c0_i32_0 = arith.constant 0 : i32
    %c0_i32_1 = arith.constant 0 : i32
    return %c0_i32, %c0_i32_0 : i32, i32
  }
  func.func @transform_9(%arg0: i32) -> (i32, i32, i32, i32) {
    %c0_i32 = arith.constant 0 : i32
    %c0_i32_0 = arith.constant 0 : i32
    %c0_i32_1 = arith.constant 0 : i32
    %c0_i32_2 = arith.constant 0 : i32
    return %arg0, %c0_i32, %c0_i32_0, %c0_i32_1 : i32, i32, i32, i32
  }
}

</mosaic_0001>

<llo_original>
// kernel: tile.33
$region0: #{tile.33}
  #allocation0 [shape = 's32[1]{0}', space=sflag, size = 0x4, scoped, tag = 'scoped memory for tile.33']
  %s0 = inlined_call_operand.vmem [shape: f32[16], index: 0, kind: input, shape index: {}]
  %s1 = inlined_call_operand.vmem [shape: f32[16,16], index: 1, kind: output, shape index: {}]
  // Predicated region
  $region2: #{tile.33} parent=0 // pred_check
    _
  $region3: #{tile.33} parent=0 // pred_check_branch
    %3 = sbr.rel (0) target = $region5
  $region4: #{tile.33} parent=0 // pred_region
    _
  $region5: #{tile.33} parent=0 // pred_fallthru
    _
  %v4 = vld [vmem:[%s0] ss:$0 sm:$0xff]
  %5 = vst [vmem:[%s1] sm:$0xff] %v4
  %s6 = scalar_lea.vmem %s1, 8
  %7 = vst [vmem:[%s6] sm:$0xff] %v4

// kernel: tile.34
$region0: #{tile.34}
  %s0 = inlined_call_operand.vmem [shape: f32[16,16], index: 0, kind: input, shape index: {}]
  %s1 = inlined_call_operand.hbm [shape: f32[1,256], index: 1, kind: output, shape index: {}]
  $region1: #{tile.34} parent=0
    #allocation0 [shape = 'u8[1024]{0}', space=vmem, size = 0x400, scoped, tag = 'operand span for operand 1']
    #allocation1 [shape = 's32[1]{0}', space=sflag, size = 0x4, scoped, tag = 'scoped memory for tile.34']
    #allocation2 [shape = 'u8[8192]{0}', space=vmem, size = 0x2000, scoped, tag = 'scoped mem for output reshape']
    %2 = vsyncpa [#allocation1], 0
    %s3 = smov 3
    %v4 = vld [vmem:[%s0] ss:$8 sm:%s3]
    %vm5 = vcmask 130048
    %6 = vst.msk [vmem:[#allocation2] ss:$8 sm:$0x3] %vm5, %v4
    %s7 = scalar_lea.vmem %s0, 7
    %s8 = smov 3
    %v9 = vld [vmem:[%s7] ss:$8 sm:%s8]
    %10 = vrot.lane.b32.xlu0 %v9, 112
    %v11 = vpop.permute.xlu0 %10
    %vm12 = vcmask 1048448
    %13 = vst.msk [vmem:[#allocation2] ss:$8 sm:$0x3] %vm12, %v11
    %s14 = scalar_lea.vmem %s0, 6
    %s15 = smov 3
    %v16 = vld [vmem:[%s14] ss:$8 sm:%s15]
    %17 = vrot.lane.b32.xlu0 %v16, 96
    %v18 = vpop.permute.xlu0 %17
    %vm19 = vcmask 917248
    %20 = vst.msk [vmem:[#allocation2] ss:$8 sm:$0x3] %vm19, %v18
    %s21 = scalar_lea.vmem %s0, 5
    %s22 = smov 3
    %v23 = vld [vmem:[%s21] ss:$8 sm:%s22]
    %24 = vrot.lane.b32.xlu0 %v23, 80
    %v25 = vpop.permute.xlu0 %24
    %vm26 = vcmask 786048
    %27 = vst.msk [vmem:[#allocation2] ss:$8 sm:$0x3] %vm26, %v25
    %s28 = scalar_lea.vmem %s0, 4
    %s29 = smov 3
    %v30 = vld [vmem:[%s28] ss:$8 sm:%s29]
    %31 = vrot.lane.b32.xlu0 %v30, 64
    %v32 = vpop.permute.xlu0 %31
    %vm33 = vcmask 654848
    %34 = vst.msk [vmem:[#allocation2] ss:$8 sm:$0x3] %vm33, %v32
    %s35 = scalar_lea.vmem %s0, 3
    %s36 = smov 3
    %v37 = vld [vmem:[%s35] ss:$8 sm:%s36]
    %38 = vrot.lane.b32.xlu0 %v37, 48
    %v39 = vpop.permute.xlu0 %38
    %vm40 = vcmask 523648
    %41 = vst.msk [vmem:[#allocation2] ss:$8 sm:$0x3] %vm40, %v39
    %s42 = scalar_lea.vmem %s0, 2
    %s43 = smov 3
    %v44 = vld [vmem:[%s42] ss:$8 sm:%s43]
    %45 = vrot.lane.b32.xlu0 %v44, 32
    %v46 = vpop.permute.xlu0 %45
    %vm47 = vcmask 392448
    %48 = vst.msk [vmem:[#allocation2] ss:$8 sm:$0x3] %vm47, %v46
    %s49 = scalar_lea.vmem %s0, 1
    %s50 = smov 3
    %v51 = vld [vmem:[%s49] ss:$8 sm:%s50]
    %52 = vrot.lane.b32.xlu0 %v51, 16
    %v53 = vpop.permute.xlu0 %52
    %vm54 = vcmask 261248
    %55 = vst.msk [vmem:[#allocation2] ss:$8 sm:$0x3] %vm54, %v53
    %s57 = sshllo.u32 0, 1
    %v59 = vld [vmem:[#allocation2] sm:%s57]
    %s60 = sshllo.u32 0, 1
    %61 = vst [vmem:[#allocation0] sm:%s60] %v59
    %s62 = scalar_lea.vmem [#allocation2], 8
    %v63 = vld [vmem:[%s62] sm:%s57]
    %s64 = sshllo.u32 0, 1
    %s65 = scalar_lea.vmem [#allocation0], 1
    %66 = vst [vmem:[%s65] sm:%s64] %v63
    %s68 = ssub.s32 32, 32
    %69 = vsyncadd [#allocation1], %s68
    %s71 = sshll.u32 [#allocation0], 4
    %s72 = int_to_ptr.vmem [resolvable:$true] %s71
    %74 = dma.vmem_to_hbm [thread:$0]  %s72, 32, %s1, [#allocation1]
    %75 = dma.done [#allocation1], 32
    %76 = vsyncpa [#allocation1], 1

// kernel: tile.28
$region0: #{tile.28}
  #allocation0 [shape = 's32[1]{0}', space=sflag, size = 0x4, scoped, tag = 'scoped memory for tile.28']
  %s0 = inlined_call_operand.vmem [shape: f32[32], index: 0, kind: input, shape index: {}]
  %s1 = inlined_call_operand.vmem [shape: f32[8,32], index: 1, kind: output, shape index: {}]
  // Predicated region
  $region2: #{tile.28} parent=0 // pred_check
    _
  $region3: #{tile.28} parent=0 // pred_check_branch
    %3 = sbr.rel (0) target = $region5
  $region4: #{tile.28} parent=0 // pred_region
    _
  $region5: #{tile.28} parent=0 // pred_fallthru
    _
  %v4 = vld [vmem:[%s0] ss:$0 sm:$0xff]
  %5 = vst [vmem:[%s1] sm:$0xff] %v4

// kernel: tile.29
$region0: #{tile.29}
  %s0 = inlined_call_operand.vmem [shape: f32[8,32], index: 0, kind: input, shape index: {}]
  %s1 = inlined_call_operand.hbm [shape: f32[1,256], index: 1, kind: output, shape index: {}]
  $region1: #{tile.29} parent=0
    #allocation0 [shape = 'u8[1024]{0}', space=vmem, size = 0x400, scoped, tag = 'operand span for operand 1']
    #allocation1 [shape = 's32[1]{0}', space=sflag, size = 0x4, scoped, tag = 'scoped memory for tile.29']
    #allocation2 [shape = 'u8[8192]{0}', space=vmem, size = 0x2000, scoped, tag = 'scoped mem for output reshape']
    %2 = vsyncpa [#allocation1], 0
    %s3 = smov 3
    %v4 = vld [vmem:[%s0] ss:$4 sm:%s3]
    %vm5 = vcmask 261120
    %6 = vst.msk [vmem:[#allocation2] ss:$8 sm:$0x3] %vm5, %v4
    %s7 = scalar_lea.vmem %s0, 3
    %s8 = smov 3
    %v9 = vld [vmem:[%s7] ss:$4 sm:%s8]
    %10 = vrot.lane.b32.xlu0 %v9, 96
    %v11 = vpop.permute.xlu0 %10
    %vm12 = vcmask 1048320
    %13 = vst.msk [vmem:[#allocation2] ss:$8 sm:$0x3] %vm12, %v11
    %s14 = scalar_lea.vmem %s0, 2
    %s15 = smov 3
    %v16 = vld [vmem:[%s14] ss:$4 sm:%s15]
    %17 = vrot.lane.b32.xlu0 %v16, 64
    %v18 = vpop.permute.xlu0 %17
    %vm19 = vcmask 785920
    %20 = vst.msk [vmem:[#allocation2] ss:$8 sm:$0x3] %vm19, %v18
    %s21 = scalar_lea.vmem %s0, 1
    %s22 = smov 3
    %v23 = vld [vmem:[%s21] ss:$4 sm:%s22]
    %24 = vrot.lane.b32.xlu0 %v23, 32
    %v25 = vpop.permute.xlu0 %24
    %vm26 = vcmask 523520
    %27 = vst.msk [vmem:[#allocation2] ss:$8 sm:$0x3] %vm26, %v25
    %s29 = sshllo.u32 0, 1
    %v31 = vld [vmem:[#allocation2] sm:%s29]
    %s32 = sshllo.u32 0, 1
    %33 = vst [vmem:[#allocation0] sm:%s32] %v31
    %s34 = scalar_lea.vmem [#allocation2], 8
    %v35 = vld [vmem:[%s34] sm:%s29]
    %s36 = sshllo.u32 0, 1
    %s37 = scalar_lea.vmem [#allocation0], 1
    %38 = vst [vmem:[%s37] sm:%s36] %v35
    %s40 = ssub.s32 32, 32
    %41 = vsyncadd [#allocation1], %s40
    %s43 = sshll.u32 [#allocation0], 4
    %s44 = int_to_ptr.vmem [resolvable:$true] %s43
    %46 = dma.vmem_to_hbm [thread:$0]  %s44, 32, %s1, [#allocation1]
    %47 = dma.done [#allocation1], 32
    %48 = vsyncpa [#allocation1], 1

// kernel: tile.38
$region0: #{tile.38}
  #allocation0 [shape = 's32[1]{0}', space=sflag, size = 0x4, scoped, tag = 'scoped memory for tile.38']
  %s0 = inlined_call_operand.vmem [shape: f32[16], index: 0, kind: input, shape index: {}]
  %s1 = inlined_call_operand.vmem [shape: f32[8,16], index: 1, kind: output, shape index: {}]
  // Predicated region
  $region2: #{tile.38} parent=0 // pred_check
    _
  $region3: #{tile.38} parent=0 // pred_check_branch
    %3 = sbr.rel (0) target = $region5
  $region4: #{tile.38} parent=0 // pred_region
    _
  $region5: #{tile.38} parent=0 // pred_fallthru
    _
  %v4 = vld [vmem:[%s0] ss:$0 sm:$0xff]
  %5 = vst [vmem:[%s1] sm:$0xff] %v4

// kernel: tile.39
$region0: #{tile.39}
  %s0 = inlined_call_operand.vmem [shape: f32[8,16], index: 0, kind: input, shape index: {}]
  %s1 = inlined_call_operand.hbm [shape: f32[1,128], index: 1, kind: output, shape index: {}]
  $region1: #{tile.39} parent=0
    #allocation0 [shape = 'u8[512]{0}', space=vmem, size = 0x400, scoped, tag = 'operand span for operand 1']
    #allocation1 [shape = 's32[1]{0}', space=sflag, size = 0x4, scoped, tag = 'scoped memory for tile.39']
    #allocation2 [shape = 'u8[4096]{0}', space=vmem, size = 0x1000, scoped, tag = 'scoped mem for output reshape']
    %2 = vsyncpa [#allocation1], 0
    %v3 = vld [vmem:[%s0] sm:$0x1]
    %vm4 = vcmask 130048
    %5 = vst.msk [vmem:[#allocation2] sm:$0x1] %vm4, %v3
    %s6 = scalar_lea.vmem %s0, 7
    %v7 = vld [vmem:[%s6] sm:$0x1]
    %8 = vrot.lane.b32.xlu0 %v7, 112
    %v9 = vpop.permute.xlu0 %8
    %vm10 = vcmask 1048448
    %11 = vst.msk [vmem:[#allocation2] sm:$0x1] %vm10, %v9
    %s12 = scalar_lea.vmem %s0, 6
    %v13 = vld [vmem:[%s12] sm:$0x1]
    %14 = vrot.lane.b32.xlu0 %v13, 96
    %v15 = vpop.permute.xlu0 %14
    %vm16 = vcmask 917248
    %17 = vst.msk [vmem:[#allocation2] sm:$0x1] %vm16, %v15
    %s18 = scalar_lea.vmem %s0, 5
    %v19 = vld [vmem:[%s18] sm:$0x1]
    %20 = vrot.lane.b32.xlu0 %v19, 80
    %v21 = vpop.permute.xlu0 %20
    %vm22 = vcmask 786048
    %23 = vst.msk [vmem:[#allocation2] sm:$0x1] %vm22, %v21
    %s24 = scalar_lea.vmem %s0, 4
    %v25 = vld [vmem:[%s24] sm:$0x1]
    %26 = vrot.lane.b32.xlu0 %v25, 64
    %v27 = vpop.permute.xlu0 %26
    %vm28 = vcmask 654848
    %29 = vst.msk [vmem:[#allocation2] sm:$0x1] %vm28, %v27
    %s30 = scalar_lea.vmem %s0, 3
    %v31 = vld [vmem:[%s30] sm:$0x1]
    %32 = vrot.lane.b32.xlu0 %v31, 48
    %v33 = vpop.permute.xlu0 %32
    %vm34 = vcmask 523648
    %35 = vst.msk [vmem:[#allocation2] sm:$0x1] %vm34, %v33
    %s36 = scalar_lea.vmem %s0, 2
    %v37 = vld [vmem:[%s36] sm:$0x1]
    %38 = vrot.lane.b32.xlu0 %v37, 32
    %v39 = vpop.permute.xlu0 %38
    %vm40 = vcmask 392448
    %41 = vst.msk [vmem:[#allocation2] sm:$0x1] %vm40, %v39
    %s42 = scalar_lea.vmem %s0, 1
    %v43 = vld [vmem:[%s42] sm:$0x1]
    %44 = vrot.lane.b32.xlu0 %v43, 16
    %v45 = vpop.permute.xlu0 %44
    %vm46 = vcmask 261248
    %47 = vst.msk [vmem:[#allocation2] sm:$0x1] %vm46, %v45
    %s49 = sshllo.u32 0, 1
    %v51 = vld [vmem:[#allocation2] sm:%s49]
    %s52 = sshllo.u32 0, 1
    %53 = vst [vmem:[#allocation0] sm:%s52] %v51
    %s55 = ssub.s32 16, 16
    %56 = vsyncadd [#allocation1], %s55
    %s58 = sshll.u32 [#allocation0], 4
    %s59 = int_to_ptr.vmem [resolvable:$true] %s58
    %61 = dma.vmem_to_hbm [thread:$0]  %s59, 16, %s1, [#allocation1]
    %62 = dma.done [#allocation1], 16
    %63 = vsyncpa [#allocation1], 1

// kernel: tile.23
$region0: #{tile.23}
  #allocation0 [shape = 's32[1]{0}', space=sflag, size = 0x4, scoped, tag = 'scoped memory for tile.23']
  %s0 = inlined_call_operand.vmem [shape: f32[64], index: 0, kind: input, shape index: {}]
  %s1 = inlined_call_operand.vmem [shape: f32[4,64], index: 1, kind: output, shape index: {}]
  // Predicated region
  $region2: #{tile.23} parent=0 // pred_check
    _
  $region3: #{tile.23} parent=0 // pred_check_branch
    %3 = sbr.rel (0) target = $region5
  $region4: #{tile.23} parent=0 // pred_region
    _
  $region5: #{tile.23} parent=0 // pred_fallthru
    _
  %v4 = vld [vmem:[%s0] ss:$0 sm:$0xff]
  %5 = vst [vmem:[%s1] sm:$0xf] %v4

// kernel: tile.24
$region0: #{tile.24}
  %s0 = inlined_call_operand.vmem [shape: f32[4,64], index: 0, kind: input, shape index: {}]
  %s1 = inlined_call_operand.hbm [shape: f32[1,256], index: 1, kind: output, shape index: {}]
  $region1: #{tile.24} parent=0
    #allocation0 [shape = 'u8[1024]{0}', space=vmem, size = 0x400, scoped, tag = 'operand span for operand 1']
    #allocation1 [shape = 's32[1]{0}', space=sflag, size = 0x4, scoped, tag = 'scoped memory for tile.24']
    #allocation2 [shape = 'u8[8192]{0}', space=vmem, size = 0x2000, scoped, tag = 'scoped mem for output reshape']
    #allocation3 [shape = 'u8[4096]{0}', space=vmem, size = 0x1000, scoped, tag = 'scoped mem for input reshape']
    %2 = vsyncpa [#allocation1], 0
    %s4 = sshllo.u32 0, 4
    %v5 = vld [vmem:[%s0] sm:%s4]
    %6 = vst [vmem:[#allocation3] sm:%s4] %v5
    %s7 = smov 3
    %v8 = vld [vmem:[#allocation3] ss:$2 sm:%s7]
    %vm9 = vcmask 523264
    %10 = vst.msk [vmem:[#allocation2] ss:$8 sm:$0x3] %vm9, %v8
    %s11 = scalar_lea.vmem [#allocation3], 1
    %s12 = smov 3
    %v13 = vld [vmem:[%s11] ss:$2 sm:%s12]
    %14 = vrot.lane.b32.xlu0 %v13, 64
    %v15 = vpop.permute.xlu0 %14
    %vm16 = vcmask 1048064
    %17 = vst.msk [vmem:[#allocation2] ss:$8 sm:$0x3] %vm16, %v15
    %s19 = sshllo.u32 0, 1
    %v21 = vld [vmem:[#allocation2] sm:%s19]
    %s22 = sshllo.u32 0, 1
    %23 = vst [vmem:[#allocation0] sm:%s22] %v21
    %s24 = scalar_lea.vmem [#allocation2], 8
    %v25 = vld [vmem:[%s24] sm:%s19]
    %s26 = sshllo.u32 0, 1
    %s27 = scalar_lea.vmem [#allocation0], 1
    %28 = vst [vmem:[%s27] sm:%s26] %v25
    %s30 = ssub.s32 32, 32
    %31 = vsyncadd [#allocation1], %s30
    %s33 = sshll.u32 [#allocation0], 4
    %s34 = int_to_ptr.vmem [resolvable:$true] %s33
    %36 = dma.vmem_to_hbm [thread:$0]  %s34, 32, %s1, [#allocation1]
    %37 = dma.done [#allocation1], 32
    %38 = vsyncpa [#allocation1], 1

// kernel: vit_decoder_forward.1
$region0: #{vit_decoder_forward.1}
  #allocation0 [shape = 'u32[]', space=smem, size = 0x4, offset = 0x4, fixed_abs, tag = 'smem constant byte address 0x4 - core index']
  #allocation1 [shape = 'u32[144,128]{1,0:T(1,128)}', space=vmem, size = 0x12000, scoped, tag = 'internal scratch']
  #allocation2 [shape = 'bf16[1,66,8,128]{3,2,1,0:T(8,128)(2,1)}', space=vmem, size = 0x21000, scoped, tag = 'scratch operand']
  %s0 = inlined_call_operand.hbm [shape: bf16[2,8,8,64], index: 0, kind: input, shape index: {}]
  %s1 = inlined_call_operand.hbm [shape: bf16[64,256], index: 1, kind: input, shape index: {}]
  %s2 = inlined_call_operand.hbm [shape: f32[1,256], index: 2, kind: input, shape index: {}]
  %s3 = inlined_call_operand.hbm [shape: bf16[128,256], index: 3, kind: input, shape index: {}]
  %s4 = inlined_call_operand.hbm [shape: f32[1,256], index: 4, kind: input, shape index: {}]
  %s5 = inlined_call_operand.hbm [shape: bf16[128,256], index: 5, kind: input, shape index: {}]
  %s6 = inlined_call_operand.hbm [shape: f32[1,256], index: 6, kind: input, shape index: {}]
  %s7 = inlined_call_operand.hbm [shape: bf16[3,3,128,128], index: 7, kind: input, shape index: {}]
  %s8 = inlined_call_operand.hbm [shape: f32[1,128], index: 8, kind: input, shape index: {}]
  %s9 = inlined_call_operand.hbm [shape: bf16[2,64,8,128], index: 9, kind: output, shape index: {}]
  %s10 = sld [smem:[#allocation0]]
  $region105: #{vit_decoder_forward.1} parent=0
    _
  %s12 = ssub.s32 1, %s10
  %s13 = scalar_select 0, %s12, %s10
  $region1: #{vit_decoder_forward.1} parent=0
    #allocation3 [shape = 'u8[32768]{0}', space=vmem, size = 0x8000, scoped, tag = 'input window, operand 0']
    #allocation4 [shape = 's32[2]{0}', space=sflag, size = 0x8, scoped, tag = 'scoped memory for vit_decoder_forward.1']
    #allocation5 [shape = 's32[2]{0}', space=sflag, size = 0x8, scoped, tag = 'scoped memory for vit_decoder_forward.1']
    #allocation6 [shape = 'u8[32768]{0}', space=vmem, size = 0x8000, scoped, tag = 'input window, operand 1, single buffered']
    #allocation7 [shape = 's32[1]{0}', space=sflag, size = 0x4, scoped, tag = 'scoped memory for vit_decoder_forward.1']
    #allocation8 [shape = 'u8[1024]{0}', space=vmem, size = 0x400, scoped, tag = 'input window, operand 2, single buffered']
    #allocation9 [shape = 'u8[65536]{0}', space=vmem, size = 0x10000, scoped, tag = 'input window, operand 3, single buffered']
    #allocation10 [shape = 's32[1]{0}', space=sflag, size = 0x4, scoped, tag = 'scoped memory for vit_decoder_forward.1']
    #allocation11 [shape = 'u8[1024]{0}', space=vmem, size = 0x400, scoped, tag = 'input window, operand 4, single buffered']
    #allocation12 [shape = 'u8[65536]{0}', space=vmem, size = 0x10000, scoped, tag = 'input window, operand 5, single buffered']
    #allocation13 [shape = 's32[1]{0}', space=sflag, size = 0x4, scoped, tag = 'scoped memory for vit_decoder_forward.1']
    #allocation14 [shape = 'u8[1024]{0}', space=vmem, size = 0x400, scoped, tag = 'input window, operand 6, single buffered']
    #allocation15 [shape = 'u8[294912]{0}', space=vmem, size = 0x48000, scoped, tag = 'input window, operand 7, single buffered']
    #allocation16 [shape = 's32[1]{0}', space=sflag, size = 0x4, scoped, tag = 'scoped memory for vit_decoder_forward.1']
    #allocation17 [shape = 'u8[512]{0}', space=vmem, size = 0x400, scoped, tag = 'input window, operand 8, single buffered']
    #allocation18 [shape = 'u8[262144]{0}', space=vmem, size = 0x40000, scoped, tag = 'output window, operand 0']
    %14 = vsyncpa [#allocation4], 0
    %s15 = scalar_lea.sflag [#allocation4], 1
    %16 = vsyncpa %s15, 0
    %17 = vsyncpa [#allocation7], 0
    %18 = vsyncpa [#allocation10], 0
    %19 = vsyncpa [#allocation13], 0
    %20 = vsyncpa [#allocation16], 0
    %21 = vsyncpa [#allocation5], 0
    %s22 = scalar_lea.sflag [#allocation5], 1
    %23 = vsyncpa %s22, 0
    loop: start=0, step=1, limit=4
    $region2: #{vit_decoder_forward.1} parent=1 // loop_pre_header
      _
    $region3: #{vit_decoder_forward.1} parent=1 // loop_header
      %s25 = sphi 0, %s29
      %p26 = scmp.ge.s32.totalorder %s25, 4
      %s35 = sphi 0, %s37
      %s38 = sphi 0, %s35
      %s39 = sphi 0, %s38
      %s55 = sphi 0, %s39
      %s59 = sphi 0, %s59
      %s61 = sphi 0, %s59
      %s62 = sphi 0, %s61
      %s76 = sphi 0, %s62
      %s80 = sphi 0, %s80
      %s82 = sphi 0, %s80
      %s83 = sphi 0, %s82
      %s97 = sphi 0, %s83
      %s101 = sphi 0, %s101
      %s103 = sphi 0, %s101
      %s104 = sphi 0, %s103
      %s118 = sphi 0, %s104
      %s122 = sphi 0, %s122
      %s124 = sphi 0, %s122
      %s125 = sphi 0, %s124
      %s139 = sphi 0, %s125
      %s143 = sphi 0, %s143
      %s145 = sphi 0, %s143
      %s146 = sphi 0, %s145
      %s160 = sphi 0, %s146
      %s164 = sphi 0, %s164
      %s166 = sphi 0, %s164
      %s167 = sphi 0, %s166
      %s181 = sphi 0, %s167
      %s185 = sphi 0, %s185
      %s187 = sphi 0, %s185
      %s188 = sphi 0, %s187
      %s202 = sphi 0, %s188
      %s206 = sphi 0, %s206
      %s208 = sphi 0, %s206
      %s209 = sphi 0, %s208
      %s223 = sphi 0, %s209
      %s229 = sphi 0, %s231
      %s232 = sphi 0, %s229
      %s233 = sphi 0, %s232
      %s249 = sphi 0, %s233
    $region4: #{vit_decoder_forward.1} parent=1 // loop_header_branch
      %28 = sbr.rel (%p26) target = $region8
    $region5: #{vit_decoder_forward.1} parent=1 // loop_body
      %s30 = ssub.s32 %s25, 1
      %s31 = ssub.s32 %s25, 2
      %s32 = sadd.s32 %s25, 1
      %s33 = ssub.s32 %s25, %s32
      %p34 = scmp.eq.s32.totalorder %s33, 0
      %s36 = sadd.s32 %s35, 1
      %s37 = scalar_select %p34, %s35, %s36
      %p40 = pneg %p34
      %p41 = scmp.eq.s32.totalorder %s25, 1
      %p42 = por %p40, %p41
      %p43 = scmp.ne.s32.totalorder %s35, %s38
      %p44 = scmp.eq.s32.totalorder %s25, 0
      %p45 = por %p43, %p44
      %p46 = scmp.ne.s32.totalorder %s35, %s38
      %p47 = scmp.eq.s32.totalorder %s30, 1
      %p48 = por %p46, %p47
      %p49 = scmp.ne.s32.totalorder %s38, %s39
      %p50 = scmp.eq.s32.totalorder %s30, 0
      %p51 = por %p49, %p50
      %p52 = scmp.ne.s32.totalorder %s38, %s39
      %p53 = scmp.eq.s32.totalorder %s31, 1
      %p54 = por %p52, %p53
      %p56 = scmp.ne.s32.totalorder %s39, %s55
      %p57 = scmp.eq.s32.totalorder %s31, 0
      %p58 = por %p56, %p57
      %s60 = sadd.s32 %s59, 1
      %p63 = scmp.eq.s32.totalorder %s25, 1
      %p64 = scmp.ne.s32.totalorder %s59, %s61
      %p65 = scmp.eq.s32.totalorder %s25, 0
      %p66 = por %p64, %p65
      %p67 = scmp.ne.s32.totalorder %s59, %s61
      %p68 = scmp.eq.s32.totalorder %s30, 1
      %p69 = por %p67, %p68
      %p70 = scmp.ne.s32.totalorder %s61, %s62
      %p71 = scmp.eq.s32.totalorder %s30, 0
      %p72 = por %p70, %p71
      %p73 = scmp.ne.s32.totalorder %s61, %s62
      %p74 = scmp.eq.s32.totalorder %s31, 1
      %p75 = por %p73, %p74
      %p77 = scmp.ne.s32.totalorder %s62, %s76
      %p78 = scmp.eq.s32.totalorder %s31, 0
      %p79 = por %p77, %p78
      %s81 = sadd.s32 %s80, 1
      %p84 = scmp.eq.s32.totalorder %s25, 1
      %p85 = scmp.ne.s32.totalorder %s80, %s82
      %p86 = scmp.eq.s32.totalorder %s25, 0
      %p87 = por %p85, %p86
      %p88 = scmp.ne.s32.totalorder %s80, %s82
      %p89 = scmp.eq.s32.totalorder %s30, 1
      %p90 = por %p88, %p89
      %p91 = scmp.ne.s32.totalorder %s82, %s83
      %p92 = scmp.eq.s32.totalorder %s30, 0
      %p93 = por %p91, %p92
      %p94 = scmp.ne.s32.totalorder %s82, %s83
      %p95 = scmp.eq.s32.totalorder %s31, 1
      %p96 = por %p94, %p95
      %p98 = scmp.ne.s32.totalorder %s83, %s97
      %p99 = scmp.eq.s32.totalorder %s31, 0
      %p100 = por %p98, %p99
      %s102 = sadd.s32 %s101, 1
      %p105 = scmp.eq.s32.totalorder %s25, 1
      %p106 = scmp.ne.s32.totalorder %s101, %s103
      %p107 = scmp.eq.s32.totalorder %s25, 0
      %p108 = por %p106, %p107
      %p109 = scmp.ne.s32.totalorder %s101, %s103
      %p110 = scmp.eq.s32.totalorder %s30, 1
      %p111 = por %p109, %p110
      %p112 = scmp.ne.s32.totalorder %s103, %s104
      %p113 = scmp.eq.s32.totalorder %s30, 0
      %p114 = por %p112, %p113
      %p115 = scmp.ne.s32.totalorder %s103, %s104
      %p116 = scmp.eq.s32.totalorder %s31, 1
      %p117 = por %p115, %p116
      %p119 = scmp.ne.s32.totalorder %s104, %s118
      %p120 = scmp.eq.s32.totalorder %s31, 0
      %p121 = por %p119, %p120
      %s123 = sadd.s32 %s122, 1
      %p126 = scmp.eq.s32.totalorder %s25, 1
      %p127 = scmp.ne.s32.totalorder %s122, %s124
      %p128 = scmp.eq.s32.totalorder %s25, 0
      %p129 = por %p127, %p128
      %p130 = scmp.ne.s32.totalorder %s122, %s124
      %p131 = scmp.eq.s32.totalorder %s30, 1
      %p132 = por %p130, %p131
      %p133 = scmp.ne.s32.totalorder %s124, %s125
      %p134 = scmp.eq.s32.totalorder %s30, 0
      %p135 = por %p133, %p134
      %p136 = scmp.ne.s32.totalorder %s124, %s125
      %p137 = scmp.eq.s32.totalorder %s31, 1
      %p138 = por %p136, %p137
      %p140 = scmp.ne.s32.totalorder %s125, %s139
      %p141 = scmp.eq.s32.totalorder %s31, 0
      %p142 = por %p140, %p141
      %s144 = sadd.s32 %s143, 1
      %p147 = scmp.eq.s32.totalorder %s25, 1
      %p148 = scmp.ne.s32.totalorder %s143, %s145
      %p149 = scmp.eq.s32.totalorder %s25, 0
      %p150 = por %p148, %p149
      %p151 = scmp.ne.s32.totalorder %s143, %s145
      %p152 = scmp.eq.s32.totalorder %s30, 1
      %p153 = por %p151, %p152
      %p154 = scmp.ne.s32.totalorder %s145, %s146
      %p155 = scmp.eq.s32.totalorder %s30, 0
      %p156 = por %p154, %p155
      %p157 = scmp.ne.s32.totalorder %s145, %s146
      %p158 = scmp.eq.s32.totalorder %s31, 1
      %p159 = por %p157, %p158
      %p161 = scmp.ne.s32.totalorder %s146, %s160
      %p162 = scmp.eq.s32.totalorder %s31, 0
      %p163 = por %p161, %p162
      %s165 = sadd.s32 %s164, 1
      %p168 = scmp.eq.s32.totalorder %s25, 1
      %p169 = scmp.ne.s32.totalorder %s164, %s166
      %p170 = scmp.eq.s32.totalorder %s25, 0
      %p171 = por %p169, %p170
      %p172 = scmp.ne.s32.totalorder %s164, %s166
      %p173 = scmp.eq.s32.totalorder %s30, 1
      %p174 = por %p172, %p173
      %p175 = scmp.ne.s32.totalorder %s166, %s167
      %p176 = scmp.eq.s32.totalorder %s30, 0
      %p177 = por %p175, %p176
      %p178 = scmp.ne.s32.totalorder %s166, %s167
      %p179 = scmp.eq.s32.totalorder %s31, 1
      %p180 = por %p178, %p179
      %p182 = scmp.ne.s32.totalorder %s167, %s181
      %p183 = scmp.eq.s32.totalorder %s31, 0
      %p184 = por %p182, %p183
      %s186 = sadd.s32 %s185, 1
      %p189 = scmp.eq.s32.totalorder %s25, 1
      %p190 = scmp.ne.s32.totalorder %s185, %s187
      %p191 = scmp.eq.s32.totalorder %s25, 0
      %p192 = por %p190, %p191
      %p193 = scmp.ne.s32.totalorder %s185, %s187
      %p194 = scmp.eq.s32.totalorder %s30, 1
      %p195 = por %p193, %p194
      %p196 = scmp.ne.s32.totalorder %s187, %s188
      %p197 = scmp.eq.s32.totalorder %s30, 0
      %p198 = por %p196, %p197
      %p199 = scmp.ne.s32.totalorder %s187, %s188
      %p200 = scmp.eq.s32.totalorder %s31, 1
      %p201 = por %p199, %p200
      %p203 = scmp.ne.s32.totalorder %s188, %s202
      %p204 = scmp.eq.s32.totalorder %s31, 0
      %p205 = por %p203, %p204
      %s207 = sadd.s32 %s206, 1
      %p210 = scmp.eq.s32.totalorder %s25, 1
      %p211 = scmp.ne.s32.totalorder %s206, %s208
      %p212 = scmp.eq.s32.totalorder %s25, 0
      %p213 = por %p211, %p212
      %p214 = scmp.ne.s32.totalorder %s206, %s208
      %p215 = scmp.eq.s32.totalorder %s30, 1
      %p216 = por %p214, %p215
      %p217 = scmp.ne.s32.totalorder %s208, %s209
      %p218 = scmp.eq.s32.totalorder %s30, 0
      %p219 = por %p217, %p218
      %p220 = scmp.ne.s32.totalorder %s208, %s209
      %p221 = scmp.eq.s32.totalorder %s31, 1
      %p222 = por %p220, %p221
      %p224 = scmp.ne.s32.totalorder %s209, %s223
      %p225 = scmp.eq.s32.totalorder %s31, 0
      %p226 = por %p224, %p225
      %s227 = ssub.s32 %s25, %s32
      %p228 = scmp.eq.s32.totalorder %s227, 0
      %s230 = sadd.s32 %s229, 1
      %s231 = scalar_select %p228, %s229, %s230
      %p234 = pneg %p228
      %p235 = scmp.eq.s32.totalorder %s25, 1
      %p236 = por %p234, %p235
      %p237 = scmp.ne.s32.totalorder %s229, %s232
      %p238 = scmp.eq.s32.totalorder %s25, 0
      %p239 = por %p237, %p238
      %p240 = scmp.ne.s32.totalorder %s229, %s232
      %p241 = scmp.eq.s32.totalorder %s30, 1
      %p242 = por %p240, %p241
      %p243 = scmp.ne.s32.totalorder %s232, %s233
      %p244 = scmp.eq.s32.totalorder %s30, 0
      %p245 = por %p243, %p244
      %p246 = scmp.ne.s32.totalorder %s232, %s233
      %p247 = scmp.eq.s32.totalorder %s31, 1
      %p248 = por %p246, %p247
      %p250 = scmp.ne.s32.totalorder %s233, %s249
      %p251 = scmp.eq.s32.totalorder %s31, 0
      %p252 = por %p250, %p251
      %p253 = scmp.le.s32.totalorder 1, %s25
      %p254 = scmp.lt.s32.totalorder %s25, 3
      %p255 = pnand %p253, %p254
      %p256 = pneg %p255
      // Predicated region
      $region9: #{vit_decoder_forward.1} parent=5 // pred_check
        _
      $region10: #{vit_decoder_forward.1} parent=5 // pred_check_branch
        %258 = sbr.rel (%p255) target = $region12
      $region11: #{vit_decoder_forward.1} parent=5 // pred_region
        %s259 = ssub.s32 %s25, 1
        // Predicated region
        $region13: #{vit_decoder_forward.1} parent=11 // pred_check
          %p260 = pneg %p72
        $region14: #{vit_decoder_forward.1} parent=11 // pred_check_branch
          %262 = sbr.rel (%p260) target = $region16
        $region15: #{vit_decoder_forward.1} parent=11 // pred_region
          %s264 = ssub.s32 1024, 1024
          %265 = vsyncadd [#allocation7], %s264
          %s266 = sshll.u32 [#allocation6], 4
          %s267 = int_to_ptr.vmem [resolvable:$true] %s266
          %272 = dma.hbm_to_vmem [thread:$0]  %s1, 1024, %s267, [#allocation7], 128, 128, 8
        $region16: #{vit_decoder_forward.1} parent=11 // pred_fallthru
          _
        // Predicated region
        $region17: #{vit_decoder_forward.1} parent=11 // pred_check
          %p273 = pneg %p93
        $region18: #{vit_decoder_forward.1} parent=11 // pred_check_branch
          %275 = sbr.rel (%p273) target = $region20
        $region19: #{vit_decoder_forward.1} parent=11 // pred_region
          %s277 = ssub.s32 32, 32
          %278 = vsyncadd [#allocation7], %s277
          %s280 = sshll.u32 [#allocation8], 4
          %s281 = int_to_ptr.vmem [resolvable:$true] %s280
          %283 = dma.hbm_to_vmem [thread:$0]  %s2, 32, %s281, [#allocation7]
        $region20: #{vit_decoder_forward.1} parent=11 // pred_fallthru
          _
        // Predicated region
        $region21: #{vit_decoder_forward.1} parent=11 // pred_check
          %p284 = pneg %p114
        $region22: #{vit_decoder_forward.1} parent=11 // pred_check_branch
          %286 = sbr.rel (%p284) target = $region24
        $region23: #{vit_decoder_forward.1} parent=11 // pred_region
          %s288 = ssub.s32 2048, 2048
          %289 = vsyncadd [#allocation10], %s288
          %s290 = sshll.u32 [#allocation9], 4
          %s291 = int_to_ptr.vmem [resolvable:$true] %s290
          %296 = dma.hbm_to_vmem [thread:$0]  %s3, 2048, %s291, [#allocation10], 128, 128, 8
        $region24: #{vit_decoder_forward.1} parent=11 // pred_fallthru
          _
        // Predicated region
        $region25: #{vit_decoder_forward.1} parent=11 // pred_check
          %p297 = pneg %p135
        $region26: #{vit_decoder_forward.1} parent=11 // pred_check_branch
          %299 = sbr.rel (%p297) target = $region28
        $region27: #{vit_decoder_forward.1} parent=11 // pred_region
          %s301 = ssub.s32 32, 32
          %302 = vsyncadd [#allocation10], %s301
          %s304 = sshll.u32 [#allocation11], 4
          %s305 = int_to_ptr.vmem [resolvable:$true] %s304
          %307 = dma.hbm_to_vmem [thread:$0]  %s4, 32, %s305, [#allocation10]
        $region28: #{vit_decoder_forward.1} parent=11 // pred_fallthru
          _
        // Predicated region
        $region29: #{vit_decoder_forward.1} parent=11 // pred_check
          %p308 = pneg %p156
        $region30: #{vit_decoder_forward.1} parent=11 // pred_check_branch
          %310 = sbr.rel (%p308) target = $region32
        $region31: #{vit_decoder_forward.1} parent=11 // pred_region
          %s312 = ssub.s32 2048, 2048
          %313 = vsyncadd [#allocation13], %s312
          %s314 = sshll.u32 [#allocation12], 4
          %s315 = int_to_ptr.vmem [resolvable:$true] %s314
          %320 = dma.hbm_to_vmem [thread:$0]  %s5, 2048, %s315, [#allocation13], 128, 128, 8
        $region32: #{vit_decoder_forward.1} parent=11 // pred_fallthru
          _
        // Predicated region
        $region33: #{vit_decoder_forward.1} parent=11 // pred_check
          %p321 = pneg %p177
        $region34: #{vit_decoder_forward.1} parent=11 // pred_check_branch
          %323 = sbr.rel (%p321) target = $region36
        $region35: #{vit_decoder_forward.1} parent=11 // pred_region
          %s325 = ssub.s32 32, 32
          %326 = vsyncadd [#allocation13], %s325
          %s328 = sshll.u32 [#allocation14], 4
          %s329 = int_to_ptr.vmem [resolvable:$true] %s328
          %331 = dma.hbm_to_vmem [thread:$0]  %s6, 32, %s329, [#allocation13]
        $region36: #{vit_decoder_forward.1} parent=11 // pred_fallthru
          _
        // Predicated region
        $region37: #{vit_decoder_forward.1} parent=11 // pred_check
          %p332 = pneg %p198
        $region38: #{vit_decoder_forward.1} parent=11 // pred_check_branch
          %334 = sbr.rel (%p332) target = $region40
        $region39: #{vit_decoder_forward.1} parent=11 // pred_region
          %s336 = ssub.s32 9216, 9216
          %337 = vsyncadd [#allocation16], %s336
          %s338 = sshll.u32 [#allocation15], 4
          %s339 = int_to_ptr.vmem [resolvable:$true] %s338
          %344 = dma.hbm_to_vmem [thread:$0]  %s7, 9216, %s339, [#allocation16], 64, 64, 4
        $region40: #{vit_decoder_forward.1} parent=11 // pred_fallthru
          _
        // Predicated region
        $region41: #{vit_decoder_forward.1} parent=11 // pred_check
          %p345 = pneg %p219
        $region42: #{vit_decoder_forward.1} parent=11 // pred_check_branch
          %347 = sbr.rel (%p345) target = $region44
        $region43: #{vit_decoder_forward.1} parent=11 // pred_region
          %s349 = ssub.s32 16, 16
          %350 = vsyncadd [#allocation16], %s349
          %s352 = sshll.u32 [#allocation17], 4
          %s353 = int_to_ptr.vmem [resolvable:$true] %s352
          %355 = dma.hbm_to_vmem [thread:$0]  %s8, 16, %s353, [#allocation16]
        $region44: #{vit_decoder_forward.1} parent=11 // pred_fallthru
          _
      $region12: #{vit_decoder_forward.1} parent=5 // pred_fallthru
        _
      %p356 = scmp.lt.s32.totalorder %s25, 2
      // Predicated region
      $region45: #{vit_decoder_forward.1} parent=5 // pred_check
        %p357 = pneg %p356
      $region46: #{vit_decoder_forward.1} parent=5 // pred_check_branch
        %359 = sbr.rel (%p357) target = $region48
      $region47: #{vit_decoder_forward.1} parent=5 // pred_region
        // Predicated region
        $region49: #{vit_decoder_forward.1} parent=47 // pred_check
          %p360 = pneg %p45
        $region50: #{vit_decoder_forward.1} parent=47 // pred_check_branch
          %362 = sbr.rel (%p360) target = $region52
        $region51: #{vit_decoder_forward.1} parent=47 // pred_region
          %s363 = sand.u32 %s35, 1
          %s364 = scalar_lea.sflag [#allocation4], %s363
          %s365 = sand.u32 %s35, 1
          %s366 = smul.addr %s365, 32
          %s367 = scalar_lea.vmem [#allocation3], %s366
          %s369 = ssub.s32 512, 512
          %370 = vsyncadd %s364, %s369
          %s371 = smul.addr %s25, 8
          %s372 = smul.addr %s371, 64
          %s373 = scalar_lea.hbm %s0, %s372
          %s374 = sshll.u32 %s367, 4
          %s375 = int_to_ptr.vmem [resolvable:$true] %s374
          %380 = dma.hbm_to_vmem [thread:$0]  %s373, 512, %s375, %s364, 64, 64, 4
        $region52: #{vit_decoder_forward.1} parent=47 // pred_fallthru
          _
      $region48: #{vit_decoder_forward.1} parent=5 // pred_fallthru
        _
      %p381 = scmp.le.s32.totalorder 1, %s25
      %p382 = scmp.lt.s32.totalorder %s25, 3
      %p383 = pnand %p381, %p382
      %p384 = pneg %p383
      // Predicated region
      $region53: #{vit_decoder_forward.1} parent=5 // pred_check
        _
      $region54: #{vit_decoder_forward.1} parent=5 // pred_check_branch
        %386 = sbr.rel (%p383) target = $region56
      $region55: #{vit_decoder_forward.1} parent=5 // pred_region
        %s387 = ssub.s32 %s25, 1
        %s388 = sand.u32 %s38, 1
        %s389 = scalar_lea.sflag [#allocation4], %s388
        %s390 = sand.u32 %s38, 1
        %s391 = smul.addr %s390, 32
        %s392 = scalar_lea.vmem [#allocation3], %s391
        // Predicated region
        $region57: #{vit_decoder_forward.1} parent=55 // pred_check
          %p393 = pneg %p51
        $region58: #{vit_decoder_forward.1} parent=55 // pred_check_branch
          %395 = sbr.rel (%p393) target = $region60
        $region59: #{vit_decoder_forward.1} parent=55 // pred_region
          %396 = dma.done %s389, 512
        $region60: #{vit_decoder_forward.1} parent=55 // pred_fallthru
          _
        // Predicated region
        $region61: #{vit_decoder_forward.1} parent=55 // pred_check
          %p397 = pneg %p72
        $region62: #{vit_decoder_forward.1} parent=55 // pred_check_branch
          %399 = sbr.rel (%p397) target = $region64
        $region63: #{vit_decoder_forward.1} parent=55 // pred_region
          %400 = dma.done [#allocation7], 1024
        $region64: #{vit_decoder_forward.1} parent=55 // pred_fallthru
          _
        // Predicated region
        $region65: #{vit_decoder_forward.1} parent=55 // pred_check
          %p401 = pneg %p93
        $region66: #{vit_decoder_forward.1} parent=55 // pred_check_branch
          %403 = sbr.rel (%p401) target = $region68
        $region67: #{vit_decoder_forward.1} parent=55 // pred_region
          %404 = dma.done [#allocation7], 32
        $region68: #{vit_decoder_forward.1} parent=55 // pred_fallthru
          _
        // Predicated region
        $region69: #{vit_decoder_forward.1} parent=55 // pred_check
          %p405 = pneg %p114
        $region70: #{vit_decoder_forward.1} parent=55 // pred_check_branch
          %407 = sbr.rel (%p405) target = $region72
        $region71: #{vit_decoder_forward.1} parent=55 // pred_region
          %408 = dma.done [#allocation10], 2048
        $region72: #{vit_decoder_forward.1} parent=55 // pred_fallthru
          _
        // Predicated region
        $region73: #{vit_decoder_forward.1} parent=55 // pred_check
          %p409 = pneg %p135
        $region74: #{vit_decoder_forward.1} parent=55 // pred_check_branch
          %411 = sbr.rel (%p409) target = $region76
        $region75: #{vit_decoder_forward.1} parent=55 // pred_region
          %412 = dma.done [#allocation10], 32
        $region76: #{vit_decoder_forward.1} parent=55 // pred_fallthru
          _
        // Predicated region
        $region77: #{vit_decoder_forward.1} parent=55 // pred_check
          %p413 = pneg %p156
        $region78: #{vit_decoder_forward.1} parent=55 // pred_check_branch
          %415 = sbr.rel (%p413) target = $region80
        $region79: #{vit_decoder_forward.1} parent=55 // pred_region
          %416 = dma.done [#allocation13], 2048
        $region80: #{vit_decoder_forward.1} parent=55 // pred_fallthru
          _
        // Predicated region
        $region81: #{vit_decoder_forward.1} parent=55 // pred_check
          %p417 = pneg %p177
        $region82: #{vit_decoder_forward.1} parent=55 // pred_check_branch
          %419 = sbr.rel (%p417) target = $region84
        $region83: #{vit_decoder_forward.1} parent=55 // pred_region
          %420 = dma.done [#allocation13], 32
        $region84: #{vit_decoder_forward.1} parent=55 // pred_fallthru
          _
        // Predicated region
        $region85: #{vit_decoder_forward.1} parent=55 // pred_check
          %p421 = pneg %p198
        $region86: #{vit_decoder_forward.1} parent=55 // pred_check_branch
          %423 = sbr.rel (%p421) target = $region88
        $region87: #{vit_decoder_forward.1} parent=55 // pred_region
          %424 = dma.done [#allocation16], 9216
        $region88: #{vit_decoder_forward.1} parent=55 // pred_fallthru
          _
        // Predicated region
        $region89: #{vit_decoder_forward.1} parent=55 // pred_check
          %p425 = pneg %p219
        $region90: #{vit_decoder_forward.1} parent=55 // pred_check_branch
          %427 = sbr.rel (%p425) target = $region92
        $region91: #{vit_decoder_forward.1} parent=55 // pred_region
          %428 = dma.done [#allocation16], 16
        $region92: #{vit_decoder_forward.1} parent=55 // pred_fallthru
          _
        %s429 = sand.u32 %s38, 1
        %s430 = scalar_lea.sflag [#allocation4], %s429
        %s431 = sand.u32 %s38, 1
        %s432 = smul.addr %s431, 32
        %s433 = scalar_lea.vmem [#allocation3], %s432
        %p434 = pneg %p51
        %p435 = pneg %p48
        %p436 = pneg %p72
        %p437 = pneg %p69
        %p438 = pneg %p93
        %p439 = pneg %p90
        %p440 = pneg %p114
        %p441 = pneg %p111
        %p442 = pneg %p135
        %p443 = pneg %p132
        %p444 = pneg %p156
        %p445 = pneg %p153
        %p446 = pneg %p177
        %p447 = pneg %p174
        %p448 = pneg %p198
        %p449 = pneg %p195
        %p450 = pneg %p219
        %p451 = pneg %p216
        %p452 = pneg %p245
        %p453 = pneg %p242
        %s454 = sand.u32 %s232, 1
        %s455 = scalar_lea.sflag [#allocation5], %s454
        %s456 = sand.u32 %s232, 1
        %s457 = smul.addr %s456, 256
        %s458 = scalar_lea.vmem [#allocation18], %s457
        %v460 = vld [vmem:[%s392] sm:$0xf]
        %v461 = vld [vmem:[%s392 + $0x4] sm:$0xf]
        %v462 = vld [vmem:[%s392 + $0x8] sm:$0xf]
        %v463 = vld [vmem:[%s392 + $0xc] sm:$0xf]
        %v464 = vld [vmem:[%s392 + $0x10] sm:$0xf]
        %v465 = vld [vmem:[%s392 + $0x14] sm:$0xf]
        %v466 = vld [vmem:[%s392 + $0x18] sm:$0xf]
        %v467 = vld [vmem:[%s392 + $0x1c] sm:$0xf]
        %v468 = vld [vmem:[#allocation6] sm:$0xff]
        %v469 = vld [vmem:[#allocation6 + $0x8] sm:$0xff]
        %v470 = vld [vmem:[#allocation6 + $0x10] sm:$0xff]
        %v471 = vld [vmem:[#allocation6 + $0x18] sm:$0xff]
        %v472 = vld [vmem:[#allocation6 + $0x20] sm:$0xff]
        %v473 = vld [vmem:[#allocation6 + $0x28] sm:$0xff]
        %v474 = vld [vmem:[#allocation6 + $0x30] sm:$0xff]
        %v475 = vld [vmem:[#allocation6 + $0x38] sm:$0xff]
        %v476 = vld [vmem:[#allocation8] sm:$0x3]
        %v478 = vlaneseq
        %v479 = vshrl.u32 %v478, 7
        %v480 = vsub.s32 0, %v479
        %v481 = vrot.slane %v476, %v480
        %v482 = vlaneseq
        %v483 = vshrl.u32 %v482, 7
        %v484 = vsub.s32 1, %v483
        %v485 = vrot.slane %v476, %v484
        %v496 = vunpack.c.l.b16 %v460
        %v497 = vunpack.c.l.b16 %v461
        %v498 = vunpack.c.l.b16 %v462
        %v499 = vunpack.c.l.b16 %v463
        %v500 = vunpack.c.l.b16 %v464
        %v501 = vunpack.c.l.b16 %v465
        %v502 = vunpack.c.l.b16 %v466
        %v503 = vunpack.c.l.b16 %v467
        %v504 = vpack.c.b16 %v497, %v496
        %v505 = vpack.c.b16 %v499, %v498
        %v506 = vpack.c.b16 %v501, %v500
        %v507 = vpack.c.b16 %v503, %v502
        %v516 = vunpack.c.l.b16 %v468
        %v517 = vunpack.c.h.b16 %v468
        %v518 = vunpack.c.l.b16 %v469
        %v519 = vunpack.c.h.b16 %v469
        %v520 = vunpack.c.l.b16 %v470
        %v521 = vunpack.c.h.b16 %v470
        %v522 = vunpack.c.l.b16 %v471
        %v523 = vunpack.c.h.b16 %v471
        %v524 = vunpack.c.l.b16 %v472
        %v525 = vunpack.c.h.b16 %v472
        %v526 = vunpack.c.l.b16 %v473
        %v527 = vunpack.c.h.b16 %v473
        %v528 = vunpack.c.l.b16 %v474
        %v529 = vunpack.c.h.b16 %v474
        %v530 = vunpack.c.l.b16 %v475
        %v531 = vunpack.c.h.b16 %v475
        %v532 = vpack.c.b16 %v518, %v516
        %v533 = vpack.c.b16 %v519, %v517
        %v534 = vpack.c.b16 %v522, %v520
        %v535 = vpack.c.b16 %v523, %v521
        %v536 = vpack.c.b16 %v526, %v524
        %v537 = vpack.c.b16 %v527, %v525
        %v538 = vpack.c.b16 %v530, %v528
        %v539 = vpack.c.b16 %v531, %v529
        %vm548 = vcmask 523264
        %v550 = vsel %vm548, %v504, 0
        %v553 = vsel %vm548, %v505, 0
        %v556 = vsel %vm548, %v506, 0
        %v559 = vsel %vm548, %v507, 0
        %561 = vmatprep.subr.bf16.mxu0 %v533
        %562 = vmatpush1.bf16.msra.mxu0 %v532
        %563 = vmatprep.subr.bf16.mxu0 %v535
        %564 = vmatpush1.bf16.msra.mxu0 %v534
        %565 = vmatprep.subr.bf16.mxu0 %v537
        %566 = vmatpush1.bf16.msra.mxu0 %v536
        %567 = vmatprep.subr.bf16.mxu0 %v539
        %568 = vmatpush1.bf16.msra.mxu0 %v538
        %569 = vmatprep.subr.bf16.mxu0 0
        %570 = vmatpush1.bf16.msra.mxu0 0
        %571 = vmatprep.subr.bf16.mxu0 0
        %572 = vmatpush1.bf16.msra.mxu0 0
        %573 = vmatprep.subr.bf16.mxu0 0
        %574 = vmatpush1.bf16.msra.mxu0 0
        %575 = vmatprep.subr.bf16.mxu0 0
        %576 = vmatpush1.bf16.msra.mxu0 0
        %577 = vmatprep.subr.bf16.mxu0 0
        %578 = vmatpush1.bf16.msra.mxu0 0
        %579 = vmatprep.subr.bf16.mxu0 0
        %580 = vmatpush1.bf16.msra.mxu0 0
        %581 = vmatprep.subr.bf16.mxu0 0
        %582 = vmatpush1.bf16.msra.mxu0 0
        %583 = vmatprep.subr.bf16.mxu0 0
        %584 = vmatpush1.bf16.msra.mxu0 0
        %585 = vmatprep.subr.bf16.mxu0 0
        %586 = vmatpush1.bf16.msra.mxu0 0
        %587 = vmatprep.subr.bf16.mxu0 0
        %588 = vmatpush1.bf16.msra.mxu0 0
        %589 = vmatprep.subr.bf16.mxu0 0
        %590 = vmatpush1.bf16.msra.mxu0 0
        %591 = vmatprep.subr.bf16.mxu0 0
        %592 = vmatpush1.bf16.msra.mxu0 0
        %593 = vmatprep.mubr.bf16.mxu0 0
        %594 = vmatmul.mubr.bf16.gmra.mrb[0].mxu0 %v550
        %v595 = vpop.f32.mrb[0].mxu0
        %v596 = vadd.f32 %v481, %v595
        %v597 = vpop.f32.mrb[0].mxu0
        %v598 = vadd.f32 %v485, %v597
        %v599 = vpop.f32.mrb[0].mxu0
        %v600 = vadd.f32 %v481, %v599
        %v601 = vpop.f32.mrb[0].mxu0
        %v602 = vadd.f32 %v485, %v601
        %603 = vmatprep.mubr.bf16.mxu0 0
        %604 = vmatmul.mubr.bf16.gmra.mrb[0].mxu0 %v553
        %v605 = vpop.f32.mrb[0].mxu0
        %v606 = vadd.f32 %v481, %v605
        %v607 = vpop.f32.mrb[0].mxu0
        %v608 = vadd.f32 %v485, %v607
        %v609 = vpop.f32.mrb[0].mxu0
        %v610 = vadd.f32 %v481, %v609
        %v611 = vpop.f32.mrb[0].mxu0
        %v612 = vadd.f32 %v485, %v611
        %613 = vmatprep.mubr.bf16.mxu0 0
        %614 = vmatmul.mubr.bf16.gmra.mrb[0].mxu0 %v556
        %v615 = vpop.f32.mrb[0].mxu0
        %v616 = vadd.f32 %v481, %v615
        %v617 = vpop.f32.mrb[0].mxu0
        %v618 = vadd.f32 %v485, %v617
        %v619 = vpop.f32.mrb[0].mxu0
        %v620 = vadd.f32 %v481, %v619
        %v621 = vpop.f32.mrb[0].mxu0
        %v622 = vadd.f32 %v485, %v621
        %623 = vmatprep.mubr.bf16.mxu0 0
        %624 = vmatmul.mubr.bf16.gmra.mrb[0].mxu0 %v559
        %v625 = vpop.f32.mrb[0].mxu0
        %v626 = vadd.f32 %v481, %v625
        %v627 = vpop.f32.mrb[0].mxu0
        %v628 = vadd.f32 %v485, %v627
        %v629 = vpop.f32.mrb[0].mxu0
        %v630 = vadd.f32 %v481, %v629
        %v631 = vpop.f32.mrb[0].mxu0
        %v632 = vadd.f32 %v485, %v631
        %633 = vdwg.mxu0
        %v634 = vmax.f32 %v596, 0.0
        %v635 = vmax.f32 %v598, 0.0
        %v636 = vmax.f32 %v600, 0.0
        %v637 = vmax.f32 %v602, 0.0
        %v638 = vmax.f32 %v606, 0.0
        %v639 = vmax.f32 %v608, 0.0
        %v640 = vmax.f32 %v610, 0.0
        %v641 = vmax.f32 %v612, 0.0
        %v642 = vmax.f32 %v616, 0.0
        %v643 = vmax.f32 %v618, 0.0
        %v644 = vmax.f32 %v620, 0.0
        %v645 = vmax.f32 %v622, 0.0
        %v646 = vmax.f32 %v626, 0.0
        %v647 = vmax.f32 %v628, 0.0
        %v648 = vmax.f32 %v630, 0.0
        %v649 = vmax.f32 %v632, 0.0
        %v650 = vpack.c.bf16 %v636, %v634
        %v651 = vpack.c.bf16 %v637, %v635
        %v652 = vpack.c.bf16 %v640, %v638
        %v653 = vpack.c.bf16 %v641, %v639
        %v654 = vpack.c.bf16 %v644, %v642
        %v655 = vpack.c.bf16 %v645, %v643
        %v656 = vpack.c.bf16 %v648, %v646
        %v657 = vpack.c.bf16 %v649, %v647
        %v662 = vunpack.c.l.b16 %v650
        %v663 = vunpack.c.h.b16 %v650
        %v664 = vunpack.c.l.b16 %v652
        %v665 = vunpack.c.h.b16 %v652
        %v666 = vunpack.c.l.b16 %v654
        %v667 = vunpack.c.h.b16 %v654
        %v668 = vunpack.c.l.b16 %v656
        %v669 = vunpack.c.h.b16 %v656
        %v674 = vunpack.c.l.b16 %v651
        %v675 = vunpack.c.h.b16 %v651
        %v676 = vunpack.c.l.b16 %v653
        %v677 = vunpack.c.h.b16 %v653
        %v678 = vunpack.c.l.b16 %v655
        %v679 = vunpack.c.h.b16 %v655
        %v680 = vunpack.c.l.b16 %v657
        %v681 = vunpack.c.h.b16 %v657
        %v682 = vld [vmem:[#allocation9] sm:$0xff]
        %v683 = vld [vmem:[#allocation9 + $0x8] sm:$0xff]
        %v684 = vld [vmem:[#allocation9 + $0x10] sm:$0xff]
        %v685 = vld [vmem:[#allocation9 + $0x18] sm:$0xff]
        %v686 = vld [vmem:[#allocation9 + $0x20] sm:$0xff]
        %v687 = vld [vmem:[#allocation9 + $0x28] sm:$0xff]
        %v688 = vld [vmem:[#allocation9 + $0x30] sm:$0xff]
        %v689 = vld [vmem:[#allocation9 + $0x38] sm:$0xff]
        %v690 = vld [vmem:[#allocation9 + $0x40] sm:$0xff]
        %v691 = vld [vmem:[#allocation9 + $0x48] sm:$0xff]
        %v692 = vld [vmem:[#allocation9 + $0x50] sm:$0xff]
        %v693 = vld [vmem:[#allocation9 + $0x58] sm:$0xff]
        %v694 = vld [vmem:[#allocation9 + $0x60] sm:$0xff]
        %v695 = vld [vmem:[#allocation9 + $0x68] sm:$0xff]
        %v696 = vld [vmem:[#allocation9 + $0x70] sm:$0xff]
        %v697 = vld [vmem:[#allocation9 + $0x78] sm:$0xff]
        %v698 = vld [vmem:[#allocation11] sm:$0x3]
        %v700 = vlaneseq
        %v701 = vshrl.u32 %v700, 7
        %v702 = vsub.s32 0, %v701
        %v703 = vrot.slane %v698, %v702
        %v704 = vlaneseq
        %v705 = vshrl.u32 %v704, 7
        %v706 = vsub.s32 1, %v705
        %v707 = vrot.slane %v698, %v706
        %v710 = vpack.c.b16 %v674, %v662
        %v711 = vpack.c.b16 %v675, %v663
        %v712 = vpack.c.b16 %v676, %v664
        %v713 = vpack.c.b16 %v677, %v665
        %v714 = vpack.c.b16 %v678, %v666
        %v715 = vpack.c.b16 %v679, %v667
        %v716 = vpack.c.b16 %v680, %v668
        %v717 = vpack.c.b16 %v681, %v669
        %v742 = vunpack.c.l.b16 %v682
        %v743 = vunpack.c.h.b16 %v682
        %v744 = vunpack.c.l.b16 %v683
        %v745 = vunpack.c.h.b16 %v683
        %v746 = vunpack.c.l.b16 %v684
        %v747 = vunpack.c.h.b16 %v684
        %v748 = vunpack.c.l.b16 %v685
        %v749 = vunpack.c.h.b16 %v685
        %v750 = vunpack.c.l.b16 %v686
        %v751 = vunpack.c.h.b16 %v686
        %v752 = vunpack.c.l.b16 %v687
        %v753 = vunpack.c.h.b16 %v687
        %v754 = vunpack.c.l.b16 %v688
        %v755 = vunpack.c.h.b16 %v688
        %v756 = vunpack.c.l.b16 %v689
        %v757 = vunpack.c.h.b16 %v689
        %v758 = vunpack.c.l.b16 %v690
        %v759 = vunpack.c.h.b16 %v690
        %v760 = vunpack.c.l.b16 %v691
        %v761 = vunpack.c.h.b16 %v691
        %v762 = vunpack.c.l.b16 %v692
        %v763 = vunpack.c.h.b16 %v692
        %v764 = vunpack.c.l.b16 %v693
        %v765 = vunpack.c.h.b16 %v693
        %v766 = vunpack.c.l.b16 %v694
        %v767 = vunpack.c.h.b16 %v694
        %v768 = vunpack.c.l.b16 %v695
        %v769 = vunpack.c.h.b16 %v695
        %v770 = vunpack.c.l.b16 %v696
        %v771 = vunpack.c.h.b16 %v696
        %v772 = vunpack.c.l.b16 %v697
        %v773 = vunpack.c.h.b16 %v697
        %v774 = vpack.c.b16 %v744, %v742
        %v775 = vpack.c.b16 %v745, %v743
        %v776 = vpack.c.b16 %v748, %v746
        %v777 = vpack.c.b16 %v749, %v747
        %v778 = vpack.c.b16 %v752, %v750
        %v779 = vpack.c.b16 %v753, %v751
        %v780 = vpack.c.b16 %v756, %v754
        %v781 = vpack.c.b16 %v757, %v755
        %v782 = vpack.c.b16 %v760, %v758
        %v783 = vpack.c.b16 %v761, %v759
        %v784 = vpack.c.b16 %v764, %v762
        %v785 = vpack.c.b16 %v765, %v763
        %v786 = vpack.c.b16 %v768, %v766
        %v787 = vpack.c.b16 %v769, %v767
        %v788 = vpack.c.b16 %v772, %v770
        %v789 = vpack.c.b16 %v773, %v771
        %806 = vmatprep.subr.bf16.mxu0 %v775
        %807 = vmatpush1.bf16.msra.mxu0 %v774
        %808 = vmatprep.subr.bf16.mxu0 %v777
        %809 = vmatpush1.bf16.msra.mxu0 %v776
        %810 = vmatprep.subr.bf16.mxu0 %v779
        %811 = vmatpush1.bf16.msra.mxu0 %v778
        %812 = vmatprep.subr.bf16.mxu0 %v781
        %813 = vmatpush1.bf16.msra.mxu0 %v780
        %814 = vmatprep.subr.bf16.mxu0 %v783
        %815 = vmatpush1.bf16.msra.mxu0 %v782
        %816 = vmatprep.subr.bf16.mxu0 %v785
        %817 = vmatpush1.bf16.msra.mxu0 %v784
        %818 = vmatprep.subr.bf16.mxu0 %v787
        %819 = vmatpush1.bf16.msra.mxu0 %v786
        %820 = vmatprep.subr.bf16.mxu0 %v789
        %821 = vmatpush1.bf16.msra.mxu0 %v788
        %822 = vmatprep.subr.bf16.mxu0 0
        %823 = vmatpush1.bf16.msra.mxu0 0
        %824 = vmatprep.subr.bf16.mxu0 0
        %825 = vmatpush1.bf16.msra.mxu0 0
        %826 = vmatprep.subr.bf16.mxu0 0
        %827 = vmatpush1.bf16.msra.mxu0 0
        %828 = vmatprep.subr.bf16.mxu0 0
        %829 = vmatpush1.bf16.msra.mxu0 0
        %830 = vmatprep.subr.bf16.mxu0 0
        %831 = vmatpush1.bf16.msra.mxu0 0
        %832 = vmatprep.subr.bf16.mxu0 0
        %833 = vmatpush1.bf16.msra.mxu0 0
        %834 = vmatprep.subr.bf16.mxu0 0
        %835 = vmatpush1.bf16.msra.mxu0 0
        %836 = vmatprep.subr.bf16.mxu0 0
        %837 = vmatpush1.bf16.msra.mxu0 0
        %838 = vmatprep.mubr.bf16.mxu0 0
        %839 = vmatmul.mubr.bf16.gmra.mrb[0].mxu0 %v710
        %v840 = vpop.f32.mrb[0].mxu0
        %v841 = vadd.f32 %v703, %v840
        %v842 = vpop.f32.mrb[0].mxu0
        %v843 = vadd.f32 %v707, %v842
        %v844 = vpop.f32.mrb[0].mxu0
        %v845 = vadd.f32 %v703, %v844
        %v846 = vpop.f32.mrb[0].mxu0
        %v847 = vadd.f32 %v707, %v846
        %848 = vmatprep.mubr.bf16.mxu0 0
        %849 = vmatmul.mubr.bf16.gmra.mrb[0].mxu0 %v711
        %v850 = vpop.f32.mrb[0].mxu0
        %v851 = vadd.f32 %v703, %v850
        %v852 = vpop.f32.mrb[0].mxu0
        %v853 = vadd.f32 %v707, %v852
        %v854 = vpop.f32.mrb[0].mxu0
        %v855 = vadd.f32 %v703, %v854
        %v856 = vpop.f32.mrb[0].mxu0
        %v857 = vadd.f32 %v707, %v856
        %858 = vmatprep.mubr.bf16.mxu0 0
        %859 = vmatmul.mubr.bf16.gmra.mrb[0].mxu0 %v712
        %v860 = vpop.f32.mrb[0].mxu0
        %v861 = vadd.f32 %v703, %v860
        %v862 = vpop.f32.mrb[0].mxu0
        %v863 = vadd.f32 %v707, %v862
        %v864 = vpop.f32.mrb[0].mxu0
        %v865 = vadd.f32 %v703, %v864
        %v866 = vpop.f32.mrb[0].mxu0
        %v867 = vadd.f32 %v707, %v866
        %868 = vmatprep.mubr.bf16.mxu0 0
        %869 = vmatmul.mubr.bf16.gmra.mrb[0].mxu0 %v713
        %v870 = vpop.f32.mrb[0].mxu0
        %v871 = vadd.f32 %v703, %v870
        %v872 = vpop.f32.mrb[0].mxu0
        %v873 = vadd.f32 %v707, %v872
        %v874 = vpop.f32.mrb[0].mxu0
        %v875 = vadd.f32 %v703, %v874
        %v876 = vpop.f32.mrb[0].mxu0
        %v877 = vadd.f32 %v707, %v876
        %878 = vmatprep.mubr.bf16.mxu0 0
        %879 = vmatmul.mubr.bf16.gmra.mrb[0].mxu0 %v714
        %v880 = vpop.f32.mrb[0].mxu0
        %v881 = vadd.f32 %v703, %v880
        %v882 = vpop.f32.mrb[0].mxu0
        %v883 = vadd.f32 %v707, %v882
        %v884 = vpop.f32.mrb[0].mxu0
        %v885 = vadd.f32 %v703, %v884
        %v886 = vpop.f32.mrb[0].mxu0
        %v887 = vadd.f32 %v707, %v886
        %888 = vmatprep.mubr.bf16.mxu0 0
        %889 = vmatmul.mubr.bf16.gmra.mrb[0].mxu0 %v715
        %v890 = vpop.f32.mrb[0].mxu0
        %v891 = vadd.f32 %v703, %v890
        %v892 = vpop.f32.mrb[0].mxu0
        %v893 = vadd.f32 %v707, %v892
        %v894 = vpop.f32.mrb[0].mxu0
        %v895 = vadd.f32 %v703, %v894
        %v896 = vpop.f32.mrb[0].mxu0
        %v897 = vadd.f32 %v707, %v896
        %898 = vmatprep.mubr.bf16.mxu0 0
        %899 = vmatmul.mubr.bf16.gmra.mrb[0].mxu0 %v716
        %v900 = vpop.f32.mrb[0].mxu0
        %v901 = vadd.f32 %v703, %v900
        %v902 = vpop.f32.mrb[0].mxu0
        %v903 = vadd.f32 %v707, %v902
        %v904 = vpop.f32.mrb[0].mxu0
        %v905 = vadd.f32 %v703, %v904
        %v906 = vpop.f32.mrb[0].mxu0
        %v907 = vadd.f32 %v707, %v906
        %908 = vmatprep.mubr.bf16.mxu0 0
        %909 = vmatmul.mubr.bf16.gmra.mrb[0].mxu0 %v717
        %v910 = vpop.f32.mrb[0].mxu0
        %v911 = vadd.f32 %v703, %v910
        %v912 = vpop.f32.mrb[0].mxu0
        %v913 = vadd.f32 %v707, %v912
        %v914 = vpop.f32.mrb[0].mxu0
        %v915 = vadd.f32 %v703, %v914
        %v916 = vpop.f32.mrb[0].mxu0
        %v917 = vadd.f32 %v707, %v916
        %918 = vdwg.mxu0
        %v919 = vmax.f32 %v841, 0.0
        %v920 = vmax.f32 %v843, 0.0
        %v921 = vmax.f32 %v845, 0.0
        %v922 = vmax.f32 %v847, 0.0
        %v923 = vmax.f32 %v851, 0.0
        %v924 = vmax.f32 %v853, 0.0
        %v925 = vmax.f32 %v855, 0.0
        %v926 = vmax.f32 %v857, 0.0
        %v927 = vmax.f32 %v861, 0.0
        %v928 = vmax.f32 %v863, 0.0
        %v929 = vmax.f32 %v865, 0.0
        %v930 = vmax.f32 %v867, 0.0
        %v931 = vmax.f32 %v871, 0.0
        %v932 = vmax.f32 %v873, 0.0
        %v933 = vmax.f32 %v875, 0.0
        %v934 = vmax.f32 %v877, 0.0
        %v935 = vmax.f32 %v881, 0.0
        %v936 = vmax.f32 %v883, 0.0
        %v937 = vmax.f32 %v885, 0.0
        %v938 = vmax.f32 %v887, 0.0
        %v939 = vmax.f32 %v891, 0.0
        %v940 = vmax.f32 %v893, 0.0
        %v941 = vmax.f32 %v895, 0.0
        %v942 = vmax.f32 %v897, 0.0
        %v943 = vmax.f32 %v901, 0.0
        %v944 = vmax.f32 %v903, 0.0
        %v945 = vmax.f32 %v905, 0.0
        %v946 = vmax.f32 %v907, 0.0
        %v947 = vmax.f32 %v911, 0.0
        %v948 = vmax.f32 %v913, 0.0
        %v949 = vmax.f32 %v915, 0.0
        %v950 = vmax.f32 %v917, 0.0
        %v951 = vpack.c.bf16 %v921, %v919
        %v952 = vpack.c.bf16 %v922, %v920
        %v953 = vpack.c.bf16 %v925, %v923
        %v954 = vpack.c.bf16 %v926, %v924
        %v955 = vpack.c.bf16 %v929, %v927
        %v956 = vpack.c.bf16 %v930, %v928
        %v957 = vpack.c.bf16 %v933, %v931
        %v958 = vpack.c.bf16 %v934, %v932
        %v959 = vpack.c.bf16 %v937, %v935
        %v960 = vpack.c.bf16 %v938, %v936
        %v961 = vpack.c.bf16 %v941, %v939
        %v962 = vpack.c.bf16 %v942, %v940
        %v963 = vpack.c.bf16 %v945, %v943
        %v964 = vpack.c.bf16 %v946, %v944
        %v965 = vpack.c.bf16 %v949, %v947
        %v966 = vpack.c.bf16 %v950, %v948
        %v975 = vunpack.c.l.b16 %v951
        %v976 = vunpack.c.h.b16 %v951
        %v977 = vunpack.c.l.b16 %v953
        %v978 = vunpack.c.h.b16 %v953
        %v979 = vunpack.c.l.b16 %v955
        %v980 = vunpack.c.h.b16 %v955
        %v981 = vunpack.c.l.b16 %v957
        %v982 = vunpack.c.h.b16 %v957
        %v983 = vunpack.c.l.b16 %v959
        %v984 = vunpack.c.h.b16 %v959
        %v985 = vunpack.c.l.b16 %v961
        %v986 = vunpack.c.h.b16 %v961
        %v987 = vunpack.c.l.b16 %v963
        %v988 = vunpack.c.h.b16 %v963
        %v989 = vunpack.c.l.b16 %v965
        %v990 = vunpack.c.h.b16 %v965
        %v999 = vunpack.c.l.b16 %v952
        %v1000 = vunpack.c.h.b16 %v952
        %v1001 = vunpack.c.l.b16 %v954
        %v1002 = vunpack.c.h.b16 %v954
        %v1003 = vunpack.c.l.b16 %v956
        %v1004 = vunpack.c.h.b16 %v956
        %v1005 = vunpack.c.l.b16 %v958
        %v1006 = vunpack.c.h.b16 %v958
        %v1007 = vunpack.c.l.b16 %v960
        %v1008 = vunpack.c.h.b16 %v960
        %v1009 = vunpack.c.l.b16 %v962
        %v1010 = vunpack.c.h.b16 %v962
        %v1011 = vunpack.c.l.b16 %v964
        %v1012 = vunpack.c.h.b16 %v964
        %v1013 = vunpack.c.l.b16 %v966
        %v1014 = vunpack.c.h.b16 %v966
        %v1015 = vld [vmem:[#allocation12] sm:$0xff]
        %v1016 = vld [vmem:[#allocation12 + $0x8] sm:$0xff]
        %v1017 = vld [vmem:[#allocation12 + $0x10] sm:$0xff]
        %v1018 = vld [vmem:[#allocation12 + $0x18] sm:$0xff]
        %v1019 = vld [vmem:[#allocation12 + $0x20] sm:$0xff]
        %v1020 = vld [vmem:[#allocation12 + $0x28] sm:$0xff]
        %v1021 = vld [vmem:[#allocation12 + $0x30] sm:$0xff]
        %v1022 = vld [vmem:[#allocation12 + $0x38] sm:$0xff]
        %v1023 = vld [vmem:[#allocation12 + $0x40] sm:$0xff]
        %v1024 = vld [vmem:[#allocation12 + $0x48] sm:$0xff]
        %v1025 = vld [vmem:[#allocation12 + $0x50] sm:$0xff]
        %v1026 = vld [vmem:[#allocation12 + $0x58] sm:$0xff]
        %v1027 = vld [vmem:[#allocation12 + $0x60] sm:$0xff]
        %v1028 = vld [vmem:[#allocation12 + $0x68] sm:$0xff]
        %v1029 = vld [vmem:[#allocation12 + $0x70] sm:$0xff]
        %v1030 = vld [vmem:[#allocation12 + $0x78] sm:$0xff]
        %v1031 = vld [vmem:[#allocation14] sm:$0x3]
        %v1033 = vlaneseq
        %v1034 = vshrl.u32 %v1033, 7
        %v1035 = vsub.s32 0, %v1034
        %v1036 = vrot.slane %v1031, %v1035
        %v1037 = vlaneseq
        %v1038 = vshrl.u32 %v1037, 7
        %v1039 = vsub.s32 1, %v1038
        %v1040 = vrot.slane %v1031, %v1039
        %v1043 = vpack.c.b16 %v999, %v975
        %v1044 = vpack.c.b16 %v1000, %v976
        %v1045 = vpack.c.b16 %v1001, %v977
        %v1046 = vpack.c.b16 %v1002, %v978
        %v1047 = vpack.c.b16 %v1003, %v979
        %v1048 = vpack.c.b16 %v1004, %v980
        %v1049 = vpack.c.b16 %v1005, %v981
        %v1050 = vpack.c.b16 %v1006, %v982
        %v1051 = vpack.c.b16 %v1007, %v983
        %v1052 = vpack.c.b16 %v1008, %v984
        %v1053 = vpack.c.b16 %v1009, %v985
        %v1054 = vpack.c.b16 %v1010, %v986
        %v1055 = vpack.c.b16 %v1011, %v987
        %v1056 = vpack.c.b16 %v1012, %v988
        %v1057 = vpack.c.b16 %v1013, %v989
        %v1058 = vpack.c.b16 %v1014, %v990
        %v1091 = vunpack.c.l.b16 %v1015
        %v1092 = vunpack.c.h.b16 %v1015
        %v1093 = vunpack.c.l.b16 %v1016
        %v1094 = vunpack.c.h.b16 %v1016
        %v1095 = vunpack.c.l.b16 %v1017
        %v1096 = vunpack.c.h.b16 %v1017
        %v1097 = vunpack.c.l.b16 %v1018
        %v1098 = vunpack.c.h.b16 %v1018
        %v1099 = vunpack.c.l.b16 %v1019
        %v1100 = vunpack.c.h.b16 %v1019
        %v1101 = vunpack.c.l.b16 %v1020
        %v1102 = vunpack.c.h.b16 %v1020
        %v1103 = vunpack.c.l.b16 %v1021
        %v1104 = vunpack.c.h.b16 %v1021
        %v1105 = vunpack.c.l.b16 %v1022
        %v1106 = vunpack.c.h.b16 %v1022
        %v1107 = vunpack.c.l.b16 %v1023
        %v1108 = vunpack.c.h.b16 %v1023
        %v1109 = vunpack.c.l.b16 %v1024
        %v1110 = vunpack.c.h.b16 %v1024
        %v1111 = vunpack.c.l.b16 %v1025
        %v1112 = vunpack.c.h.b16 %v1025
        %v1113 = vunpack.c.l.b16 %v1026
        %v1114 = vunpack.c.h.b16 %v1026
        %v1115 = vunpack.c.l.b16 %v1027
        %v1116 = vunpack.c.h.b16 %v1027
        %v1117 = vunpack.c.l.b16 %v1028
        %v1118 = vunpack.c.h.b16 %v1028
        %v1119 = vunpack.c.l.b16 %v1029
        %v1120 = vunpack.c.h.b16 %v1029
        %v1121 = vunpack.c.l.b16 %v1030
        %v1122 = vunpack.c.h.b16 %v1030
        %v1123 = vpack.c.b16 %v1093, %v1091
        %v1124 = vpack.c.b16 %v1094, %v1092
        %v1125 = vpack.c.b16 %v1097, %v1095
        %v1126 = vpack.c.b16 %v1098, %v1096
        %v1127 = vpack.c.b16 %v1101, %v1099
        %v1128 = vpack.c.b16 %v1102, %v1100
        %v1129 = vpack.c.b16 %v1105, %v1103
        %v1130 = vpack.c.b16 %v1106, %v1104
        %v1131 = vpack.c.b16 %v1109, %v1107
        %v1132 = vpack.c.b16 %v1110, %v1108
        %v1133 = vpack.c.b16 %v1113, %v1111
        %v1134 = vpack.c.b16 %v1114, %v1112
        %v1135 = vpack.c.b16 %v1117, %v1115
        %v1136 = vpack.c.b16 %v1118, %v1116
        %v1137 = vpack.c.b16 %v1121, %v1119
        %v1138 = vpack.c.b16 %v1122, %v1120
        %1155 = vmatprep.subr.bf16.mxu0 %v1124
        %1156 = vmatpush1.bf16.msra.mxu0 %v1123
        %1157 = vmatprep.subr.bf16.mxu0 %v1126
        %1158 = vmatpush1.bf16.msra.mxu0 %v1125
        %1159 = vmatprep.subr.bf16.mxu0 %v1128
        %1160 = vmatpush1.bf16.msra.mxu0 %v1127
        %1161 = vmatprep.subr.bf16.mxu0 %v1130
        %1162 = vmatpush1.bf16.msra.mxu0 %v1129
        %1163 = vmatprep.subr.bf16.mxu0 %v1132
        %1164 = vmatpush1.bf16.msra.mxu0 %v1131
        %1165 = vmatprep.subr.bf16.mxu0 %v1134
        %1166 = vmatpush1.bf16.msra.mxu0 %v1133
        %1167 = vmatprep.subr.bf16.mxu0 %v1136
        %1168 = vmatpush1.bf16.msra.mxu0 %v1135
        %1169 = vmatprep.subr.bf16.mxu0 %v1138
        %1170 = vmatpush1.bf16.msra.mxu0 %v1137
        %1171 = vmatprep.subr.bf16.mxu0 0
        %1172 = vmatpush1.bf16.msra.mxu0 0
        %1173 = vmatprep.subr.bf16.mxu0 0
        %1174 = vmatpush1.bf16.msra.mxu0 0
        %1175 = vmatprep.subr.bf16.mxu0 0
        %1176 = vmatpush1.bf16.msra.mxu0 0
        %1177 = vmatprep.subr.bf16.mxu0 0
        %1178 = vmatpush1.bf16.msra.mxu0 0
        %1179 = vmatprep.subr.bf16.mxu0 0
        %1180 = vmatpush1.bf16.msra.mxu0 0
        %1181 = vmatprep.subr.bf16.mxu0 0
        %1182 = vmatpush1.bf16.msra.mxu0 0
        %1183 = vmatprep.subr.bf16.mxu0 0
        %1184 = vmatpush1.bf16.msra.mxu0 0
        %1185 = vmatprep.subr.bf16.mxu0 0
        %1186 = vmatpush1.bf16.msra.mxu0 0
        %1187 = vmatprep.mubr.bf16.mxu0 0
        %1188 = vmatmul.mubr.bf16.gmra.mrb[0].mxu0 %v1043
        %v1189 = vpop.f32.mrb[0].mxu0
        %v1190 = vadd.f32 %v1036, %v1189
        %v1191 = vpop.f32.mrb[0].mxu0
        %v1192 = vadd.f32 %v1040, %v1191
        %v1193 = vpop.f32.mrb[0].mxu0
        %v1194 = vadd.f32 %v1036, %v1193
        %v1195 = vpop.f32.mrb[0].mxu0
        %v1196 = vadd.f32 %v1040, %v1195
        %1197 = vmatprep.mubr.bf16.mxu0 0
        %1198 = vmatmul.mubr.bf16.gmra.mrb[0].mxu0 %v1044
        %v1199 = vpop.f32.mrb[0].mxu0
        %v1200 = vadd.f32 %v1036, %v1199
        %v1201 = vpop.f32.mrb[0].mxu0
        %v1202 = vadd.f32 %v1040, %v1201
        %v1203 = vpop.f32.mrb[0].mxu0
        %v1204 = vadd.f32 %v1036, %v1203
        %v1205 = vpop.f32.mrb[0].mxu0
        %v1206 = vadd.f32 %v1040, %v1205
        %1207 = vmatprep.mubr.bf16.mxu0 0
        %1208 = vmatmul.mubr.bf16.gmra.mrb[0].mxu0 %v1045
        %v1209 = vpop.f32.mrb[0].mxu0
        %v1210 = vadd.f32 %v1036, %v1209
        %v1211 = vpop.f32.mrb[0].mxu0
        %v1212 = vadd.f32 %v1040, %v1211
        %v1213 = vpop.f32.mrb[0].mxu0
        %v1214 = vadd.f32 %v1036, %v1213
        %v1215 = vpop.f32.mrb[0].mxu0
        %v1216 = vadd.f32 %v1040, %v1215
        %1217 = vmatprep.mubr.bf16.mxu0 0
        %1218 = vmatmul.mubr.bf16.gmra.mrb[0].mxu0 %v1046
        %v1219 = vpop.f32.mrb[0].mxu0
        %v1220 = vadd.f32 %v1036, %v1219
        %v1221 = vpop.f32.mrb[0].mxu0
        %v1222 = vadd.f32 %v1040, %v1221
        %v1223 = vpop.f32.mrb[0].mxu0
        %v1224 = vadd.f32 %v1036, %v1223
        %v1225 = vpop.f32.mrb[0].mxu0
        %v1226 = vadd.f32 %v1040, %v1225
        %1227 = vmatprep.mubr.bf16.mxu0 0
        %1228 = vmatmul.mubr.bf16.gmra.mrb[0].mxu0 %v1047
        %v1229 = vpop.f32.mrb[0].mxu0
        %v1230 = vadd.f32 %v1036, %v1229
        %v1231 = vpop.f32.mrb[0].mxu0
        %v1232 = vadd.f32 %v1040, %v1231
        %v1233 = vpop.f32.mrb[0].mxu0
        %v1234 = vadd.f32 %v1036, %v1233
        %v1235 = vpop.f32.mrb[0].mxu0
        %v1236 = vadd.f32 %v1040, %v1235
        %1237 = vmatprep.mubr.bf16.mxu0 0
        %1238 = vmatmul.mubr.bf16.gmra.mrb[0].mxu0 %v1048
        %v1239 = vpop.f32.mrb[0].mxu0
        %v1240 = vadd.f32 %v1036, %v1239
        %v1241 = vpop.f32.mrb[0].mxu0
        %v1242 = vadd.f32 %v1040, %v1241
        %v1243 = vpop.f32.mrb[0].mxu0
        %v1244 = vadd.f32 %v1036, %v1243
        %v1245 = vpop.f32.mrb[0].mxu0
        %v1246 = vadd.f32 %v1040, %v1245
        %1247 = vmatprep.mubr.bf16.mxu0 0
        %1248 = vmatmul.mubr.bf16.gmra.mrb[0].mxu0 %v1049
        %v1249 = vpop.f32.mrb[0].mxu0
        %v1250 = vadd.f32 %v1036, %v1249
        %v1251 = vpop.f32.mrb[0].mxu0
        %v1252 = vadd.f32 %v1040, %v1251
        %v1253 = vpop.f32.mrb[0].mxu0
        %v1254 = vadd.f32 %v1036, %v1253
        %v1255 = vpop.f32.mrb[0].mxu0
        %v1256 = vadd.f32 %v1040, %v1255
        %1257 = vmatprep.mubr.bf16.mxu0 0
        %1258 = vmatmul.mubr.bf16.gmra.mrb[0].mxu0 %v1050
        %v1259 = vpop.f32.mrb[0].mxu0
        %v1260 = vadd.f32 %v1036, %v1259
        %v1261 = vpop.f32.mrb[0].mxu0
        %v1262 = vadd.f32 %v1040, %v1261
        %v1263 = vpop.f32.mrb[0].mxu0
        %v1264 = vadd.f32 %v1036, %v1263
        %v1265 = vpop.f32.mrb[0].mxu0
        %v1266 = vadd.f32 %v1040, %v1265
        %1267 = vmatprep.mubr.bf16.mxu0 0
        %1268 = vmatmul.mubr.bf16.gmra.mrb[0].mxu0 %v1051
        %v1269 = vpop.f32.mrb[0].mxu0
        %v1270 = vadd.f32 %v1036, %v1269
        %v1271 = vpop.f32.mrb[0].mxu0
        %v1272 = vadd.f32 %v1040, %v1271
        %v1273 = vpop.f32.mrb[0].mxu0
        %v1274 = vadd.f32 %v1036, %v1273
        %v1275 = vpop.f32.mrb[0].mxu0
        %v1276 = vadd.f32 %v1040, %v1275
        %1277 = vmatprep.mubr.bf16.mxu0 0
        %1278 = vmatmul.mubr.bf16.gmra.mrb[0].mxu0 %v1052
        %v1279 = vpop.f32.mrb[0].mxu0
        %v1280 = vadd.f32 %v1036, %v1279
        %v1281 = vpop.f32.mrb[0].mxu0
        %v1282 = vadd.f32 %v1040, %v1281
        %v1283 = vpop.f32.mrb[0].mxu0
        %v1284 = vadd.f32 %v1036, %v1283
        %v1285 = vpop.f32.mrb[0].mxu0
        %v1286 = vadd.f32 %v1040, %v1285
        %1287 = vmatprep.mubr.bf16.mxu0 0
        %1288 = vmatmul.mubr.bf16.gmra.mrb[0].mxu0 %v1053
        %v1289 = vpop.f32.mrb[0].mxu0
        %v1290 = vadd.f32 %v1036, %v1289
        %v1291 = vpop.f32.mrb[0].mxu0
        %v1292 = vadd.f32 %v1040, %v1291
        %v1293 = vpop.f32.mrb[0].mxu0
        %v1294 = vadd.f32 %v1036, %v1293
        %v1295 = vpop.f32.mrb[0].mxu0
        %v1296 = vadd.f32 %v1040, %v1295
        %1297 = vmatprep.mubr.bf16.mxu0 0
        %1298 = vmatmul.mubr.bf16.gmra.mrb[0].mxu0 %v1054
        %v1299 = vpop.f32.mrb[0].mxu0
        %v1300 = vadd.f32 %v1036, %v1299
        %v1301 = vpop.f32.mrb[0].mxu0
        %v1302 = vadd.f32 %v1040, %v1301
        %v1303 = vpop.f32.mrb[0].mxu0
        %v1304 = vadd.f32 %v1036, %v1303
        %v1305 = vpop.f32.mrb[0].mxu0
        %v1306 = vadd.f32 %v1040, %v1305
        %1307 = vmatprep.mubr.bf16.mxu0 0
        %1308 = vmatmul.mubr.bf16.gmra.mrb[0].mxu0 %v1055
        %v1309 = vpop.f32.mrb[0].mxu0
        %v1310 = vadd.f32 %v1036, %v1309
        %v1311 = vpop.f32.mrb[0].mxu0
        %v1312 = vadd.f32 %v1040, %v1311
        %v1313 = vpop.f32.mrb[0].mxu0
        %v1314 = vadd.f32 %v1036, %v1313
        %v1315 = vpop.f32.mrb[0].mxu0
        %v1316 = vadd.f32 %v1040, %v1315
        %1317 = vmatprep.mubr.bf16.mxu0 0
        %1318 = vmatmul.mubr.bf16.gmra.mrb[0].mxu0 %v1056
        %v1319 = vpop.f32.mrb[0].mxu0
        %v1320 = vadd.f32 %v1036, %v1319
        %v1321 = vpop.f32.mrb[0].mxu0
        %v1322 = vadd.f32 %v1040, %v1321
        %v1323 = vpop.f32.mrb[0].mxu0
        %v1324 = vadd.f32 %v1036, %v1323
        %v1325 = vpop.f32.mrb[0].mxu0
        %v1326 = vadd.f32 %v1040, %v1325
        %1327 = vmatprep.mubr.bf16.mxu0 0
        %1328 = vmatmul.mubr.bf16.gmra.mrb[0].mxu0 %v1057
        %v1329 = vpop.f32.mrb[0].mxu0
        %v1330 = vadd.f32 %v1036, %v1329
        %v1331 = vpop.f32.mrb[0].mxu0
        %v1332 = vadd.f32 %v1040, %v1331
        %v1333 = vpop.f32.mrb[0].mxu0
        %v1334 = vadd.f32 %v1036, %v1333
        %v1335 = vpop.f32.mrb[0].mxu0
        %v1336 = vadd.f32 %v1040, %v1335
        %1337 = vmatprep.mubr.bf16.mxu0 0
        %1338 = vmatmul.mubr.bf16.gmra.mrb[0].mxu0 %v1058
        %v1339 = vpop.f32.mrb[0].mxu0
        %v1340 = vadd.f32 %v1036, %v1339
        %v1341 = vpop.f32.mrb[0].mxu0
        %v1342 = vadd.f32 %v1040, %v1341
        %v1343 = vpop.f32.mrb[0].mxu0
        %v1344 = vadd.f32 %v1036, %v1343
        %v1345 = vpop.f32.mrb[0].mxu0
        %v1346 = vadd.f32 %v1040, %v1345
        %1347 = vdwg.mxu0
        %v1348 = vmax.f32 %v1190, 0.0
        %v1349 = vmax.f32 %v1192, 0.0
        %v1350 = vmax.f32 %v1194, 0.0
        %v1351 = vmax.f32 %v1196, 0.0
        %v1352 = vmax.f32 %v1200, 0.0
        %v1353 = vmax.f32 %v1202, 0.0
        %v1354 = vmax.f32 %v1204, 0.0
        %v1355 = vmax.f32 %v1206, 0.0
        %v1356 = vmax.f32 %v1210, 0.0
        %v1357 = vmax.f32 %v1212, 0.0
        %v1358 = vmax.f32 %v1214, 0.0
        %v1359 = vmax.f32 %v1216, 0.0
        %v1360 = vmax.f32 %v1220, 0.0
        %v1361 = vmax.f32 %v1222, 0.0
        %v1362 = vmax.f32 %v1224, 0.0
        %v1363 = vmax.f32 %v1226, 0.0
        %v1364 = vmax.f32 %v1230, 0.0
        %v1365 = vmax.f32 %v1232, 0.0
        %v1366 = vmax.f32 %v1234, 0.0
        %v1367 = vmax.f32 %v1236, 0.0
        %v1368 = vmax.f32 %v1240, 0.0
        %v1369 = vmax.f32 %v1242, 0.0
        %v1370 = vmax.f32 %v1244, 0.0
        %v1371 = vmax.f32 %v1246, 0.0
        %v1372 = vmax.f32 %v1250, 0.0
        %v1373 = vmax.f32 %v1252, 0.0
        %v1374 = vmax.f32 %v1254, 0.0
        %v1375 = vmax.f32 %v1256, 0.0
        %v1376 = vmax.f32 %v1260, 0.0
        %v1377 = vmax.f32 %v1262, 0.0
        %v1378 = vmax.f32 %v1264, 0.0
        %v1379 = vmax.f32 %v1266, 0.0
        %v1380 = vmax.f32 %v1270, 0.0
        %v1381 = vmax.f32 %v1272, 0.0
        %v1382 = vmax.f32 %v1274, 0.0
        %v1383 = vmax.f32 %v1276, 0.0
        %v1384 = vmax.f32 %v1280, 0.0
        %v1385 = vmax.f32 %v1282, 0.0
        %v1386 = vmax.f32 %v1284, 0.0
        %v1387 = vmax.f32 %v1286, 0.0
        %v1388 = vmax.f32 %v1290, 0.0
        %v1389 = vmax.f32 %v1292, 0.0
        %v1390 = vmax.f32 %v1294, 0.0
        %v1391 = vmax.f32 %v1296, 0.0
        %v1392 = vmax.f32 %v1300, 0.0
        %v1393 = vmax.f32 %v1302, 0.0
        %v1394 = vmax.f32 %v1304, 0.0
        %v1395 = vmax.f32 %v1306, 0.0
        %v1396 = vmax.f32 %v1310, 0.0
        %v1397 = vmax.f32 %v1312, 0.0
        %v1398 = vmax.f32 %v1314, 0.0
        %v1399 = vmax.f32 %v1316, 0.0
        %v1400 = vmax.f32 %v1320, 0.0
        %v1401 = vmax.f32 %v1322, 0.0
        %v1402 = vmax.f32 %v1324, 0.0
        %v1403 = vmax.f32 %v1326, 0.0
        %v1404 = vmax.f32 %v1330, 0.0
        %v1405 = vmax.f32 %v1332, 0.0
        %v1406 = vmax.f32 %v1334, 0.0
        %v1407 = vmax.f32 %v1336, 0.0
        %v1408 = vmax.f32 %v1340, 0.0
        %v1409 = vmax.f32 %v1342, 0.0
        %v1410 = vmax.f32 %v1344, 0.0
        %v1411 = vmax.f32 %v1346, 0.0
        %v1412 = vpack.c.bf16 %v1350, %v1348
        %v1413 = vpack.c.bf16 %v1351, %v1349
        %v1414 = vpack.c.bf16 %v1354, %v1352
        %v1415 = vpack.c.bf16 %v1355, %v1353
        %v1416 = vpack.c.bf16 %v1358, %v1356
        %v1417 = vpack.c.bf16 %v1359, %v1357
        %v1418 = vpack.c.bf16 %v1362, %v1360
        %v1419 = vpack.c.bf16 %v1363, %v1361
        %v1420 = vpack.c.bf16 %v1366, %v1364
        %v1421 = vpack.c.bf16 %v1367, %v1365
        %v1422 = vpack.c.bf16 %v1370, %v1368
        %v1423 = vpack.c.bf16 %v1371, %v1369
        %v1424 = vpack.c.bf16 %v1374, %v1372
        %v1425 = vpack.c.bf16 %v1375, %v1373
        %v1426 = vpack.c.bf16 %v1378, %v1376
        %v1427 = vpack.c.bf16 %v1379, %v1377
        %v1428 = vpack.c.bf16 %v1382, %v1380
        %v1429 = vpack.c.bf16 %v1383, %v1381
        %v1430 = vpack.c.bf16 %v1386, %v1384
        %v1431 = vpack.c.bf16 %v1387, %v1385
        %v1432 = vpack.c.bf16 %v1390, %v1388
        %v1433 = vpack.c.bf16 %v1391, %v1389
        %v1434 = vpack.c.bf16 %v1394, %v1392
        %v1435 = vpack.c.bf16 %v1395, %v1393
        %v1436 = vpack.c.bf16 %v1398, %v1396
        %v1437 = vpack.c.bf16 %v1399, %v1397
        %v1438 = vpack.c.bf16 %v1402, %v1400
        %v1439 = vpack.c.bf16 %v1403, %v1401
        %v1440 = vpack.c.bf16 %v1406, %v1404
        %v1441 = vpack.c.bf16 %v1407, %v1405
        %v1442 = vpack.c.bf16 %v1410, %v1408
        %v1443 = vpack.c.bf16 %v1411, %v1409
        %v1460 = vunpack.c.l.b16 %v1412
        %v1461 = vunpack.c.h.b16 %v1412
        %v1462 = vunpack.c.l.b16 %v1414
        %v1463 = vunpack.c.h.b16 %v1414
        %v1464 = vunpack.c.l.b16 %v1416
        %v1465 = vunpack.c.h.b16 %v1416
        %v1466 = vunpack.c.l.b16 %v1418
        %v1467 = vunpack.c.h.b16 %v1418
        %v1468 = vunpack.c.l.b16 %v1420
        %v1469 = vunpack.c.h.b16 %v1420
        %v1470 = vunpack.c.l.b16 %v1422
        %v1471 = vunpack.c.h.b16 %v1422
        %v1472 = vunpack.c.l.b16 %v1424
        %v1473 = vunpack.c.h.b16 %v1424
        %v1474 = vunpack.c.l.b16 %v1426
        %v1475 = vunpack.c.h.b16 %v1426
        %v1476 = vunpack.c.l.b16 %v1428
        %v1477 = vunpack.c.h.b16 %v1428
        %v1478 = vunpack.c.l.b16 %v1430
        %v1479 = vunpack.c.h.b16 %v1430
        %v1480 = vunpack.c.l.b16 %v1432
        %v1481 = vunpack.c.h.b16 %v1432
        %v1482 = vunpack.c.l.b16 %v1434
        %v1483 = vunpack.c.h.b16 %v1434
        %v1484 = vunpack.c.l.b16 %v1436
        %v1485 = vunpack.c.h.b16 %v1436
        %v1486 = vunpack.c.l.b16 %v1438
        %v1487 = vunpack.c.h.b16 %v1438
        %v1488 = vunpack.c.l.b16 %v1440
        %v1489 = vunpack.c.h.b16 %v1440
        %v1490 = vunpack.c.l.b16 %v1442
        %v1491 = vunpack.c.h.b16 %v1442
        %v1492 = vpack.c.b16 %v1460, %v1460
        %v1493 = vpack.c.b16 %v1461, %v1461
        %v1494 = vpack.c.b16 %v1462, %v1462
        %v1495 = vpack.c.b16 %v1463, %v1463
        %v1496 = vpack.c.b16 %v1464, %v1464
        %v1497 = vpack.c.b16 %v1465, %v1465
        %v1498 = vpack.c.b16 %v1466, %v1466
        %v1499 = vpack.c.b16 %v1467, %v1467
        %v1500 = vpack.c.b16 %v1468, %v1468
        %v1501 = vpack.c.b16 %v1469, %v1469
        %v1502 = vpack.c.b16 %v1470, %v1470
        %v1503 = vpack.c.b16 %v1471, %v1471
        %v1504 = vpack.c.b16 %v1472, %v1472
        %v1505 = vpack.c.b16 %v1473, %v1473
        %v1506 = vpack.c.b16 %v1474, %v1474
        %v1507 = vpack.c.b16 %v1475, %v1475
        %v1508 = vpack.c.b16 %v1476, %v1476
        %v1509 = vpack.c.b16 %v1477, %v1477
        %v1510 = vpack.c.b16 %v1478, %v1478
        %v1511 = vpack.c.b16 %v1479, %v1479
        %v1512 = vpack.c.b16 %v1480, %v1480
        %v1513 = vpack.c.b16 %v1481, %v1481
        %v1514 = vpack.c.b16 %v1482, %v1482
        %v1515 = vpack.c.b16 %v1483, %v1483
        %v1516 = vpack.c.b16 %v1484, %v1484
        %v1517 = vpack.c.b16 %v1485, %v1485
        %v1518 = vpack.c.b16 %v1486, %v1486
        %v1519 = vpack.c.b16 %v1487, %v1487
        %v1520 = vpack.c.b16 %v1488, %v1488
        %v1521 = vpack.c.b16 %v1489, %v1489
        %v1522 = vpack.c.b16 %v1490, %v1490
        %v1523 = vpack.c.b16 %v1491, %v1491
        %v1572 = vunpack.c.l.b16 %v1413
        %v1573 = vunpack.c.h.b16 %v1413
        %v1574 = vunpack.c.l.b16 %v1415
        %v1575 = vunpack.c.h.b16 %v1415
        %v1576 = vunpack.c.l.b16 %v1417
        %v1577 = vunpack.c.h.b16 %v1417
        %v1578 = vunpack.c.l.b16 %v1419
        %v1579 = vunpack.c.h.b16 %v1419
        %v1580 = vunpack.c.l.b16 %v1421
        %v1581 = vunpack.c.h.b16 %v1421
        %v1582 = vunpack.c.l.b16 %v1423
        %v1583 = vunpack.c.h.b16 %v1423
        %v1584 = vunpack.c.l.b16 %v1425
        %v1585 = vunpack.c.h.b16 %v1425
        %v1586 = vunpack.c.l.b16 %v1427
        %v1587 = vunpack.c.h.b16 %v1427
        %v1588 = vunpack.c.l.b16 %v1429
        %v1589 = vunpack.c.h.b16 %v1429
        %v1590 = vunpack.c.l.b16 %v1431
        %v1591 = vunpack.c.h.b16 %v1431
        %v1592 = vunpack.c.l.b16 %v1433
        %v1593 = vunpack.c.h.b16 %v1433
        %v1594 = vunpack.c.l.b16 %v1435
        %v1595 = vunpack.c.h.b16 %v1435
        %v1596 = vunpack.c.l.b16 %v1437
        %v1597 = vunpack.c.h.b16 %v1437
        %v1598 = vunpack.c.l.b16 %v1439
        %v1599 = vunpack.c.h.b16 %v1439
        %v1600 = vunpack.c.l.b16 %v1441
        %v1601 = vunpack.c.h.b16 %v1441
        %v1602 = vunpack.c.l.b16 %v1443
        %v1603 = vunpack.c.h.b16 %v1443
        %v1604 = vpack.c.b16 %v1572, %v1572
        %v1605 = vpack.c.b16 %v1573, %v1573
        %v1606 = vpack.c.b16 %v1574, %v1574
        %v1607 = vpack.c.b16 %v1575, %v1575
        %v1608 = vpack.c.b16 %v1576, %v1576
        %v1609 = vpack.c.b16 %v1577, %v1577
        %v1610 = vpack.c.b16 %v1578, %v1578
        %v1611 = vpack.c.b16 %v1579, %v1579
        %v1612 = vpack.c.b16 %v1580, %v1580
        %v1613 = vpack.c.b16 %v1581, %v1581
        %v1614 = vpack.c.b16 %v1582, %v1582
        %v1615 = vpack.c.b16 %v1583, %v1583
        %v1616 = vpack.c.b16 %v1584, %v1584
        %v1617 = vpack.c.b16 %v1585, %v1585
        %v1618 = vpack.c.b16 %v1586, %v1586
        %v1619 = vpack.c.b16 %v1587, %v1587
        %v1620 = vpack.c.b16 %v1588, %v1588
        %v1621 = vpack.c.b16 %v1589, %v1589
        %v1622 = vpack.c.b16 %v1590, %v1590
        %v1623 = vpack.c.b16 %v1591, %v1591
        %v1624 = vpack.c.b16 %v1592, %v1592
        %v1625 = vpack.c.b16 %v1593, %v1593
        %v1626 = vpack.c.b16 %v1594, %v1594
        %v1627 = vpack.c.b16 %v1595, %v1595
        %v1628 = vpack.c.b16 %v1596, %v1596
        %v1629 = vpack.c.b16 %v1597, %v1597
        %v1630 = vpack.c.b16 %v1598, %v1598
        %v1631 = vpack.c.b16 %v1599, %v1599
        %v1632 = vpack.c.b16 %v1600, %v1600
        %v1633 = vpack.c.b16 %v1601, %v1601
        %v1634 = vpack.c.b16 %v1602, %v1602
        %v1635 = vpack.c.b16 %v1603, %v1603
        %1668 = vst [vmem:[#allocation2] sm:$0xf] 0
        %s1669 = scalar_lea.vmem [#allocation2], 260
        %1670 = vst [vmem:[%s1669] sm:$0xf] 0
        %s1671 = scalar_lea.vmem [#allocation2], 4
        %1672 = vst [vmem:[%s1671] sm:$0xf] %v1492
        %1673 = vst [vmem:[%s1671 + $0x4] sm:$0xf] %v1604
        %1674 = vst [vmem:[%s1671 + $0x8] sm:$0xf] %v1493
        %1675 = vst [vmem:[%s1671 + $0xc] sm:$0xf] %v1605
        %1676 = vst [vmem:[%s1671 + $0x10] sm:$0xf] %v1494
        %1677 = vst [vmem:[%s1671 + $0x14] sm:$0xf] %v1606
        %1678 = vst [vmem:[%s1671 + $0x18] sm:$0xf] %v1495
        %1679 = vst [vmem:[%s1671 + $0x1c] sm:$0xf] %v1607
        %1680 = vst [vmem:[%s1671 + $0x20] sm:$0xf] %v1496
        %1681 = vst [vmem:[%s1671 + $0x24] sm:$0xf] %v1608
        %1682 = vst [vmem:[%s1671 + $0x28] sm:$0xf] %v1497
        %1683 = vst [vmem:[%s1671 + $0x2c] sm:$0xf] %v1609
        %1684 = vst [vmem:[%s1671 + $0x30] sm:$0xf] %v1498
        %1685 = vst [vmem:[%s1671 + $0x34] sm:$0xf] %v1610
        %1686 = vst [vmem:[%s1671 + $0x38] sm:$0xf] %v1499
        %1687 = vst [vmem:[%s1671 + $0x3c] sm:$0xf] %v1611
        %1688 = vst [vmem:[%s1671 + $0x40] sm:$0xf] %v1500
        %1689 = vst [vmem:[%s1671 + $0x44] sm:$0xf] %v1612
        %1690 = vst [vmem:[%s1671 + $0x48] sm:$0xf] %v1501
        %1691 = vst [vmem:[%s1671 + $0x4c] sm:$0xf] %v1613
        %1692 = vst [vmem:[%s1671 + $0x50] sm:$0xf] %v1502
        %1693 = vst [vmem:[%s1671 + $0x54] sm:$0xf] %v1614
        %1694 = vst [vmem:[%s1671 + $0x58] sm:$0xf] %v1503
        %1695 = vst [vmem:[%s1671 + $0x5c] sm:$0xf] %v1615
        %1696 = vst [vmem:[%s1671 + $0x60] sm:$0xf] %v1504
        %1697 = vst [vmem:[%s1671 + $0x64] sm:$0xf] %v1616
        %1698 = vst [vmem:[%s1671 + $0x68] sm:$0xf] %v1505
        %1699 = vst [vmem:[%s1671 + $0x6c] sm:$0xf] %v1617
        %1700 = vst [vmem:[%s1671 + $0x70] sm:$0xf] %v1506
        %1701 = vst [vmem:[%s1671 + $0x74] sm:$0xf] %v1618
        %1702 = vst [vmem:[%s1671 + $0x78] sm:$0xf] %v1507
        %1703 = vst [vmem:[%s1671 + $0x7c] sm:$0xf] %v1619
        %1704 = vst [vmem:[%s1671 + $0x80] sm:$0xf] %v1508
        %1705 = vst [vmem:[%s1671 + $0x84] sm:$0xf] %v1620
        %1706 = vst [vmem:[%s1671 + $0x88] sm:$0xf] %v1509
        %1707 = vst [vmem:[%s1671 + $0x8c] sm:$0xf] %v1621
        %1708 = vst [vmem:[%s1671 + $0x90] sm:$0xf] %v1510
        %1709 = vst [vmem:[%s1671 + $0x94] sm:$0xf] %v1622
        %1710 = vst [vmem:[%s1671 + $0x98] sm:$0xf] %v1511
        %1711 = vst [vmem:[%s1671 + $0x9c] sm:$0xf] %v1623
        %1712 = vst [vmem:[%s1671 + $0xa0] sm:$0xf] %v1512
        %1713 = vst [vmem:[%s1671 + $0xa4] sm:$0xf] %v1624
        %1714 = vst [vmem:[%s1671 + $0xa8] sm:$0xf] %v1513
        %1715 = vst [vmem:[%s1671 + $0xac] sm:$0xf] %v1625
        %1716 = vst [vmem:[%s1671 + $0xb0] sm:$0xf] %v1514
        %1717 = vst [vmem:[%s1671 + $0xb4] sm:$0xf] %v1626
        %1718 = vst [vmem:[%s1671 + $0xb8] sm:$0xf] %v1515
        %1719 = vst [vmem:[%s1671 + $0xbc] sm:$0xf] %v1627
        %1720 = vst [vmem:[%s1671 + $0xc0] sm:$0xf] %v1516
        %1721 = vst [vmem:[%s1671 + $0xc4] sm:$0xf] %v1628
        %1722 = vst [vmem:[%s1671 + $0xc8] sm:$0xf] %v1517
        %1723 = vst [vmem:[%s1671 + $0xcc] sm:$0xf] %v1629
        %1724 = vst [vmem:[%s1671 + $0xd0] sm:$0xf] %v1518
        %1725 = vst [vmem:[%s1671 + $0xd4] sm:$0xf] %v1630
        %1726 = vst [vmem:[%s1671 + $0xd8] sm:$0xf] %v1519
        %1727 = vst [vmem:[%s1671 + $0xdc] sm:$0xf] %v1631
        %1728 = vst [vmem:[%s1671 + $0xe0] sm:$0xf] %v1520
        %1729 = vst [vmem:[%s1671 + $0xe4] sm:$0xf] %v1632
        %1730 = vst [vmem:[%s1671 + $0xe8] sm:$0xf] %v1521
        %1731 = vst [vmem:[%s1671 + $0xec] sm:$0xf] %v1633
        %1732 = vst [vmem:[%s1671 + $0xf0] sm:$0xf] %v1522
        %1733 = vst [vmem:[%s1671 + $0xf4] sm:$0xf] %v1634
        %1734 = vst [vmem:[%s1671 + $0xf8] sm:$0xf] %v1523
        %1735 = vst [vmem:[%s1671 + $0xfc] sm:$0xf] %v1635
        %v1736 = vld [vmem:[#allocation2] sm:$0xf]
        %v1737 = vld [vmem:[#allocation2 + $0x4] sm:$0xf]
        %v1738 = vld [vmem:[#allocation2 + $0x8] sm:$0xf]
        %v1739 = vld [vmem:[#allocation2 + $0xc] sm:$0xf]
        %v1740 = vld [vmem:[#allocation2 + $0x10] sm:$0xf]
        %v1741 = vld [vmem:[#allocation2 + $0x14] sm:$0xf]
        %v1742 = vld [vmem:[#allocation2 + $0x18] sm:$0xf]
        %v1743 = vld [vmem:[#allocation2 + $0x1c] sm:$0xf]
        %v1744 = vld [vmem:[#allocation2 + $0x20] sm:$0xf]
        %v1745 = vld [vmem:[#allocation2 + $0x24] sm:$0xf]
        %v1746 = vld [vmem:[#allocation2 + $0x28] sm:$0xf]
        %v1747 = vld [vmem:[#allocation2 + $0x2c] sm:$0xf]
        %v1748 = vld [vmem:[#allocation2 + $0x30] sm:$0xf]
        %v1749 = vld [vmem:[#allocation2 + $0x34] sm:$0xf]
        %v1750 = vld [vmem:[#allocation2 + $0x38] sm:$0xf]
        %v1751 = vld [vmem:[#allocation2 + $0x3c] sm:$0xf]
        %v1752 = vld [vmem:[#allocation2 + $0x40] sm:$0xf]
        %v1753 = vld [vmem:[#allocation2 + $0x44] sm:$0xf]
        %v1754 = vld [vmem:[#allocation2 + $0x48] sm:$0xf]
        %v1755 = vld [vmem:[#allocation2 + $0x4c] sm:$0xf]
        %v1756 = vld [vmem:[#allocation2 + $0x50] sm:$0xf]
        %v1757 = vld [vmem:[#allocation2 + $0x54] sm:$0xf]
        %v1758 = vld [vmem:[#allocation2 + $0x58] sm:$0xf]
        %v1759 = vld [vmem:[#allocation2 + $0x5c] sm:$0xf]
        %v1760 = vld [vmem:[#allocation2 + $0x60] sm:$0xf]
        %v1761 = vld [vmem:[#allocation2 + $0x64] sm:$0xf]
        %v1762 = vld [vmem:[#allocation2 + $0x68] sm:$0xf]
        %v1763 = vld [vmem:[#allocation2 + $0x6c] sm:$0xf]
        %v1764 = vld [vmem:[#allocation2 + $0x70] sm:$0xf]
        %v1765 = vld [vmem:[#allocation2 + $0x74] sm:$0xf]
        %v1766 = vld [vmem:[#allocation2 + $0x78] sm:$0xf]
        %v1767 = vld [vmem:[#allocation2 + $0x7c] sm:$0xf]
        %v1768 = vld [vmem:[#allocation2 + $0x80] sm:$0xf]
        %v1769 = vld [vmem:[#allocation2 + $0x84] sm:$0xf]
        %v1770 = vld [vmem:[#allocation2 + $0x88] sm:$0xf]
        %v1771 = vld [vmem:[#allocation2 + $0x8c] sm:$0xf]
        %v1772 = vld [vmem:[#allocation2 + $0x90] sm:$0xf]
        %v1773 = vld [vmem:[#allocation2 + $0x94] sm:$0xf]
        %v1774 = vld [vmem:[#allocation2 + $0x98] sm:$0xf]
        %v1775 = vld [vmem:[#allocation2 + $0x9c] sm:$0xf]
        %v1776 = vld [vmem:[#allocation2 + $0xa0] sm:$0xf]
        %v1777 = vld [vmem:[#allocation2 + $0xa4] sm:$0xf]
        %v1778 = vld [vmem:[#allocation2 + $0xa8] sm:$0xf]
        %v1779 = vld [vmem:[#allocation2 + $0xac] sm:$0xf]
        %v1780 = vld [vmem:[#allocation2 + $0xb0] sm:$0xf]
        %v1781 = vld [vmem:[#allocation2 + $0xb4] sm:$0xf]
        %v1782 = vld [vmem:[#allocation2 + $0xb8] sm:$0xf]
        %v1783 = vld [vmem:[#allocation2 + $0xbc] sm:$0xf]
        %v1784 = vld [vmem:[#allocation2 + $0xc0] sm:$0xf]
        %v1785 = vld [vmem:[#allocation2 + $0xc4] sm:$0xf]
        %v1786 = vld [vmem:[#allocation2 + $0xc8] sm:$0xf]
        %v1787 = vld [vmem:[#allocation2 + $0xcc] sm:$0xf]
        %v1788 = vld [vmem:[#allocation2 + $0xd0] sm:$0xf]
        %v1789 = vld [vmem:[#allocation2 + $0xd4] sm:$0xf]
        %v1790 = vld [vmem:[#allocation2 + $0xd8] sm:$0xf]
        %v1791 = vld [vmem:[#allocation2 + $0xdc] sm:$0xf]
        %v1792 = vld [vmem:[#allocation2 + $0xe0] sm:$0xf]
        %v1793 = vld [vmem:[#allocation2 + $0xe4] sm:$0xf]
        %v1794 = vld [vmem:[#allocation2 + $0xe8] sm:$0xf]
        %v1795 = vld [vmem:[#allocation2 + $0xec] sm:$0xf]
        %v1796 = vld [vmem:[#allocation2 + $0xf0] sm:$0xf]
        %v1797 = vld [vmem:[#allocation2 + $0xf4] sm:$0xf]
        %v1798 = vld [vmem:[#allocation2 + $0xf8] sm:$0xf]
        %v1799 = vld [vmem:[#allocation2 + $0xfc] sm:$0xf]
        %v1800 = vunpack.c.l.bf16 %v1736
        %v1801 = vunpack.c.l.bf16 %v1737
        %v1802 = vunpack.c.l.bf16 %v1738
        %v1803 = vunpack.c.l.bf16 %v1739
        %v1804 = vunpack.c.l.bf16 %v1740
        %v1805 = vunpack.c.l.bf16 %v1741
        %v1806 = vunpack.c.l.bf16 %v1742
        %v1807 = vunpack.c.l.bf16 %v1743
        %v1808 = vunpack.c.l.bf16 %v1744
        %v1809 = vunpack.c.l.bf16 %v1745
        %v1810 = vunpack.c.l.bf16 %v1746
        %v1811 = vunpack.c.l.bf16 %v1747
        %v1812 = vunpack.c.l.bf16 %v1748
        %v1813 = vunpack.c.l.bf16 %v1749
        %v1814 = vunpack.c.l.bf16 %v1750
        %v1815 = vunpack.c.l.bf16 %v1751
        %v1816 = vunpack.c.l.bf16 %v1752
        %v1817 = vunpack.c.l.bf16 %v1753
        %v1818 = vunpack.c.l.bf16 %v1754
        %v1819 = vunpack.c.l.bf16 %v1755
        %v1820 = vunpack.c.l.bf16 %v1756
        %v1821 = vunpack.c.l.bf16 %v1757
        %v1822 = vunpack.c.l.bf16 %v1758
        %v1823 = vunpack.c.l.bf16 %v1759
        %v1824 = vunpack.c.l.bf16 %v1760
        %v1825 = vunpack.c.l.bf16 %v1761
        %v1826 = vunpack.c.l.bf16 %v1762
        %v1827 = vunpack.c.l.bf16 %v1763
        %v1828 = vunpack.c.l.bf16 %v1764
        %v1829 = vunpack.c.l.bf16 %v1765
        %v1830 = vunpack.c.l.bf16 %v1766
        %v1831 = vunpack.c.l.bf16 %v1767
        %v1832 = vunpack.c.l.bf16 %v1768
        %v1833 = vunpack.c.l.bf16 %v1769
        %v1834 = vunpack.c.l.bf16 %v1770
        %v1835 = vunpack.c.l.bf16 %v1771
        %v1836 = vunpack.c.l.bf16 %v1772
        %v1837 = vunpack.c.l.bf16 %v1773
        %v1838 = vunpack.c.l.bf16 %v1774
        %v1839 = vunpack.c.l.bf16 %v1775
        %v1840 = vunpack.c.l.bf16 %v1776
        %v1841 = vunpack.c.l.bf16 %v1777
        %v1842 = vunpack.c.l.bf16 %v1778
        %v1843 = vunpack.c.l.bf16 %v1779
        %v1844 = vunpack.c.l.bf16 %v1780
        %v1845 = vunpack.c.l.bf16 %v1781
        %v1846 = vunpack.c.l.bf16 %v1782
        %v1847 = vunpack.c.l.bf16 %v1783
        %v1848 = vunpack.c.l.bf16 %v1784
        %v1849 = vunpack.c.l.bf16 %v1785
        %v1850 = vunpack.c.l.bf16 %v1786
        %v1851 = vunpack.c.l.bf16 %v1787
        %v1852 = vunpack.c.l.bf16 %v1788
        %v1853 = vunpack.c.l.bf16 %v1789
        %v1854 = vunpack.c.l.bf16 %v1790
        %v1855 = vunpack.c.l.bf16 %v1791
        %v1856 = vunpack.c.l.bf16 %v1792
        %v1857 = vunpack.c.l.bf16 %v1793
        %v1858 = vunpack.c.l.bf16 %v1794
        %v1859 = vunpack.c.l.bf16 %v1795
        %v1860 = vunpack.c.l.bf16 %v1796
        %v1861 = vunpack.c.l.bf16 %v1797
        %v1862 = vunpack.c.l.bf16 %v1798
        %v1863 = vunpack.c.l.bf16 %v1799
        %v1928 = vrot.slane %v1800, 7
        %v1929 = vrot.slane %v1801, 7
        %v1930 = vrot.slane %v1802, 7
        %v1931 = vrot.slane %v1803, 7
        %v1932 = vrot.slane %v1804, 7
        %v1933 = vrot.slane %v1805, 7
        %v1934 = vrot.slane %v1806, 7
        %v1935 = vrot.slane %v1807, 7
        %v1936 = vrot.slane %v1808, 7
        %v1937 = vrot.slane %v1809, 7
        %v1938 = vrot.slane %v1810, 7
        %v1939 = vrot.slane %v1811, 7
        %v1940 = vrot.slane %v1812, 7
        %v1941 = vrot.slane %v1813, 7
        %v1942 = vrot.slane %v1814, 7
        %v1943 = vrot.slane %v1815, 7
        %v1944 = vrot.slane %v1816, 7
        %v1945 = vrot.slane %v1817, 7
        %v1946 = vrot.slane %v1818, 7
        %v1947 = vrot.slane %v1819, 7
        %v1948 = vrot.slane %v1820, 7
        %v1949 = vrot.slane %v1821, 7
        %v1950 = vrot.slane %v1822, 7
        %v1951 = vrot.slane %v1823, 7
        %v1952 = vrot.slane %v1824, 7
        %v1953 = vrot.slane %v1825, 7
        %v1954 = vrot.slane %v1826, 7
        %v1955 = vrot.slane %v1827, 7
        %v1956 = vrot.slane %v1828, 7
        %v1957 = vrot.slane %v1829, 7
        %v1958 = vrot.slane %v1830, 7
        %v1959 = vrot.slane %v1831, 7
        %v1960 = vrot.slane %v1832, 7
        %v1961 = vrot.slane %v1833, 7
        %v1962 = vrot.slane %v1834, 7
        %v1963 = vrot.slane %v1835, 7
        %v1964 = vrot.slane %v1836, 7
        %v1965 = vrot.slane %v1837, 7
        %v1966 = vrot.slane %v1838, 7
        %v1967 = vrot.slane %v1839, 7
        %v1968 = vrot.slane %v1840, 7
        %v1969 = vrot.slane %v1841, 7
        %v1970 = vrot.slane %v1842, 7
        %v1971 = vrot.slane %v1843, 7
        %v1972 = vrot.slane %v1844, 7
        %v1973 = vrot.slane %v1845, 7
        %v1974 = vrot.slane %v1846, 7
        %v1975 = vrot.slane %v1847, 7
        %v1976 = vrot.slane %v1848, 7
        %v1977 = vrot.slane %v1849, 7
        %v1978 = vrot.slane %v1850, 7
        %v1979 = vrot.slane %v1851, 7
        %v1980 = vrot.slane %v1852, 7
        %v1981 = vrot.slane %v1853, 7
        %v1982 = vrot.slane %v1854, 7
        %v1983 = vrot.slane %v1855, 7
        %v1984 = vrot.slane %v1856, 7
        %v1985 = vrot.slane %v1857, 7
        %v1986 = vrot.slane %v1858, 7
        %v1987 = vrot.slane %v1859, 7
        %v1988 = vrot.slane %v1860, 7
        %v1989 = vrot.slane %v1861, 7
        %v1990 = vrot.slane %v1862, 7
        %v1991 = vrot.slane %v1863, 7
        %vm2056 = vcmask 1040384
        %v2057 = vsel %vm2056, 0.0, %v1928
        %v2058 = vsel %vm2056, 0.0, %v1929
        %v2059 = vsel %vm2056, 0.0, %v1930
        %v2060 = vsel %vm2056, 0.0, %v1931
        %v2061 = vsel %vm2056, 0.0, %v1932
        %v2062 = vsel %vm2056, 0.0, %v1933
        %v2063 = vsel %vm2056, 0.0, %v1934
        %v2064 = vsel %vm2056, 0.0, %v1935
        %v2065 = vsel %vm2056, 0.0, %v1936
        %v2066 = vsel %vm2056, 0.0, %v1937
        %v2067 = vsel %vm2056, 0.0, %v1938
        %v2068 = vsel %vm2056, 0.0, %v1939
        %v2069 = vsel %vm2056, 0.0, %v1940
        %v2070 = vsel %vm2056, 0.0, %v1941
        %v2071 = vsel %vm2056, 0.0, %v1942
        %v2072 = vsel %vm2056, 0.0, %v1943
        %v2073 = vsel %vm2056, 0.0, %v1944
        %v2074 = vsel %vm2056, 0.0, %v1945
        %v2075 = vsel %vm2056, 0.0, %v1946
        %v2076 = vsel %vm2056, 0.0, %v1947
        %v2077 = vsel %vm2056, 0.0, %v1948
        %v2078 = vsel %vm2056, 0.0, %v1949
        %v2079 = vsel %vm2056, 0.0, %v1950
        %v2080 = vsel %vm2056, 0.0, %v1951
        %v2081 = vsel %vm2056, 0.0, %v1952
        %v2082 = vsel %vm2056, 0.0, %v1953
        %v2083 = vsel %vm2056, 0.0, %v1954
        %v2084 = vsel %vm2056, 0.0, %v1955
        %v2085 = vsel %vm2056, 0.0, %v1956
        %v2086 = vsel %vm2056, 0.0, %v1957
        %v2087 = vsel %vm2056, 0.0, %v1958
        %v2088 = vsel %vm2056, 0.0, %v1959
        %v2089 = vsel %vm2056, 0.0, %v1960
        %v2090 = vsel %vm2056, 0.0, %v1961
        %v2091 = vsel %vm2056, 0.0, %v1962
        %v2092 = vsel %vm2056, 0.0, %v1963
        %v2093 = vsel %vm2056, 0.0, %v1964
        %v2094 = vsel %vm2056, 0.0, %v1965
        %v2095 = vsel %vm2056, 0.0, %v1966
        %v2096 = vsel %vm2056, 0.0, %v1967
        %v2097 = vsel %vm2056, 0.0, %v1968
        %v2098 = vsel %vm2056, 0.0, %v1969
        %v2099 = vsel %vm2056, 0.0, %v1970
        %v2100 = vsel %vm2056, 0.0, %v1971
        %v2101 = vsel %vm2056, 0.0, %v1972
        %v2102 = vsel %vm2056, 0.0, %v1973
        %v2103 = vsel %vm2056, 0.0, %v1974
        %v2104 = vsel %vm2056, 0.0, %v1975
        %v2105 = vsel %vm2056, 0.0, %v1976
        %v2106 = vsel %vm2056, 0.0, %v1977
        %v2107 = vsel %vm2056, 0.0, %v1978
        %v2108 = vsel %vm2056, 0.0, %v1979
        %v2109 = vsel %vm2056, 0.0, %v1980
        %v2110 = vsel %vm2056, 0.0, %v1981
        %v2111 = vsel %vm2056, 0.0, %v1982
        %v2112 = vsel %vm2056, 0.0, %v1983
        %v2113 = vsel %vm2056, 0.0, %v1984
        %v2114 = vsel %vm2056, 0.0, %v1985
        %v2115 = vsel %vm2056, 0.0, %v1986
        %v2116 = vsel %vm2056, 0.0, %v1987
        %v2117 = vsel %vm2056, 0.0, %v1988
        %v2118 = vsel %vm2056, 0.0, %v1989
        %v2119 = vsel %vm2056, 0.0, %v1990
        %v2120 = vsel %vm2056, 0.0, %v1991
        %v2121 = vrot.slane %v1800, 1
        %v2122 = vrot.slane %v1801, 1
        %v2123 = vrot.slane %v1802, 1
        %v2124 = vrot.slane %v1803, 1
        %v2125 = vrot.slane %v1804, 1
        %v2126 = vrot.slane %v1805, 1
        %v2127 = vrot.slane %v1806, 1
        %v2128 = vrot.slane %v1807, 1
        %v2129 = vrot.slane %v1808, 1
        %v2130 = vrot.slane %v1809, 1
        %v2131 = vrot.slane %v1810, 1
        %v2132 = vrot.slane %v1811, 1
        %v2133 = vrot.slane %v1812, 1
        %v2134 = vrot.slane %v1813, 1
        %v2135 = vrot.slane %v1814, 1
        %v2136 = vrot.slane %v1815, 1
        %v2137 = vrot.slane %v1816, 1
        %v2138 = vrot.slane %v1817, 1
        %v2139 = vrot.slane %v1818, 1
        %v2140 = vrot.slane %v1819, 1
        %v2141 = vrot.slane %v1820, 1
        %v2142 = vrot.slane %v1821, 1
        %v2143 = vrot.slane %v1822, 1
        %v2144 = vrot.slane %v1823, 1
        %v2145 = vrot.slane %v1824, 1
        %v2146 = vrot.slane %v1825, 1
        %v2147 = vrot.slane %v1826, 1
        %v2148 = vrot.slane %v1827, 1
        %v2149 = vrot.slane %v1828, 1
        %v2150 = vrot.slane %v1829, 1
        %v2151 = vrot.slane %v1830, 1
        %v2152 = vrot.slane %v1831, 1
        %v2153 = vrot.slane %v1832, 1
        %v2154 = vrot.slane %v1833, 1
        %v2155 = vrot.slane %v1834, 1
        %v2156 = vrot.slane %v1835, 1
        %v2157 = vrot.slane %v1836, 1
        %v2158 = vrot.slane %v1837, 1
        %v2159 = vrot.slane %v1838, 1
        %v2160 = vrot.slane %v1839, 1
        %v2161 = vrot.slane %v1840, 1
        %v2162 = vrot.slane %v1841, 1
        %v2163 = vrot.slane %v1842, 1
        %v2164 = vrot.slane %v1843, 1
        %v2165 = vrot.slane %v1844, 1
        %v2166 = vrot.slane %v1845, 1
        %v2167 = vrot.slane %v1846, 1
        %v2168 = vrot.slane %v1847, 1
        %v2169 = vrot.slane %v1848, 1
        %v2170 = vrot.slane %v1849, 1
        %v2171 = vrot.slane %v1850, 1
        %v2172 = vrot.slane %v1851, 1
        %v2173 = vrot.slane %v1852, 1
        %v2174 = vrot.slane %v1853, 1
        %v2175 = vrot.slane %v1854, 1
        %v2176 = vrot.slane %v1855, 1
        %v2177 = vrot.slane %v1856, 1
        %v2178 = vrot.slane %v1857, 1
        %v2179 = vrot.slane %v1858, 1
        %v2180 = vrot.slane %v1859, 1
        %v2181 = vrot.slane %v1860, 1
        %v2182 = vrot.slane %v1861, 1
        %v2183 = vrot.slane %v1862, 1
        %v2184 = vrot.slane %v1863, 1
        %vm2249 = vcmask 1046528
        %v2250 = vsel %vm2249, %v2121, 0.0
        %v2251 = vsel %vm2249, %v2122, 0.0
        %v2252 = vsel %vm2249, %v2123, 0.0
        %v2253 = vsel %vm2249, %v2124, 0.0
        %v2254 = vsel %vm2249, %v2125, 0.0
        %v2255 = vsel %vm2249, %v2126, 0.0
        %v2256 = vsel %vm2249, %v2127, 0.0
        %v2257 = vsel %vm2249, %v2128, 0.0
        %v2258 = vsel %vm2249, %v2129, 0.0
        %v2259 = vsel %vm2249, %v2130, 0.0
        %v2260 = vsel %vm2249, %v2131, 0.0
        %v2261 = vsel %vm2249, %v2132, 0.0
        %v2262 = vsel %vm2249, %v2133, 0.0
        %v2263 = vsel %vm2249, %v2134, 0.0
        %v2264 = vsel %vm2249, %v2135, 0.0
        %v2265 = vsel %vm2249, %v2136, 0.0
        %v2266 = vsel %vm2249, %v2137, 0.0
        %v2267 = vsel %vm2249, %v2138, 0.0
        %v2268 = vsel %vm2249, %v2139, 0.0
        %v2269 = vsel %vm2249, %v2140, 0.0
        %v2270 = vsel %vm2249, %v2141, 0.0
        %v2271 = vsel %vm2249, %v2142, 0.0
        %v2272 = vsel %vm2249, %v2143, 0.0
        %v2273 = vsel %vm2249, %v2144, 0.0
        %v2274 = vsel %vm2249, %v2145, 0.0
        %v2275 = vsel %vm2249, %v2146, 0.0
        %v2276 = vsel %vm2249, %v2147, 0.0
        %v2277 = vsel %vm2249, %v2148, 0.0
        %v2278 = vsel %vm2249, %v2149, 0.0
        %v2279 = vsel %vm2249, %v2150, 0.0
        %v2280 = vsel %vm2249, %v2151, 0.0
        %v2281 = vsel %vm2249, %v2152, 0.0
        %v2282 = vsel %vm2249, %v2153, 0.0
        %v2283 = vsel %vm2249, %v2154, 0.0
        %v2284 = vsel %vm2249, %v2155, 0.0
        %v2285 = vsel %vm2249, %v2156, 0.0
        %v2286 = vsel %vm2249, %v2157, 0.0
        %v2287 = vsel %vm2249, %v2158, 0.0
        %v2288 = vsel %vm2249, %v2159, 0.0
        %v2289 = vsel %vm2249, %v2160, 0.0
        %v2290 = vsel %vm2249, %v2161, 0.0
        %v2291 = vsel %vm2249, %v2162, 0.0
        %v2292 = vsel %vm2249, %v2163, 0.0
        %v2293 = vsel %vm2249, %v2164, 0.0
        %v2294 = vsel %vm2249, %v2165, 0.0
        %v2295 = vsel %vm2249, %v2166, 0.0
        %v2296 = vsel %vm2249, %v2167, 0.0
        %v2297 = vsel %vm2249, %v2168, 0.0
        %v2298 = vsel %vm2249, %v2169, 0.0
        %v2299 = vsel %vm2249, %v2170, 0.0
        %v2300 = vsel %vm2249, %v2171, 0.0
        %v2301 = vsel %vm2249, %v2172, 0.0
        %v2302 = vsel %vm2249, %v2173, 0.0
        %v2303 = vsel %vm2249, %v2174, 0.0
        %v2304 = vsel %vm2249, %v2175, 0.0
        %v2305 = vsel %vm2249, %v2176, 0.0
        %v2306 = vsel %vm2249, %v2177, 0.0
        %v2307 = vsel %vm2249, %v2178, 0.0
        %v2308 = vsel %vm2249, %v2179, 0.0
        %v2309 = vsel %vm2249, %v2180, 0.0
        %v2310 = vsel %vm2249, %v2181, 0.0
        %v2311 = vsel %vm2249, %v2182, 0.0
        %v2312 = vsel %vm2249, %v2183, 0.0
        %v2313 = vsel %vm2249, %v2184, 0.0
        %v2314 = vpack.c.bf16 %v2057, %v2057
        %v2315 = vpack.c.bf16 %v2058, %v2058
        %v2316 = vpack.c.bf16 %v2059, %v2059
        %v2317 = vpack.c.bf16 %v2060, %v2060
        %v2318 = vpack.c.bf16 %v2061, %v2061
        %v2319 = vpack.c.bf16 %v2062, %v2062
        %v2320 = vpack.c.bf16 %v2063, %v2063
        %v2321 = vpack.c.bf16 %v2064, %v2064
        %v2322 = vpack.c.bf16 %v2065, %v2065
        %v2323 = vpack.c.bf16 %v2066, %v2066
        %v2324 = vpack.c.bf16 %v2067, %v2067
        %v2325 = vpack.c.bf16 %v2068, %v2068
        %v2326 = vpack.c.bf16 %v2069, %v2069
        %v2327 = vpack.c.bf16 %v2070, %v2070
        %v2328 = vpack.c.bf16 %v2071, %v2071
        %v2329 = vpack.c.bf16 %v2072, %v2072
        %v2330 = vpack.c.bf16 %v2073, %v2073
        %v2331 = vpack.c.bf16 %v2074, %v2074
        %v2332 = vpack.c.bf16 %v2075, %v2075
        %v2333 = vpack.c.bf16 %v2076, %v2076
        %v2334 = vpack.c.bf16 %v2077, %v2077
        %v2335 = vpack.c.bf16 %v2078, %v2078
        %v2336 = vpack.c.bf16 %v2079, %v2079
        %v2337 = vpack.c.bf16 %v2080, %v2080
        %v2338 = vpack.c.bf16 %v2081, %v2081
        %v2339 = vpack.c.bf16 %v2082, %v2082
        %v2340 = vpack.c.bf16 %v2083, %v2083
        %v2341 = vpack.c.bf16 %v2084, %v2084
        %v2342 = vpack.c.bf16 %v2085, %v2085
        %v2343 = vpack.c.bf16 %v2086, %v2086
        %v2344 = vpack.c.bf16 %v2087, %v2087
        %v2345 = vpack.c.bf16 %v2088, %v2088
        %v2346 = vpack.c.bf16 %v2089, %v2089
        %v2347 = vpack.c.bf16 %v2090, %v2090
        %v2348 = vpack.c.bf16 %v2091, %v2091
        %v2349 = vpack.c.bf16 %v2092, %v2092
        %v2350 = vpack.c.bf16 %v2093, %v2093
        %v2351 = vpack.c.bf16 %v2094, %v2094
        %v2352 = vpack.c.bf16 %v2095, %v2095
        %v2353 = vpack.c.bf16 %v2096, %v2096
        %v2354 = vpack.c.bf16 %v2097, %v2097
        %v2355 = vpack.c.bf16 %v2098, %v2098
        %v2356 = vpack.c.bf16 %v2099, %v2099
        %v2357 = vpack.c.bf16 %v2100, %v2100
        %v2358 = vpack.c.bf16 %v2101, %v2101
        %v2359 = vpack.c.bf16 %v2102, %v2102
        %v2360 = vpack.c.bf16 %v2103, %v2103
        %v2361 = vpack.c.bf16 %v2104, %v2104
        %v2362 = vpack.c.bf16 %v2105, %v2105
        %v2363 = vpack.c.bf16 %v2106, %v2106
        %v2364 = vpack.c.bf16 %v2107, %v2107
        %v2365 = vpack.c.bf16 %v2108, %v2108
        %v2366 = vpack.c.bf16 %v2109, %v2109
        %v2367 = vpack.c.bf16 %v2110, %v2110
        %v2368 = vpack.c.bf16 %v2111, %v2111
        %v2369 = vpack.c.bf16 %v2112, %v2112
        %v2370 = vpack.c.bf16 %v2113, %v2113
        %v2371 = vpack.c.bf16 %v2114, %v2114
        %v2372 = vpack.c.bf16 %v2115, %v2115
        %v2373 = vpack.c.bf16 %v2116, %v2116
        %v2374 = vpack.c.bf16 %v2117, %v2117
        %v2375 = vpack.c.bf16 %v2118, %v2118
        %v2376 = vpack.c.bf16 %v2119, %v2119
        %v2377 = vpack.c.bf16 %v2120, %v2120
        %v2378 = vpack.c.bf16 %v2250, %v2250
        %v2379 = vpack.c.bf16 %v2251, %v2251
        %v2380 = vpack.c.bf16 %v2252, %v2252
        %v2381 = vpack.c.bf16 %v2253, %v2253
        %v2382 = vpack.c.bf16 %v2254, %v2254
        %v2383 = vpack.c.bf16 %v2255, %v2255
        %v2384 = vpack.c.bf16 %v2256, %v2256
        %v2385 = vpack.c.bf16 %v2257, %v2257
        %v2386 = vpack.c.bf16 %v2258, %v2258
        %v2387 = vpack.c.bf16 %v2259, %v2259
        %v2388 = vpack.c.bf16 %v2260, %v2260
        %v2389 = vpack.c.bf16 %v2261, %v2261
        %v2390 = vpack.c.bf16 %v2262, %v2262
        %v2391 = vpack.c.bf16 %v2263, %v2263
        %v2392 = vpack.c.bf16 %v2264, %v2264
        %v2393 = vpack.c.bf16 %v2265, %v2265
        %v2394 = vpack.c.bf16 %v2266, %v2266
        %v2395 = vpack.c.bf16 %v2267, %v2267
        %v2396 = vpack.c.bf16 %v2268, %v2268
        %v2397 = vpack.c.bf16 %v2269, %v2269
        %v2398 = vpack.c.bf16 %v2270, %v2270
        %v2399 = vpack.c.bf16 %v2271, %v2271
        %v2400 = vpack.c.bf16 %v2272, %v2272
        %v2401 = vpack.c.bf16 %v2273, %v2273
        %v2402 = vpack.c.bf16 %v2274, %v2274
        %v2403 = vpack.c.bf16 %v2275, %v2275
        %v2404 = vpack.c.bf16 %v2276, %v2276
        %v2405 = vpack.c.bf16 %v2277, %v2277
        %v2406 = vpack.c.bf16 %v2278, %v2278
        %v2407 = vpack.c.bf16 %v2279, %v2279
        %v2408 = vpack.c.bf16 %v2280, %v2280
        %v2409 = vpack.c.bf16 %v2281, %v2281
        %v2410 = vpack.c.bf16 %v2282, %v2282
        %v2411 = vpack.c.bf16 %v2283, %v2283
        %v2412 = vpack.c.bf16 %v2284, %v2284
        %v2413 = vpack.c.bf16 %v2285, %v2285
        %v2414 = vpack.c.bf16 %v2286, %v2286
        %v2415 = vpack.c.bf16 %v2287, %v2287
        %v2416 = vpack.c.bf16 %v2288, %v2288
        %v2417 = vpack.c.bf16 %v2289, %v2289
        %v2418 = vpack.c.bf16 %v2290, %v2290
        %v2419 = vpack.c.bf16 %v2291, %v2291
        %v2420 = vpack.c.bf16 %v2292, %v2292
        %v2421 = vpack.c.bf16 %v2293, %v2293
        %v2422 = vpack.c.bf16 %v2294, %v2294
        %v2423 = vpack.c.bf16 %v2295, %v2295
        %v2424 = vpack.c.bf16 %v2296, %v2296
        %v2425 = vpack.c.bf16 %v2297, %v2297
        %v2426 = vpack.c.bf16 %v2298, %v2298
        %v2427 = vpack.c.bf16 %v2299, %v2299
        %v2428 = vpack.c.bf16 %v2300, %v2300
        %v2429 = vpack.c.bf16 %v2301, %v2301
        %v2430 = vpack.c.bf16 %v2302, %v2302
        %v2431 = vpack.c.bf16 %v2303, %v2303
        %v2432 = vpack.c.bf16 %v2304, %v2304
        %v2433 = vpack.c.bf16 %v2305, %v2305
        %v2434 = vpack.c.bf16 %v2306, %v2306
        %v2435 = vpack.c.bf16 %v2307, %v2307
        %v2436 = vpack.c.bf16 %v2308, %v2308
        %v2437 = vpack.c.bf16 %v2309, %v2309
        %v2438 = vpack.c.bf16 %v2310, %v2310
        %v2439 = vpack.c.bf16 %v2311, %v2311
        %v2440 = vpack.c.bf16 %v2312, %v2312
        %v2441 = vpack.c.bf16 %v2313, %v2313
        %v2442 = vld [vmem:[#allocation15] sm:$0xf]
        %v2443 = vld [vmem:[#allocation15 + $0x4] sm:$0xf]
        %v2444 = vld [vmem:[#allocation15 + $0x8] sm:$0xf]
        %v2445 = vld [vmem:[#allocation15 + $0xc] sm:$0xf]
        %v2446 = vld [vmem:[#allocation15 + $0x10] sm:$0xf]
        %v2447 = vld [vmem:[#allocation15 + $0x14] sm:$0xf]
        %v2448 = vld [vmem:[#allocation15 + $0x18] sm:$0xf]
        %v2449 = vld [vmem:[#allocation15 + $0x1c] sm:$0xf]
        %v2450 = vld [vmem:[#allocation15 + $0x20] sm:$0xf]
        %v2451 = vld [vmem:[#allocation15 + $0x24] sm:$0xf]
        %v2452 = vld [vmem:[#allocation15 + $0x28] sm:$0xf]
        %v2453 = vld [vmem:[#allocation15 + $0x2c] sm:$0xf]
        %v2454 = vld [vmem:[#allocation15 + $0x30] sm:$0xf]
        %v2455 = vld [vmem:[#allocation15 + $0x34] sm:$0xf]
        %v2456 = vld [vmem:[#allocation15 + $0x38] sm:$0xf]
        %v2457 = vld [vmem:[#allocation15 + $0x3c] sm:$0xf]
        %s2458 = scalar_lea.vmem [#allocation15], 64
        %v2459 = vld [vmem:[%s2458] sm:$0xf]
        %v2460 = vld [vmem:[%s2458 + $0x4] sm:$0xf]
        %v2461 = vld [vmem:[%s2458 + $0x8] sm:$0xf]
        %v2462 = vld [vmem:[%s2458 + $0xc] sm:$0xf]
        %v2463 = vld [vmem:[%s2458 + $0x10] sm:$0xf]
        %v2464 = vld [vmem:[%s2458 + $0x14] sm:$0xf]
        %v2465 = vld [vmem:[%s2458 + $0x18] sm:$0xf]
        %v2466 = vld [vmem:[%s2458 + $0x1c] sm:$0xf]
        %v2467 = vld [vmem:[%s2458 + $0x20] sm:$0xf]
        %v2468 = vld [vmem:[%s2458 + $0x24] sm:$0xf]
        %v2469 = vld [vmem:[%s2458 + $0x28] sm:$0xf]
        %v2470 = vld [vmem:[%s2458 + $0x2c] sm:$0xf]
        %v2471 = vld [vmem:[%s2458 + $0x30] sm:$0xf]
        %v2472 = vld [vmem:[%s2458 + $0x34] sm:$0xf]
        %v2473 = vld [vmem:[%s2458 + $0x38] sm:$0xf]
        %v2474 = vld [vmem:[%s2458 + $0x3c] sm:$0xf]
        %v2539 = vunpack.c.l.b16 %v1736
        %v2540 = vunpack.c.l.b16 %v1737
        %v2541 = vunpack.c.l.b16 %v1738
        %v2542 = vunpack.c.l.b16 %v1739
        %v2543 = vunpack.c.l.b16 %v1740
        %v2544 = vunpack.c.l.b16 %v1741
        %v2545 = vunpack.c.l.b16 %v1742
        %v2546 = vunpack.c.l.b16 %v1743
        %v2547 = vunpack.c.l.b16 %v1744
        %v2548 = vunpack.c.l.b16 %v1745
        %v2549 = vunpack.c.l.b16 %v1746
        %v2550 = vunpack.c.l.b16 %v1747
        %v2551 = vunpack.c.l.b16 %v1748
        %v2552 = vunpack.c.l.b16 %v1749
        %v2553 = vunpack.c.l.b16 %v1750
        %v2554 = vunpack.c.l.b16 %v1751
        %v2555 = vunpack.c.l.b16 %v1752
        %v2556 = vunpack.c.l.b16 %v1753
        %v2557 = vunpack.c.l.b16 %v1754
        %v2558 = vunpack.c.l.b16 %v1755
        %v2559 = vunpack.c.l.b16 %v1756
        %v2560 = vunpack.c.l.b16 %v1757
        %v2561 = vunpack.c.l.b16 %v1758
        %v2562 = vunpack.c.l.b16 %v1759
        %v2563 = vunpack.c.l.b16 %v1760
        %v2564 = vunpack.c.l.b16 %v1761
        %v2565 = vunpack.c.l.b16 %v1762
        %v2566 = vunpack.c.l.b16 %v1763
        %v2567 = vunpack.c.l.b16 %v1764
        %v2568 = vunpack.c.l.b16 %v1765
        %v2569 = vunpack.c.l.b16 %v1766
        %v2570 = vunpack.c.l.b16 %v1767
        %v2571 = vunpack.c.l.b16 %v1768
        %v2572 = vunpack.c.l.b16 %v1769
        %v2573 = vunpack.c.l.b16 %v1770
        %v2574 = vunpack.c.l.b16 %v1771
        %v2575 = vunpack.c.l.b16 %v1772
        %v2576 = vunpack.c.l.b16 %v1773
        %v2577 = vunpack.c.l.b16 %v1774
        %v2578 = vunpack.c.l.b16 %v1775
        %v2579 = vunpack.c.l.b16 %v1776
        %v2580 = vunpack.c.l.b16 %v1777
        %v2581 = vunpack.c.l.b16 %v1778
        %v2582 = vunpack.c.l.b16 %v1779
        %v2583 = vunpack.c.l.b16 %v1780
        %v2584 = vunpack.c.l.b16 %v1781
        %v2585 = vunpack.c.l.b16 %v1782
        %v2586 = vunpack.c.l.b16 %v1783
        %v2587 = vunpack.c.l.b16 %v1784
        %v2588 = vunpack.c.l.b16 %v1785
        %v2589 = vunpack.c.l.b16 %v1786
        %v2590 = vunpack.c.l.b16 %v1787
        %v2591 = vunpack.c.l.b16 %v1788
        %v2592 = vunpack.c.l.b16 %v1789
        %v2593 = vunpack.c.l.b16 %v1790
        %v2594 = vunpack.c.l.b16 %v1791
        %v2595 = vunpack.c.l.b16 %v1792
        %v2596 = vunpack.c.l.b16 %v1793
        %v2597 = vunpack.c.l.b16 %v1794
        %v2598 = vunpack.c.l.b16 %v1795
        %v2599 = vunpack.c.l.b16 %v1796
        %v2600 = vunpack.c.l.b16 %v1797
        %v2601 = vunpack.c.l.b16 %v1798
        %v2602 = vunpack.c.l.b16 %v1799
        %v2603 = vpack.c.b16 %v2540, %v2539
        %v2604 = vpack.c.b16 %v2542, %v2541
        %v2605 = vpack.c.b16 %v2544, %v2543
        %v2606 = vpack.c.b16 %v2546, %v2545
        %v2607 = vpack.c.b16 %v2548, %v2547
        %v2608 = vpack.c.b16 %v2550, %v2549
        %v2609 = vpack.c.b16 %v2552, %v2551
        %v2610 = vpack.c.b16 %v2554, %v2553
        %v2611 = vpack.c.b16 %v2556, %v2555
        %v2612 = vpack.c.b16 %v2558, %v2557
        %v2613 = vpack.c.b16 %v2560, %v2559
        %v2614 = vpack.c.b16 %v2562, %v2561
        %v2615 = vpack.c.b16 %v2564, %v2563
        %v2616 = vpack.c.b16 %v2566, %v2565
        %v2617 = vpack.c.b16 %v2568, %v2567
        %v2618 = vpack.c.b16 %v2570, %v2569
        %v2619 = vpack.c.b16 %v2572, %v2571
        %v2620 = vpack.c.b16 %v2574, %v2573
        %v2621 = vpack.c.b16 %v2576, %v2575
        %v2622 = vpack.c.b16 %v2578, %v2577
        %v2623 = vpack.c.b16 %v2580, %v2579
        %v2624 = vpack.c.b16 %v2582, %v2581
        %v2625 = vpack.c.b16 %v2584, %v2583
        %v2626 = vpack.c.b16 %v2586, %v2585
        %v2627 = vpack.c.b16 %v2588, %v2587
        %v2628 = vpack.c.b16 %v2590, %v2589
        %v2629 = vpack.c.b16 %v2592, %v2591
        %v2630 = vpack.c.b16 %v2594, %v2593
        %v2631 = vpack.c.b16 %v2596, %v2595
        %v2632 = vpack.c.b16 %v2598, %v2597
        %v2633 = vpack.c.b16 %v2600, %v2599
        %v2634 = vpack.c.b16 %v2602, %v2601
        %v2683 = vunpack.c.l.b16 %v2459
        %v2684 = vunpack.c.l.b16 %v2460
        %v2685 = vunpack.c.l.b16 %v2461
        %v2686 = vunpack.c.l.b16 %v2462
        %v2687 = vunpack.c.l.b16 %v2463
        %v2688 = vunpack.c.l.b16 %v2464
        %v2689 = vunpack.c.l.b16 %v2465
        %v2690 = vunpack.c.l.b16 %v2466
        %v2691 = vunpack.c.l.b16 %v2467
        %v2692 = vunpack.c.l.b16 %v2468
        %v2693 = vunpack.c.l.b16 %v2469
        %v2694 = vunpack.c.l.b16 %v2470
        %v2695 = vunpack.c.l.b16 %v2471
        %v2696 = vunpack.c.l.b16 %v2472
        %v2697 = vunpack.c.l.b16 %v2473
        %v2698 = vunpack.c.l.b16 %v2474
        %v2699 = vpack.c.b16 %v2684, %v2683
        %v2700 = vpack.c.b16 %v2686, %v2685
        %v2701 = vpack.c.b16 %v2688, %v2687
        %v2702 = vpack.c.b16 %v2690, %v2689
        %v2703 = vpack.c.b16 %v2692, %v2691
        %v2704 = vpack.c.b16 %v2694, %v2693
        %v2705 = vpack.c.b16 %v2696, %v2695
        %v2706 = vpack.c.b16 %v2698, %v2697
        %2715 = vmatprep.subr.bf16.mxu0 0
        %2716 = vmatpush1.bf16.msra.mxu0 %v2699
        %2717 = vmatprep.subr.bf16.mxu0 0
        %2718 = vmatpush1.bf16.msra.mxu0 %v2700
        %2719 = vmatprep.subr.bf16.mxu0 0
        %2720 = vmatpush1.bf16.msra.mxu0 %v2701
        %2721 = vmatprep.subr.bf16.mxu0 0
        %2722 = vmatpush1.bf16.msra.mxu0 %v2702
        %2723 = vmatprep.subr.bf16.mxu0 0
        %2724 = vmatpush1.bf16.msra.mxu0 %v2703
        %2725 = vmatprep.subr.bf16.mxu0 0
        %2726 = vmatpush1.bf16.msra.mxu0 %v2704
        %2727 = vmatprep.subr.bf16.mxu0 0
        %2728 = vmatpush1.bf16.msra.mxu0 %v2705
        %2729 = vmatprep.subr.bf16.mxu0 0
        %2730 = vmatpush1.bf16.msra.mxu0 %v2706
        %2731 = vmatprep.subr.bf16.mxu0 0
        %2732 = vmatpush1.bf16.msra.mxu0 0
        %2733 = vmatprep.subr.bf16.mxu0 0
        %2734 = vmatpush1.bf16.msra.mxu0 0
        %2735 = vmatprep.subr.bf16.mxu0 0
        %2736 = vmatpush1.bf16.msra.mxu0 0
        %2737 = vmatprep.subr.bf16.mxu0 0
        %2738 = vmatpush1.bf16.msra.mxu0 0
        %2739 = vmatprep.subr.bf16.mxu0 0
        %2740 = vmatpush1.bf16.msra.mxu0 0
        %2741 = vmatprep.subr.bf16.mxu0 0
        %2742 = vmatpush1.bf16.msra.mxu0 0
        %2743 = vmatprep.subr.bf16.mxu0 0
        %2744 = vmatpush1.bf16.msra.mxu0 0
        %2745 = vmatprep.subr.bf16.mxu0 0
        %2746 = vmatpush1.bf16.msra.mxu0 0
        %2747 = vmatprep.mubr.bf16.mxu0 0
        %2748 = vmatmul.mubr.bf16.gmra.mrb[0].mxu0 %v2603
        %v2749 = vpop.f32.mrb[0].mxu0
        %v2750 = vadd.f32 0.0, %v2749
        %v2751 = vpop.f32.mrb[0].mxu0
        %v2752 = vpop.f32.mrb[0].mxu0
        %v2753 = vadd.f32 0.0, %v2752
        %v2754 = vpop.f32.mrb[0].mxu0
        %2755 = vmatprep.mubr.bf16.mxu0 0
        %2756 = vmatmul.mubr.bf16.gmra.mrb[0].mxu0 %v2604
        %v2757 = vpop.f32.mrb[0].mxu0
        %v2758 = vadd.f32 0.0, %v2757
        %v2759 = vpop.f32.mrb[0].mxu0
        %v2760 = vpop.f32.mrb[0].mxu0
        %v2761 = vadd.f32 0.0, %v2760
        %v2762 = vpop.f32.mrb[0].mxu0
        %2763 = vmatprep.mubr.bf16.mxu0 0
        %2764 = vmatmul.mubr.bf16.gmra.mrb[0].mxu0 %v2605
        %v2765 = vpop.f32.mrb[0].mxu0
        %v2766 = vadd.f32 0.0, %v2765
        %v2767 = vpop.f32.mrb[0].mxu0
        %v2768 = vpop.f32.mrb[0].mxu0
        %v2769 = vadd.f32 0.0, %v2768
        %v2770 = vpop.f32.mrb[0].mxu0
        %2771 = vmatprep.mubr.bf16.mxu0 0
        %2772 = vmatmul.mubr.bf16.gmra.mrb[0].mxu0 %v2606
        %v2773 = vpop.f32.mrb[0].mxu0
        %v2774 = vadd.f32 0.0, %v2773
        %v2775 = vpop.f32.mrb[0].mxu0
        %v2776 = vpop.f32.mrb[0].mxu0
        %v2777 = vadd.f32 0.0, %v2776
        %v2778 = vpop.f32.mrb[0].mxu0
        %2779 = vmatprep.mubr.bf16.mxu0 0
        %2780 = vmatmul.mubr.bf16.gmra.mrb[0].mxu0 %v2607
        %v2781 = vpop.f32.mrb[0].mxu0
        %v2782 = vadd.f32 0.0, %v2781
        %v2783 = vpop.f32.mrb[0].mxu0
        %v2784 = vpop.f32.mrb[0].mxu0
        %v2785 = vadd.f32 0.0, %v2784
        %v2786 = vpop.f32.mrb[0].mxu0
        %2787 = vmatprep.mubr.bf16.mxu0 0
        %2788 = vmatmul.mubr.bf16.gmra.mrb[0].mxu0 %v2608
        %v2789 = vpop.f32.mrb[0].mxu0
        %v2790 = vadd.f32 0.0, %v2789
        %v2791 = vpop.f32.mrb[0].mxu0
        %v2792 = vpop.f32.mrb[0].mxu0
        %v2793 = vadd.f32 0.0, %v2792
        %v2794 = vpop.f32.mrb[0].mxu0
        %2795 = vmatprep.mubr.bf16.mxu0 0
        %2796 = vmatmul.mubr.bf16.gmra.mrb[0].mxu0 %v2609
        %v2797 = vpop.f32.mrb[0].mxu0
        %v2798 = vadd.f32 0.0, %v2797
        %v2799 = vpop.f32.mrb[0].mxu0
        %v2800 = vpop.f32.mrb[0].mxu0
        %v2801 = vadd.f32 0.0, %v2800
        %v2802 = vpop.f32.mrb[0].mxu0
        %2803 = vmatprep.mubr.bf16.mxu0 0
        %2804 = vmatmul.mubr.bf16.gmra.mrb[0].mxu0 %v2610
        %v2805 = vpop.f32.mrb[0].mxu0
        %v2806 = vadd.f32 0.0, %v2805
        %v2807 = vpop.f32.mrb[0].mxu0
        %v2808 = vpop.f32.mrb[0].mxu0
        %v2809 = vadd.f32 0.0, %v2808
        %v2810 = vpop.f32.mrb[0].mxu0
        %2811 = vmatprep.mubr.bf16.mxu0 0
        %2812 = vmatmul.mubr.bf16.gmra.mrb[0].mxu0 %v2611
        %v2813 = vpop.f32.mrb[0].mxu0
        %v2814 = vadd.f32 0.0, %v2813
        %v2815 = vpop.f32.mrb[0].mxu0
        %v2816 = vpop.f32.mrb[0].mxu0
        %v2817 = vadd.f32 0.0, %v2816
        %v2818 = vpop.f32.mrb[0].mxu0
        %2819 = vmatprep.mubr.bf16.mxu0 0
        %2820 = vmatmul.mubr.bf16.gmra.mrb[0].mxu0 %v2612
        %v2821 = vpop.f32.mrb[0].mxu0
        %v2822 = vadd.f32 0.0, %v2821
        %v2823 = vpop.f32.mrb[0].mxu0
        %v2824 = vpop.f32.mrb[0].mxu0
        %v2825 = vadd.f32 0.0, %v2824
        %v2826 = vpop.f32.mrb[0].mxu0
        %2827 = vmatprep.mubr.bf16.mxu0 0
        %2828 = vmatmul.mubr.bf16.gmra.mrb[0].mxu0 %v2613
        %v2829 = vpop.f32.mrb[0].mxu0
        %v2830 = vadd.f32 0.0, %v2829
        %v2831 = vpop.f32.mrb[0].mxu0
        %v2832 = vpop.f32.mrb[0].mxu0
        %v2833 = vadd.f32 0.0, %v2832
        %v2834 = vpop.f32.mrb[0].mxu0
        %2835 = vmatprep.mubr.bf16.mxu0 0
        %2836 = vmatmul.mubr.bf16.gmra.mrb[0].mxu0 %v2614
        %v2837 = vpop.f32.mrb[0].mxu0
        %v2838 = vadd.f32 0.0, %v2837
        %v2839 = vpop.f32.mrb[0].mxu0
        %v2840 = vpop.f32.mrb[0].mxu0
        %v2841 = vadd.f32 0.0, %v2840
        %v2842 = vpop.f32.mrb[0].mxu0
        %2843 = vmatprep.mubr.bf16.mxu0 0
        %2844 = vmatmul.mubr.bf16.gmra.mrb[0].mxu0 %v2615
        %v2845 = vpop.f32.mrb[0].mxu0
        %v2846 = vadd.f32 0.0, %v2845
        %v2847 = vpop.f32.mrb[0].mxu0
        %v2848 = vpop.f32.mrb[0].mxu0
        %v2849 = vadd.f32 0.0, %v2848
        %v2850 = vpop.f32.mrb[0].mxu0
        %2851 = vmatprep.mubr.bf16.mxu0 0
        %2852 = vmatmul.mubr.bf16.gmra.mrb[0].mxu0 %v2616
        %v2853 = vpop.f32.mrb[0].mxu0
        %v2854 = vadd.f32 0.0, %v2853
        %v2855 = vpop.f32.mrb[0].mxu0
        %v2856 = vpop.f32.mrb[0].mxu0
        %v2857 = vadd.f32 0.0, %v2856
        %v2858 = vpop.f32.mrb[0].mxu0
        %2859 = vmatprep.mubr.bf16.mxu0 0
        %2860 = vmatmul.mubr.bf16.gmra.mrb[0].mxu0 %v2617
        %v2861 = vpop.f32.mrb[0].mxu0
        %v2862 = vadd.f32 0.0, %v2861
        %v2863 = vpop.f32.mrb[0].mxu0
        %v2864 = vpop.f32.mrb[0].mxu0
        %v2865 = vadd.f32 0.0, %v2864
        %v2866 = vpop.f32.mrb[0].mxu0
        %2867 = vmatprep.mubr.bf16.mxu0 0
        %2868 = vmatmul.mubr.bf16.gmra.mrb[0].mxu0 %v2618
        %v2869 = vpop.f32.mrb[0].mxu0
        %v2870 = vadd.f32 0.0, %v2869
        %v2871 = vpop.f32.mrb[0].mxu0
        %v2872 = vpop.f32.mrb[0].mxu0
        %v2873 = vadd.f32 0.0, %v2872
        %v2874 = vpop.f32.mrb[0].mxu0
        %2875 = vmatprep.mubr.bf16.mxu0 0
        %2876 = vmatmul.mubr.bf16.gmra.mrb[0].mxu0 %v2619
        %v2877 = vpop.f32.mrb[0].mxu0
        %v2878 = vadd.f32 0.0, %v2877
        %v2879 = vpop.f32.mrb[0].mxu0
        %v2880 = vpop.f32.mrb[0].mxu0
        %v2881 = vadd.f32 0.0, %v2880
        %v2882 = vpop.f32.mrb[0].mxu0
        %2883 = vmatprep.mubr.bf16.mxu0 0
        %2884 = vmatmul.mubr.bf16.gmra.mrb[0].mxu0 %v2620
        %v2885 = vpop.f32.mrb[0].mxu0
        %v2886 = vadd.f32 0.0, %v2885
        %v2887 = vpop.f32.mrb[0].mxu0
        %v2888 = vpop.f32.mrb[0].mxu0
        %v2889 = vadd.f32 0.0, %v2888
        %v2890 = vpop.f32.mrb[0].mxu0
        %2891 = vmatprep.mubr.bf16.mxu0 0
        %2892 = vmatmul.mubr.bf16.gmra.mrb[0].mxu0 %v2621
        %v2893 = vpop.f32.mrb[0].mxu0
        %v2894 = vadd.f32 0.0, %v2893
        %v2895 = vpop.f32.mrb[0].mxu0
        %v2896 = vpop.f32.mrb[0].mxu0
        %v2897 = vadd.f32 0.0, %v2896
        %v2898 = vpop.f32.mrb[0].mxu0
        %2899 = vmatprep.mubr.bf16.mxu0 0
        %2900 = vmatmul.mubr.bf16.gmra.mrb[0].mxu0 %v2622
        %v2901 = vpop.f32.mrb[0].mxu0
        %v2902 = vadd.f32 0.0, %v2901
        %v2903 = vpop.f32.mrb[0].mxu0
        %v2904 = vpop.f32.mrb[0].mxu0
        %v2905 = vadd.f32 0.0, %v2904
        %v2906 = vpop.f32.mrb[0].mxu0
        %2907 = vmatprep.mubr.bf16.mxu0 0
        %2908 = vmatmul.mubr.bf16.gmra.mrb[0].mxu0 %v2623
        %v2909 = vpop.f32.mrb[0].mxu0
        %v2910 = vadd.f32 0.0, %v2909
        %v2911 = vpop.f32.mrb[0].mxu0
        %v2912 = vpop.f32.mrb[0].mxu0
        %v2913 = vadd.f32 0.0, %v2912
        %v2914 = vpop.f32.mrb[0].mxu0
        %2915 = vmatprep.mubr.bf16.mxu0 0
        %2916 = vmatmul.mubr.bf16.gmra.mrb[0].mxu0 %v2624
        %v2917 = vpop.f32.mrb[0].mxu0
        %v2918 = vadd.f32 0.0, %v2917
        %v2919 = vpop.f32.mrb[0].mxu0
        %v2920 = vpop.f32.mrb[0].mxu0
        %v2921 = vadd.f32 0.0, %v2920
        %v2922 = vpop.f32.mrb[0].mxu0
        %2923 = vmatprep.mubr.bf16.mxu0 0
        %2924 = vmatmul.mubr.bf16.gmra.mrb[0].mxu0 %v2625
        %v2925 = vpop.f32.mrb[0].mxu0
        %v2926 = vadd.f32 0.0, %v2925
        %v2927 = vpop.f32.mrb[0].mxu0
        %v2928 = vpop.f32.mrb[0].mxu0
        %v2929 = vadd.f32 0.0, %v2928
        %v2930 = vpop.f32.mrb[0].mxu0
        %2931 = vmatprep.mubr.bf16.mxu0 0
        %2932 = vmatmul.mubr.bf16.gmra.mrb[0].mxu0 %v2626
        %v2933 = vpop.f32.mrb[0].mxu0
        %v2934 = vadd.f32 0.0, %v2933
        %v2935 = vpop.f32.mrb[0].mxu0
        %v2936 = vpop.f32.mrb[0].mxu0
        %v2937 = vadd.f32 0.0, %v2936
        %v2938 = vpop.f32.mrb[0].mxu0
        %2939 = vmatprep.mubr.bf16.mxu0 0
        %2940 = vmatmul.mubr.bf16.gmra.mrb[0].mxu0 %v2627
        %v2941 = vpop.f32.mrb[0].mxu0
        %v2942 = vadd.f32 0.0, %v2941
        %v2943 = vpop.f32.mrb[0].mxu0
        %v2944 = vpop.f32.mrb[0].mxu0
        %v2945 = vadd.f32 0.0, %v2944
        %v2946 = vpop.f32.mrb[0].mxu0
        %2947 = vmatprep.mubr.bf16.mxu0 0
        %2948 = vmatmul.mubr.bf16.gmra.mrb[0].mxu0 %v2628
        %v2949 = vpop.f32.mrb[0].mxu0
        %v2950 = vadd.f32 0.0, %v2949
        %v2951 = vpop.f32.mrb[0].mxu0
        %v2952 = vpop.f32.mrb[0].mxu0
        %v2953 = vadd.f32 0.0, %v2952
        %v2954 = vpop.f32.mrb[0].mxu0
        %2955 = vmatprep.mubr.bf16.mxu0 0
        %2956 = vmatmul.mubr.bf16.gmra.mrb[0].mxu0 %v2629
        %v2957 = vpop.f32.mrb[0].mxu0
        %v2958 = vadd.f32 0.0, %v2957
        %v2959 = vpop.f32.mrb[0].mxu0
        %v2960 = vpop.f32.mrb[0].mxu0
        %v2961 = vadd.f32 0.0, %v2960
        %v2962 = vpop.f32.mrb[0].mxu0
        %2963 = vmatprep.mubr.bf16.mxu0 0
        %2964 = vmatmul.mubr.bf16.gmra.mrb[0].mxu0 %v2630
        %v2965 = vpop.f32.mrb[0].mxu0
        %v2966 = vadd.f32 0.0, %v2965
        %v2967 = vpop.f32.mrb[0].mxu0
        %v2968 = vpop.f32.mrb[0].mxu0
        %v2969 = vadd.f32 0.0, %v2968
        %v2970 = vpop.f32.mrb[0].mxu0
        %2971 = vmatprep.mubr.bf16.mxu0 0
        %2972 = vmatmul.mubr.bf16.gmra.mrb[0].mxu0 %v2631
        %v2973 = vpop.f32.mrb[0].mxu0
        %v2974 = vadd.f32 0.0, %v2973
        %v2975 = vpop.f32.mrb[0].mxu0
        %v2976 = vpop.f32.mrb[0].mxu0
        %v2977 = vadd.f32 0.0, %v2976
        %v2978 = vpop.f32.mrb[0].mxu0
        %2979 = vmatprep.mubr.bf16.mxu0 0
        %2980 = vmatmul.mubr.bf16.gmra.mrb[0].mxu0 %v2632
        %v2981 = vpop.f32.mrb[0].mxu0
        %v2982 = vadd.f32 0.0, %v2981
        %v2983 = vpop.f32.mrb[0].mxu0
        %v2984 = vpop.f32.mrb[0].mxu0
        %v2985 = vadd.f32 0.0, %v2984
        %v2986 = vpop.f32.mrb[0].mxu0
        %2987 = vmatprep.mubr.bf16.mxu0 0
        %2988 = vmatmul.mubr.bf16.gmra.mrb[0].mxu0 %v2633
        %v2989 = vpop.f32.mrb[0].mxu0
        %v2990 = vadd.f32 0.0, %v2989
        %v2991 = vpop.f32.mrb[0].mxu0
        %v2992 = vpop.f32.mrb[0].mxu0
        %v2993 = vadd.f32 0.0, %v2992
        %v2994 = vpop.f32.mrb[0].mxu0
        %2995 = vmatprep.mubr.bf16.mxu0 0
        %2996 = vmatmul.mubr.bf16.gmra.mrb[0].mxu0 %v2634
        %v2997 = vpop.f32.mrb[0].mxu0
        %v2998 = vadd.f32 0.0, %v2997
        %v2999 = vpop.f32.mrb[0].mxu0
        %v3000 = vpop.f32.mrb[0].mxu0
        %v3001 = vadd.f32 0.0, %v3000
        %v3002 = vpop.f32.mrb[0].mxu0
        %3003 = vdwg.mxu0
        %v3068 = vunpack.c.l.b16 %v2314
        %v3069 = vunpack.c.l.b16 %v2315
        %v3070 = vunpack.c.l.b16 %v2316
        %v3071 = vunpack.c.l.b16 %v2317
        %v3072 = vunpack.c.l.b16 %v2318
        %v3073 = vunpack.c.l.b16 %v2319
        %v3074 = vunpack.c.l.b16 %v2320
        %v3075 = vunpack.c.l.b16 %v2321
        %v3076 = vunpack.c.l.b16 %v2322
        %v3077 = vunpack.c.l.b16 %v2323
        %v3078 = vunpack.c.l.b16 %v2324
        %v3079 = vunpack.c.l.b16 %v2325
        %v3080 = vunpack.c.l.b16 %v2326
        %v3081 = vunpack.c.l.b16 %v2327
        %v3082 = vunpack.c.l.b16 %v2328
        %v3083 = vunpack.c.l.b16 %v2329
        %v3084 = vunpack.c.l.b16 %v2330
        %v3085 = vunpack.c.l.b16 %v2331
        %v3086 = vunpack.c.l.b16 %v2332
        %v3087 = vunpack.c.l.b16 %v2333
        %v3088 = vunpack.c.l.b16 %v2334
        %v3089 = vunpack.c.l.b16 %v2335
        %v3090 = vunpack.c.l.b16 %v2336
        %v3091 = vunpack.c.l.b16 %v2337
        %v3092 = vunpack.c.l.b16 %v2338
        %v3093 = vunpack.c.l.b16 %v2339
        %v3094 = vunpack.c.l.b16 %v2340
        %v3095 = vunpack.c.l.b16 %v2341
        %v3096 = vunpack.c.l.b16 %v2342
        %v3097 = vunpack.c.l.b16 %v2343
        %v3098 = vunpack.c.l.b16 %v2344
        %v3099 = vunpack.c.l.b16 %v2345
        %v3100 = vunpack.c.l.b16 %v2346
        %v3101 = vunpack.c.l.b16 %v2347
        %v3102 = vunpack.c.l.b16 %v2348
        %v3103 = vunpack.c.l.b16 %v2349
        %v3104 = vunpack.c.l.b16 %v2350
        %v3105 = vunpack.c.l.b16 %v2351
        %v3106 = vunpack.c.l.b16 %v2352
        %v3107 = vunpack.c.l.b16 %v2353
        %v3108 = vunpack.c.l.b16 %v2354
        %v3109 = vunpack.c.l.b16 %v2355
        %v3110 = vunpack.c.l.b16 %v2356
        %v3111 = vunpack.c.l.b16 %v2357
        %v3112 = vunpack.c.l.b16 %v2358
        %v3113 = vunpack.c.l.b16 %v2359
        %v3114 = vunpack.c.l.b16 %v2360
        %v3115 = vunpack.c.l.b16 %v2361
        %v3116 = vunpack.c.l.b16 %v2362
        %v3117 = vunpack.c.l.b16 %v2363
        %v3118 = vunpack.c.l.b16 %v2364
        %v3119 = vunpack.c.l.b16 %v2365
        %v3120 = vunpack.c.l.b16 %v2366
        %v3121 = vunpack.c.l.b16 %v2367
        %v3122 = vunpack.c.l.b16 %v2368
        %v3123 = vunpack.c.l.b16 %v2369
        %v3124 = vunpack.c.l.b16 %v2370
        %v3125 = vunpack.c.l.b16 %v2371
        %v3126 = vunpack.c.l.b16 %v2372
        %v3127 = vunpack.c.l.b16 %v2373
        %v3128 = vunpack.c.l.b16 %v2374
        %v3129 = vunpack.c.l.b16 %v2375
        %v3130 = vunpack.c.l.b16 %v2376
        %v3131 = vunpack.c.l.b16 %v2377
        %v3132 = vpack.c.b16 %v3069, %v3068
        %v3133 = vpack.c.b16 %v3071, %v3070
        %v3134 = vpack.c.b16 %v3073, %v3072
        %v3135 = vpack.c.b16 %v3075, %v3074
        %v3136 = vpack.c.b16 %v3077, %v3076
        %v3137 = vpack.c.b16 %v3079, %v3078
        %v3138 = vpack.c.b16 %v3081, %v3080
        %v3139 = vpack.c.b16 %v3083, %v3082
        %v3140 = vpack.c.b16 %v3085, %v3084
        %v3141 = vpack.c.b16 %v3087, %v3086
        %v3142 = vpack.c.b16 %v3089, %v3088
        %v3143 = vpack.c.b16 %v3091, %v3090
        %v3144 = vpack.c.b16 %v3093, %v3092
        %v3145 = vpack.c.b16 %v3095, %v3094
        %v3146 = vpack.c.b16 %v3097, %v3096
        %v3147 = vpack.c.b16 %v3099, %v3098
        %v3148 = vpack.c.b16 %v3101, %v3100
        %v3149 = vpack.c.b16 %v3103, %v3102
        %v3150 = vpack.c.b16 %v3105, %v3104
        %v3151 = vpack.c.b16 %v3107, %v3106
        %v3152 = vpack.c.b16 %v3109, %v3108
        %v3153 = vpack.c.b16 %v3111, %v3110
        %v3154 = vpack.c.b16 %v3113, %v3112
        %v3155 = vpack.c.b16 %v3115, %v3114
        %v3156 = vpack.c.b16 %v3117, %v3116
        %v3157 = vpack.c.b16 %v3119, %v3118
        %v3158 = vpack.c.b16 %v3121, %v3120
        %v3159 = vpack.c.b16 %v3123, %v3122
        %v3160 = vpack.c.b16 %v3125, %v3124
        %v3161 = vpack.c.b16 %v3127, %v3126
        %v3162 = vpack.c.b16 %v3129, %v3128
        %v3163 = vpack.c.b16 %v3131, %v3130
        %v3212 = vunpack.c.l.b16 %v2442
        %v3213 = vunpack.c.l.b16 %v2443
        %v3214 = vunpack.c.l.b16 %v2444
        %v3215 = vunpack.c.l.b16 %v2445
        %v3216 = vunpack.c.l.b16 %v2446
        %v3217 = vunpack.c.l.b16 %v2447
        %v3218 = vunpack.c.l.b16 %v2448
        %v3219 = vunpack.c.l.b16 %v2449
        %v3220 = vunpack.c.l.b16 %v2450
        %v3221 = vunpack.c.l.b16 %v2451
        %v3222 = vunpack.c.l.b16 %v2452
        %v3223 = vunpack.c.l.b16 %v2453
        %v3224 = vunpack.c.l.b16 %v2454
        %v3225 = vunpack.c.l.b16 %v2455
        %v3226 = vunpack.c.l.b16 %v2456
        %v3227 = vunpack.c.l.b16 %v2457
        %v3228 = vpack.c.b16 %v3213, %v3212
        %v3229 = vpack.c.b16 %v3215, %v3214
        %v3230 = vpack.c.b16 %v3217, %v3216
        %v3231 = vpack.c.b16 %v3219, %v3218
        %v3232 = vpack.c.b16 %v3221, %v3220
        %v3233 = vpack.c.b16 %v3223, %v3222
        %v3234 = vpack.c.b16 %v3225, %v3224
        %v3235 = vpack.c.b16 %v3227, %v3226
        %3244 = vmatprep.subr.bf16.mxu0 0
        %3245 = vmatpush1.bf16.msra.mxu0 %v3228
        %3246 = vmatprep.subr.bf16.mxu0 0
        %3247 = vmatpush1.bf16.msra.mxu0 %v3229
        %3248 = vmatprep.subr.bf16.mxu0 0
        %3249 = vmatpush1.bf16.msra.mxu0 %v3230
        %3250 = vmatprep.subr.bf16.mxu0 0
        %3251 = vmatpush1.bf16.msra.mxu0 %v3231
        %3252 = vmatprep.subr.bf16.mxu0 0
        %3253 = vmatpush1.bf16.msra.mxu0 %v3232
        %3254 = vmatprep.subr.bf16.mxu0 0
        %3255 = vmatpush1.bf16.msra.mxu0 %v3233
        %3256 = vmatprep.subr.bf16.mxu0 0
        %3257 = vmatpush1.bf16.msra.mxu0 %v3234
        %3258 = vmatprep.subr.bf16.mxu0 0
        %3259 = vmatpush1.bf16.msra.mxu0 %v3235
        %3260 = vmatprep.subr.bf16.mxu0 0
        %3261 = vmatpush1.bf16.msra.mxu0 0
        %3262 = vmatprep.subr.bf16.mxu0 0
        %3263 = vmatpush1.bf16.msra.mxu0 0
        %3264 = vmatprep.subr.bf16.mxu0 0
        %3265 = vmatpush1.bf16.msra.mxu0 0
        %3266 = vmatprep.subr.bf16.mxu0 0
        %3267 = vmatpush1.bf16.msra.mxu0 0
        %3268 = vmatprep.subr.bf16.mxu0 0
        %3269 = vmatpush1.bf16.msra.mxu0 0
        %3270 = vmatprep.subr.bf16.mxu0 0
        %3271 = vmatpush1.bf16.msra.mxu0 0
        %3272 = vmatprep.subr.bf16.mxu0 0
        %3273 = vmatpush1.bf16.msra.mxu0 0
        %3274 = vmatprep.subr.bf16.mxu0 0
        %3275 = vmatpush1.bf16.msra.mxu0 0
        %3276 = vmatprep.mubr.bf16.mxu0 0
        %3277 = vmatmul.mubr.bf16.gmra.mrb[0].mxu0 %v3132
        %v3278 = vpop.f32.mrb[0].mxu0
        %v3279 = vadd.f32 %v2750, %v3278
        %v3280 = vpop.f32.mrb[0].mxu0
        %v3281 = vpop.f32.mrb[0].mxu0
        %v3282 = vadd.f32 %v2753, %v3281
        %v3283 = vpop.f32.mrb[0].mxu0
        %3284 = vmatprep.mubr.bf16.mxu0 0
        %3285 = vmatmul.mubr.bf16.gmra.mrb[0].mxu0 %v3133
        %v3286 = vpop.f32.mrb[0].mxu0
        %v3287 = vadd.f32 %v2758, %v3286
        %v3288 = vpop.f32.mrb[0].mxu0
        %v3289 = vpop.f32.mrb[0].mxu0
        %v3290 = vadd.f32 %v2761, %v3289
        %v3291 = vpop.f32.mrb[0].mxu0
        %3292 = vmatprep.mubr.bf16.mxu0 0
        %3293 = vmatmul.mubr.bf16.gmra.mrb[0].mxu0 %v3134
        %v3294 = vpop.f32.mrb[0].mxu0
        %v3295 = vadd.f32 %v2766, %v3294
        %v3296 = vpop.f32.mrb[0].mxu0
        %v3297 = vpop.f32.mrb[0].mxu0
        %v3298 = vadd.f32 %v2769, %v3297
        %v3299 = vpop.f32.mrb[0].mxu0
        %3300 = vmatprep.mubr.bf16.mxu0 0
        %3301 = vmatmul.mubr.bf16.gmra.mrb[0].mxu0 %v3135
        %v3302 = vpop.f32.mrb[0].mxu0
        %v3303 = vadd.f32 %v2774, %v3302
        %v3304 = vpop.f32.mrb[0].mxu0
        %v3305 = vpop.f32.mrb[0].mxu0
        %v3306 = vadd.f32 %v2777, %v3305
        %v3307 = vpop.f32.mrb[0].mxu0
        %3308 = vmatprep.mubr.bf16.mxu0 0
        %3309 = vmatmul.mubr.bf16.gmra.mrb[0].mxu0 %v3136
        %v3310 = vpop.f32.mrb[0].mxu0
        %v3311 = vadd.f32 %v2782, %v3310
        %v3312 = vpop.f32.mrb[0].mxu0
        %v3313 = vpop.f32.mrb[0].mxu0
        %v3314 = vadd.f32 %v2785, %v3313
        %v3315 = vpop.f32.mrb[0].mxu0
        %3316 = vmatprep.mubr.bf16.mxu0 0
        %3317 = vmatmul.mubr.bf16.gmra.mrb[0].mxu0 %v3137
        %v3318 = vpop.f32.mrb[0].mxu0
        %v3319 = vadd.f32 %v2790, %v3318
        %v3320 = vpop.f32.mrb[0].mxu0
        %v3321 = vpop.f32.mrb[0].mxu0
        %v3322 = vadd.f32 %v2793, %v3321
        %v3323 = vpop.f32.mrb[0].mxu0
        %3324 = vmatprep.mubr.bf16.mxu0 0
        %3325 = vmatmul.mubr.bf16.gmra.mrb[0].mxu0 %v3138
        %v3326 = vpop.f32.mrb[0].mxu0
        %v3327 = vadd.f32 %v2798, %v3326
        %v3328 = vpop.f32.mrb[0].mxu0
        %v3329 = vpop.f32.mrb[0].mxu0
        %v3330 = vadd.f32 %v2801, %v3329
        %v3331 = vpop.f32.mrb[0].mxu0
        %3332 = vmatprep.mubr.bf16.mxu0 0
        %3333 = vmatmul.mubr.bf16.gmra.mrb[0].mxu0 %v3139
        %v3334 = vpop.f32.mrb[0].mxu0
        %v3335 = vadd.f32 %v2806, %v3334
        %v3336 = vpop.f32.mrb[0].mxu0
        %v3337 = vpop.f32.mrb[0].mxu0
        %v3338 = vadd.f32 %v2809, %v3337
        %v3339 = vpop.f32.mrb[0].mxu0
        %3340 = vmatprep.mubr.bf16.mxu0 0
        %3341 = vmatmul.mubr.bf16.gmra.mrb[0].mxu0 %v3140
        %v3342 = vpop.f32.mrb[0].mxu0
        %v3343 = vadd.f32 %v2814, %v3342
        %v3344 = vpop.f32.mrb[0].mxu0
        %v3345 = vpop.f32.mrb[0].mxu0
        %v3346 = vadd.f32 %v2817, %v3345
        %v3347 = vpop.f32.mrb[0].mxu0
        %3348 = vmatprep.mubr.bf16.mxu0 0
        %3349 = vmatmul.mubr.bf16.gmra.mrb[0].mxu0 %v3141
        %v3350 = vpop.f32.mrb[0].mxu0
        %v3351 = vadd.f32 %v2822, %v3350
        %v3352 = vpop.f32.mrb[0].mxu0
        %v3353 = vpop.f32.mrb[0].mxu0
        %v3354 = vadd.f32 %v2825, %v3353
        %v3355 = vpop.f32.mrb[0].mxu0
        %3356 = vmatprep.mubr.bf16.mxu0 0
        %3357 = vmatmul.mubr.bf16.gmra.mrb[0].mxu0 %v3142
        %v3358 = vpop.f32.mrb[0].mxu0
        %v3359 = vadd.f32 %v2830, %v3358
        %v3360 = vpop.f32.mrb[0].mxu0
        %v3361 = vpop.f32.mrb[0].mxu0
        %v3362 = vadd.f32 %v2833, %v3361
        %v3363 = vpop.f32.mrb[0].mxu0
        %3364 = vmatprep.mubr.bf16.mxu0 0
        %3365 = vmatmul.mubr.bf16.gmra.mrb[0].mxu0 %v3143
        %v3366 = vpop.f32.mrb[0].mxu0
        %v3367 = vadd.f32 %v2838, %v3366
        %v3368 = vpop.f32.mrb[0].mxu0
        %v3369 = vpop.f32.mrb[0].mxu0
        %v3370 = vadd.f32 %v2841, %v3369
        %v3371 = vpop.f32.mrb[0].mxu0
        %3372 = vmatprep.mubr.bf16.mxu0 0
        %3373 = vmatmul.mubr.bf16.gmra.mrb[0].mxu0 %v3144
        %v3374 = vpop.f32.mrb[0].mxu0
        %v3375 = vadd.f32 %v2846, %v3374
        %v3376 = vpop.f32.mrb[0].mxu0
        %v3377 = vpop.f32.mrb[0].mxu0
        %v3378 = vadd.f32 %v2849, %v3377
        %v3379 = vpop.f32.mrb[0].mxu0
        %3380 = vmatprep.mubr.bf16.mxu0 0
        %3381 = vmatmul.mubr.bf16.gmra.mrb[0].mxu0 %v3145
        %v3382 = vpop.f32.mrb[0].mxu0
        %v3383 = vadd.f32 %v2854, %v3382
        %v3384 = vpop.f32.mrb[0].mxu0
        %v3385 = vpop.f32.mrb[0].mxu0
        %v3386 = vadd.f32 %v2857, %v3385
        %v3387 = vpop.f32.mrb[0].mxu0
        %3388 = vmatprep.mubr.bf16.mxu0 0
        %3389 = vmatmul.mubr.bf16.gmra.mrb[0].mxu0 %v3146
        %v3390 = vpop.f32.mrb[0].mxu0
        %v3391 = vadd.f32 %v2862, %v3390
        %v3392 = vpop.f32.mrb[0].mxu0
        %v3393 = vpop.f32.mrb[0].mxu0
        %v3394 = vadd.f32 %v2865, %v3393
        %v3395 = vpop.f32.mrb[0].mxu0
        %3396 = vmatprep.mubr.bf16.mxu0 0
        %3397 = vmatmul.mubr.bf16.gmra.mrb[0].mxu0 %v3147
        %v3398 = vpop.f32.mrb[0].mxu0
        %v3399 = vadd.f32 %v2870, %v3398
        %v3400 = vpop.f32.mrb[0].mxu0
        %v3401 = vpop.f32.mrb[0].mxu0
        %v3402 = vadd.f32 %v2873, %v3401
        %v3403 = vpop.f32.mrb[0].mxu0
        %3404 = vmatprep.mubr.bf16.mxu0 0
        %3405 = vmatmul.mubr.bf16.gmra.mrb[0].mxu0 %v3148
        %v3406 = vpop.f32.mrb[0].mxu0
        %v3407 = vadd.f32 %v2878, %v3406
        %v3408 = vpop.f32.mrb[0].mxu0
        %v3409 = vpop.f32.mrb[0].mxu0
        %v3410 = vadd.f32 %v2881, %v3409
        %v3411 = vpop.f32.mrb[0].mxu0
        %3412 = vmatprep.mubr.bf16.mxu0 0
        %3413 = vmatmul.mubr.bf16.gmra.mrb[0].mxu0 %v3149
        %v3414 = vpop.f32.mrb[0].mxu0
        %v3415 = vadd.f32 %v2886, %v3414
        %v3416 = vpop.f32.mrb[0].mxu0
        %v3417 = vpop.f32.mrb[0].mxu0
        %v3418 = vadd.f32 %v2889, %v3417
        %v3419 = vpop.f32.mrb[0].mxu0
        %3420 = vmatprep.mubr.bf16.mxu0 0
        %3421 = vmatmul.mubr.bf16.gmra.mrb[0].mxu0 %v3150
        %v3422 = vpop.f32.mrb[0].mxu0
        %v3423 = vadd.f32 %v2894, %v3422
        %v3424 = vpop.f32.mrb[0].mxu0
        %v3425 = vpop.f32.mrb[0].mxu0
        %v3426 = vadd.f32 %v2897, %v3425
        %v3427 = vpop.f32.mrb[0].mxu0
        %3428 = vmatprep.mubr.bf16.mxu0 0
        %3429 = vmatmul.mubr.bf16.gmra.mrb[0].mxu0 %v3151
        %v3430 = vpop.f32.mrb[0].mxu0
        %v3431 = vadd.f32 %v2902, %v3430
        %v3432 = vpop.f32.mrb[0].mxu0
        %v3433 = vpop.f32.mrb[0].mxu0
        %v3434 = vadd.f32 %v2905, %v3433
        %v3435 = vpop.f32.mrb[0].mxu0
        %3436 = vmatprep.mubr.bf16.mxu0 0
        %3437 = vmatmul.mubr.bf16.gmra.mrb[0].mxu0 %v3152
        %v3438 = vpop.f32.mrb[0].mxu0
        %v3439 = vadd.f32 %v2910, %v3438
        %v3440 = vpop.f32.mrb[0].mxu0
        %v3441 = vpop.f32.mrb[0].mxu0
        %v3442 = vadd.f32 %v2913, %v3441
        %v3443 = vpop.f32.mrb[0].mxu0
        %3444 = vmatprep.mubr.bf16.mxu0 0
        %3445 = vmatmul.mubr.bf16.gmra.mrb[0].mxu0 %v3153
        %v3446 = vpop.f32.mrb[0].mxu0
        %v3447 = vadd.f32 %v2918, %v3446
        %v3448 = vpop.f32.mrb[0].mxu0
        %v3449 = vpop.f32.mrb[0].mxu0
        %v3450 = vadd.f32 %v2921, %v3449
        %v3451 = vpop.f32.mrb[0].mxu0
        %3452 = vmatprep.mubr.bf16.mxu0 0
        %3453 = vmatmul.mubr.bf16.gmra.mrb[0].mxu0 %v3154
        %v3454 = vpop.f32.mrb[0].mxu0
        %v3455 = vadd.f32 %v2926, %v3454
        %v3456 = vpop.f32.mrb[0].mxu0
        %v3457 = vpop.f32.mrb[0].mxu0
        %v3458 = vadd.f32 %v2929, %v3457
        %v3459 = vpop.f32.mrb[0].mxu0
        %3460 = vmatprep.mubr.bf16.mxu0 0
        %3461 = vmatmul.mubr.bf16.gmra.mrb[0].mxu0 %v3155
        %v3462 = vpop.f32.mrb[0].mxu0
        %v3463 = vadd.f32 %v2934, %v3462
        %v3464 = vpop.f32.mrb[0].mxu0
        %v3465 = vpop.f32.mrb[0].mxu0
        %v3466 = vadd.f32 %v2937, %v3465
        %v3467 = vpop.f32.mrb[0].mxu0
        %3468 = vmatprep.mubr.bf16.mxu0 0
        %3469 = vmatmul.mubr.bf16.gmra.mrb[0].mxu0 %v3156
        %v3470 = vpop.f32.mrb[0].mxu0
        %v3471 = vadd.f32 %v2942, %v3470
        %v3472 = vpop.f32.mrb[0].mxu0
        %v3473 = vpop.f32.mrb[0].mxu0
        %v3474 = vadd.f32 %v2945, %v3473
        %v3475 = vpop.f32.mrb[0].mxu0
        %3476 = vmatprep.mubr.bf16.mxu0 0
        %3477 = vmatmul.mubr.bf16.gmra.mrb[0].mxu0 %v3157
        %v3478 = vpop.f32.mrb[0].mxu0
        %v3479 = vadd.f32 %v2950, %v3478
        %v3480 = vpop.f32.mrb[0].mxu0
        %v3481 = vpop.f32.mrb[0].mxu0
        %v3482 = vadd.f32 %v2953, %v3481
        %v3483 = vpop.f32.mrb[0].mxu0
        %3484 = vmatprep.mubr.bf16.mxu0 0
        %3485 = vmatmul.mubr.bf16.gmra.mrb[0].mxu0 %v3158
        %v3486 = vpop.f32.mrb[0].mxu0
        %v3487 = vadd.f32 %v2958, %v3486
        %v3488 = vpop.f32.mrb[0].mxu0
        %v3489 = vpop.f32.mrb[0].mxu0
        %v3490 = vadd.f32 %v2961, %v3489
        %v3491 = vpop.f32.mrb[0].mxu0
        %3492 = vmatprep.mubr.bf16.mxu0 0
        %3493 = vmatmul.mubr.bf16.gmra.mrb[0].mxu0 %v3159
        %v3494 = vpop.f32.mrb[0].mxu0
        %v3495 = vadd.f32 %v2966, %v3494
        %v3496 = vpop.f32.mrb[0].mxu0
        %v3497 = vpop.f32.mrb[0].mxu0
        %v3498 = vadd.f32 %v2969, %v3497
        %v3499 = vpop.f32.mrb[0].mxu0
        %3500 = vmatprep.mubr.bf16.mxu0 0
        %3501 = vmatmul.mubr.bf16.gmra.mrb[0].mxu0 %v3160
        %v3502 = vpop.f32.mrb[0].mxu0
        %v3503 = vadd.f32 %v2974, %v3502
        %v3504 = vpop.f32.mrb[0].mxu0
        %v3505 = vpop.f32.mrb[0].mxu0
        %v3506 = vadd.f32 %v2977, %v3505
        %v3507 = vpop.f32.mrb[0].mxu0
        %3508 = vmatprep.mubr.bf16.mxu0 0
        %3509 = vmatmul.mubr.bf16.gmra.mrb[0].mxu0 %v3161
        %v3510 = vpop.f32.mrb[0].mxu0
        %v3511 = vadd.f32 %v2982, %v3510
        %v3512 = vpop.f32.mrb[0].mxu0
        %v3513 = vpop.f32.mrb[0].mxu0
        %v3514 = vadd.f32 %v2985, %v3513
        %v3515 = vpop.f32.mrb[0].mxu0
        %3516 = vmatprep.mubr.bf16.mxu0 0
        %3517 = vmatmul.mubr.bf16.gmra.mrb[0].mxu0 %v3162
        %v3518 = vpop.f32.mrb[0].mxu0
        %v3519 = vadd.f32 %v2990, %v3518
        %v3520 = vpop.f32.mrb[0].mxu0
        %v3521 = vpop.f32.mrb[0].mxu0
        %v3522 = vadd.f32 %v2993, %v3521
        %v3523 = vpop.f32.mrb[0].mxu0
        %3524 = vmatprep.mubr.bf16.mxu0 0
        %3525 = vmatmul.mubr.bf16.gmra.mrb[0].mxu0 %v3163
        %v3526 = vpop.f32.mrb[0].mxu0
        %v3527 = vadd.f32 %v2998, %v3526
        %v3528 = vpop.f32.mrb[0].mxu0
        %v3529 = vpop.f32.mrb[0].mxu0
        %v3530 = vadd.f32 %v3001, %v3529
        %v3531 = vpop.f32.mrb[0].mxu0
        %3532 = vdwg.mxu0
        %s3533 = scalar_lea.vmem [#allocation15], 128
        %v3534 = vld [vmem:[%s3533] sm:$0xf]
        %v3535 = vld [vmem:[%s3533 + $0x4] sm:$0xf]
        %v3536 = vld [vmem:[%s3533 + $0x8] sm:$0xf]
        %v3537 = vld [vmem:[%s3533 + $0xc] sm:$0xf]
        %v3538 = vld [vmem:[%s3533 + $0x10] sm:$0xf]
        %v3539 = vld [vmem:[%s3533 + $0x14] sm:$0xf]
        %v3540 = vld [vmem:[%s3533 + $0x18] sm:$0xf]
        %v3541 = vld [vmem:[%s3533 + $0x1c] sm:$0xf]
        %v3542 = vld [vmem:[%s3533 + $0x20] sm:$0xf]
        %v3543 = vld [vmem:[%s3533 + $0x24] sm:$0xf]
        %v3544 = vld [vmem:[%s3533 + $0x28] sm:$0xf]
        %v3545 = vld [vmem:[%s3533 + $0x2c] sm:$0xf]
        %v3546 = vld [vmem:[%s3533 + $0x30] sm:$0xf]
        %v3547 = vld [vmem:[%s3533 + $0x34] sm:$0xf]
        %v3548 = vld [vmem:[%s3533 + $0x38] sm:$0xf]
        %v3549 = vld [vmem:[%s3533 + $0x3c] sm:$0xf]
        %v3614 = vunpack.c.l.b16 %v2378
        %v3615 = vunpack.c.l.b16 %v2379
        %v3616 = vunpack.c.l.b16 %v2380
        %v3617 = vunpack.c.l.b16 %v2381
        %v3618 = vunpack.c.l.b16 %v2382
        %v3619 = vunpack.c.l.b16 %v2383
        %v3620 = vunpack.c.l.b16 %v2384
        %v3621 = vunpack.c.l.b16 %v2385
        %v3622 = vunpack.c.l.b16 %v2386
        %v3623 = vunpack.c.l.b16 %v2387
        %v3624 = vunpack.c.l.b16 %v2388
        %v3625 = vunpack.c.l.b16 %v2389
        %v3626 = vunpack.c.l.b16 %v2390
        %v3627 = vunpack.c.l.b16 %v2391
        %v3628 = vunpack.c.l.b16 %v2392
        %v3629 = vunpack.c.l.b16 %v2393
        %v3630 = vunpack.c.l.b16 %v2394
        %v3631 = vunpack.c.l.b16 %v2395
        %v3632 = vunpack.c.l.b16 %v2396
        %v3633 = vunpack.c.l.b16 %v2397
        %v3634 = vunpack.c.l.b16 %v2398
        %v3635 = vunpack.c.l.b16 %v2399
        %v3636 = vunpack.c.l.b16 %v2400
        %v3637 = vunpack.c.l.b16 %v2401
        %v3638 = vunpack.c.l.b16 %v2402
        %v3639 = vunpack.c.l.b16 %v2403
        %v3640 = vunpack.c.l.b16 %v2404
        %v3641 = vunpack.c.l.b16 %v2405
        %v3642 = vunpack.c.l.b16 %v2406
        %v3643 = vunpack.c.l.b16 %v2407
        %v3644 = vunpack.c.l.b16 %v2408
        %v3645 = vunpack.c.l.b16 %v2409
        %v3646 = vunpack.c.l.b16 %v2410
        %v3647 = vunpack.c.l.b16 %v2411
        %v3648 = vunpack.c.l.b16 %v2412
        %v3649 = vunpack.c.l.b16 %v2413
        %v3650 = vunpack.c.l.b16 %v2414
        %v3651 = vunpack.c.l.b16 %v2415
        %v3652 = vunpack.c.l.b16 %v2416
        %v3653 = vunpack.c.l.b16 %v2417
        %v3654 = vunpack.c.l.b16 %v2418
        %v3655 = vunpack.c.l.b16 %v2419
        %v3656 = vunpack.c.l.b16 %v2420
        %v3657 = vunpack.c.l.b16 %v2421
        %v3658 = vunpack.c.l.b16 %v2422
        %v3659 = vunpack.c.l.b16 %v2423
        %v3660 = vunpack.c.l.b16 %v2424
        %v3661 = vunpack.c.l.b16 %v2425
        %v3662 = vunpack.c.l.b16 %v2426
        %v3663 = vunpack.c.l.b16 %v2427
        %v3664 = vunpack.c.l.b16 %v2428
        %v3665 = vunpack.c.l.b16 %v2429
        %v3666 = vunpack.c.l.b16 %v2430
        %v3667 = vunpack.c.l.b16 %v2431
        %v3668 = vunpack.c.l.b16 %v2432
        %v3669 = vunpack.c.l.b16 %v2433
        %v3670 = vunpack.c.l.b16 %v2434
        %v3671 = vunpack.c.l.b16 %v2435
        %v3672 = vunpack.c.l.b16 %v2436
        %v3673 = vunpack.c.l.b16 %v2437
        %v3674 = vunpack.c.l.b16 %v2438
        %v3675 = vunpack.c.l.b16 %v2439
        %v3676 = vunpack.c.l.b16 %v2440
        %v3677 = vunpack.c.l.b16 %v2441
        %v3678 = vpack.c.b16 %v3615, %v3614
        %v3679 = vpack.c.b16 %v3617, %v3616
        %v3680 = vpack.c.b16 %v3619, %v3618
        %v3681 = vpack.c.b16 %v3621, %v3620
        %v3682 = vpack.c.b16 %v3623, %v3622
        %v3683 = vpack.c.b16 %v3625, %v3624
        %v3684 = vpack.c.b16 %v3627, %v3626
        %v3685 = vpack.c.b16 %v3629, %v3628
        %v3686 = vpack.c.b16 %v3631, %v3630
        %v3687 = vpack.c.b16 %v3633, %v3632
        %v3688 = vpack.c.b16 %v3635, %v3634
        %v3689 = vpack.c.b16 %v3637, %v3636
        %v3690 = vpack.c.b16 %v3639, %v3638
        %v3691 = vpack.c.b16 %v3641, %v3640
        %v3692 = vpack.c.b16 %v3643, %v3642
        %v3693 = vpack.c.b16 %v3645, %v3644
        %v3694 = vpack.c.b16 %v3647, %v3646
        %v3695 = vpack.c.b16 %v3649, %v3648
        %v3696 = vpack.c.b16 %v3651, %v3650
        %v3697 = vpack.c.b16 %v3653, %v3652
        %v3698 = vpack.c.b16 %v3655, %v3654
        %v3699 = vpack.c.b16 %v3657, %v3656
        %v3700 = vpack.c.b16 %v3659, %v3658
        %v3701 = vpack.c.b16 %v3661, %v3660
        %v3702 = vpack.c.b16 %v3663, %v3662
        %v3703 = vpack.c.b16 %v3665, %v3664
        %v3704 = vpack.c.b16 %v3667, %v3666
        %v3705 = vpack.c.b16 %v3669, %v3668
        %v3706 = vpack.c.b16 %v3671, %v3670
        %v3707 = vpack.c.b16 %v3673, %v3672
        %v3708 = vpack.c.b16 %v3675, %v3674
        %v3709 = vpack.c.b16 %v3677, %v3676
        %v3758 = vunpack.c.l.b16 %v3534
        %v3759 = vunpack.c.l.b16 %v3535
        %v3760 = vunpack.c.l.b16 %v3536
        %v3761 = vunpack.c.l.b16 %v3537
        %v3762 = vunpack.c.l.b16 %v3538
        %v3763 = vunpack.c.l.b16 %v3539
        %v3764 = vunpack.c.l.b16 %v3540
        %v3765 = vunpack.c.l.b16 %v3541
        %v3766 = vunpack.c.l.b16 %v3542
        %v3767 = vunpack.c.l.b16 %v3543
        %v3768 = vunpack.c.l.b16 %v3544
        %v3769 = vunpack.c.l.b16 %v3545
        %v3770 = vunpack.c.l.b16 %v3546
        %v3771 = vunpack.c.l.b16 %v3547
        %v3772 = vunpack.c.l.b16 %v3548
        %v3773 = vunpack.c.l.b16 %v3549
        %v3774 = vpack.c.b16 %v3759, %v3758
        %v3775 = vpack.c.b16 %v3761, %v3760
        %v3776 = vpack.c.b16 %v3763, %v3762
        %v3777 = vpack.c.b16 %v3765, %v3764
        %v3778 = vpack.c.b16 %v3767, %v3766
        %v3779 = vpack.c.b16 %v3769, %v3768
        %v3780 = vpack.c.b16 %v3771, %v3770
        %v3781 = vpack.c.b16 %v3773, %v3772
        %3790 = vmatprep.subr.bf16.mxu0 0
        %3791 = vmatpush1.bf16.msra.mxu0 %v3774
        %3792 = vmatprep.subr.bf16.mxu0 0
        %3793 = vmatpush1.bf16.msra.mxu0 %v3775
        %3794 = vmatprep.subr.bf16.mxu0 0
        %3795 = vmatpush1.bf16.msra.mxu0 %v3776
        %3796 = vmatprep.subr.bf16.mxu0 0
        %3797 = vmatpush1.bf16.msra.mxu0 %v3777
        %3798 = vmatprep.subr.bf16.mxu0 0
        %3799 = vmatpush1.bf16.msra.mxu0 %v3778
        %3800 = vmatprep.subr.bf16.mxu0 0
        %3801 = vmatpush1.bf16.msra.mxu0 %v3779
        %3802 = vmatprep.subr.bf16.mxu0 0
        %3803 = vmatpush1.bf16.msra.mxu0 %v3780
        %3804 = vmatprep.subr.bf16.mxu0 0
        %3805 = vmatpush1.bf16.msra.mxu0 %v3781
        %3806 = vmatprep.subr.bf16.mxu0 0
        %3807 = vmatpush1.bf16.msra.mxu0 0
        %3808 = vmatprep.subr.bf16.mxu0 0
        %3809 = vmatpush1.bf16.msra.mxu0 0
        %3810 = vmatprep.subr.bf16.mxu0 0
        %3811 = vmatpush1.bf16.msra.mxu0 0
        %3812 = vmatprep.subr.bf16.mxu0 0
        %3813 = vmatpush1.bf16.msra.mxu0 0
        %3814 = vmatprep.subr.bf16.mxu0 0
        %3815 = vmatpush1.bf16.msra.mxu0 0
        %3816 = vmatprep.subr.bf16.mxu0 0
        %3817 = vmatpush1.bf16.msra.mxu0 0
        %3818 = vmatprep.subr.bf16.mxu0 0
        %3819 = vmatpush1.bf16.msra.mxu0 0
        %3820 = vmatprep.subr.bf16.mxu0 0
        %3821 = vmatpush1.bf16.msra.mxu0 0
        %3822 = vmatprep.mubr.bf16.mxu0 0
        %3823 = vmatmul.mubr.bf16.gmra.mrb[0].mxu0 %v3678
        %v3824 = vpop.f32.mrb[0].mxu0
        %v3825 = vadd.f32 0.0, %v3824
        %v3826 = vpop.f32.mrb[0].mxu0
        %v3827 = vpop.f32.mrb[0].mxu0
        %v3828 = vadd.f32 0.0, %v3827
        %v3829 = vpop.f32.mrb[0].mxu0
        %3830 = vmatprep.mubr.bf16.mxu0 0
        %3831 = vmatmul.mubr.bf16.gmra.mrb[0].mxu0 %v3679
        %v3832 = vpop.f32.mrb[0].mxu0
        %v3833 = vadd.f32 0.0, %v3832
        %v3834 = vpop.f32.mrb[0].mxu0
        %v3835 = vpop.f32.mrb[0].mxu0
        %v3836 = vadd.f32 0.0, %v3835
        %v3837 = vpop.f32.mrb[0].mxu0
        %3838 = vmatprep.mubr.bf16.mxu0 0
        %3839 = vmatmul.mubr.bf16.gmra.mrb[0].mxu0 %v3680
        %v3840 = vpop.f32.mrb[0].mxu0
        %v3841 = vadd.f32 0.0, %v3840
        %v3842 = vpop.f32.mrb[0].mxu0
        %v3843 = vpop.f32.mrb[0].mxu0
        %v3844 = vadd.f32 0.0, %v3843
        %v3845 = vpop.f32.mrb[0].mxu0
        %3846 = vmatprep.mubr.bf16.mxu0 0
        %3847 = vmatmul.mubr.bf16.gmra.mrb[0].mxu0 %v3681
        %v3848 = vpop.f32.mrb[0].mxu0
        %v3849 = vadd.f32 0.0, %v3848
        %v3850 = vpop.f32.mrb[0].mxu0
        %v3851 = vpop.f32.mrb[0].mxu0
        %v3852 = vadd.f32 0.0, %v3851
        %v3853 = vpop.f32.mrb[0].mxu0
        %3854 = vmatprep.mubr.bf16.mxu0 0
        %3855 = vmatmul.mubr.bf16.gmra.mrb[0].mxu0 %v3682
        %v3856 = vpop.f32.mrb[0].mxu0
        %v3857 = vadd.f32 0.0, %v3856
        %v3858 = vpop.f32.mrb[0].mxu0
        %v3859 = vpop.f32.mrb[0].mxu0
        %v3860 = vadd.f32 0.0, %v3859
        %v3861 = vpop.f32.mrb[0].mxu0
        %3862 = vmatprep.mubr.bf16.mxu0 0
        %3863 = vmatmul.mubr.bf16.gmra.mrb[0].mxu0 %v3683
        %v3864 = vpop.f32.mrb[0].mxu0
        %v3865 = vadd.f32 0.0, %v3864
        %v3866 = vpop.f32.mrb[0].mxu0
        %v3867 = vpop.f32.mrb[0].mxu0
        %v3868 = vadd.f32 0.0, %v3867
        %v3869 = vpop.f32.mrb[0].mxu0
        %3870 = vmatprep.mubr.bf16.mxu0 0
        %3871 = vmatmul.mubr.bf16.gmra.mrb[0].mxu0 %v3684
        %v3872 = vpop.f32.mrb[0].mxu0
        %v3873 = vadd.f32 0.0, %v3872
        %v3874 = vpop.f32.mrb[0].mxu0
        %v3875 = vpop.f32.mrb[0].mxu0
        %v3876 = vadd.f32 0.0, %v3875
        %v3877 = vpop.f32.mrb[0].mxu0
        %3878 = vmatprep.mubr.bf16.mxu0 0
        %3879 = vmatmul.mubr.bf16.gmra.mrb[0].mxu0 %v3685
        %v3880 = vpop.f32.mrb[0].mxu0
        %v3881 = vadd.f32 0.0, %v3880
        %v3882 = vpop.f32.mrb[0].mxu0
        %v3883 = vpop.f32.mrb[0].mxu0
        %v3884 = vadd.f32 0.0, %v3883
        %v3885 = vpop.f32.mrb[0].mxu0
        %3886 = vmatprep.mubr.bf16.mxu0 0
        %3887 = vmatmul.mubr.bf16.gmra.mrb[0].mxu0 %v3686
        %v3888 = vpop.f32.mrb[0].mxu0
        %v3889 = vadd.f32 0.0, %v3888
        %v3890 = vpop.f32.mrb[0].mxu0
        %v3891 = vpop.f32.mrb[0].mxu0
        %v3892 = vadd.f32 0.0, %v3891
        %v3893 = vpop.f32.mrb[0].mxu0
        %3894 = vmatprep.mubr.bf16.mxu0 0
        %3895 = vmatmul.mubr.bf16.gmra.mrb[0].mxu0 %v3687
        %v3896 = vpop.f32.mrb[0].mxu0
        %v3897 = vadd.f32 0.0, %v3896
        %v3898 = vpop.f32.mrb[0].mxu0
        %v3899 = vpop.f32.mrb[0].mxu0
        %v3900 = vadd.f32 0.0, %v3899
        %v3901 = vpop.f32.mrb[0].mxu0
        %3902 = vmatprep.mubr.bf16.mxu0 0
        %3903 = vmatmul.mubr.bf16.gmra.mrb[0].mxu0 %v3688
        %v3904 = vpop.f32.mrb[0].mxu0
        %v3905 = vadd.f32 0.0, %v3904
        %v3906 = vpop.f32.mrb[0].mxu0
        %v3907 = vpop.f32.mrb[0].mxu0
        %v3908 = vadd.f32 0.0, %v3907
        %v3909 = vpop.f32.mrb[0].mxu0
        %3910 = vmatprep.mubr.bf16.mxu0 0
        %3911 = vmatmul.mubr.bf16.gmra.mrb[0].mxu0 %v3689
        %v3912 = vpop.f32.mrb[0].mxu0
        %v3913 = vadd.f32 0.0, %v3912
        %v3914 = vpop.f32.mrb[0].mxu0
        %v3915 = vpop.f32.mrb[0].mxu0
        %v3916 = vadd.f32 0.0, %v3915
        %v3917 = vpop.f32.mrb[0].mxu0
        %3918 = vmatprep.mubr.bf16.mxu0 0
        %3919 = vmatmul.mubr.bf16.gmra.mrb[0].mxu0 %v3690
        %v3920 = vpop.f32.mrb[0].mxu0
        %v3921 = vadd.f32 0.0, %v3920
        %v3922 = vpop.f32.mrb[0].mxu0
        %v3923 = vpop.f32.mrb[0].mxu0
        %v3924 = vadd.f32 0.0, %v3923
        %v3925 = vpop.f32.mrb[0].mxu0
        %3926 = vmatprep.mubr.bf16.mxu0 0
        %3927 = vmatmul.mubr.bf16.gmra.mrb[0].mxu0 %v3691
        %v3928 = vpop.f32.mrb[0].mxu0
        %v3929 = vadd.f32 0.0, %v3928
        %v3930 = vpop.f32.mrb[0].mxu0
        %v3931 = vpop.f32.mrb[0].mxu0
        %v3932 = vadd.f32 0.0, %v3931
        %v3933 = vpop.f32.mrb[0].mxu0
        %3934 = vmatprep.mubr.bf16.mxu0 0
        %3935 = vmatmul.mubr.bf16.gmra.mrb[0].mxu0 %v3692
        %v3936 = vpop.f32.mrb[0].mxu0
        %v3937 = vadd.f32 0.0, %v3936
        %v3938 = vpop.f32.mrb[0].mxu0
        %v3939 = vpop.f32.mrb[0].mxu0
        %v3940 = vadd.f32 0.0, %v3939
        %v3941 = vpop.f32.mrb[0].mxu0
        %3942 = vmatprep.mubr.bf16.mxu0 0
        %3943 = vmatmul.mubr.bf16.gmra.mrb[0].mxu0 %v3693
        %v3944 = vpop.f32.mrb[0].mxu0
        %v3945 = vadd.f32 0.0, %v3944
        %v3946 = vpop.f32.mrb[0].mxu0
        %v3947 = vpop.f32.mrb[0].mxu0
        %v3948 = vadd.f32 0.0, %v3947
        %v3949 = vpop.f32.mrb[0].mxu0
        %3950 = vmatprep.mubr.bf16.mxu0 0
        %3951 = vmatmul.mubr.bf16.gmra.mrb[0].mxu0 %v3694
        %v3952 = vpop.f32.mrb[0].mxu0
        %v3953 = vadd.f32 0.0, %v3952
        %v3954 = vpop.f32.mrb[0].mxu0
        %v3955 = vpop.f32.mrb[0].mxu0
        %v3956 = vadd.f32 0.0, %v3955
        %v3957 = vpop.f32.mrb[0].mxu0
        %3958 = vmatprep.mubr.bf16.mxu0 0
        %3959 = vmatmul.mubr.bf16.gmra.mrb[0].mxu0 %v3695
        %v3960 = vpop.f32.mrb[0].mxu0
        %v3961 = vadd.f32 0.0, %v3960
        %v3962 = vpop.f32.mrb[0].mxu0
        %v3963 = vpop.f32.mrb[0].mxu0
        %v3964 = vadd.f32 0.0, %v3963
        %v3965 = vpop.f32.mrb[0].mxu0
        %3966 = vmatprep.mubr.bf16.mxu0 0
        %3967 = vmatmul.mubr.bf16.gmra.mrb[0].mxu0 %v3696
        %v3968 = vpop.f32.mrb[0].mxu0
        %v3969 = vadd.f32 0.0, %v3968
        %v3970 = vpop.f32.mrb[0].mxu0
        %v3971 = vpop.f32.mrb[0].mxu0
        %v3972 = vadd.f32 0.0, %v3971
        %v3973 = vpop.f32.mrb[0].mxu0
        %3974 = vmatprep.mubr.bf16.mxu0 0
        %3975 = vmatmul.mubr.bf16.gmra.mrb[0].mxu0 %v3697
        %v3976 = vpop.f32.mrb[0].mxu0
        %v3977 = vadd.f32 0.0, %v3976
        %v3978 = vpop.f32.mrb[0].mxu0
        %v3979 = vpop.f32.mrb[0].mxu0
        %v3980 = vadd.f32 0.0, %v3979
        %v3981 = vpop.f32.mrb[0].mxu0
        %3982 = vmatprep.mubr.bf16.mxu0 0
        %3983 = vmatmul.mubr.bf16.gmra.mrb[0].mxu0 %v3698
        %v3984 = vpop.f32.mrb[0].mxu0
        %v3985 = vadd.f32 0.0, %v3984
        %v3986 = vpop.f32.mrb[0].mxu0
        %v3987 = vpop.f32.mrb[0].mxu0
        %v3988 = vadd.f32 0.0, %v3987
        %v3989 = vpop.f32.mrb[0].mxu0
        %3990 = vmatprep.mubr.bf16.mxu0 0
        %3991 = vmatmul.mubr.bf16.gmra.mrb[0].mxu0 %v3699
        %v3992 = vpop.f32.mrb[0].mxu0
        %v3993 = vadd.f32 0.0, %v3992
        %v3994 = vpop.f32.mrb[0].mxu0
        %v3995 = vpop.f32.mrb[0].mxu0
        %v3996 = vadd.f32 0.0, %v3995
        %v3997 = vpop.f32.mrb[0].mxu0
        %3998 = vmatprep.mubr.bf16.mxu0 0
        %3999 = vmatmul.mubr.bf16.gmra.mrb[0].mxu0 %v3700
        %v4000 = vpop.f32.mrb[0].mxu0
        %v4001 = vadd.f32 0.0, %v4000
        %v4002 = vpop.f32.mrb[0].mxu0
        %v4003 = vpop.f32.mrb[0].mxu0
        %v4004 = vadd.f32 0.0, %v4003
        %v4005 = vpop.f32.mrb[0].mxu0
        %4006 = vmatprep.mubr.bf16.mxu0 0
        %4007 = vmatmul.mubr.bf16.gmra.mrb[0].mxu0 %v3701
        %v4008 = vpop.f32.mrb[0].mxu0
        %v4009 = vadd.f32 0.0, %v4008
        %v4010 = vpop.f32.mrb[0].mxu0
        %v4011 = vpop.f32.mrb[0].mxu0
        %v4012 = vadd.f32 0.0, %v4011
        %v4013 = vpop.f32.mrb[0].mxu0
        %4014 = vmatprep.mubr.bf16.mxu0 0
        %4015 = vmatmul.mubr.bf16.gmra.mrb[0].mxu0 %v3702
        %v4016 = vpop.f32.mrb[0].mxu0
        %v4017 = vadd.f32 0.0, %v4016
        %v4018 = vpop.f32.mrb[0].mxu0
        %v4019 = vpop.f32.mrb[0].mxu0
        %v4020 = vadd.f32 0.0, %v4019
        %v4021 = vpop.f32.mrb[0].mxu0
        %4022 = vmatprep.mubr.bf16.mxu0 0
        %4023 = vmatmul.mubr.bf16.gmra.mrb[0].mxu0 %v3703
        %v4024 = vpop.f32.mrb[0].mxu0
        %v4025 = vadd.f32 0.0, %v4024
        %v4026 = vpop.f32.mrb[0].mxu0
        %v4027 = vpop.f32.mrb[0].mxu0
        %v4028 = vadd.f32 0.0, %v4027
        %v4029 = vpop.f32.mrb[0].mxu0
        %4030 = vmatprep.mubr.bf16.mxu0 0
        %4031 = vmatmul.mubr.bf16.gmra.mrb[0].mxu0 %v3704
        %v4032 = vpop.f32.mrb[0].mxu0
        %v4033 = vadd.f32 0.0, %v4032
        %v4034 = vpop.f32.mrb[0].mxu0
        %v4035 = vpop.f32.mrb[0].mxu0
        %v4036 = vadd.f32 0.0, %v4035
        %v4037 = vpop.f32.mrb[0].mxu0
        %4038 = vmatprep.mubr.bf16.mxu0 0
        %4039 = vmatmul.mubr.bf16.gmra.mrb[0].mxu0 %v3705
        %v4040 = vpop.f32.mrb[0].mxu0
        %v4041 = vadd.f32 0.0, %v4040
        %v4042 = vpop.f32.mrb[0].mxu0
        %v4043 = vpop.f32.mrb[0].mxu0
        %v4044 = vadd.f32 0.0, %v4043
        %v4045 = vpop.f32.mrb[0].mxu0
        %4046 = vmatprep.mubr.bf16.mxu0 0
        %4047 = vmatmul.mubr.bf16.gmra.mrb[0].mxu0 %v3706
        %v4048 = vpop.f32.mrb[0].mxu0
        %v4049 = vadd.f32 0.0, %v4048
        %v4050 = vpop.f32.mrb[0].mxu0
        %v4051 = vpop.f32.mrb[0].mxu0
        %v4052 = vadd.f32 0.0, %v4051
        %v4053 = vpop.f32.mrb[0].mxu0
        %4054 = vmatprep.mubr.bf16.mxu0 0
        %4055 = vmatmul.mubr.bf16.gmra.mrb[0].mxu0 %v3707
        %v4056 = vpop.f32.mrb[0].mxu0
        %v4057 = vadd.f32 0.0, %v4056
        %v4058 = vpop.f32.mrb[0].mxu0
        %v4059 = vpop.f32.mrb[0].mxu0
        %v4060 = vadd.f32 0.0, %v4059
        %v4061 = vpop.f32.mrb[0].mxu0
        %4062 = vmatprep.mubr.bf16.mxu0 0
        %4063 = vmatmul.mubr.bf16.gmra.mrb[0].mxu0 %v3708
        %v4064 = vpop.f32.mrb[0].mxu0
        %v4065 = vadd.f32 0.0, %v4064
        %v4066 = vpop.f32.mrb[0].mxu0
        %v4067 = vpop.f32.mrb[0].mxu0
        %v4068 = vadd.f32 0.0, %v4067
        %v4069 = vpop.f32.mrb[0].mxu0
        %4070 = vmatprep.mubr.bf16.mxu0 0
        %4071 = vmatmul.mubr.bf16.gmra.mrb[0].mxu0 %v3709
        %v4072 = vpop.f32.mrb[0].mxu0
        %v4073 = vadd.f32 0.0, %v4072
        %v4074 = vpop.f32.mrb[0].mxu0
        %v4075 = vpop.f32.mrb[0].mxu0
        %v4076 = vadd.f32 0.0, %v4075
        %v4077 = vpop.f32.mrb[0].mxu0
        %4078 = vdwg.mxu0
        %v4079 = vadd.f32 %v3279, %v3825
        %v4080 = vadd.f32 %v3282, %v3828
        %v4081 = vadd.f32 %v3287, %v3833
        %v4082 = vadd.f32 %v3290, %v3836
        %v4083 = vadd.f32 %v3295, %v3841
        %v4084 = vadd.f32 %v3298, %v3844
        %v4085 = vadd.f32 %v3303, %v3849
        %v4086 = vadd.f32 %v3306, %v3852
        %v4087 = vadd.f32 %v3311, %v3857
        %v4088 = vadd.f32 %v3314, %v3860
        %v4089 = vadd.f32 %v3319, %v3865
        %v4090 = vadd.f32 %v3322, %v3868
        %v4091 = vadd.f32 %v3327, %v3873
        %v4092 = vadd.f32 %v3330, %v3876
        %v4093 = vadd.f32 %v3335, %v3881
        %v4094 = vadd.f32 %v3338, %v3884
        %v4095 = vadd.f32 %v3343, %v3889
        %v4096 = vadd.f32 %v3346, %v3892
        %v4097 = vadd.f32 %v3351, %v3897
        %v4098 = vadd.f32 %v3354, %v3900
        %v4099 = vadd.f32 %v3359, %v3905
        %v4100 = vadd.f32 %v3362, %v3908
        %v4101 = vadd.f32 %v3367, %v3913
        %v4102 = vadd.f32 %v3370, %v3916
        %v4103 = vadd.f32 %v3375, %v3921
        %v4104 = vadd.f32 %v3378, %v3924
        %v4105 = vadd.f32 %v3383, %v3929
        %v4106 = vadd.f32 %v3386, %v3932
        %v4107 = vadd.f32 %v3391, %v3937
        %v4108 = vadd.f32 %v3394, %v3940
        %v4109 = vadd.f32 %v3399, %v3945
        %v4110 = vadd.f32 %v3402, %v3948
        %v4111 = vadd.f32 %v3407, %v3953
        %v4112 = vadd.f32 %v3410, %v3956
        %v4113 = vadd.f32 %v3415, %v3961
        %v4114 = vadd.f32 %v3418, %v3964
        %v4115 = vadd.f32 %v3423, %v3969
        %v4116 = vadd.f32 %v3426, %v3972
        %v4117 = vadd.f32 %v3431, %v3977
        %v4118 = vadd.f32 %v3434, %v3980
        %v4119 = vadd.f32 %v3439, %v3985
        %v4120 = vadd.f32 %v3442, %v3988
        %v4121 = vadd.f32 %v3447, %v3993
        %v4122 = vadd.f32 %v3450, %v3996
        %v4123 = vadd.f32 %v3455, %v4001
        %v4124 = vadd.f32 %v3458, %v4004
        %v4125 = vadd.f32 %v3463, %v4009
        %v4126 = vadd.f32 %v3466, %v4012
        %v4127 = vadd.f32 %v3471, %v4017
        %v4128 = vadd.f32 %v3474, %v4020
        %v4129 = vadd.f32 %v3479, %v4025
        %v4130 = vadd.f32 %v3482, %v4028
        %v4131 = vadd.f32 %v3487, %v4033
        %v4132 = vadd.f32 %v3490, %v4036
        %v4133 = vadd.f32 %v3495, %v4041
        %v4134 = vadd.f32 %v3498, %v4044
        %v4135 = vadd.f32 %v3503, %v4049
        %v4136 = vadd.f32 %v3506, %v4052
        %v4137 = vadd.f32 %v3511, %v4057
        %v4138 = vadd.f32 %v3514, %v4060
        %v4139 = vadd.f32 %v3519, %v4065
        %v4140 = vadd.f32 %v3522, %v4068
        %v4141 = vadd.f32 %v3527, %v4073
        %v4142 = vadd.f32 %v3530, %v4076
        %v4143 = vld [vmem:[%s1671] sm:$0xf]
        %v4144 = vld [vmem:[%s1671 + $0x4] sm:$0xf]
        %v4145 = vld [vmem:[%s1671 + $0x8] sm:$0xf]
        %v4146 = vld [vmem:[%s1671 + $0xc] sm:$0xf]
        %v4147 = vld [vmem:[%s1671 + $0x10] sm:$0xf]
        %v4148 = vld [vmem:[%s1671 + $0x14] sm:$0xf]
        %v4149 = vld [vmem:[%s1671 + $0x18] sm:$0xf]
        %v4150 = vld [vmem:[%s1671 + $0x1c] sm:$0xf]
        %v4151 = vld [vmem:[%s1671 + $0x20] sm:$0xf]
        %v4152 = vld [vmem:[%s1671 + $0x24] sm:$0xf]
        %v4153 = vld [vmem:[%s1671 + $0x28] sm:$0xf]
        %v4154 = vld [vmem:[%s1671 + $0x2c] sm:$0xf]
        %v4155 = vld [vmem:[%s1671 + $0x30] sm:$0xf]
        %v4156 = vld [vmem:[%s1671 + $0x34] sm:$0xf]
        %v4157 = vld [vmem:[%s1671 + $0x38] sm:$0xf]
        %v4158 = vld [vmem:[%s1671 + $0x3c] sm:$0xf]
        %v4159 = vld [vmem:[%s1671 + $0x40] sm:$0xf]
        %v4160 = vld [vmem:[%s1671 + $0x44] sm:$0xf]
        %v4161 = vld [vmem:[%s1671 + $0x48] sm:$0xf]
        %v4162 = vld [vmem:[%s1671 + $0x4c] sm:$0xf]
        %v4163 = vld [vmem:[%s1671 + $0x50] sm:$0xf]
        %v4164 = vld [vmem:[%s1671 + $0x54] sm:$0xf]
        %v4165 = vld [vmem:[%s1671 + $0x58] sm:$0xf]
        %v4166 = vld [vmem:[%s1671 + $0x5c] sm:$0xf]
        %v4167 = vld [vmem:[%s1671 + $0x60] sm:$0xf]
        %v4168 = vld [vmem:[%s1671 + $0x64] sm:$0xf]
        %v4169 = vld [vmem:[%s1671 + $0x68] sm:$0xf]
        %v4170 = vld [vmem:[%s1671 + $0x6c] sm:$0xf]
        %v4171 = vld [vmem:[%s1671 + $0x70] sm:$0xf]
        %v4172 = vld [vmem:[%s1671 + $0x74] sm:$0xf]
        %v4173 = vld [vmem:[%s1671 + $0x78] sm:$0xf]
        %v4174 = vld [vmem:[%s1671 + $0x7c] sm:$0xf]
        %v4175 = vld [vmem:[%s1671 + $0x80] sm:$0xf]
        %v4176 = vld [vmem:[%s1671 + $0x84] sm:$0xf]
        %v4177 = vld [vmem:[%s1671 + $0x88] sm:$0xf]
        %v4178 = vld [vmem:[%s1671 + $0x8c] sm:$0xf]
        %v4179 = vld [vmem:[%s1671 + $0x90] sm:$0xf]
        %v4180 = vld [vmem:[%s1671 + $0x94] sm:$0xf]
        %v4181 = vld [vmem:[%s1671 + $0x98] sm:$0xf]
        %v4182 = vld [vmem:[%s1671 + $0x9c] sm:$0xf]
        %v4183 = vld [vmem:[%s1671 + $0xa0] sm:$0xf]
        %v4184 = vld [vmem:[%s1671 + $0xa4] sm:$0xf]
        %v4185 = vld [vmem:[%s1671 + $0xa8] sm:$0xf]
        %v4186 = vld [vmem:[%s1671 + $0xac] sm:$0xf]
        %v4187 = vld [vmem:[%s1671 + $0xb0] sm:$0xf]
        %v4188 = vld [vmem:[%s1671 + $0xb4] sm:$0xf]
        %v4189 = vld [vmem:[%s1671 + $0xb8] sm:$0xf]
        %v4190 = vld [vmem:[%s1671 + $0xbc] sm:$0xf]
        %v4191 = vld [vmem:[%s1671 + $0xc0] sm:$0xf]
        %v4192 = vld [vmem:[%s1671 + $0xc4] sm:$0xf]
        %v4193 = vld [vmem:[%s1671 + $0xc8] sm:$0xf]
        %v4194 = vld [vmem:[%s1671 + $0xcc] sm:$0xf]
        %v4195 = vld [vmem:[%s1671 + $0xd0] sm:$0xf]
        %v4196 = vld [vmem:[%s1671 + $0xd4] sm:$0xf]
        %v4197 = vld [vmem:[%s1671 + $0xd8] sm:$0xf]
        %v4198 = vld [vmem:[%s1671 + $0xdc] sm:$0xf]
        %v4199 = vld [vmem:[%s1671 + $0xe0] sm:$0xf]
        %v4200 = vld [vmem:[%s1671 + $0xe4] sm:$0xf]
        %v4201 = vld [vmem:[%s1671 + $0xe8] sm:$0xf]
        %v4202 = vld [vmem:[%s1671 + $0xec] sm:$0xf]
        %v4203 = vld [vmem:[%s1671 + $0xf0] sm:$0xf]
        %v4204 = vld [vmem:[%s1671 + $0xf4] sm:$0xf]
        %v4205 = vld [vmem:[%s1671 + $0xf8] sm:$0xf]
        %v4206 = vld [vmem:[%s1671 + $0xfc] sm:$0xf]
        %v4207 = vunpack.c.l.bf16 %v4143
        %v4208 = vunpack.c.l.bf16 %v4144
        %v4209 = vunpack.c.l.bf16 %v4145
        %v4210 = vunpack.c.l.bf16 %v4146
        %v4211 = vunpack.c.l.bf16 %v4147
        %v4212 = vunpack.c.l.bf16 %v4148
        %v4213 = vunpack.c.l.bf16 %v4149
        %v4214 = vunpack.c.l.bf16 %v4150
        %v4215 = vunpack.c.l.bf16 %v4151
        %v4216 = vunpack.c.l.bf16 %v4152
        %v4217 = vunpack.c.l.bf16 %v4153
        %v4218 = vunpack.c.l.bf16 %v4154
        %v4219 = vunpack.c.l.bf16 %v4155
        %v4220 = vunpack.c.l.bf16 %v4156
        %v4221 = vunpack.c.l.bf16 %v4157
        %v4222 = vunpack.c.l.bf16 %v4158
        %v4223 = vunpack.c.l.bf16 %v4159
        %v4224 = vunpack.c.l.bf16 %v4160
        %v4225 = vunpack.c.l.bf16 %v4161
        %v4226 = vunpack.c.l.bf16 %v4162
        %v4227 = vunpack.c.l.bf16 %v4163
        %v4228 = vunpack.c.l.bf16 %v4164
        %v4229 = vunpack.c.l.bf16 %v4165
        %v4230 = vunpack.c.l.bf16 %v4166
        %v4231 = vunpack.c.l.bf16 %v4167
        %v4232 = vunpack.c.l.bf16 %v4168
        %v4233 = vunpack.c.l.bf16 %v4169
        %v4234 = vunpack.c.l.bf16 %v4170
        %v4235 = vunpack.c.l.bf16 %v4171
        %v4236 = vunpack.c.l.bf16 %v4172
        %v4237 = vunpack.c.l.bf16 %v4173
        %v4238 = vunpack.c.l.bf16 %v4174
        %v4239 = vunpack.c.l.bf16 %v4175
        %v4240 = vunpack.c.l.bf16 %v4176
        %v4241 = vunpack.c.l.bf16 %v4177
        %v4242 = vunpack.c.l.bf16 %v4178
        %v4243 = vunpack.c.l.bf16 %v4179
        %v4244 = vunpack.c.l.bf16 %v4180
        %v4245 = vunpack.c.l.bf16 %v4181
        %v4246 = vunpack.c.l.bf16 %v4182
        %v4247 = vunpack.c.l.bf16 %v4183
        %v4248 = vunpack.c.l.bf16 %v4184
        %v4249 = vunpack.c.l.bf16 %v4185
        %v4250 = vunpack.c.l.bf16 %v4186
        %v4251 = vunpack.c.l.bf16 %v4187
        %v4252 = vunpack.c.l.bf16 %v4188
        %v4253 = vunpack.c.l.bf16 %v4189
        %v4254 = vunpack.c.l.bf16 %v4190
        %v4255 = vunpack.c.l.bf16 %v4191
        %v4256 = vunpack.c.l.bf16 %v4192
        %v4257 = vunpack.c.l.bf16 %v4193
        %v4258 = vunpack.c.l.bf16 %v4194
        %v4259 = vunpack.c.l.bf16 %v4195
        %v4260 = vunpack.c.l.bf16 %v4196
        %v4261 = vunpack.c.l.bf16 %v4197
        %v4262 = vunpack.c.l.bf16 %v4198
        %v4263 = vunpack.c.l.bf16 %v4199
        %v4264 = vunpack.c.l.bf16 %v4200
        %v4265 = vunpack.c.l.bf16 %v4201
        %v4266 = vunpack.c.l.bf16 %v4202
        %v4267 = vunpack.c.l.bf16 %v4203
        %v4268 = vunpack.c.l.bf16 %v4204
        %v4269 = vunpack.c.l.bf16 %v4205
        %v4270 = vunpack.c.l.bf16 %v4206
        %v4335 = vrot.slane %v4207, 7
        %v4336 = vrot.slane %v4208, 7
        %v4337 = vrot.slane %v4209, 7
        %v4338 = vrot.slane %v4210, 7
        %v4339 = vrot.slane %v4211, 7
        %v4340 = vrot.slane %v4212, 7
        %v4341 = vrot.slane %v4213, 7
        %v4342 = vrot.slane %v4214, 7
        %v4343 = vrot.slane %v4215, 7
        %v4344 = vrot.slane %v4216, 7
        %v4345 = vrot.slane %v4217, 7
        %v4346 = vrot.slane %v4218, 7
        %v4347 = vrot.slane %v4219, 7
        %v4348 = vrot.slane %v4220, 7
        %v4349 = vrot.slane %v4221, 7
        %v4350 = vrot.slane %v4222, 7
        %v4351 = vrot.slane %v4223, 7
        %v4352 = vrot.slane %v4224, 7
        %v4353 = vrot.slane %v4225, 7
        %v4354 = vrot.slane %v4226, 7
        %v4355 = vrot.slane %v4227, 7
        %v4356 = vrot.slane %v4228, 7
        %v4357 = vrot.slane %v4229, 7
        %v4358 = vrot.slane %v4230, 7
        %v4359 = vrot.slane %v4231, 7
        %v4360 = vrot.slane %v4232, 7
        %v4361 = vrot.slane %v4233, 7
        %v4362 = vrot.slane %v4234, 7
        %v4363 = vrot.slane %v4235, 7
        %v4364 = vrot.slane %v4236, 7
        %v4365 = vrot.slane %v4237, 7
        %v4366 = vrot.slane %v4238, 7
        %v4367 = vrot.slane %v4239, 7
        %v4368 = vrot.slane %v4240, 7
        %v4369 = vrot.slane %v4241, 7
        %v4370 = vrot.slane %v4242, 7
        %v4371 = vrot.slane %v4243, 7
        %v4372 = vrot.slane %v4244, 7
        %v4373 = vrot.slane %v4245, 7
        %v4374 = vrot.slane %v4246, 7
        %v4375 = vrot.slane %v4247, 7
        %v4376 = vrot.slane %v4248, 7
        %v4377 = vrot.slane %v4249, 7
        %v4378 = vrot.slane %v4250, 7
        %v4379 = vrot.slane %v4251, 7
        %v4380 = vrot.slane %v4252, 7
        %v4381 = vrot.slane %v4253, 7
        %v4382 = vrot.slane %v4254, 7
        %v4383 = vrot.slane %v4255, 7
        %v4384 = vrot.slane %v4256, 7
        %v4385 = vrot.slane %v4257, 7
        %v4386 = vrot.slane %v4258, 7
        %v4387 = vrot.slane %v4259, 7
        %v4388 = vrot.slane %v4260, 7
        %v4389 = vrot.slane %v4261, 7
        %v4390 = vrot.slane %v4262, 7
        %v4391 = vrot.slane %v4263, 7
        %v4392 = vrot.slane %v4264, 7
        %v4393 = vrot.slane %v4265, 7
        %v4394 = vrot.slane %v4266, 7
        %v4395 = vrot.slane %v4267, 7
        %v4396 = vrot.slane %v4268, 7
        %v4397 = vrot.slane %v4269, 7
        %v4398 = vrot.slane %v4270, 7
        %v4463 = vsel %vm2056, 0.0, %v4335
        %v4464 = vsel %vm2056, 0.0, %v4336
        %v4465 = vsel %vm2056, 0.0, %v4337
        %v4466 = vsel %vm2056, 0.0, %v4338
        %v4467 = vsel %vm2056, 0.0, %v4339
        %v4468 = vsel %vm2056, 0.0, %v4340
        %v4469 = vsel %vm2056, 0.0, %v4341
        %v4470 = vsel %vm2056, 0.0, %v4342
        %v4471 = vsel %vm2056, 0.0, %v4343
        %v4472 = vsel %vm2056, 0.0, %v4344
        %v4473 = vsel %vm2056, 0.0, %v4345
        %v4474 = vsel %vm2056, 0.0, %v4346
        %v4475 = vsel %vm2056, 0.0, %v4347
        %v4476 = vsel %vm2056, 0.0, %v4348
        %v4477 = vsel %vm2056, 0.0, %v4349
        %v4478 = vsel %vm2056, 0.0, %v4350
        %v4479 = vsel %vm2056, 0.0, %v4351
        %v4480 = vsel %vm2056, 0.0, %v4352
        %v4481 = vsel %vm2056, 0.0, %v4353
        %v4482 = vsel %vm2056, 0.0, %v4354
        %v4483 = vsel %vm2056, 0.0, %v4355
        %v4484 = vsel %vm2056, 0.0, %v4356
        %v4485 = vsel %vm2056, 0.0, %v4357
        %v4486 = vsel %vm2056, 0.0, %v4358
        %v4487 = vsel %vm2056, 0.0, %v4359
        %v4488 = vsel %vm2056, 0.0, %v4360
        %v4489 = vsel %vm2056, 0.0, %v4361
        %v4490 = vsel %vm2056, 0.0, %v4362
        %v4491 = vsel %vm2056, 0.0, %v4363
        %v4492 = vsel %vm2056, 0.0, %v4364
        %v4493 = vsel %vm2056, 0.0, %v4365
        %v4494 = vsel %vm2056, 0.0, %v4366
        %v4495 = vsel %vm2056, 0.0, %v4367
        %v4496 = vsel %vm2056, 0.0, %v4368
        %v4497 = vsel %vm2056, 0.0, %v4369
        %v4498 = vsel %vm2056, 0.0, %v4370
        %v4499 = vsel %vm2056, 0.0, %v4371
        %v4500 = vsel %vm2056, 0.0, %v4372
        %v4501 = vsel %vm2056, 0.0, %v4373
        %v4502 = vsel %vm2056, 0.0, %v4374
        %v4503 = vsel %vm2056, 0.0, %v4375
        %v4504 = vsel %vm2056, 0.0, %v4376
        %v4505 = vsel %vm2056, 0.0, %v4377
        %v4506 = vsel %vm2056, 0.0, %v4378
        %v4507 = vsel %vm2056, 0.0, %v4379
        %v4508 = vsel %vm2056, 0.0, %v4380
        %v4509 = vsel %vm2056, 0.0, %v4381
        %v4510 = vsel %vm2056, 0.0, %v4382
        %v4511 = vsel %vm2056, 0.0, %v4383
        %v4512 = vsel %vm2056, 0.0, %v4384
        %v4513 = vsel %vm2056, 0.0, %v4385
        %v4514 = vsel %vm2056, 0.0, %v4386
        %v4515 = vsel %vm2056, 0.0, %v4387
        %v4516 = vsel %vm2056, 0.0, %v4388
        %v4517 = vsel %vm2056, 0.0, %v4389
        %v4518 = vsel %vm2056, 0.0, %v4390
        %v4519 = vsel %vm2056, 0.0, %v4391
        %v4520 = vsel %vm2056, 0.0, %v4392
        %v4521 = vsel %vm2056, 0.0, %v4393
        %v4522 = vsel %vm2056, 0.0, %v4394
        %v4523 = vsel %vm2056, 0.0, %v4395
        %v4524 = vsel %vm2056, 0.0, %v4396
        %v4525 = vsel %vm2056, 0.0, %v4397
        %v4526 = vsel %vm2056, 0.0, %v4398
        %v4527 = vrot.slane %v4207, 1
        %v4528 = vrot.slane %v4208, 1
        %v4529 = vrot.slane %v4209, 1
        %v4530 = vrot.slane %v4210, 1
        %v4531 = vrot.slane %v4211, 1
        %v4532 = vrot.slane %v4212, 1
        %v4533 = vrot.slane %v4213, 1
        %v4534 = vrot.slane %v4214, 1
        %v4535 = vrot.slane %v4215, 1
        %v4536 = vrot.slane %v4216, 1
        %v4537 = vrot.slane %v4217, 1
        %v4538 = vrot.slane %v4218, 1
        %v4539 = vrot.slane %v4219, 1
        %v4540 = vrot.slane %v4220, 1
        %v4541 = vrot.slane %v4221, 1
        %v4542 = vrot.slane %v4222, 1
        %v4543 = vrot.slane %v4223, 1
        %v4544 = vrot.slane %v4224, 1
        %v4545 = vrot.slane %v4225, 1
        %v4546 = vrot.slane %v4226, 1
        %v4547 = vrot.slane %v4227, 1
        %v4548 = vrot.slane %v4228, 1
        %v4549 = vrot.slane %v4229, 1
        %v4550 = vrot.slane %v4230, 1
        %v4551 = vrot.slane %v4231, 1
        %v4552 = vrot.slane %v4232, 1
        %v4553 = vrot.slane %v4233, 1
        %v4554 = vrot.slane %v4234, 1
        %v4555 = vrot.slane %v4235, 1
        %v4556 = vrot.slane %v4236, 1
        %v4557 = vrot.slane %v4237, 1
        %v4558 = vrot.slane %v4238, 1
        %v4559 = vrot.slane %v4239, 1
        %v4560 = vrot.slane %v4240, 1
        %v4561 = vrot.slane %v4241, 1
        %v4562 = vrot.slane %v4242, 1
        %v4563 = vrot.slane %v4243, 1
        %v4564 = vrot.slane %v4244, 1
        %v4565 = vrot.slane %v4245, 1
        %v4566 = vrot.slane %v4246, 1
        %v4567 = vrot.slane %v4247, 1
        %v4568 = vrot.slane %v4248, 1
        %v4569 = vrot.slane %v4249, 1
        %v4570 = vrot.slane %v4250, 1
        %v4571 = vrot.slane %v4251, 1
        %v4572 = vrot.slane %v4252, 1
        %v4573 = vrot.slane %v4253, 1
        %v4574 = vrot.slane %v4254, 1
        %v4575 = vrot.slane %v4255, 1
        %v4576 = vrot.slane %v4256, 1
        %v4577 = vrot.slane %v4257, 1
        %v4578 = vrot.slane %v4258, 1
        %v4579 = vrot.slane %v4259, 1
        %v4580 = vrot.slane %v4260, 1
        %v4581 = vrot.slane %v4261, 1
        %v4582 = vrot.slane %v4262, 1
        %v4583 = vrot.slane %v4263, 1
        %v4584 = vrot.slane %v4264, 1
        %v4585 = vrot.slane %v4265, 1
        %v4586 = vrot.slane %v4266, 1
        %v4587 = vrot.slane %v4267, 1
        %v4588 = vrot.slane %v4268, 1
        %v4589 = vrot.slane %v4269, 1
        %v4590 = vrot.slane %v4270, 1
        %v4655 = vsel %vm2249, %v4527, 0.0
        %v4656 = vsel %vm2249, %v4528, 0.0
        %v4657 = vsel %vm2249, %v4529, 0.0
        %v4658 = vsel %vm2249, %v4530, 0.0
        %v4659 = vsel %vm2249, %v4531, 0.0
        %v4660 = vsel %vm2249, %v4532, 0.0
        %v4661 = vsel %vm2249, %v4533, 0.0
        %v4662 = vsel %vm2249, %v4534, 0.0
        %v4663 = vsel %vm2249, %v4535, 0.0
        %v4664 = vsel %vm2249, %v4536, 0.0
        %v4665 = vsel %vm2249, %v4537, 0.0
        %v4666 = vsel %vm2249, %v4538, 0.0
        %v4667 = vsel %vm2249, %v4539, 0.0
        %v4668 = vsel %vm2249, %v4540, 0.0
        %v4669 = vsel %vm2249, %v4541, 0.0
        %v4670 = vsel %vm2249, %v4542, 0.0
        %v4671 = vsel %vm2249, %v4543, 0.0
        %v4672 = vsel %vm2249, %v4544, 0.0
        %v4673 = vsel %vm2249, %v4545, 0.0
        %v4674 = vsel %vm2249, %v4546, 0.0
        %v4675 = vsel %vm2249, %v4547, 0.0
        %v4676 = vsel %vm2249, %v4548, 0.0
        %v4677 = vsel %vm2249, %v4549, 0.0
        %v4678 = vsel %vm2249, %v4550, 0.0
        %v4679 = vsel %vm2249, %v4551, 0.0
        %v4680 = vsel %vm2249, %v4552, 0.0
        %v4681 = vsel %vm2249, %v4553, 0.0
        %v4682 = vsel %vm2249, %v4554, 0.0
        %v4683 = vsel %vm2249, %v4555, 0.0
        %v4684 = vsel %vm2249, %v4556, 0.0
        %v4685 = vsel %vm2249, %v4557, 0.0
        %v4686 = vsel %vm2249, %v4558, 0.0
        %v4687 = vsel %vm2249, %v4559, 0.0
        %v4688 = vsel %vm2249, %v4560, 0.0
        %v4689 = vsel %vm2249, %v4561, 0.0
        %v4690 = vsel %vm2249, %v4562, 0.0
        %v4691 = vsel %vm2249, %v4563, 0.0
        %v4692 = vsel %vm2249, %v4564, 0.0
        %v4693 = vsel %vm2249, %v4565, 0.0
        %v4694 = vsel %vm2249, %v4566, 0.0
        %v4695 = vsel %vm2249, %v4567, 0.0
        %v4696 = vsel %vm2249, %v4568, 0.0
        %v4697 = vsel %vm2249, %v4569, 0.0
        %v4698 = vsel %vm2249, %v4570, 0.0
        %v4699 = vsel %vm2249, %v4571, 0.0
        %v4700 = vsel %vm2249, %v4572, 0.0
        %v4701 = vsel %vm2249, %v4573, 0.0
        %v4702 = vsel %vm2249, %v4574, 0.0
        %v4703 = vsel %vm2249, %v4575, 0.0
        %v4704 = vsel %vm2249, %v4576, 0.0
        %v4705 = vsel %vm2249, %v4577, 0.0
        %v4706 = vsel %vm2249, %v4578, 0.0
        %v4707 = vsel %vm2249, %v4579, 0.0
        %v4708 = vsel %vm2249, %v4580, 0.0
        %v4709 = vsel %vm2249, %v4581, 0.0
        %v4710 = vsel %vm2249, %v4582, 0.0
        %v4711 = vsel %vm2249, %v4583, 0.0
        %v4712 = vsel %vm2249, %v4584, 0.0
        %v4713 = vsel %vm2249, %v4585, 0.0
        %v4714 = vsel %vm2249, %v4586, 0.0
        %v4715 = vsel %vm2249, %v4587, 0.0
        %v4716 = vsel %vm2249, %v4588, 0.0
        %v4717 = vsel %vm2249, %v4589, 0.0
        %v4718 = vsel %vm2249, %v4590, 0.0
        %v4719 = vpack.c.bf16 %v4463, %v4463
        %v4720 = vpack.c.bf16 %v4464, %v4464
        %v4721 = vpack.c.bf16 %v4465, %v4465
        %v4722 = vpack.c.bf16 %v4466, %v4466
        %v4723 = vpack.c.bf16 %v4467, %v4467
        %v4724 = vpack.c.bf16 %v4468, %v4468
        %v4725 = vpack.c.bf16 %v4469, %v4469
        %v4726 = vpack.c.bf16 %v4470, %v4470
        %v4727 = vpack.c.bf16 %v4471, %v4471
        %v4728 = vpack.c.bf16 %v4472, %v4472
        %v4729 = vpack.c.bf16 %v4473, %v4473
        %v4730 = vpack.c.bf16 %v4474, %v4474
        %v4731 = vpack.c.bf16 %v4475, %v4475
        %v4732 = vpack.c.bf16 %v4476, %v4476
        %v4733 = vpack.c.bf16 %v4477, %v4477
        %v4734 = vpack.c.bf16 %v4478, %v4478
        %v4735 = vpack.c.bf16 %v4479, %v4479
        %v4736 = vpack.c.bf16 %v4480, %v4480
        %v4737 = vpack.c.bf16 %v4481, %v4481
        %v4738 = vpack.c.bf16 %v4482, %v4482
        %v4739 = vpack.c.bf16 %v4483, %v4483
        %v4740 = vpack.c.bf16 %v4484, %v4484
        %v4741 = vpack.c.bf16 %v4485, %v4485
        %v4742 = vpack.c.bf16 %v4486, %v4486
        %v4743 = vpack.c.bf16 %v4487, %v4487
        %v4744 = vpack.c.bf16 %v4488, %v4488
        %v4745 = vpack.c.bf16 %v4489, %v4489
        %v4746 = vpack.c.bf16 %v4490, %v4490
        %v4747 = vpack.c.bf16 %v4491, %v4491
        %v4748 = vpack.c.bf16 %v4492, %v4492
        %v4749 = vpack.c.bf16 %v4493, %v4493
        %v4750 = vpack.c.bf16 %v4494, %v4494
        %v4751 = vpack.c.bf16 %v4495, %v4495
        %v4752 = vpack.c.bf16 %v4496, %v4496
        %v4753 = vpack.c.bf16 %v4497, %v4497
        %v4754 = vpack.c.bf16 %v4498, %v4498
        %v4755 = vpack.c.bf16 %v4499, %v4499
        %v4756 = vpack.c.bf16 %v4500, %v4500
        %v4757 = vpack.c.bf16 %v4501, %v4501
        %v4758 = vpack.c.bf16 %v4502, %v4502
        %v4759 = vpack.c.bf16 %v4503, %v4503
        %v4760 = vpack.c.bf16 %v4504, %v4504
        %v4761 = vpack.c.bf16 %v4505, %v4505
        %v4762 = vpack.c.bf16 %v4506, %v4506
        %v4763 = vpack.c.bf16 %v4507, %v4507
        %v4764 = vpack.c.bf16 %v4508, %v4508
        %v4765 = vpack.c.bf16 %v4509, %v4509
        %v4766 = vpack.c.bf16 %v4510, %v4510
        %v4767 = vpack.c.bf16 %v4511, %v4511
        %v4768 = vpack.c.bf16 %v4512, %v4512
        %v4769 = vpack.c.bf16 %v4513, %v4513
        %v4770 = vpack.c.bf16 %v4514, %v4514
        %v4771 = vpack.c.bf16 %v4515, %v4515
        %v4772 = vpack.c.bf16 %v4516, %v4516
        %v4773 = vpack.c.bf16 %v4517, %v4517
        %v4774 = vpack.c.bf16 %v4518, %v4518
        %v4775 = vpack.c.bf16 %v4519, %v4519
        %v4776 = vpack.c.bf16 %v4520, %v4520
        %v4777 = vpack.c.bf16 %v4521, %v4521
        %v4778 = vpack.c.bf16 %v4522, %v4522
        %v4779 = vpack.c.bf16 %v4523, %v4523
        %v4780 = vpack.c.bf16 %v4524, %v4524
        %v4781 = vpack.c.bf16 %v4525, %v4525
        %v4782 = vpack.c.bf16 %v4526, %v4526
        %v4783 = vpack.c.bf16 %v4655, %v4655
        %v4784 = vpack.c.bf16 %v4656, %v4656
        %v4785 = vpack.c.bf16 %v4657, %v4657
        %v4786 = vpack.c.bf16 %v4658, %v4658
        %v4787 = vpack.c.bf16 %v4659, %v4659
        %v4788 = vpack.c.bf16 %v4660, %v4660
        %v4789 = vpack.c.bf16 %v4661, %v4661
        %v4790 = vpack.c.bf16 %v4662, %v4662
        %v4791 = vpack.c.bf16 %v4663, %v4663
        %v4792 = vpack.c.bf16 %v4664, %v4664
        %v4793 = vpack.c.bf16 %v4665, %v4665
        %v4794 = vpack.c.bf16 %v4666, %v4666
        %v4795 = vpack.c.bf16 %v4667, %v4667
        %v4796 = vpack.c.bf16 %v4668, %v4668
        %v4797 = vpack.c.bf16 %v4669, %v4669
        %v4798 = vpack.c.bf16 %v4670, %v4670
        %v4799 = vpack.c.bf16 %v4671, %v4671
        %v4800 = vpack.c.bf16 %v4672, %v4672
        %v4801 = vpack.c.bf16 %v4673, %v4673
        %v4802 = vpack.c.bf16 %v4674, %v4674
        %v4803 = vpack.c.bf16 %v4675, %v4675
        %v4804 = vpack.c.bf16 %v4676, %v4676
        %v4805 = vpack.c.bf16 %v4677, %v4677
        %v4806 = vpack.c.bf16 %v4678, %v4678
        %v4807 = vpack.c.bf16 %v4679, %v4679
        %v4808 = vpack.c.bf16 %v4680, %v4680
        %v4809 = vpack.c.bf16 %v4681, %v4681
        %v4810 = vpack.c.bf16 %v4682, %v4682
        %v4811 = vpack.c.bf16 %v4683, %v4683
        %v4812 = vpack.c.bf16 %v4684, %v4684
        %v4813 = vpack.c.bf16 %v4685, %v4685
        %v4814 = vpack.c.bf16 %v4686, %v4686
        %v4815 = vpack.c.bf16 %v4687, %v4687
        %v4816 = vpack.c.bf16 %v4688, %v4688
        %v4817 = vpack.c.bf16 %v4689, %v4689
        %v4818 = vpack.c.bf16 %v4690, %v4690
        %v4819 = vpack.c.bf16 %v4691, %v4691
        %v4820 = vpack.c.bf16 %v4692, %v4692
        %v4821 = vpack.c.bf16 %v4693, %v4693
        %v4822 = vpack.c.bf16 %v4694, %v4694
        %v4823 = vpack.c.bf16 %v4695, %v4695
        %v4824 = vpack.c.bf16 %v4696, %v4696
        %v4825 = vpack.c.bf16 %v4697, %v4697
        %v4826 = vpack.c.bf16 %v4698, %v4698
        %v4827 = vpack.c.bf16 %v4699, %v4699
        %v4828 = vpack.c.bf16 %v4700, %v4700
        %v4829 = vpack.c.bf16 %v4701, %v4701
        %v4830 = vpack.c.bf16 %v4702, %v4702
        %v4831 = vpack.c.bf16 %v4703, %v4703
        %v4832 = vpack.c.bf16 %v4704, %v4704
        %v4833 = vpack.c.bf16 %v4705, %v4705
        %v4834 = vpack.c.bf16 %v4706, %v4706
        %v4835 = vpack.c.bf16 %v4707, %v4707
        %v4836 = vpack.c.bf16 %v4708, %v4708
        %v4837 = vpack.c.bf16 %v4709, %v4709
        %v4838 = vpack.c.bf16 %v4710, %v4710
        %v4839 = vpack.c.bf16 %v4711, %v4711
        %v4840 = vpack.c.bf16 %v4712, %v4712
        %v4841 = vpack.c.bf16 %v4713, %v4713
        %v4842 = vpack.c.bf16 %v4714, %v4714
        %v4843 = vpack.c.bf16 %v4715, %v4715
        %v4844 = vpack.c.bf16 %v4716, %v4716
        %v4845 = vpack.c.bf16 %v4717, %v4717
        %v4846 = vpack.c.bf16 %v4718, %v4718
        %s4847 = scalar_lea.vmem [#allocation15], 192
        %v4848 = vld [vmem:[%s4847] sm:$0xf]
        %v4849 = vld [vmem:[%s4847 + $0x4] sm:$0xf]
        %v4850 = vld [vmem:[%s4847 + $0x8] sm:$0xf]
        %v4851 = vld [vmem:[%s4847 + $0xc] sm:$0xf]
        %v4852 = vld [vmem:[%s4847 + $0x10] sm:$0xf]
        %v4853 = vld [vmem:[%s4847 + $0x14] sm:$0xf]
        %v4854 = vld [vmem:[%s4847 + $0x18] sm:$0xf]
        %v4855 = vld [vmem:[%s4847 + $0x1c] sm:$0xf]
        %v4856 = vld [vmem:[%s4847 + $0x20] sm:$0xf]
        %v4857 = vld [vmem:[%s4847 + $0x24] sm:$0xf]
        %v4858 = vld [vmem:[%s4847 + $0x28] sm:$0xf]
        %v4859 = vld [vmem:[%s4847 + $0x2c] sm:$0xf]
        %v4860 = vld [vmem:[%s4847 + $0x30] sm:$0xf]
        %v4861 = vld [vmem:[%s4847 + $0x34] sm:$0xf]
        %v4862 = vld [vmem:[%s4847 + $0x38] sm:$0xf]
        %v4863 = vld [vmem:[%s4847 + $0x3c] sm:$0xf]
        %v4928 = vunpack.c.l.b16 %v4719
        %v4929 = vunpack.c.l.b16 %v4720
        %v4930 = vunpack.c.l.b16 %v4721
        %v4931 = vunpack.c.l.b16 %v4722
        %v4932 = vunpack.c.l.b16 %v4723
        %v4933 = vunpack.c.l.b16 %v4724
        %v4934 = vunpack.c.l.b16 %v4725
        %v4935 = vunpack.c.l.b16 %v4726
        %v4936 = vunpack.c.l.b16 %v4727
        %v4937 = vunpack.c.l.b16 %v4728
        %v4938 = vunpack.c.l.b16 %v4729
        %v4939 = vunpack.c.l.b16 %v4730
        %v4940 = vunpack.c.l.b16 %v4731
        %v4941 = vunpack.c.l.b16 %v4732
        %v4942 = vunpack.c.l.b16 %v4733
        %v4943 = vunpack.c.l.b16 %v4734
        %v4944 = vunpack.c.l.b16 %v4735
        %v4945 = vunpack.c.l.b16 %v4736
        %v4946 = vunpack.c.l.b16 %v4737
        %v4947 = vunpack.c.l.b16 %v4738
        %v4948 = vunpack.c.l.b16 %v4739
        %v4949 = vunpack.c.l.b16 %v4740
        %v4950 = vunpack.c.l.b16 %v4741
        %v4951 = vunpack.c.l.b16 %v4742
        %v4952 = vunpack.c.l.b16 %v4743
        %v4953 = vunpack.c.l.b16 %v4744
        %v4954 = vunpack.c.l.b16 %v4745
        %v4955 = vunpack.c.l.b16 %v4746
        %v4956 = vunpack.c.l.b16 %v4747
        %v4957 = vunpack.c.l.b16 %v4748
        %v4958 = vunpack.c.l.b16 %v4749
        %v4959 = vunpack.c.l.b16 %v4750
        %v4960 = vunpack.c.l.b16 %v4751
        %v4961 = vunpack.c.l.b16 %v4752
        %v4962 = vunpack.c.l.b16 %v4753
        %v4963 = vunpack.c.l.b16 %v4754
        %v4964 = vunpack.c.l.b16 %v4755
        %v4965 = vunpack.c.l.b16 %v4756
        %v4966 = vunpack.c.l.b16 %v4757
        %v4967 = vunpack.c.l.b16 %v4758
        %v4968 = vunpack.c.l.b16 %v4759
        %v4969 = vunpack.c.l.b16 %v4760
        %v4970 = vunpack.c.l.b16 %v4761
        %v4971 = vunpack.c.l.b16 %v4762
        %v4972 = vunpack.c.l.b16 %v4763
        %v4973 = vunpack.c.l.b16 %v4764
        %v4974 = vunpack.c.l.b16 %v4765
        %v4975 = vunpack.c.l.b16 %v4766
        %v4976 = vunpack.c.l.b16 %v4767
        %v4977 = vunpack.c.l.b16 %v4768
        %v4978 = vunpack.c.l.b16 %v4769
        %v4979 = vunpack.c.l.b16 %v4770
        %v4980 = vunpack.c.l.b16 %v4771
        %v4981 = vunpack.c.l.b16 %v4772
        %v4982 = vunpack.c.l.b16 %v4773
        %v4983 = vunpack.c.l.b16 %v4774
        %v4984 = vunpack.c.l.b16 %v4775
        %v4985 = vunpack.c.l.b16 %v4776
        %v4986 = vunpack.c.l.b16 %v4777
        %v4987 = vunpack.c.l.b16 %v4778
        %v4988 = vunpack.c.l.b16 %v4779
        %v4989 = vunpack.c.l.b16 %v4780
        %v4990 = vunpack.c.l.b16 %v4781
        %v4991 = vunpack.c.l.b16 %v4782
        %v4992 = vpack.c.b16 %v4929, %v4928
        %v4993 = vpack.c.b16 %v4931, %v4930
        %v4994 = vpack.c.b16 %v4933, %v4932
        %v4995 = vpack.c.b16 %v4935, %v4934
        %v4996 = vpack.c.b16 %v4937, %v4936
        %v4997 = vpack.c.b16 %v4939, %v4938
        %v4998 = vpack.c.b16 %v4941, %v4940
        %v4999 = vpack.c.b16 %v4943, %v4942
        %v5000 = vpack.c.b16 %v4945, %v4944
        %v5001 = vpack.c.b16 %v4947, %v4946
        %v5002 = vpack.c.b16 %v4949, %v4948
        %v5003 = vpack.c.b16 %v4951, %v4950
        %v5004 = vpack.c.b16 %v4953, %v4952
        %v5005 = vpack.c.b16 %v4955, %v4954
        %v5006 = vpack.c.b16 %v4957, %v4956
        %v5007 = vpack.c.b16 %v4959, %v4958
        %v5008 = vpack.c.b16 %v4961, %v4960
        %v5009 = vpack.c.b16 %v4963, %v4962
        %v5010 = vpack.c.b16 %v4965, %v4964
        %v5011 = vpack.c.b16 %v4967, %v4966
        %v5012 = vpack.c.b16 %v4969, %v4968
        %v5013 = vpack.c.b16 %v4971, %v4970
        %v5014 = vpack.c.b16 %v4973, %v4972
        %v5015 = vpack.c.b16 %v4975, %v4974
        %v5016 = vpack.c.b16 %v4977, %v4976
        %v5017 = vpack.c.b16 %v4979, %v4978
        %v5018 = vpack.c.b16 %v4981, %v4980
        %v5019 = vpack.c.b16 %v4983, %v4982
        %v5020 = vpack.c.b16 %v4985, %v4984
        %v5021 = vpack.c.b16 %v4987, %v4986
        %v5022 = vpack.c.b16 %v4989, %v4988
        %v5023 = vpack.c.b16 %v4991, %v4990
        %v5072 = vunpack.c.l.b16 %v4848
        %v5073 = vunpack.c.l.b16 %v4849
        %v5074 = vunpack.c.l.b16 %v4850
        %v5075 = vunpack.c.l.b16 %v4851
        %v5076 = vunpack.c.l.b16 %v4852
        %v5077 = vunpack.c.l.b16 %v4853
        %v5078 = vunpack.c.l.b16 %v4854
        %v5079 = vunpack.c.l.b16 %v4855
        %v5080 = vunpack.c.l.b16 %v4856
        %v5081 = vunpack.c.l.b16 %v4857
        %v5082 = vunpack.c.l.b16 %v4858
        %v5083 = vunpack.c.l.b16 %v4859
        %v5084 = vunpack.c.l.b16 %v4860
        %v5085 = vunpack.c.l.b16 %v4861
        %v5086 = vunpack.c.l.b16 %v4862
        %v5087 = vunpack.c.l.b16 %v4863
        %v5088 = vpack.c.b16 %v5073, %v5072
        %v5089 = vpack.c.b16 %v5075, %v5074
        %v5090 = vpack.c.b16 %v5077, %v5076
        %v5091 = vpack.c.b16 %v5079, %v5078
        %v5092 = vpack.c.b16 %v5081, %v5080
        %v5093 = vpack.c.b16 %v5083, %v5082
        %v5094 = vpack.c.b16 %v5085, %v5084
        %v5095 = vpack.c.b16 %v5087, %v5086
        %5104 = vmatprep.subr.bf16.mxu0 0
        %5105 = vmatpush1.bf16.msra.mxu0 %v5088
        %5106 = vmatprep.subr.bf16.mxu0 0
        %5107 = vmatpush1.bf16.msra.mxu0 %v5089
        %5108 = vmatprep.subr.bf16.mxu0 0
        %5109 = vmatpush1.bf16.msra.mxu0 %v5090
        %5110 = vmatprep.subr.bf16.mxu0 0
        %5111 = vmatpush1.bf16.msra.mxu0 %v5091
        %5112 = vmatprep.subr.bf16.mxu0 0
        %5113 = vmatpush1.bf16.msra.mxu0 %v5092
        %5114 = vmatprep.subr.bf16.mxu0 0
        %5115 = vmatpush1.bf16.msra.mxu0 %v5093
        %5116 = vmatprep.subr.bf16.mxu0 0
        %5117 = vmatpush1.bf16.msra.mxu0 %v5094
        %5118 = vmatprep.subr.bf16.mxu0 0
        %5119 = vmatpush1.bf16.msra.mxu0 %v5095
        %5120 = vmatprep.subr.bf16.mxu0 0
        %5121 = vmatpush1.bf16.msra.mxu0 0
        %5122 = vmatprep.subr.bf16.mxu0 0
        %5123 = vmatpush1.bf16.msra.mxu0 0
        %5124 = vmatprep.subr.bf16.mxu0 0
        %5125 = vmatpush1.bf16.msra.mxu0 0
        %5126 = vmatprep.subr.bf16.mxu0 0
        %5127 = vmatpush1.bf16.msra.mxu0 0
        %5128 = vmatprep.subr.bf16.mxu0 0
        %5129 = vmatpush1.bf16.msra.mxu0 0
        %5130 = vmatprep.subr.bf16.mxu0 0
        %5131 = vmatpush1.bf16.msra.mxu0 0
        %5132 = vmatprep.subr.bf16.mxu0 0
        %5133 = vmatpush1.bf16.msra.mxu0 0
        %5134 = vmatprep.subr.bf16.mxu0 0
        %5135 = vmatpush1.bf16.msra.mxu0 0
        %5136 = vmatprep.mubr.bf16.mxu0 0
        %5137 = vmatmul.mubr.bf16.gmra.mrb[0].mxu0 %v4992
        %v5138 = vpop.f32.mrb[0].mxu0
        %v5139 = vadd.f32 0.0, %v5138
        %v5140 = vpop.f32.mrb[0].mxu0
        %v5141 = vpop.f32.mrb[0].mxu0
        %v5142 = vadd.f32 0.0, %v5141
        %v5143 = vpop.f32.mrb[0].mxu0
        %5144 = vmatprep.mubr.bf16.mxu0 0
        %5145 = vmatmul.mubr.bf16.gmra.mrb[0].mxu0 %v4993
        %v5146 = vpop.f32.mrb[0].mxu0
        %v5147 = vadd.f32 0.0, %v5146
        %v5148 = vpop.f32.mrb[0].mxu0
        %v5149 = vpop.f32.mrb[0].mxu0
        %v5150 = vadd.f32 0.0, %v5149
        %v5151 = vpop.f32.mrb[0].mxu0
        %5152 = vmatprep.mubr.bf16.mxu0 0
        %5153 = vmatmul.mubr.bf16.gmra.mrb[0].mxu0 %v4994
        %v5154 = vpop.f32.mrb[0].mxu0
        %v5155 = vadd.f32 0.0, %v5154
        %v5156 = vpop.f32.mrb[0].mxu0
        %v5157 = vpop.f32.mrb[0].mxu0
        %v5158 = vadd.f32 0.0, %v5157
        %v5159 = vpop.f32.mrb[0].mxu0
        %5160 = vmatprep.mubr.bf16.mxu0 0
        %5161 = vmatmul.mubr.bf16.gmra.mrb[0].mxu0 %v4995
        %v5162 = vpop.f32.mrb[0].mxu0
        %v5163 = vadd.f32 0.0, %v5162
        %v5164 = vpop.f32.mrb[0].mxu0
        %v5165 = vpop.f32.mrb[0].mxu0
        %v5166 = vadd.f32 0.0, %v5165
        %v5167 = vpop.f32.mrb[0].mxu0
        %5168 = vmatprep.mubr.bf16.mxu0 0
        %5169 = vmatmul.mubr.bf16.gmra.mrb[0].mxu0 %v4996
        %v5170 = vpop.f32.mrb[0].mxu0
        %v5171 = vadd.f32 0.0, %v5170
        %v5172 = vpop.f32.mrb[0].mxu0
        %v5173 = vpop.f32.mrb[0].mxu0
        %v5174 = vadd.f32 0.0, %v5173
        %v5175 = vpop.f32.mrb[0].mxu0
        %5176 = vmatprep.mubr.bf16.mxu0 0
        %5177 = vmatmul.mubr.bf16.gmra.mrb[0].mxu0 %v4997
        %v5178 = vpop.f32.mrb[0].mxu0
        %v5179 = vadd.f32 0.0, %v5178
        %v5180 = vpop.f32.mrb[0].mxu0
        %v5181 = vpop.f32.mrb[0].mxu0
        %v5182 = vadd.f32 0.0, %v5181
        %v5183 = vpop.f32.mrb[0].mxu0
        %5184 = vmatprep.mubr.bf16.mxu0 0
        %5185 = vmatmul.mubr.bf16.gmra.mrb[0].mxu0 %v4998
        %v5186 = vpop.f32.mrb[0].mxu0
        %v5187 = vadd.f32 0.0, %v5186
        %v5188 = vpop.f32.mrb[0].mxu0
        %v5189 = vpop.f32.mrb[0].mxu0
        %v5190 = vadd.f32 0.0, %v5189
        %v5191 = vpop.f32.mrb[0].mxu0
        %5192 = vmatprep.mubr.bf16.mxu0 0
        %5193 = vmatmul.mubr.bf16.gmra.mrb[0].mxu0 %v4999
        %v5194 = vpop.f32.mrb[0].mxu0
        %v5195 = vadd.f32 0.0, %v5194
        %v5196 = vpop.f32.mrb[0].mxu0
        %v5197 = vpop.f32.mrb[0].mxu0
        %v5198 = vadd.f32 0.0, %v5197
        %v5199 = vpop.f32.mrb[0].mxu0
        %5200 = vmatprep.mubr.bf16.mxu0 0
        %5201 = vmatmul.mubr.bf16.gmra.mrb[0].mxu0 %v5000
        %v5202 = vpop.f32.mrb[0].mxu0
        %v5203 = vadd.f32 0.0, %v5202
        %v5204 = vpop.f32.mrb[0].mxu0
        %v5205 = vpop.f32.mrb[0].mxu0
        %v5206 = vadd.f32 0.0, %v5205
        %v5207 = vpop.f32.mrb[0].mxu0
        %5208 = vmatprep.mubr.bf16.mxu0 0
        %5209 = vmatmul.mubr.bf16.gmra.mrb[0].mxu0 %v5001
        %v5210 = vpop.f32.mrb[0].mxu0
        %v5211 = vadd.f32 0.0, %v5210
        %v5212 = vpop.f32.mrb[0].mxu0
        %v5213 = vpop.f32.mrb[0].mxu0
        %v5214 = vadd.f32 0.0, %v5213
        %v5215 = vpop.f32.mrb[0].mxu0
        %5216 = vmatprep.mubr.bf16.mxu0 0
        %5217 = vmatmul.mubr.bf16.gmra.mrb[0].mxu0 %v5002
        %v5218 = vpop.f32.mrb[0].mxu0
        %v5219 = vadd.f32 0.0, %v5218
        %v5220 = vpop.f32.mrb[0].mxu0
        %v5221 = vpop.f32.mrb[0].mxu0
        %v5222 = vadd.f32 0.0, %v5221
        %v5223 = vpop.f32.mrb[0].mxu0
        %5224 = vmatprep.mubr.bf16.mxu0 0
        %5225 = vmatmul.mubr.bf16.gmra.mrb[0].mxu0 %v5003
        %v5226 = vpop.f32.mrb[0].mxu0
        %v5227 = vadd.f32 0.0, %v5226
        %v5228 = vpop.f32.mrb[0].mxu0
        %v5229 = vpop.f32.mrb[0].mxu0
        %v5230 = vadd.f32 0.0, %v5229
        %v5231 = vpop.f32.mrb[0].mxu0
        %5232 = vmatprep.mubr.bf16.mxu0 0
        %5233 = vmatmul.mubr.bf16.gmra.mrb[0].mxu0 %v5004
        %v5234 = vpop.f32.mrb[0].mxu0
        %v5235 = vadd.f32 0.0, %v5234
        %v5236 = vpop.f32.mrb[0].mxu0
        %v5237 = vpop.f32.mrb[0].mxu0
        %v5238 = vadd.f32 0.0, %v5237
        %v5239 = vpop.f32.mrb[0].mxu0
        %5240 = vmatprep.mubr.bf16.mxu0 0
        %5241 = vmatmul.mubr.bf16.gmra.mrb[0].mxu0 %v5005
        %v5242 = vpop.f32.mrb[0].mxu0
        %v5243 = vadd.f32 0.0, %v5242
        %v5244 = vpop.f32.mrb[0].mxu0
        %v5245 = vpop.f32.mrb[0].mxu0
        %v5246 = vadd.f32 0.0, %v5245
        %v5247 = vpop.f32.mrb[0].mxu0
        %5248 = vmatprep.mubr.bf16.mxu0 0
        %5249 = vmatmul.mubr.bf16.gmra.mrb[0].mxu0 %v5006
        %v5250 = vpop.f32.mrb[0].mxu0
        %v5251 = vadd.f32 0.0, %v5250
        %v5252 = vpop.f32.mrb[0].mxu0
        %v5253 = vpop.f32.mrb[0].mxu0
        %v5254 = vadd.f32 0.0, %v5253
        %v5255 = vpop.f32.mrb[0].mxu0
        %5256 = vmatprep.mubr.bf16.mxu0 0
        %5257 = vmatmul.mubr.bf16.gmra.mrb[0].mxu0 %v5007
        %v5258 = vpop.f32.mrb[0].mxu0
        %v5259 = vadd.f32 0.0, %v5258
        %v5260 = vpop.f32.mrb[0].mxu0
        %v5261 = vpop.f32.mrb[0].mxu0
        %v5262 = vadd.f32 0.0, %v5261
        %v5263 = vpop.f32.mrb[0].mxu0
        %5264 = vmatprep.mubr.bf16.mxu0 0
        %5265 = vmatmul.mubr.bf16.gmra.mrb[0].mxu0 %v5008
        %v5266 = vpop.f32.mrb[0].mxu0
        %v5267 = vadd.f32 0.0, %v5266
        %v5268 = vpop.f32.mrb[0].mxu0
        %v5269 = vpop.f32.mrb[0].mxu0
        %v5270 = vadd.f32 0.0, %v5269
        %v5271 = vpop.f32.mrb[0].mxu0
        %5272 = vmatprep.mubr.bf16.mxu0 0
        %5273 = vmatmul.mubr.bf16.gmra.mrb[0].mxu0 %v5009
        %v5274 = vpop.f32.mrb[0].mxu0
        %v5275 = vadd.f32 0.0, %v5274
        %v5276 = vpop.f32.mrb[0].mxu0
        %v5277 = vpop.f32.mrb[0].mxu0
        %v5278 = vadd.f32 0.0, %v5277
        %v5279 = vpop.f32.mrb[0].mxu0
        %5280 = vmatprep.mubr.bf16.mxu0 0
        %5281 = vmatmul.mubr.bf16.gmra.mrb[0].mxu0 %v5010
        %v5282 = vpop.f32.mrb[0].mxu0
        %v5283 = vadd.f32 0.0, %v5282
        %v5284 = vpop.f32.mrb[0].mxu0
        %v5285 = vpop.f32.mrb[0].mxu0
        %v5286 = vadd.f32 0.0, %v5285
        %v5287 = vpop.f32.mrb[0].mxu0
        %5288 = vmatprep.mubr.bf16.mxu0 0
        %5289 = vmatmul.mubr.bf16.gmra.mrb[0].mxu0 %v5011
        %v5290 = vpop.f32.mrb[0].mxu0
        %v5291 = vadd.f32 0.0, %v5290
        %v5292 = vpop.f32.mrb[0].mxu0
        %v5293 = vpop.f32.mrb[0].mxu0
        %v5294 = vadd.f32 0.0, %v5293
        %v5295 = vpop.f32.mrb[0].mxu0
        %5296 = vmatprep.mubr.bf16.mxu0 0
        %5297 = vmatmul.mubr.bf16.gmra.mrb[0].mxu0 %v5012
        %v5298 = vpop.f32.mrb[0].mxu0
        %v5299 = vadd.f32 0.0, %v5298
        %v5300 = vpop.f32.mrb[0].mxu0
        %v5301 = vpop.f32.mrb[0].mxu0
        %v5302 = vadd.f32 0.0, %v5301
        %v5303 = vpop.f32.mrb[0].mxu0
        %5304 = vmatprep.mubr.bf16.mxu0 0
        %5305 = vmatmul.mubr.bf16.gmra.mrb[0].mxu0 %v5013
        %v5306 = vpop.f32.mrb[0].mxu0
        %v5307 = vadd.f32 0.0, %v5306
        %v5308 = vpop.f32.mrb[0].mxu0
        %v5309 = vpop.f32.mrb[0].mxu0
        %v5310 = vadd.f32 0.0, %v5309
        %v5311 = vpop.f32.mrb[0].mxu0
        %5312 = vmatprep.mubr.bf16.mxu0 0
        %5313 = vmatmul.mubr.bf16.gmra.mrb[0].mxu0 %v5014
        %v5314 = vpop.f32.mrb[0].mxu0
        %v5315 = vadd.f32 0.0, %v5314
        %v5316 = vpop.f32.mrb[0].mxu0
        %v5317 = vpop.f32.mrb[0].mxu0
        %v5318 = vadd.f32 0.0, %v5317
        %v5319 = vpop.f32.mrb[0].mxu0
        %5320 = vmatprep.mubr.bf16.mxu0 0
        %5321 = vmatmul.mubr.bf16.gmra.mrb[0].mxu0 %v5015
        %v5322 = vpop.f32.mrb[0].mxu0
        %v5323 = vadd.f32 0.0, %v5322
        %v5324 = vpop.f32.mrb[0].mxu0
        %v5325 = vpop.f32.mrb[0].mxu0
        %v5326 = vadd.f32 0.0, %v5325
        %v5327 = vpop.f32.mrb[0].mxu0
        %5328 = vmatprep.mubr.bf16.mxu0 0
        %5329 = vmatmul.mubr.bf16.gmra.mrb[0].mxu0 %v5016
        %v5330 = vpop.f32.mrb[0].mxu0
        %v5331 = vadd.f32 0.0, %v5330
        %v5332 = vpop.f32.mrb[0].mxu0
        %v5333 = vpop.f32.mrb[0].mxu0
        %v5334 = vadd.f32 0.0, %v5333
        %v5335 = vpop.f32.mrb[0].mxu0
        %5336 = vmatprep.mubr.bf16.mxu0 0
        %5337 = vmatmul.mubr.bf16.gmra.mrb[0].mxu0 %v5017
        %v5338 = vpop.f32.mrb[0].mxu0
        %v5339 = vadd.f32 0.0, %v5338
        %v5340 = vpop.f32.mrb[0].mxu0
        %v5341 = vpop.f32.mrb[0].mxu0
        %v5342 = vadd.f32 0.0, %v5341
        %v5343 = vpop.f32.mrb[0].mxu0
        %5344 = vmatprep.mubr.bf16.mxu0 0
        %5345 = vmatmul.mubr.bf16.gmra.mrb[0].mxu0 %v5018
        %v5346 = vpop.f32.mrb[0].mxu0
        %v5347 = vadd.f32 0.0, %v5346
        %v5348 = vpop.f32.mrb[0].mxu0
        %v5349 = vpop.f32.mrb[0].mxu0
        %v5350 = vadd.f32 0.0, %v5349
        %v5351 = vpop.f32.mrb[0].mxu0
        %5352 = vmatprep.mubr.bf16.mxu0 0
        %5353 = vmatmul.mubr.bf16.gmra.mrb[0].mxu0 %v5019
        %v5354 = vpop.f32.mrb[0].mxu0
        %v5355 = vadd.f32 0.0, %v5354
        %v5356 = vpop.f32.mrb[0].mxu0
        %v5357 = vpop.f32.mrb[0].mxu0
        %v5358 = vadd.f32 0.0, %v5357
        %v5359 = vpop.f32.mrb[0].mxu0
        %5360 = vmatprep.mubr.bf16.mxu0 0
        %5361 = vmatmul.mubr.bf16.gmra.mrb[0].mxu0 %v5020
        %v5362 = vpop.f32.mrb[0].mxu0
        %v5363 = vadd.f32 0.0, %v5362
        %v5364 = vpop.f32.mrb[0].mxu0
        %v5365 = vpop.f32.mrb[0].mxu0
        %v5366 = vadd.f32 0.0, %v5365
        %v5367 = vpop.f32.mrb[0].mxu0
        %5368 = vmatprep.mubr.bf16.mxu0 0
        %5369 = vmatmul.mubr.bf16.gmra.mrb[0].mxu0 %v5021
        %v5370 = vpop.f32.mrb[0].mxu0
        %v5371 = vadd.f32 0.0, %v5370
        %v5372 = vpop.f32.mrb[0].mxu0
        %v5373 = vpop.f32.mrb[0].mxu0
        %v5374 = vadd.f32 0.0, %v5373
        %v5375 = vpop.f32.mrb[0].mxu0
        %5376 = vmatprep.mubr.bf16.mxu0 0
        %5377 = vmatmul.mubr.bf16.gmra.mrb[0].mxu0 %v5022
        %v5378 = vpop.f32.mrb[0].mxu0
        %v5379 = vadd.f32 0.0, %v5378
        %v5380 = vpop.f32.mrb[0].mxu0
        %v5381 = vpop.f32.mrb[0].mxu0
        %v5382 = vadd.f32 0.0, %v5381
        %v5383 = vpop.f32.mrb[0].mxu0
        %5384 = vmatprep.mubr.bf16.mxu0 0
        %5385 = vmatmul.mubr.bf16.gmra.mrb[0].mxu0 %v5023
        %v5386 = vpop.f32.mrb[0].mxu0
        %v5387 = vadd.f32 0.0, %v5386
        %v5388 = vpop.f32.mrb[0].mxu0
        %v5389 = vpop.f32.mrb[0].mxu0
        %v5390 = vadd.f32 0.0, %v5389
        %v5391 = vpop.f32.mrb[0].mxu0
        %5392 = vdwg.mxu0
        %v5393 = vadd.f32 %v4079, %v5139
        %v5394 = vadd.f32 %v4080, %v5142
        %v5395 = vadd.f32 %v4081, %v5147
        %v5396 = vadd.f32 %v4082, %v5150
        %v5397 = vadd.f32 %v4083, %v5155
        %v5398 = vadd.f32 %v4084, %v5158
        %v5399 = vadd.f32 %v4085, %v5163
        %v5400 = vadd.f32 %v4086, %v5166
        %v5401 = vadd.f32 %v4087, %v5171
        %v5402 = vadd.f32 %v4088, %v5174
        %v5403 = vadd.f32 %v4089, %v5179
        %v5404 = vadd.f32 %v4090, %v5182
        %v5405 = vadd.f32 %v4091, %v5187
        %v5406 = vadd.f32 %v4092, %v5190
        %v5407 = vadd.f32 %v4093, %v5195
        %v5408 = vadd.f32 %v4094, %v5198
        %v5409 = vadd.f32 %v4095, %v5203
        %v5410 = vadd.f32 %v4096, %v5206
        %v5411 = vadd.f32 %v4097, %v5211
        %v5412 = vadd.f32 %v4098, %v5214
        %v5413 = vadd.f32 %v4099, %v5219
        %v5414 = vadd.f32 %v4100, %v5222
        %v5415 = vadd.f32 %v4101, %v5227
        %v5416 = vadd.f32 %v4102, %v5230
        %v5417 = vadd.f32 %v4103, %v5235
        %v5418 = vadd.f32 %v4104, %v5238
        %v5419 = vadd.f32 %v4105, %v5243
        %v5420 = vadd.f32 %v4106, %v5246
        %v5421 = vadd.f32 %v4107, %v5251
        %v5422 = vadd.f32 %v4108, %v5254
        %v5423 = vadd.f32 %v4109, %v5259
        %v5424 = vadd.f32 %v4110, %v5262
        %v5425 = vadd.f32 %v4111, %v5267
        %v5426 = vadd.f32 %v4112, %v5270
        %v5427 = vadd.f32 %v4113, %v5275
        %v5428 = vadd.f32 %v4114, %v5278
        %v5429 = vadd.f32 %v4115, %v5283
        %v5430 = vadd.f32 %v4116, %v5286
        %v5431 = vadd.f32 %v4117, %v5291
        %v5432 = vadd.f32 %v4118, %v5294
        %v5433 = vadd.f32 %v4119, %v5299
        %v5434 = vadd.f32 %v4120, %v5302
        %v5435 = vadd.f32 %v4121, %v5307
        %v5436 = vadd.f32 %v4122, %v5310
        %v5437 = vadd.f32 %v4123, %v5315
        %v5438 = vadd.f32 %v4124, %v5318
        %v5439 = vadd.f32 %v4125, %v5323
        %v5440 = vadd.f32 %v4126, %v5326
        %v5441 = vadd.f32 %v4127, %v5331
        %v5442 = vadd.f32 %v4128, %v5334
        %v5443 = vadd.f32 %v4129, %v5339
        %v5444 = vadd.f32 %v4130, %v5342
        %v5445 = vadd.f32 %v4131, %v5347
        %v5446 = vadd.f32 %v4132, %v5350
        %v5447 = vadd.f32 %v4133, %v5355
        %v5448 = vadd.f32 %v4134, %v5358
        %v5449 = vadd.f32 %v4135, %v5363
        %v5450 = vadd.f32 %v4136, %v5366
        %v5451 = vadd.f32 %v4137, %v5371
        %v5452 = vadd.f32 %v4138, %v5374
        %v5453 = vadd.f32 %v4139, %v5379
        %v5454 = vadd.f32 %v4140, %v5382
        %v5455 = vadd.f32 %v4141, %v5387
        %v5456 = vadd.f32 %v4142, %v5390
        %s5457 = scalar_lea.vmem [#allocation15], 256
        %v5458 = vld [vmem:[%s5457] sm:$0xf]
        %v5459 = vld [vmem:[%s5457 + $0x4] sm:$0xf]
        %v5460 = vld [vmem:[%s5457 + $0x8] sm:$0xf]
        %v5461 = vld [vmem:[%s5457 + $0xc] sm:$0xf]
        %v5462 = vld [vmem:[%s5457 + $0x10] sm:$0xf]
        %v5463 = vld [vmem:[%s5457 + $0x14] sm:$0xf]
        %v5464 = vld [vmem:[%s5457 + $0x18] sm:$0xf]
        %v5465 = vld [vmem:[%s5457 + $0x1c] sm:$0xf]
        %v5466 = vld [vmem:[%s5457 + $0x20] sm:$0xf]
        %v5467 = vld [vmem:[%s5457 + $0x24] sm:$0xf]
        %v5468 = vld [vmem:[%s5457 + $0x28] sm:$0xf]
        %v5469 = vld [vmem:[%s5457 + $0x2c] sm:$0xf]
        %v5470 = vld [vmem:[%s5457 + $0x30] sm:$0xf]
        %v5471 = vld [vmem:[%s5457 + $0x34] sm:$0xf]
        %v5472 = vld [vmem:[%s5457 + $0x38] sm:$0xf]
        %v5473 = vld [vmem:[%s5457 + $0x3c] sm:$0xf]
        %v5538 = vunpack.c.l.b16 %v4143
        %v5539 = vunpack.c.l.b16 %v4144
        %v5540 = vunpack.c.l.b16 %v4145
        %v5541 = vunpack.c.l.b16 %v4146
        %v5542 = vunpack.c.l.b16 %v4147
        %v5543 = vunpack.c.l.b16 %v4148
        %v5544 = vunpack.c.l.b16 %v4149
        %v5545 = vunpack.c.l.b16 %v4150
        %v5546 = vunpack.c.l.b16 %v4151
        %v5547 = vunpack.c.l.b16 %v4152
        %v5548 = vunpack.c.l.b16 %v4153
        %v5549 = vunpack.c.l.b16 %v4154
        %v5550 = vunpack.c.l.b16 %v4155
        %v5551 = vunpack.c.l.b16 %v4156
        %v5552 = vunpack.c.l.b16 %v4157
        %v5553 = vunpack.c.l.b16 %v4158
        %v5554 = vunpack.c.l.b16 %v4159
        %v5555 = vunpack.c.l.b16 %v4160
        %v5556 = vunpack.c.l.b16 %v4161
        %v5557 = vunpack.c.l.b16 %v4162
        %v5558 = vunpack.c.l.b16 %v4163
        %v5559 = vunpack.c.l.b16 %v4164
        %v5560 = vunpack.c.l.b16 %v4165
        %v5561 = vunpack.c.l.b16 %v4166
        %v5562 = vunpack.c.l.b16 %v4167
        %v5563 = vunpack.c.l.b16 %v4168
        %v5564 = vunpack.c.l.b16 %v4169
        %v5565 = vunpack.c.l.b16 %v4170
        %v5566 = vunpack.c.l.b16 %v4171
        %v5567 = vunpack.c.l.b16 %v4172
        %v5568 = vunpack.c.l.b16 %v4173
        %v5569 = vunpack.c.l.b16 %v4174
        %v5570 = vunpack.c.l.b16 %v4175
        %v5571 = vunpack.c.l.b16 %v4176
        %v5572 = vunpack.c.l.b16 %v4177
        %v5573 = vunpack.c.l.b16 %v4178
        %v5574 = vunpack.c.l.b16 %v4179
        %v5575 = vunpack.c.l.b16 %v4180
        %v5576 = vunpack.c.l.b16 %v4181
        %v5577 = vunpack.c.l.b16 %v4182
        %v5578 = vunpack.c.l.b16 %v4183
        %v5579 = vunpack.c.l.b16 %v4184
        %v5580 = vunpack.c.l.b16 %v4185
        %v5581 = vunpack.c.l.b16 %v4186
        %v5582 = vunpack.c.l.b16 %v4187
        %v5583 = vunpack.c.l.b16 %v4188
        %v5584 = vunpack.c.l.b16 %v4189
        %v5585 = vunpack.c.l.b16 %v4190
        %v5586 = vunpack.c.l.b16 %v4191
        %v5587 = vunpack.c.l.b16 %v4192
        %v5588 = vunpack.c.l.b16 %v4193
        %v5589 = vunpack.c.l.b16 %v4194
        %v5590 = vunpack.c.l.b16 %v4195
        %v5591 = vunpack.c.l.b16 %v4196
        %v5592 = vunpack.c.l.b16 %v4197
        %v5593 = vunpack.c.l.b16 %v4198
        %v5594 = vunpack.c.l.b16 %v4199
        %v5595 = vunpack.c.l.b16 %v4200
        %v5596 = vunpack.c.l.b16 %v4201
        %v5597 = vunpack.c.l.b16 %v4202
        %v5598 = vunpack.c.l.b16 %v4203
        %v5599 = vunpack.c.l.b16 %v4204
        %v5600 = vunpack.c.l.b16 %v4205
        %v5601 = vunpack.c.l.b16 %v4206
        %v5602 = vpack.c.b16 %v5539, %v5538
        %v5603 = vpack.c.b16 %v5541, %v5540
        %v5604 = vpack.c.b16 %v5543, %v5542
        %v5605 = vpack.c.b16 %v5545, %v5544
        %v5606 = vpack.c.b16 %v5547, %v5546
        %v5607 = vpack.c.b16 %v5549, %v5548
        %v5608 = vpack.c.b16 %v5551, %v5550
        %v5609 = vpack.c.b16 %v5553, %v5552
        %v5610 = vpack.c.b16 %v5555, %v5554
        %v5611 = vpack.c.b16 %v5557, %v5556
        %v5612 = vpack.c.b16 %v5559, %v5558
        %v5613 = vpack.c.b16 %v5561, %v5560
        %v5614 = vpack.c.b16 %v5563, %v5562
        %v5615 = vpack.c.b16 %v5565, %v5564
        %v5616 = vpack.c.b16 %v5567, %v5566
        %v5617 = vpack.c.b16 %v5569, %v5568
        %v5618 = vpack.c.b16 %v5571, %v5570
        %v5619 = vpack.c.b16 %v5573, %v5572
        %v5620 = vpack.c.b16 %v5575, %v5574
        %v5621 = vpack.c.b16 %v5577, %v5576
        %v5622 = vpack.c.b16 %v5579, %v5578
        %v5623 = vpack.c.b16 %v5581, %v5580
        %v5624 = vpack.c.b16 %v5583, %v5582
        %v5625 = vpack.c.b16 %v5585, %v5584
        %v5626 = vpack.c.b16 %v5587, %v5586
        %v5627 = vpack.c.b16 %v5589, %v5588
        %v5628 = vpack.c.b16 %v5591, %v5590
        %v5629 = vpack.c.b16 %v5593, %v5592
        %v5630 = vpack.c.b16 %v5595, %v5594
        %v5631 = vpack.c.b16 %v5597, %v5596
        %v5632 = vpack.c.b16 %v5599, %v5598
        %v5633 = vpack.c.b16 %v5601, %v5600
        %v5682 = vunpack.c.l.b16 %v5458
        %v5683 = vunpack.c.l.b16 %v5459
        %v5684 = vunpack.c.l.b16 %v5460
        %v5685 = vunpack.c.l.b16 %v5461
        %v5686 = vunpack.c.l.b16 %v5462
        %v5687 = vunpack.c.l.b16 %v5463
        %v5688 = vunpack.c.l.b16 %v5464
        %v5689 = vunpack.c.l.b16 %v5465
        %v5690 = vunpack.c.l.b16 %v5466
        %v5691 = vunpack.c.l.b16 %v5467
        %v5692 = vunpack.c.l.b16 %v5468
        %v5693 = vunpack.c.l.b16 %v5469
        %v5694 = vunpack.c.l.b16 %v5470
        %v5695 = vunpack.c.l.b16 %v5471
        %v5696 = vunpack.c.l.b16 %v5472
        %v5697 = vunpack.c.l.b16 %v5473
        %v5698 = vpack.c.b16 %v5683, %v5682
        %v5699 = vpack.c.b16 %v5685, %v5684
        %v5700 = vpack.c.b16 %v5687, %v5686
        %v5701 = vpack.c.b16 %v5689, %v5688
        %v5702 = vpack.c.b16 %v5691, %v5690
        %v5703 = vpack.c.b16 %v5693, %v5692
        %v5704 = vpack.c.b16 %v5695, %v5694
        %v5705 = vpack.c.b16 %v5697, %v5696
        %5714 = vmatprep.subr.bf16.mxu0 0
        %5715 = vmatpush1.bf16.msra.mxu0 %v5698
        %5716 = vmatprep.subr.bf16.mxu0 0
        %5717 = vmatpush1.bf16.msra.mxu0 %v5699
        %5718 = vmatprep.subr.bf16.mxu0 0
        %5719 = vmatpush1.bf16.msra.mxu0 %v5700
        %5720 = vmatprep.subr.bf16.mxu0 0
        %5721 = vmatpush1.bf16.msra.mxu0 %v5701
        %5722 = vmatprep.subr.bf16.mxu0 0
        %5723 = vmatpush1.bf16.msra.mxu0 %v5702
        %5724 = vmatprep.subr.bf16.mxu0 0
        %5725 = vmatpush1.bf16.msra.mxu0 %v5703
        %5726 = vmatprep.subr.bf16.mxu0 0
        %5727 = vmatpush1.bf16.msra.mxu0 %v5704
        %5728 = vmatprep.subr.bf16.mxu0 0
        %5729 = vmatpush1.bf16.msra.mxu0 %v5705
        %5730 = vmatprep.subr.bf16.mxu0 0
        %5731 = vmatpush1.bf16.msra.mxu0 0
        %5732 = vmatprep.subr.bf16.mxu0 0
        %5733 = vmatpush1.bf16.msra.mxu0 0
        %5734 = vmatprep.subr.bf16.mxu0 0
        %5735 = vmatpush1.bf16.msra.mxu0 0
        %5736 = vmatprep.subr.bf16.mxu0 0
        %5737 = vmatpush1.bf16.msra.mxu0 0
        %5738 = vmatprep.subr.bf16.mxu0 0
        %5739 = vmatpush1.bf16.msra.mxu0 0
        %5740 = vmatprep.subr.bf16.mxu0 0
        %5741 = vmatpush1.bf16.msra.mxu0 0
        %5742 = vmatprep.subr.bf16.mxu0 0
        %5743 = vmatpush1.bf16.msra.mxu0 0
        %5744 = vmatprep.subr.bf16.mxu0 0
        %5745 = vmatpush1.bf16.msra.mxu0 0
        %5746 = vmatprep.mubr.bf16.mxu0 0
        %5747 = vmatmul.mubr.bf16.gmra.mrb[0].mxu0 %v5602
        %v5748 = vpop.f32.mrb[0].mxu0
        %v5749 = vadd.f32 0.0, %v5748
        %v5750 = vpop.f32.mrb[0].mxu0
        %v5751 = vpop.f32.mrb[0].mxu0
        %v5752 = vadd.f32 0.0, %v5751
        %v5753 = vpop.f32.mrb[0].mxu0
        %5754 = vmatprep.mubr.bf16.mxu0 0
        %5755 = vmatmul.mubr.bf16.gmra.mrb[0].mxu0 %v5603
        %v5756 = vpop.f32.mrb[0].mxu0
        %v5757 = vadd.f32 0.0, %v5756
        %v5758 = vpop.f32.mrb[0].mxu0
        %v5759 = vpop.f32.mrb[0].mxu0
        %v5760 = vadd.f32 0.0, %v5759
        %v5761 = vpop.f32.mrb[0].mxu0
        %5762 = vmatprep.mubr.bf16.mxu0 0
        %5763 = vmatmul.mubr.bf16.gmra.mrb[0].mxu0 %v5604
        %v5764 = vpop.f32.mrb[0].mxu0
        %v5765 = vadd.f32 0.0, %v5764
        %v5766 = vpop.f32.mrb[0].mxu0
        %v5767 = vpop.f32.mrb[0].mxu0
        %v5768 = vadd.f32 0.0, %v5767
        %v5769 = vpop.f32.mrb[0].mxu0
        %5770 = vmatprep.mubr.bf16.mxu0 0
        %5771 = vmatmul.mubr.bf16.gmra.mrb[0].mxu0 %v5605
        %v5772 = vpop.f32.mrb[0].mxu0
        %v5773 = vadd.f32 0.0, %v5772
        %v5774 = vpop.f32.mrb[0].mxu0
        %v5775 = vpop.f32.mrb[0].mxu0
        %v5776 = vadd.f32 0.0, %v5775
        %v5777 = vpop.f32.mrb[0].mxu0
        %5778 = vmatprep.mubr.bf16.mxu0 0
        %5779 = vmatmul.mubr.bf16.gmra.mrb[0].mxu0 %v5606
        %v5780 = vpop.f32.mrb[0].mxu0
        %v5781 = vadd.f32 0.0, %v5780
        %v5782 = vpop.f32.mrb[0].mxu0
        %v5783 = vpop.f32.mrb[0].mxu0
        %v5784 = vadd.f32 0.0, %v5783
        %v5785 = vpop.f32.mrb[0].mxu0
        %5786 = vmatprep.mubr.bf16.mxu0 0
        %5787 = vmatmul.mubr.bf16.gmra.mrb[0].mxu0 %v5607
        %v5788 = vpop.f32.mrb[0].mxu0
        %v5789 = vadd.f32 0.0, %v5788
        %v5790 = vpop.f32.mrb[0].mxu0
        %v5791 = vpop.f32.mrb[0].mxu0
        %v5792 = vadd.f32 0.0, %v5791
        %v5793 = vpop.f32.mrb[0].mxu0
        %5794 = vmatprep.mubr.bf16.mxu0 0
        %5795 = vmatmul.mubr.bf16.gmra.mrb[0].mxu0 %v5608
        %v5796 = vpop.f32.mrb[0].mxu0
        %v5797 = vadd.f32 0.0, %v5796
        %v5798 = vpop.f32.mrb[0].mxu0
        %v5799 = vpop.f32.mrb[0].mxu0
        %v5800 = vadd.f32 0.0, %v5799
        %v5801 = vpop.f32.mrb[0].mxu0
        %5802 = vmatprep.mubr.bf16.mxu0 0
        %5803 = vmatmul.mubr.bf16.gmra.mrb[0].mxu0 %v5609
        %v5804 = vpop.f32.mrb[0].mxu0
        %v5805 = vadd.f32 0.0, %v5804
        %v5806 = vpop.f32.mrb[0].mxu0
        %v5807 = vpop.f32.mrb[0].mxu0
        %v5808 = vadd.f32 0.0, %v5807
        %v5809 = vpop.f32.mrb[0].mxu0
        %5810 = vmatprep.mubr.bf16.mxu0 0
        %5811 = vmatmul.mubr.bf16.gmra.mrb[0].mxu0 %v5610
        %v5812 = vpop.f32.mrb[0].mxu0
        %v5813 = vadd.f32 0.0, %v5812
        %v5814 = vpop.f32.mrb[0].mxu0
        %v5815 = vpop.f32.mrb[0].mxu0
        %v5816 = vadd.f32 0.0, %v5815
        %v5817 = vpop.f32.mrb[0].mxu0
        %5818 = vmatprep.mubr.bf16.mxu0 0
        %5819 = vmatmul.mubr.bf16.gmra.mrb[0].mxu0 %v5611
        %v5820 = vpop.f32.mrb[0].mxu0
        %v5821 = vadd.f32 0.0, %v5820
        %v5822 = vpop.f32.mrb[0].mxu0
        %v5823 = vpop.f32.mrb[0].mxu0
        %v5824 = vadd.f32 0.0, %v5823
        %v5825 = vpop.f32.mrb[0].mxu0
        %5826 = vmatprep.mubr.bf16.mxu0 0
        %5827 = vmatmul.mubr.bf16.gmra.mrb[0].mxu0 %v5612
        %v5828 = vpop.f32.mrb[0].mxu0
        %v5829 = vadd.f32 0.0, %v5828
        %v5830 = vpop.f32.mrb[0].mxu0
        %v5831 = vpop.f32.mrb[0].mxu0
        %v5832 = vadd.f32 0.0, %v5831
        %v5833 = vpop.f32.mrb[0].mxu0
        %5834 = vmatprep.mubr.bf16.mxu0 0
        %5835 = vmatmul.mubr.bf16.gmra.mrb[0].mxu0 %v5613
        %v5836 = vpop.f32.mrb[0].mxu0
        %v5837 = vadd.f32 0.0, %v5836
        %v5838 = vpop.f32.mrb[0].mxu0
        %v5839 = vpop.f32.mrb[0].mxu0
        %v5840 = vadd.f32 0.0, %v5839
        %v5841 = vpop.f32.mrb[0].mxu0
        %5842 = vmatprep.mubr.bf16.mxu0 0
        %5843 = vmatmul.mubr.bf16.gmra.mrb[0].mxu0 %v5614
        %v5844 = vpop.f32.mrb[0].mxu0
        %v5845 = vadd.f32 0.0, %v5844
        %v5846 = vpop.f32.mrb[0].mxu0
        %v5847 = vpop.f32.mrb[0].mxu0
        %v5848 = vadd.f32 0.0, %v5847
        %v5849 = vpop.f32.mrb[0].mxu0
        %5850 = vmatprep.mubr.bf16.mxu0 0
        %5851 = vmatmul.mubr.bf16.gmra.mrb[0].mxu0 %v5615
        %v5852 = vpop.f32.mrb[0].mxu0
        %v5853 = vadd.f32 0.0, %v5852
        %v5854 = vpop.f32.mrb[0].mxu0
        %v5855 = vpop.f32.mrb[0].mxu0
        %v5856 = vadd.f32 0.0, %v5855
        %v5857 = vpop.f32.mrb[0].mxu0
        %5858 = vmatprep.mubr.bf16.mxu0 0
        %5859 = vmatmul.mubr.bf16.gmra.mrb[0].mxu0 %v5616
        %v5860 = vpop.f32.mrb[0].mxu0
        %v5861 = vadd.f32 0.0, %v5860
        %v5862 = vpop.f32.mrb[0].mxu0
        %v5863 = vpop.f32.mrb[0].mxu0
        %v5864 = vadd.f32 0.0, %v5863
        %v5865 = vpop.f32.mrb[0].mxu0
        %5866 = vmatprep.mubr.bf16.mxu0 0
        %5867 = vmatmul.mubr.bf16.gmra.mrb[0].mxu0 %v5617
        %v5868 = vpop.f32.mrb[0].mxu0
        %v5869 = vadd.f32 0.0, %v5868
        %v5870 = vpop.f32.mrb[0].mxu0
        %v5871 = vpop.f32.mrb[0].mxu0
        %v5872 = vadd.f32 0.0, %v5871
        %v5873 = vpop.f32.mrb[0].mxu0
        %5874 = vmatprep.mubr.bf16.mxu0 0
        %5875 = vmatmul.mubr.bf16.gmra.mrb[0].mxu0 %v5618
        %v5876 = vpop.f32.mrb[0].mxu0
        %v5877 = vadd.f32 0.0, %v5876
        %v5878 = vpop.f32.mrb[0].mxu0
        %v5879 = vpop.f32.mrb[0].mxu0
        %v5880 = vadd.f32 0.0, %v5879
        %v5881 = vpop.f32.mrb[0].mxu0
        %5882 = vmatprep.mubr.bf16.mxu0 0
        %5883 = vmatmul.mubr.bf16.gmra.mrb[0].mxu0 %v5619
        %v5884 = vpop.f32.mrb[0].mxu0
        %v5885 = vadd.f32 0.0, %v5884
        %v5886 = vpop.f32.mrb[0].mxu0
        %v5887 = vpop.f32.mrb[0].mxu0
        %v5888 = vadd.f32 0.0, %v5887
        %v5889 = vpop.f32.mrb[0].mxu0
        %5890 = vmatprep.mubr.bf16.mxu0 0
        %5891 = vmatmul.mubr.bf16.gmra.mrb[0].mxu0 %v5620
        %v5892 = vpop.f32.mrb[0].mxu0
        %v5893 = vadd.f32 0.0, %v5892
        %v5894 = vpop.f32.mrb[0].mxu0
        %v5895 = vpop.f32.mrb[0].mxu0
        %v5896 = vadd.f32 0.0, %v5895
        %v5897 = vpop.f32.mrb[0].mxu0
        %5898 = vmatprep.mubr.bf16.mxu0 0
        %5899 = vmatmul.mubr.bf16.gmra.mrb[0].mxu0 %v5621
        %v5900 = vpop.f32.mrb[0].mxu0
        %v5901 = vadd.f32 0.0, %v5900
        %v5902 = vpop.f32.mrb[0].mxu0
        %v5903 = vpop.f32.mrb[0].mxu0
        %v5904 = vadd.f32 0.0, %v5903
        %v5905 = vpop.f32.mrb[0].mxu0
        %5906 = vmatprep.mubr.bf16.mxu0 0
        %5907 = vmatmul.mubr.bf16.gmra.mrb[0].mxu0 %v5622
        %v5908 = vpop.f32.mrb[0].mxu0
        %v5909 = vadd.f32 0.0, %v5908
        %v5910 = vpop.f32.mrb[0].mxu0
        %v5911 = vpop.f32.mrb[0].mxu0
        %v5912 = vadd.f32 0.0, %v5911
        %v5913 = vpop.f32.mrb[0].mxu0
        %5914 = vmatprep.mubr.bf16.mxu0 0
        %5915 = vmatmul.mubr.bf16.gmra.mrb[0].mxu0 %v5623
        %v5916 = vpop.f32.mrb[0].mxu0
        %v5917 = vadd.f32 0.0, %v5916
        %v5918 = vpop.f32.mrb[0].mxu0
        %v5919 = vpop.f32.mrb[0].mxu0
        %v5920 = vadd.f32 0.0, %v5919
        %v5921 = vpop.f32.mrb[0].mxu0
        %5922 = vmatprep.mubr.bf16.mxu0 0
        %5923 = vmatmul.mubr.bf16.gmra.mrb[0].mxu0 %v5624
        %v5924 = vpop.f32.mrb[0].mxu0
        %v5925 = vadd.f32 0.0, %v5924
        %v5926 = vpop.f32.mrb[0].mxu0
        %v5927 = vpop.f32.mrb[0].mxu0
        %v5928 = vadd.f32 0.0, %v5927
        %v5929 = vpop.f32.mrb[0].mxu0
        %5930 = vmatprep.mubr.bf16.mxu0 0
        %5931 = vmatmul.mubr.bf16.gmra.mrb[0].mxu0 %v5625
        %v5932 = vpop.f32.mrb[0].mxu0
        %v5933 = vadd.f32 0.0, %v5932
        %v5934 = vpop.f32.mrb[0].mxu0
        %v5935 = vpop.f32.mrb[0].mxu0
        %v5936 = vadd.f32 0.0, %v5935
        %v5937 = vpop.f32.mrb[0].mxu0
        %5938 = vmatprep.mubr.bf16.mxu0 0
        %5939 = vmatmul.mubr.bf16.gmra.mrb[0].mxu0 %v5626
        %v5940 = vpop.f32.mrb[0].mxu0
        %v5941 = vadd.f32 0.0, %v5940
        %v5942 = vpop.f32.mrb[0].mxu0
        %v5943 = vpop.f32.mrb[0].mxu0
        %v5944 = vadd.f32 0.0, %v5943
        %v5945 = vpop.f32.mrb[0].mxu0
        %5946 = vmatprep.mubr.bf16.mxu0 0
        %5947 = vmatmul.mubr.bf16.gmra.mrb[0].mxu0 %v5627
        %v5948 = vpop.f32.mrb[0].mxu0
        %v5949 = vadd.f32 0.0, %v5948
        %v5950 = vpop.f32.mrb[0].mxu0
        %v5951 = vpop.f32.mrb[0].mxu0
        %v5952 = vadd.f32 0.0, %v5951
        %v5953 = vpop.f32.mrb[0].mxu0
        %5954 = vmatprep.mubr.bf16.mxu0 0
        %5955 = vmatmul.mubr.bf16.gmra.mrb[0].mxu0 %v5628
        %v5956 = vpop.f32.mrb[0].mxu0
        %v5957 = vadd.f32 0.0, %v5956
        %v5958 = vpop.f32.mrb[0].mxu0
        %v5959 = vpop.f32.mrb[0].mxu0
        %v5960 = vadd.f32 0.0, %v5959
        %v5961 = vpop.f32.mrb[0].mxu0
        %5962 = vmatprep.mubr.bf16.mxu0 0
        %5963 = vmatmul.mubr.bf16.gmra.mrb[0].mxu0 %v5629
        %v5964 = vpop.f32.mrb[0].mxu0
        %v5965 = vadd.f32 0.0, %v5964
        %v5966 = vpop.f32.mrb[0].mxu0
        %v5967 = vpop.f32.mrb[0].mxu0
        %v5968 = vadd.f32 0.0, %v5967
        %v5969 = vpop.f32.mrb[0].mxu0
        %5970 = vmatprep.mubr.bf16.mxu0 0
        %5971 = vmatmul.mubr.bf16.gmra.mrb[0].mxu0 %v5630
        %v5972 = vpop.f32.mrb[0].mxu0
        %v5973 = vadd.f32 0.0, %v5972
        %v5974 = vpop.f32.mrb[0].mxu0
        %v5975 = vpop.f32.mrb[0].mxu0
        %v5976 = vadd.f32 0.0, %v5975
        %v5977 = vpop.f32.mrb[0].mxu0
        %5978 = vmatprep.mubr.bf16.mxu0 0
        %5979 = vmatmul.mubr.bf16.gmra.mrb[0].mxu0 %v5631
        %v5980 = vpop.f32.mrb[0].mxu0
        %v5981 = vadd.f32 0.0, %v5980
        %v5982 = vpop.f32.mrb[0].mxu0
        %v5983 = vpop.f32.mrb[0].mxu0
        %v5984 = vadd.f32 0.0, %v5983
        %v5985 = vpop.f32.mrb[0].mxu0
        %5986 = vmatprep.mubr.bf16.mxu0 0
        %5987 = vmatmul.mubr.bf16.gmra.mrb[0].mxu0 %v5632
        %v5988 = vpop.f32.mrb[0].mxu0
        %v5989 = vadd.f32 0.0, %v5988
        %v5990 = vpop.f32.mrb[0].mxu0
        %v5991 = vpop.f32.mrb[0].mxu0
        %v5992 = vadd.f32 0.0, %v5991
        %v5993 = vpop.f32.mrb[0].mxu0
        %5994 = vmatprep.mubr.bf16.mxu0 0
        %5995 = vmatmul.mubr.bf16.gmra.mrb[0].mxu0 %v5633
        %v5996 = vpop.f32.mrb[0].mxu0
        %v5997 = vadd.f32 0.0, %v5996
        %v5998 = vpop.f32.mrb[0].mxu0
        %v5999 = vpop.f32.mrb[0].mxu0
        %v6000 = vadd.f32 0.0, %v5999
        %v6001 = vpop.f32.mrb[0].mxu0
        %6002 = vdwg.mxu0
        %v6003 = vadd.f32 %v5393, %v5749
        %v6004 = vadd.f32 %v5394, %v5752
        %v6005 = vadd.f32 %v5395, %v5757
        %v6006 = vadd.f32 %v5396, %v5760
        %v6007 = vadd.f32 %v5397, %v5765
        %v6008 = vadd.f32 %v5398, %v5768
        %v6009 = vadd.f32 %v5399, %v5773
        %v6010 = vadd.f32 %v5400, %v5776
        %v6011 = vadd.f32 %v5401, %v5781
        %v6012 = vadd.f32 %v5402, %v5784
        %v6013 = vadd.f32 %v5403, %v5789
        %v6014 = vadd.f32 %v5404, %v5792
        %v6015 = vadd.f32 %v5405, %v5797
        %v6016 = vadd.f32 %v5406, %v5800
        %v6017 = vadd.f32 %v5407, %v5805
        %v6018 = vadd.f32 %v5408, %v5808
        %v6019 = vadd.f32 %v5409, %v5813
        %v6020 = vadd.f32 %v5410, %v5816
        %v6021 = vadd.f32 %v5411, %v5821
        %v6022 = vadd.f32 %v5412, %v5824
        %v6023 = vadd.f32 %v5413, %v5829
        %v6024 = vadd.f32 %v5414, %v5832
        %v6025 = vadd.f32 %v5415, %v5837
        %v6026 = vadd.f32 %v5416, %v5840
        %v6027 = vadd.f32 %v5417, %v5845
        %v6028 = vadd.f32 %v5418, %v5848
        %v6029 = vadd.f32 %v5419, %v5853
        %v6030 = vadd.f32 %v5420, %v5856
        %v6031 = vadd.f32 %v5421, %v5861
        %v6032 = vadd.f32 %v5422, %v5864
        %v6033 = vadd.f32 %v5423, %v5869
        %v6034 = vadd.f32 %v5424, %v5872
        %v6035 = vadd.f32 %v5425, %v5877
        %v6036 = vadd.f32 %v5426, %v5880
        %v6037 = vadd.f32 %v5427, %v5885
        %v6038 = vadd.f32 %v5428, %v5888
        %v6039 = vadd.f32 %v5429, %v5893
        %v6040 = vadd.f32 %v5430, %v5896
        %v6041 = vadd.f32 %v5431, %v5901
        %v6042 = vadd.f32 %v5432, %v5904
        %v6043 = vadd.f32 %v5433, %v5909
        %v6044 = vadd.f32 %v5434, %v5912
        %v6045 = vadd.f32 %v5435, %v5917
        %v6046 = vadd.f32 %v5436, %v5920
        %v6047 = vadd.f32 %v5437, %v5925
        %v6048 = vadd.f32 %v5438, %v5928
        %v6049 = vadd.f32 %v5439, %v5933
        %v6050 = vadd.f32 %v5440, %v5936
        %v6051 = vadd.f32 %v5441, %v5941
        %v6052 = vadd.f32 %v5442, %v5944
        %v6053 = vadd.f32 %v5443, %v5949
        %v6054 = vadd.f32 %v5444, %v5952
        %v6055 = vadd.f32 %v5445, %v5957
        %v6056 = vadd.f32 %v5446, %v5960
        %v6057 = vadd.f32 %v5447, %v5965
        %v6058 = vadd.f32 %v5448, %v5968
        %v6059 = vadd.f32 %v5449, %v5973
        %v6060 = vadd.f32 %v5450, %v5976
        %v6061 = vadd.f32 %v5451, %v5981
        %v6062 = vadd.f32 %v5452, %v5984
        %v6063 = vadd.f32 %v5453, %v5989
        %v6064 = vadd.f32 %v5454, %v5992
        %v6065 = vadd.f32 %v5455, %v5997
        %v6066 = vadd.f32 %v5456, %v6000
        %s6067 = scalar_lea.vmem [#allocation15], 320
        %v6068 = vld [vmem:[%s6067] sm:$0xf]
        %v6069 = vld [vmem:[%s6067 + $0x4] sm:$0xf]
        %v6070 = vld [vmem:[%s6067 + $0x8] sm:$0xf]
        %v6071 = vld [vmem:[%s6067 + $0xc] sm:$0xf]
        %v6072 = vld [vmem:[%s6067 + $0x10] sm:$0xf]
        %v6073 = vld [vmem:[%s6067 + $0x14] sm:$0xf]
        %v6074 = vld [vmem:[%s6067 + $0x18] sm:$0xf]
        %v6075 = vld [vmem:[%s6067 + $0x1c] sm:$0xf]
        %v6076 = vld [vmem:[%s6067 + $0x20] sm:$0xf]
        %v6077 = vld [vmem:[%s6067 + $0x24] sm:$0xf]
        %v6078 = vld [vmem:[%s6067 + $0x28] sm:$0xf]
        %v6079 = vld [vmem:[%s6067 + $0x2c] sm:$0xf]
        %v6080 = vld [vmem:[%s6067 + $0x30] sm:$0xf]
        %v6081 = vld [vmem:[%s6067 + $0x34] sm:$0xf]
        %v6082 = vld [vmem:[%s6067 + $0x38] sm:$0xf]
        %v6083 = vld [vmem:[%s6067 + $0x3c] sm:$0xf]
        %v6148 = vunpack.c.l.b16 %v4783
        %v6149 = vunpack.c.l.b16 %v4784
        %v6150 = vunpack.c.l.b16 %v4785
        %v6151 = vunpack.c.l.b16 %v4786
        %v6152 = vunpack.c.l.b16 %v4787
        %v6153 = vunpack.c.l.b16 %v4788
        %v6154 = vunpack.c.l.b16 %v4789
        %v6155 = vunpack.c.l.b16 %v4790
        %v6156 = vunpack.c.l.b16 %v4791
        %v6157 = vunpack.c.l.b16 %v4792
        %v6158 = vunpack.c.l.b16 %v4793
        %v6159 = vunpack.c.l.b16 %v4794
        %v6160 = vunpack.c.l.b16 %v4795
        %v6161 = vunpack.c.l.b16 %v4796
        %v6162 = vunpack.c.l.b16 %v4797
        %v6163 = vunpack.c.l.b16 %v4798
        %v6164 = vunpack.c.l.b16 %v4799
        %v6165 = vunpack.c.l.b16 %v4800
        %v6166 = vunpack.c.l.b16 %v4801
        %v6167 = vunpack.c.l.b16 %v4802
        %v6168 = vunpack.c.l.b16 %v4803
        %v6169 = vunpack.c.l.b16 %v4804
        %v6170 = vunpack.c.l.b16 %v4805
        %v6171 = vunpack.c.l.b16 %v4806
        %v6172 = vunpack.c.l.b16 %v4807
        %v6173 = vunpack.c.l.b16 %v4808
        %v6174 = vunpack.c.l.b16 %v4809
        %v6175 = vunpack.c.l.b16 %v4810
        %v6176 = vunpack.c.l.b16 %v4811
        %v6177 = vunpack.c.l.b16 %v4812
        %v6178 = vunpack.c.l.b16 %v4813
        %v6179 = vunpack.c.l.b16 %v4814
        %v6180 = vunpack.c.l.b16 %v4815
        %v6181 = vunpack.c.l.b16 %v4816
        %v6182 = vunpack.c.l.b16 %v4817
        %v6183 = vunpack.c.l.b16 %v4818
        %v6184 = vunpack.c.l.b16 %v4819
        %v6185 = vunpack.c.l.b16 %v4820
        %v6186 = vunpack.c.l.b16 %v4821
        %v6187 = vunpack.c.l.b16 %v4822
        %v6188 = vunpack.c.l.b16 %v4823
        %v6189 = vunpack.c.l.b16 %v4824
        %v6190 = vunpack.c.l.b16 %v4825
        %v6191 = vunpack.c.l.b16 %v4826
        %v6192 = vunpack.c.l.b16 %v4827
        %v6193 = vunpack.c.l.b16 %v4828
        %v6194 = vunpack.c.l.b16 %v4829
        %v6195 = vunpack.c.l.b16 %v4830
        %v6196 = vunpack.c.l.b16 %v4831
        %v6197 = vunpack.c.l.b16 %v4832
        %v6198 = vunpack.c.l.b16 %v4833
        %v6199 = vunpack.c.l.b16 %v4834
        %v6200 = vunpack.c.l.b16 %v4835
        %v6201 = vunpack.c.l.b16 %v4836
        %v6202 = vunpack.c.l.b16 %v4837
        %v6203 = vunpack.c.l.b16 %v4838
        %v6204 = vunpack.c.l.b16 %v4839
        %v6205 = vunpack.c.l.b16 %v4840
        %v6206 = vunpack.c.l.b16 %v4841
        %v6207 = vunpack.c.l.b16 %v4842
        %v6208 = vunpack.c.l.b16 %v4843
        %v6209 = vunpack.c.l.b16 %v4844
        %v6210 = vunpack.c.l.b16 %v4845
        %v6211 = vunpack.c.l.b16 %v4846
        %v6212 = vpack.c.b16 %v6149, %v6148
        %v6213 = vpack.c.b16 %v6151, %v6150
        %v6214 = vpack.c.b16 %v6153, %v6152
        %v6215 = vpack.c.b16 %v6155, %v6154
        %v6216 = vpack.c.b16 %v6157, %v6156
        %v6217 = vpack.c.b16 %v6159, %v6158
        %v6218 = vpack.c.b16 %v6161, %v6160
        %v6219 = vpack.c.b16 %v6163, %v6162
        %v6220 = vpack.c.b16 %v6165, %v6164
        %v6221 = vpack.c.b16 %v6167, %v6166
        %v6222 = vpack.c.b16 %v6169, %v6168
        %v6223 = vpack.c.b16 %v6171, %v6170
        %v6224 = vpack.c.b16 %v6173, %v6172
        %v6225 = vpack.c.b16 %v6175, %v6174
        %v6226 = vpack.c.b16 %v6177, %v6176
        %v6227 = vpack.c.b16 %v6179, %v6178
        %v6228 = vpack.c.b16 %v6181, %v6180
        %v6229 = vpack.c.b16 %v6183, %v6182
        %v6230 = vpack.c.b16 %v6185, %v6184
        %v6231 = vpack.c.b16 %v6187, %v6186
        %v6232 = vpack.c.b16 %v6189, %v6188
        %v6233 = vpack.c.b16 %v6191, %v6190
        %v6234 = vpack.c.b16 %v6193, %v6192
        %v6235 = vpack.c.b16 %v6195, %v6194
        %v6236 = vpack.c.b16 %v6197, %v6196
        %v6237 = vpack.c.b16 %v6199, %v6198
        %v6238 = vpack.c.b16 %v6201, %v6200
        %v6239 = vpack.c.b16 %v6203, %v6202
        %v6240 = vpack.c.b16 %v6205, %v6204
        %v6241 = vpack.c.b16 %v6207, %v6206
        %v6242 = vpack.c.b16 %v6209, %v6208
        %v6243 = vpack.c.b16 %v6211, %v6210
        %v6292 = vunpack.c.l.b16 %v6068
        %v6293 = vunpack.c.l.b16 %v6069
        %v6294 = vunpack.c.l.b16 %v6070
        %v6295 = vunpack.c.l.b16 %v6071
        %v6296 = vunpack.c.l.b16 %v6072
        %v6297 = vunpack.c.l.b16 %v6073
        %v6298 = vunpack.c.l.b16 %v6074
        %v6299 = vunpack.c.l.b16 %v6075
        %v6300 = vunpack.c.l.b16 %v6076
        %v6301 = vunpack.c.l.b16 %v6077
        %v6302 = vunpack.c.l.b16 %v6078
        %v6303 = vunpack.c.l.b16 %v6079
        %v6304 = vunpack.c.l.b16 %v6080
        %v6305 = vunpack.c.l.b16 %v6081
        %v6306 = vunpack.c.l.b16 %v6082
        %v6307 = vunpack.c.l.b16 %v6083
        %v6308 = vpack.c.b16 %v6293, %v6292
        %v6309 = vpack.c.b16 %v6295, %v6294
        %v6310 = vpack.c.b16 %v6297, %v6296
        %v6311 = vpack.c.b16 %v6299, %v6298
        %v6312 = vpack.c.b16 %v6301, %v6300
        %v6313 = vpack.c.b16 %v6303, %v6302
        %v6314 = vpack.c.b16 %v6305, %v6304
        %v6315 = vpack.c.b16 %v6307, %v6306
        %6324 = vmatprep.subr.bf16.mxu0 0
        %6325 = vmatpush1.bf16.msra.mxu0 %v6308
        %6326 = vmatprep.subr.bf16.mxu0 0
        %6327 = vmatpush1.bf16.msra.mxu0 %v6309
        %6328 = vmatprep.subr.bf16.mxu0 0
        %6329 = vmatpush1.bf16.msra.mxu0 %v6310
        %6330 = vmatprep.subr.bf16.mxu0 0
        %6331 = vmatpush1.bf16.msra.mxu0 %v6311
        %6332 = vmatprep.subr.bf16.mxu0 0
        %6333 = vmatpush1.bf16.msra.mxu0 %v6312
        %6334 = vmatprep.subr.bf16.mxu0 0
        %6335 = vmatpush1.bf16.msra.mxu0 %v6313
        %6336 = vmatprep.subr.bf16.mxu0 0
        %6337 = vmatpush1.bf16.msra.mxu0 %v6314
        %6338 = vmatprep.subr.bf16.mxu0 0
        %6339 = vmatpush1.bf16.msra.mxu0 %v6315
        %6340 = vmatprep.subr.bf16.mxu0 0
        %6341 = vmatpush1.bf16.msra.mxu0 0
        %6342 = vmatprep.subr.bf16.mxu0 0
        %6343 = vmatpush1.bf16.msra.mxu0 0
        %6344 = vmatprep.subr.bf16.mxu0 0
        %6345 = vmatpush1.bf16.msra.mxu0 0
        %6346 = vmatprep.subr.bf16.mxu0 0
        %6347 = vmatpush1.bf16.msra.mxu0 0
        %6348 = vmatprep.subr.bf16.mxu0 0
        %6349 = vmatpush1.bf16.msra.mxu0 0
        %6350 = vmatprep.subr.bf16.mxu0 0
        %6351 = vmatpush1.bf16.msra.mxu0 0
        %6352 = vmatprep.subr.bf16.mxu0 0
        %6353 = vmatpush1.bf16.msra.mxu0 0
        %6354 = vmatprep.subr.bf16.mxu0 0
        %6355 = vmatpush1.bf16.msra.mxu0 0
        %6356 = vmatprep.mubr.bf16.mxu0 0
        %6357 = vmatmul.mubr.bf16.gmra.mrb[0].mxu0 %v6212
        %v6358 = vpop.f32.mrb[0].mxu0
        %v6359 = vadd.f32 0.0, %v6358
        %v6360 = vpop.f32.mrb[0].mxu0
        %v6361 = vpop.f32.mrb[0].mxu0
        %v6362 = vadd.f32 0.0, %v6361
        %v6363 = vpop.f32.mrb[0].mxu0
        %6364 = vmatprep.mubr.bf16.mxu0 0
        %6365 = vmatmul.mubr.bf16.gmra.mrb[0].mxu0 %v6213
        %v6366 = vpop.f32.mrb[0].mxu0
        %v6367 = vadd.f32 0.0, %v6366
        %v6368 = vpop.f32.mrb[0].mxu0
        %v6369 = vpop.f32.mrb[0].mxu0
        %v6370 = vadd.f32 0.0, %v6369
        %v6371 = vpop.f32.mrb[0].mxu0
        %6372 = vmatprep.mubr.bf16.mxu0 0
        %6373 = vmatmul.mubr.bf16.gmra.mrb[0].mxu0 %v6214
        %v6374 = vpop.f32.mrb[0].mxu0
        %v6375 = vadd.f32 0.0, %v6374
        %v6376 = vpop.f32.mrb[0].mxu0
        %v6377 = vpop.f32.mrb[0].mxu0
        %v6378 = vadd.f32 0.0, %v6377
        %v6379 = vpop.f32.mrb[0].mxu0
        %6380 = vmatprep.mubr.bf16.mxu0 0
        %6381 = vmatmul.mubr.bf16.gmra.mrb[0].mxu0 %v6215
        %v6382 = vpop.f32.mrb[0].mxu0
        %v6383 = vadd.f32 0.0, %v6382
        %v6384 = vpop.f32.mrb[0].mxu0
        %v6385 = vpop.f32.mrb[0].mxu0
        %v6386 = vadd.f32 0.0, %v6385
        %v6387 = vpop.f32.mrb[0].mxu0
        %6388 = vmatprep.mubr.bf16.mxu0 0
        %6389 = vmatmul.mubr.bf16.gmra.mrb[0].mxu0 %v6216
        %v6390 = vpop.f32.mrb[0].mxu0
        %v6391 = vadd.f32 0.0, %v6390
        %v6392 = vpop.f32.mrb[0].mxu0
        %v6393 = vpop.f32.mrb[0].mxu0
        %v6394 = vadd.f32 0.0, %v6393
        %v6395 = vpop.f32.mrb[0].mxu0
        %6396 = vmatprep.mubr.bf16.mxu0 0
        %6397 = vmatmul.mubr.bf16.gmra.mrb[0].mxu0 %v6217
        %v6398 = vpop.f32.mrb[0].mxu0
        %v6399 = vadd.f32 0.0, %v6398
        %v6400 = vpop.f32.mrb[0].mxu0
        %v6401 = vpop.f32.mrb[0].mxu0
        %v6402 = vadd.f32 0.0, %v6401
        %v6403 = vpop.f32.mrb[0].mxu0
        %6404 = vmatprep.mubr.bf16.mxu0 0
        %6405 = vmatmul.mubr.bf16.gmra.mrb[0].mxu0 %v6218
        %v6406 = vpop.f32.mrb[0].mxu0
        %v6407 = vadd.f32 0.0, %v6406
        %v6408 = vpop.f32.mrb[0].mxu0
        %v6409 = vpop.f32.mrb[0].mxu0
        %v6410 = vadd.f32 0.0, %v6409
        %v6411 = vpop.f32.mrb[0].mxu0
        %6412 = vmatprep.mubr.bf16.mxu0 0
        %6413 = vmatmul.mubr.bf16.gmra.mrb[0].mxu0 %v6219
        %v6414 = vpop.f32.mrb[0].mxu0
        %v6415 = vadd.f32 0.0, %v6414
        %v6416 = vpop.f32.mrb[0].mxu0
        %v6417 = vpop.f32.mrb[0].mxu0
        %v6418 = vadd.f32 0.0, %v6417
        %v6419 = vpop.f32.mrb[0].mxu0
        %6420 = vmatprep.mubr.bf16.mxu0 0
        %6421 = vmatmul.mubr.bf16.gmra.mrb[0].mxu0 %v6220
        %v6422 = vpop.f32.mrb[0].mxu0
        %v6423 = vadd.f32 0.0, %v6422
        %v6424 = vpop.f32.mrb[0].mxu0
        %v6425 = vpop.f32.mrb[0].mxu0
        %v6426 = vadd.f32 0.0, %v6425
        %v6427 = vpop.f32.mrb[0].mxu0
        %6428 = vmatprep.mubr.bf16.mxu0 0
        %6429 = vmatmul.mubr.bf16.gmra.mrb[0].mxu0 %v6221
        %v6430 = vpop.f32.mrb[0].mxu0
        %v6431 = vadd.f32 0.0, %v6430
        %v6432 = vpop.f32.mrb[0].mxu0
        %v6433 = vpop.f32.mrb[0].mxu0
        %v6434 = vadd.f32 0.0, %v6433
        %v6435 = vpop.f32.mrb[0].mxu0
        %6436 = vmatprep.mubr.bf16.mxu0 0
        %6437 = vmatmul.mubr.bf16.gmra.mrb[0].mxu0 %v6222
        %v6438 = vpop.f32.mrb[0].mxu0
        %v6439 = vadd.f32 0.0, %v6438
        %v6440 = vpop.f32.mrb[0].mxu0
        %v6441 = vpop.f32.mrb[0].mxu0
        %v6442 = vadd.f32 0.0, %v6441
        %v6443 = vpop.f32.mrb[0].mxu0
        %6444 = vmatprep.mubr.bf16.mxu0 0
        %6445 = vmatmul.mubr.bf16.gmra.mrb[0].mxu0 %v6223
        %v6446 = vpop.f32.mrb[0].mxu0
        %v6447 = vadd.f32 0.0, %v6446
        %v6448 = vpop.f32.mrb[0].mxu0
        %v6449 = vpop.f32.mrb[0].mxu0
        %v6450 = vadd.f32 0.0, %v6449
        %v6451 = vpop.f32.mrb[0].mxu0
        %6452 = vmatprep.mubr.bf16.mxu0 0
        %6453 = vmatmul.mubr.bf16.gmra.mrb[0].mxu0 %v6224
        %v6454 = vpop.f32.mrb[0].mxu0
        %v6455 = vadd.f32 0.0, %v6454
        %v6456 = vpop.f32.mrb[0].mxu0
        %v6457 = vpop.f32.mrb[0].mxu0
        %v6458 = vadd.f32 0.0, %v6457
        %v6459 = vpop.f32.mrb[0].mxu0
        %6460 = vmatprep.mubr.bf16.mxu0 0
        %6461 = vmatmul.mubr.bf16.gmra.mrb[0].mxu0 %v6225
        %v6462 = vpop.f32.mrb[0].mxu0
        %v6463 = vadd.f32 0.0, %v6462
        %v6464 = vpop.f32.mrb[0].mxu0
        %v6465 = vpop.f32.mrb[0].mxu0
        %v6466 = vadd.f32 0.0, %v6465
        %v6467 = vpop.f32.mrb[0].mxu0
        %6468 = vmatprep.mubr.bf16.mxu0 0
        %6469 = vmatmul.mubr.bf16.gmra.mrb[0].mxu0 %v6226
        %v6470 = vpop.f32.mrb[0].mxu0
        %v6471 = vadd.f32 0.0, %v6470
        %v6472 = vpop.f32.mrb[0].mxu0
        %v6473 = vpop.f32.mrb[0].mxu0
        %v6474 = vadd.f32 0.0, %v6473
        %v6475 = vpop.f32.mrb[0].mxu0
        %6476 = vmatprep.mubr.bf16.mxu0 0
        %6477 = vmatmul.mubr.bf16.gmra.mrb[0].mxu0 %v6227
        %v6478 = vpop.f32.mrb[0].mxu0
        %v6479 = vadd.f32 0.0, %v6478
        %v6480 = vpop.f32.mrb[0].mxu0
        %v6481 = vpop.f32.mrb[0].mxu0
        %v6482 = vadd.f32 0.0, %v6481
        %v6483 = vpop.f32.mrb[0].mxu0
        %6484 = vmatprep.mubr.bf16.mxu0 0
        %6485 = vmatmul.mubr.bf16.gmra.mrb[0].mxu0 %v6228
        %v6486 = vpop.f32.mrb[0].mxu0
        %v6487 = vadd.f32 0.0, %v6486
        %v6488 = vpop.f32.mrb[0].mxu0
        %v6489 = vpop.f32.mrb[0].mxu0
        %v6490 = vadd.f32 0.0, %v6489
        %v6491 = vpop.f32.mrb[0].mxu0
        %6492 = vmatprep.mubr.bf16.mxu0 0
        %6493 = vmatmul.mubr.bf16.gmra.mrb[0].mxu0 %v6229
        %v6494 = vpop.f32.mrb[0].mxu0
        %v6495 = vadd.f32 0.0, %v6494
        %v6496 = vpop.f32.mrb[0].mxu0
        %v6497 = vpop.f32.mrb[0].mxu0
        %v6498 = vadd.f32 0.0, %v6497
        %v6499 = vpop.f32.mrb[0].mxu0
        %6500 = vmatprep.mubr.bf16.mxu0 0
        %6501 = vmatmul.mubr.bf16.gmra.mrb[0].mxu0 %v6230
        %v6502 = vpop.f32.mrb[0].mxu0
        %v6503 = vadd.f32 0.0, %v6502
        %v6504 = vpop.f32.mrb[0].mxu0
        %v6505 = vpop.f32.mrb[0].mxu0
        %v6506 = vadd.f32 0.0, %v6505
        %v6507 = vpop.f32.mrb[0].mxu0
        %6508 = vmatprep.mubr.bf16.mxu0 0
        %6509 = vmatmul.mubr.bf16.gmra.mrb[0].mxu0 %v6231
        %v6510 = vpop.f32.mrb[0].mxu0
        %v6511 = vadd.f32 0.0, %v6510
        %v6512 = vpop.f32.mrb[0].mxu0
        %v6513 = vpop.f32.mrb[0].mxu0
        %v6514 = vadd.f32 0.0, %v6513
        %v6515 = vpop.f32.mrb[0].mxu0
        %6516 = vmatprep.mubr.bf16.mxu0 0
        %6517 = vmatmul.mubr.bf16.gmra.mrb[0].mxu0 %v6232
        %v6518 = vpop.f32.mrb[0].mxu0
        %v6519 = vadd.f32 0.0, %v6518
        %v6520 = vpop.f32.mrb[0].mxu0
        %v6521 = vpop.f32.mrb[0].mxu0
        %v6522 = vadd.f32 0.0, %v6521
        %v6523 = vpop.f32.mrb[0].mxu0
        %6524 = vmatprep.mubr.bf16.mxu0 0
        %6525 = vmatmul.mubr.bf16.gmra.mrb[0].mxu0 %v6233
        %v6526 = vpop.f32.mrb[0].mxu0
        %v6527 = vadd.f32 0.0, %v6526
        %v6528 = vpop.f32.mrb[0].mxu0
        %v6529 = vpop.f32.mrb[0].mxu0
        %v6530 = vadd.f32 0.0, %v6529
        %v6531 = vpop.f32.mrb[0].mxu0
        %6532 = vmatprep.mubr.bf16.mxu0 0
        %6533 = vmatmul.mubr.bf16.gmra.mrb[0].mxu0 %v6234
        %v6534 = vpop.f32.mrb[0].mxu0
        %v6535 = vadd.f32 0.0, %v6534
        %v6536 = vpop.f32.mrb[0].mxu0
        %v6537 = vpop.f32.mrb[0].mxu0
        %v6538 = vadd.f32 0.0, %v6537
        %v6539 = vpop.f32.mrb[0].mxu0
        %6540 = vmatprep.mubr.bf16.mxu0 0
        %6541 = vmatmul.mubr.bf16.gmra.mrb[0].mxu0 %v6235
        %v6542 = vpop.f32.mrb[0].mxu0
        %v6543 = vadd.f32 0.0, %v6542
        %v6544 = vpop.f32.mrb[0].mxu0
        %v6545 = vpop.f32.mrb[0].mxu0
        %v6546 = vadd.f32 0.0, %v6545
        %v6547 = vpop.f32.mrb[0].mxu0
        %6548 = vmatprep.mubr.bf16.mxu0 0
        %6549 = vmatmul.mubr.bf16.gmra.mrb[0].mxu0 %v6236
        %v6550 = vpop.f32.mrb[0].mxu0
        %v6551 = vadd.f32 0.0, %v6550
        %v6552 = vpop.f32.mrb[0].mxu0
        %v6553 = vpop.f32.mrb[0].mxu0
        %v6554 = vadd.f32 0.0, %v6553
        %v6555 = vpop.f32.mrb[0].mxu0
        %6556 = vmatprep.mubr.bf16.mxu0 0
        %6557 = vmatmul.mubr.bf16.gmra.mrb[0].mxu0 %v6237
        %v6558 = vpop.f32.mrb[0].mxu0
        %v6559 = vadd.f32 0.0, %v6558
        %v6560 = vpop.f32.mrb[0].mxu0
        %v6561 = vpop.f32.mrb[0].mxu0
        %v6562 = vadd.f32 0.0, %v6561
        %v6563 = vpop.f32.mrb[0].mxu0
        %6564 = vmatprep.mubr.bf16.mxu0 0
        %6565 = vmatmul.mubr.bf16.gmra.mrb[0].mxu0 %v6238
        %v6566 = vpop.f32.mrb[0].mxu0
        %v6567 = vadd.f32 0.0, %v6566
        %v6568 = vpop.f32.mrb[0].mxu0
        %v6569 = vpop.f32.mrb[0].mxu0
        %v6570 = vadd.f32 0.0, %v6569
        %v6571 = vpop.f32.mrb[0].mxu0
        %6572 = vmatprep.mubr.bf16.mxu0 0
        %6573 = vmatmul.mubr.bf16.gmra.mrb[0].mxu0 %v6239
        %v6574 = vpop.f32.mrb[0].mxu0
        %v6575 = vadd.f32 0.0, %v6574
        %v6576 = vpop.f32.mrb[0].mxu0
        %v6577 = vpop.f32.mrb[0].mxu0
        %v6578 = vadd.f32 0.0, %v6577
        %v6579 = vpop.f32.mrb[0].mxu0
        %6580 = vmatprep.mubr.bf16.mxu0 0
        %6581 = vmatmul.mubr.bf16.gmra.mrb[0].mxu0 %v6240
        %v6582 = vpop.f32.mrb[0].mxu0
        %v6583 = vadd.f32 0.0, %v6582
        %v6584 = vpop.f32.mrb[0].mxu0
        %v6585 = vpop.f32.mrb[0].mxu0
        %v6586 = vadd.f32 0.0, %v6585
        %v6587 = vpop.f32.mrb[0].mxu0
        %6588 = vmatprep.mubr.bf16.mxu0 0
        %6589 = vmatmul.mubr.bf16.gmra.mrb[0].mxu0 %v6241
        %v6590 = vpop.f32.mrb[0].mxu0
        %v6591 = vadd.f32 0.0, %v6590
        %v6592 = vpop.f32.mrb[0].mxu0
        %v6593 = vpop.f32.mrb[0].mxu0
        %v6594 = vadd.f32 0.0, %v6593
        %v6595 = vpop.f32.mrb[0].mxu0
        %6596 = vmatprep.mubr.bf16.mxu0 0
        %6597 = vmatmul.mubr.bf16.gmra.mrb[0].mxu0 %v6242
        %v6598 = vpop.f32.mrb[0].mxu0
        %v6599 = vadd.f32 0.0, %v6598
        %v6600 = vpop.f32.mrb[0].mxu0
        %v6601 = vpop.f32.mrb[0].mxu0
        %v6602 = vadd.f32 0.0, %v6601
        %v6603 = vpop.f32.mrb[0].mxu0
        %6604 = vmatprep.mubr.bf16.mxu0 0
        %6605 = vmatmul.mubr.bf16.gmra.mrb[0].mxu0 %v6243
        %v6606 = vpop.f32.mrb[0].mxu0
        %v6607 = vadd.f32 0.0, %v6606
        %v6608 = vpop.f32.mrb[0].mxu0
        %v6609 = vpop.f32.mrb[0].mxu0
        %v6610 = vadd.f32 0.0, %v6609
        %v6611 = vpop.f32.mrb[0].mxu0
        %6612 = vdwg.mxu0
        %v6613 = vadd.f32 %v6003, %v6359
        %v6614 = vadd.f32 %v6004, %v6362
        %v6615 = vadd.f32 %v6005, %v6367
        %v6616 = vadd.f32 %v6006, %v6370
        %v6617 = vadd.f32 %v6007, %v6375
        %v6618 = vadd.f32 %v6008, %v6378
        %v6619 = vadd.f32 %v6009, %v6383
        %v6620 = vadd.f32 %v6010, %v6386
        %v6621 = vadd.f32 %v6011, %v6391
        %v6622 = vadd.f32 %v6012, %v6394
        %v6623 = vadd.f32 %v6013, %v6399
        %v6624 = vadd.f32 %v6014, %v6402
        %v6625 = vadd.f32 %v6015, %v6407
        %v6626 = vadd.f32 %v6016, %v6410
        %v6627 = vadd.f32 %v6017, %v6415
        %v6628 = vadd.f32 %v6018, %v6418
        %v6629 = vadd.f32 %v6019, %v6423
        %v6630 = vadd.f32 %v6020, %v6426
        %v6631 = vadd.f32 %v6021, %v6431
        %v6632 = vadd.f32 %v6022, %v6434
        %v6633 = vadd.f32 %v6023, %v6439
        %v6634 = vadd.f32 %v6024, %v6442
        %v6635 = vadd.f32 %v6025, %v6447
        %v6636 = vadd.f32 %v6026, %v6450
        %v6637 = vadd.f32 %v6027, %v6455
        %v6638 = vadd.f32 %v6028, %v6458
        %v6639 = vadd.f32 %v6029, %v6463
        %v6640 = vadd.f32 %v6030, %v6466
        %v6641 = vadd.f32 %v6031, %v6471
        %v6642 = vadd.f32 %v6032, %v6474
        %v6643 = vadd.f32 %v6033, %v6479
        %v6644 = vadd.f32 %v6034, %v6482
        %v6645 = vadd.f32 %v6035, %v6487
        %v6646 = vadd.f32 %v6036, %v6490
        %v6647 = vadd.f32 %v6037, %v6495
        %v6648 = vadd.f32 %v6038, %v6498
        %v6649 = vadd.f32 %v6039, %v6503
        %v6650 = vadd.f32 %v6040, %v6506
        %v6651 = vadd.f32 %v6041, %v6511
        %v6652 = vadd.f32 %v6042, %v6514
        %v6653 = vadd.f32 %v6043, %v6519
        %v6654 = vadd.f32 %v6044, %v6522
        %v6655 = vadd.f32 %v6045, %v6527
        %v6656 = vadd.f32 %v6046, %v6530
        %v6657 = vadd.f32 %v6047, %v6535
        %v6658 = vadd.f32 %v6048, %v6538
        %v6659 = vadd.f32 %v6049, %v6543
        %v6660 = vadd.f32 %v6050, %v6546
        %v6661 = vadd.f32 %v6051, %v6551
        %v6662 = vadd.f32 %v6052, %v6554
        %v6663 = vadd.f32 %v6053, %v6559
        %v6664 = vadd.f32 %v6054, %v6562
        %v6665 = vadd.f32 %v6055, %v6567
        %v6666 = vadd.f32 %v6056, %v6570
        %v6667 = vadd.f32 %v6057, %v6575
        %v6668 = vadd.f32 %v6058, %v6578
        %v6669 = vadd.f32 %v6059, %v6583
        %v6670 = vadd.f32 %v6060, %v6586
        %v6671 = vadd.f32 %v6061, %v6591
        %v6672 = vadd.f32 %v6062, %v6594
        %v6673 = vadd.f32 %v6063, %v6599
        %v6674 = vadd.f32 %v6064, %v6602
        %v6675 = vadd.f32 %v6065, %v6607
        %v6676 = vadd.f32 %v6066, %v6610
        %s6677 = scalar_lea.vmem [#allocation2], 8
        %v6678 = vld [vmem:[%s6677] sm:$0xf]
        %v6679 = vld [vmem:[%s6677 + $0x4] sm:$0xf]
        %v6680 = vld [vmem:[%s6677 + $0x8] sm:$0xf]
        %v6681 = vld [vmem:[%s6677 + $0xc] sm:$0xf]
        %v6682 = vld [vmem:[%s6677 + $0x10] sm:$0xf]
        %v6683 = vld [vmem:[%s6677 + $0x14] sm:$0xf]
        %v6684 = vld [vmem:[%s6677 + $0x18] sm:$0xf]
        %v6685 = vld [vmem:[%s6677 + $0x1c] sm:$0xf]
        %v6686 = vld [vmem:[%s6677 + $0x20] sm:$0xf]
        %v6687 = vld [vmem:[%s6677 + $0x24] sm:$0xf]
        %v6688 = vld [vmem:[%s6677 + $0x28] sm:$0xf]
        %v6689 = vld [vmem:[%s6677 + $0x2c] sm:$0xf]
        %v6690 = vld [vmem:[%s6677 + $0x30] sm:$0xf]
        %v6691 = vld [vmem:[%s6677 + $0x34] sm:$0xf]
        %v6692 = vld [vmem:[%s6677 + $0x38] sm:$0xf]
        %v6693 = vld [vmem:[%s6677 + $0x3c] sm:$0xf]
        %v6694 = vld [vmem:[%s6677 + $0x40] sm:$0xf]
        %v6695 = vld [vmem:[%s6677 + $0x44] sm:$0xf]
        %v6696 = vld [vmem:[%s6677 + $0x48] sm:$0xf]
        %v6697 = vld [vmem:[%s6677 + $0x4c] sm:$0xf]
        %v6698 = vld [vmem:[%s6677 + $0x50] sm:$0xf]
        %v6699 = vld [vmem:[%s6677 + $0x54] sm:$0xf]
        %v6700 = vld [vmem:[%s6677 + $0x58] sm:$0xf]
        %v6701 = vld [vmem:[%s6677 + $0x5c] sm:$0xf]
        %v6702 = vld [vmem:[%s6677 + $0x60] sm:$0xf]
        %v6703 = vld [vmem:[%s6677 + $0x64] sm:$0xf]
        %v6704 = vld [vmem:[%s6677 + $0x68] sm:$0xf]
        %v6705 = vld [vmem:[%s6677 + $0x6c] sm:$0xf]
        %v6706 = vld [vmem:[%s6677 + $0x70] sm:$0xf]
        %v6707 = vld [vmem:[%s6677 + $0x74] sm:$0xf]
        %v6708 = vld [vmem:[%s6677 + $0x78] sm:$0xf]
        %v6709 = vld [vmem:[%s6677 + $0x7c] sm:$0xf]
        %v6710 = vld [vmem:[%s6677 + $0x80] sm:$0xf]
        %v6711 = vld [vmem:[%s6677 + $0x84] sm:$0xf]
        %v6712 = vld [vmem:[%s6677 + $0x88] sm:$0xf]
        %v6713 = vld [vmem:[%s6677 + $0x8c] sm:$0xf]
        %v6714 = vld [vmem:[%s6677 + $0x90] sm:$0xf]
        %v6715 = vld [vmem:[%s6677 + $0x94] sm:$0xf]
        %v6716 = vld [vmem:[%s6677 + $0x98] sm:$0xf]
        %v6717 = vld [vmem:[%s6677 + $0x9c] sm:$0xf]
        %v6718 = vld [vmem:[%s6677 + $0xa0] sm:$0xf]
        %v6719 = vld [vmem:[%s6677 + $0xa4] sm:$0xf]
        %v6720 = vld [vmem:[%s6677 + $0xa8] sm:$0xf]
        %v6721 = vld [vmem:[%s6677 + $0xac] sm:$0xf]
        %v6722 = vld [vmem:[%s6677 + $0xb0] sm:$0xf]
        %v6723 = vld [vmem:[%s6677 + $0xb4] sm:$0xf]
        %v6724 = vld [vmem:[%s6677 + $0xb8] sm:$0xf]
        %v6725 = vld [vmem:[%s6677 + $0xbc] sm:$0xf]
        %v6726 = vld [vmem:[%s6677 + $0xc0] sm:$0xf]
        %v6727 = vld [vmem:[%s6677 + $0xc4] sm:$0xf]
        %v6728 = vld [vmem:[%s6677 + $0xc8] sm:$0xf]
        %v6729 = vld [vmem:[%s6677 + $0xcc] sm:$0xf]
        %v6730 = vld [vmem:[%s6677 + $0xd0] sm:$0xf]
        %v6731 = vld [vmem:[%s6677 + $0xd4] sm:$0xf]
        %v6732 = vld [vmem:[%s6677 + $0xd8] sm:$0xf]
        %v6733 = vld [vmem:[%s6677 + $0xdc] sm:$0xf]
        %v6734 = vld [vmem:[%s6677 + $0xe0] sm:$0xf]
        %v6735 = vld [vmem:[%s6677 + $0xe4] sm:$0xf]
        %v6736 = vld [vmem:[%s6677 + $0xe8] sm:$0xf]
        %v6737 = vld [vmem:[%s6677 + $0xec] sm:$0xf]
        %v6738 = vld [vmem:[%s6677 + $0xf0] sm:$0xf]
        %v6739 = vld [vmem:[%s6677 + $0xf4] sm:$0xf]
        %v6740 = vld [vmem:[%s6677 + $0xf8] sm:$0xf]
        %v6741 = vld [vmem:[%s6677 + $0xfc] sm:$0xf]
        %v6742 = vunpack.c.l.bf16 %v6678
        %v6743 = vunpack.c.l.bf16 %v6679
        %v6744 = vunpack.c.l.bf16 %v6680
        %v6745 = vunpack.c.l.bf16 %v6681
        %v6746 = vunpack.c.l.bf16 %v6682
        %v6747 = vunpack.c.l.bf16 %v6683
        %v6748 = vunpack.c.l.bf16 %v6684
        %v6749 = vunpack.c.l.bf16 %v6685
        %v6750 = vunpack.c.l.bf16 %v6686
        %v6751 = vunpack.c.l.bf16 %v6687
        %v6752 = vunpack.c.l.bf16 %v6688
        %v6753 = vunpack.c.l.bf16 %v6689
        %v6754 = vunpack.c.l.bf16 %v6690
        %v6755 = vunpack.c.l.bf16 %v6691
        %v6756 = vunpack.c.l.bf16 %v6692
        %v6757 = vunpack.c.l.bf16 %v6693
        %v6758 = vunpack.c.l.bf16 %v6694
        %v6759 = vunpack.c.l.bf16 %v6695
        %v6760 = vunpack.c.l.bf16 %v6696
        %v6761 = vunpack.c.l.bf16 %v6697
        %v6762 = vunpack.c.l.bf16 %v6698
        %v6763 = vunpack.c.l.bf16 %v6699
        %v6764 = vunpack.c.l.bf16 %v6700
        %v6765 = vunpack.c.l.bf16 %v6701
        %v6766 = vunpack.c.l.bf16 %v6702
        %v6767 = vunpack.c.l.bf16 %v6703
        %v6768 = vunpack.c.l.bf16 %v6704
        %v6769 = vunpack.c.l.bf16 %v6705
        %v6770 = vunpack.c.l.bf16 %v6706
        %v6771 = vunpack.c.l.bf16 %v6707
        %v6772 = vunpack.c.l.bf16 %v6708
        %v6773 = vunpack.c.l.bf16 %v6709
        %v6774 = vunpack.c.l.bf16 %v6710
        %v6775 = vunpack.c.l.bf16 %v6711
        %v6776 = vunpack.c.l.bf16 %v6712
        %v6777 = vunpack.c.l.bf16 %v6713
        %v6778 = vunpack.c.l.bf16 %v6714
        %v6779 = vunpack.c.l.bf16 %v6715
        %v6780 = vunpack.c.l.bf16 %v6716
        %v6781 = vunpack.c.l.bf16 %v6717
        %v6782 = vunpack.c.l.bf16 %v6718
        %v6783 = vunpack.c.l.bf16 %v6719
        %v6784 = vunpack.c.l.bf16 %v6720
        %v6785 = vunpack.c.l.bf16 %v6721
        %v6786 = vunpack.c.l.bf16 %v6722
        %v6787 = vunpack.c.l.bf16 %v6723
        %v6788 = vunpack.c.l.bf16 %v6724
        %v6789 = vunpack.c.l.bf16 %v6725
        %v6790 = vunpack.c.l.bf16 %v6726
        %v6791 = vunpack.c.l.bf16 %v6727
        %v6792 = vunpack.c.l.bf16 %v6728
        %v6793 = vunpack.c.l.bf16 %v6729
        %v6794 = vunpack.c.l.bf16 %v6730
        %v6795 = vunpack.c.l.bf16 %v6731
        %v6796 = vunpack.c.l.bf16 %v6732
        %v6797 = vunpack.c.l.bf16 %v6733
        %v6798 = vunpack.c.l.bf16 %v6734
        %v6799 = vunpack.c.l.bf16 %v6735
        %v6800 = vunpack.c.l.bf16 %v6736
        %v6801 = vunpack.c.l.bf16 %v6737
        %v6802 = vunpack.c.l.bf16 %v6738
        %v6803 = vunpack.c.l.bf16 %v6739
        %v6804 = vunpack.c.l.bf16 %v6740
        %v6805 = vunpack.c.l.bf16 %v6741
        %v6870 = vrot.slane %v6742, 7
        %v6871 = vrot.slane %v6743, 7
        %v6872 = vrot.slane %v6744, 7
        %v6873 = vrot.slane %v6745, 7
        %v6874 = vrot.slane %v6746, 7
        %v6875 = vrot.slane %v6747, 7
        %v6876 = vrot.slane %v6748, 7
        %v6877 = vrot.slane %v6749, 7
        %v6878 = vrot.slane %v6750, 7
        %v6879 = vrot.slane %v6751, 7
        %v6880 = vrot.slane %v6752, 7
        %v6881 = vrot.slane %v6753, 7
        %v6882 = vrot.slane %v6754, 7
        %v6883 = vrot.slane %v6755, 7
        %v6884 = vrot.slane %v6756, 7
        %v6885 = vrot.slane %v6757, 7
        %v6886 = vrot.slane %v6758, 7
        %v6887 = vrot.slane %v6759, 7
        %v6888 = vrot.slane %v6760, 7
        %v6889 = vrot.slane %v6761, 7
        %v6890 = vrot.slane %v6762, 7
        %v6891 = vrot.slane %v6763, 7
        %v6892 = vrot.slane %v6764, 7
        %v6893 = vrot.slane %v6765, 7
        %v6894 = vrot.slane %v6766, 7
        %v6895 = vrot.slane %v6767, 7
        %v6896 = vrot.slane %v6768, 7
        %v6897 = vrot.slane %v6769, 7
        %v6898 = vrot.slane %v6770, 7
        %v6899 = vrot.slane %v6771, 7
        %v6900 = vrot.slane %v6772, 7
        %v6901 = vrot.slane %v6773, 7
        %v6902 = vrot.slane %v6774, 7
        %v6903 = vrot.slane %v6775, 7
        %v6904 = vrot.slane %v6776, 7
        %v6905 = vrot.slane %v6777, 7
        %v6906 = vrot.slane %v6778, 7
        %v6907 = vrot.slane %v6779, 7
        %v6908 = vrot.slane %v6780, 7
        %v6909 = vrot.slane %v6781, 7
        %v6910 = vrot.slane %v6782, 7
        %v6911 = vrot.slane %v6783, 7
        %v6912 = vrot.slane %v6784, 7
        %v6913 = vrot.slane %v6785, 7
        %v6914 = vrot.slane %v6786, 7
        %v6915 = vrot.slane %v6787, 7
        %v6916 = vrot.slane %v6788, 7
        %v6917 = vrot.slane %v6789, 7
        %v6918 = vrot.slane %v6790, 7
        %v6919 = vrot.slane %v6791, 7
        %v6920 = vrot.slane %v6792, 7
        %v6921 = vrot.slane %v6793, 7
        %v6922 = vrot.slane %v6794, 7
        %v6923 = vrot.slane %v6795, 7
        %v6924 = vrot.slane %v6796, 7
        %v6925 = vrot.slane %v6797, 7
        %v6926 = vrot.slane %v6798, 7
        %v6927 = vrot.slane %v6799, 7
        %v6928 = vrot.slane %v6800, 7
        %v6929 = vrot.slane %v6801, 7
        %v6930 = vrot.slane %v6802, 7
        %v6931 = vrot.slane %v6803, 7
        %v6932 = vrot.slane %v6804, 7
        %v6933 = vrot.slane %v6805, 7
        %v6998 = vsel %vm2056, 0.0, %v6870
        %v6999 = vsel %vm2056, 0.0, %v6871
        %v7000 = vsel %vm2056, 0.0, %v6872
        %v7001 = vsel %vm2056, 0.0, %v6873
        %v7002 = vsel %vm2056, 0.0, %v6874
        %v7003 = vsel %vm2056, 0.0, %v6875
        %v7004 = vsel %vm2056, 0.0, %v6876
        %v7005 = vsel %vm2056, 0.0, %v6877
        %v7006 = vsel %vm2056, 0.0, %v6878
        %v7007 = vsel %vm2056, 0.0, %v6879
        %v7008 = vsel %vm2056, 0.0, %v6880
        %v7009 = vsel %vm2056, 0.0, %v6881
        %v7010 = vsel %vm2056, 0.0, %v6882
        %v7011 = vsel %vm2056, 0.0, %v6883
        %v7012 = vsel %vm2056, 0.0, %v6884
        %v7013 = vsel %vm2056, 0.0, %v6885
        %v7014 = vsel %vm2056, 0.0, %v6886
        %v7015 = vsel %vm2056, 0.0, %v6887
        %v7016 = vsel %vm2056, 0.0, %v6888
        %v7017 = vsel %vm2056, 0.0, %v6889
        %v7018 = vsel %vm2056, 0.0, %v6890
        %v7019 = vsel %vm2056, 0.0, %v6891
        %v7020 = vsel %vm2056, 0.0, %v6892
        %v7021 = vsel %vm2056, 0.0, %v6893
        %v7022 = vsel %vm2056, 0.0, %v6894
        %v7023 = vsel %vm2056, 0.0, %v6895
        %v7024 = vsel %vm2056, 0.0, %v6896
        %v7025 = vsel %vm2056, 0.0, %v6897
        %v7026 = vsel %vm2056, 0.0, %v6898
        %v7027 = vsel %vm2056, 0.0, %v6899
        %v7028 = vsel %vm2056, 0.0, %v6900
        %v7029 = vsel %vm2056, 0.0, %v6901
        %v7030 = vsel %vm2056, 0.0, %v6902
        %v7031 = vsel %vm2056, 0.0, %v6903
        %v7032 = vsel %vm2056, 0.0, %v6904
        %v7033 = vsel %vm2056, 0.0, %v6905
        %v7034 = vsel %vm2056, 0.0, %v6906
        %v7035 = vsel %vm2056, 0.0, %v6907
        %v7036 = vsel %vm2056, 0.0, %v6908
        %v7037 = vsel %vm2056, 0.0, %v6909
        %v7038 = vsel %vm2056, 0.0, %v6910
        %v7039 = vsel %vm2056, 0.0, %v6911
        %v7040 = vsel %vm2056, 0.0, %v6912
        %v7041 = vsel %vm2056, 0.0, %v6913
        %v7042 = vsel %vm2056, 0.0, %v6914
        %v7043 = vsel %vm2056, 0.0, %v6915
        %v7044 = vsel %vm2056, 0.0, %v6916
        %v7045 = vsel %vm2056, 0.0, %v6917
        %v7046 = vsel %vm2056, 0.0, %v6918
        %v7047 = vsel %vm2056, 0.0, %v6919
        %v7048 = vsel %vm2056, 0.0, %v6920
        %v7049 = vsel %vm2056, 0.0, %v6921
        %v7050 = vsel %vm2056, 0.0, %v6922
        %v7051 = vsel %vm2056, 0.0, %v6923
        %v7052 = vsel %vm2056, 0.0, %v6924
        %v7053 = vsel %vm2056, 0.0, %v6925
        %v7054 = vsel %vm2056, 0.0, %v6926
        %v7055 = vsel %vm2056, 0.0, %v6927
        %v7056 = vsel %vm2056, 0.0, %v6928
        %v7057 = vsel %vm2056, 0.0, %v6929
        %v7058 = vsel %vm2056, 0.0, %v6930
        %v7059 = vsel %vm2056, 0.0, %v6931
        %v7060 = vsel %vm2056, 0.0, %v6932
        %v7061 = vsel %vm2056, 0.0, %v6933
        %v7062 = vrot.slane %v6742, 1
        %v7063 = vrot.slane %v6743, 1
        %v7064 = vrot.slane %v6744, 1
        %v7065 = vrot.slane %v6745, 1
        %v7066 = vrot.slane %v6746, 1
        %v7067 = vrot.slane %v6747, 1
        %v7068 = vrot.slane %v6748, 1
        %v7069 = vrot.slane %v6749, 1
        %v7070 = vrot.slane %v6750, 1
        %v7071 = vrot.slane %v6751, 1
        %v7072 = vrot.slane %v6752, 1
        %v7073 = vrot.slane %v6753, 1
        %v7074 = vrot.slane %v6754, 1
        %v7075 = vrot.slane %v6755, 1
        %v7076 = vrot.slane %v6756, 1
        %v7077 = vrot.slane %v6757, 1
        %v7078 = vrot.slane %v6758, 1
        %v7079 = vrot.slane %v6759, 1
        %v7080 = vrot.slane %v6760, 1
        %v7081 = vrot.slane %v6761, 1
        %v7082 = vrot.slane %v6762, 1
        %v7083 = vrot.slane %v6763, 1
        %v7084 = vrot.slane %v6764, 1
        %v7085 = vrot.slane %v6765, 1
        %v7086 = vrot.slane %v6766, 1
        %v7087 = vrot.slane %v6767, 1
        %v7088 = vrot.slane %v6768, 1
        %v7089 = vrot.slane %v6769, 1
        %v7090 = vrot.slane %v6770, 1
        %v7091 = vrot.slane %v6771, 1
        %v7092 = vrot.slane %v6772, 1
        %v7093 = vrot.slane %v6773, 1
        %v7094 = vrot.slane %v6774, 1
        %v7095 = vrot.slane %v6775, 1
        %v7096 = vrot.slane %v6776, 1
        %v7097 = vrot.slane %v6777, 1
        %v7098 = vrot.slane %v6778, 1
        %v7099 = vrot.slane %v6779, 1
        %v7100 = vrot.slane %v6780, 1
        %v7101 = vrot.slane %v6781, 1
        %v7102 = vrot.slane %v6782, 1
        %v7103 = vrot.slane %v6783, 1
        %v7104 = vrot.slane %v6784, 1
        %v7105 = vrot.slane %v6785, 1
        %v7106 = vrot.slane %v6786, 1
        %v7107 = vrot.slane %v6787, 1
        %v7108 = vrot.slane %v6788, 1
        %v7109 = vrot.slane %v6789, 1
        %v7110 = vrot.slane %v6790, 1
        %v7111 = vrot.slane %v6791, 1
        %v7112 = vrot.slane %v6792, 1
        %v7113 = vrot.slane %v6793, 1
        %v7114 = vrot.slane %v6794, 1
        %v7115 = vrot.slane %v6795, 1
        %v7116 = vrot.slane %v6796, 1
        %v7117 = vrot.slane %v6797, 1
        %v7118 = vrot.slane %v6798, 1
        %v7119 = vrot.slane %v6799, 1
        %v7120 = vrot.slane %v6800, 1
        %v7121 = vrot.slane %v6801, 1
        %v7122 = vrot.slane %v6802, 1
        %v7123 = vrot.slane %v6803, 1
        %v7124 = vrot.slane %v6804, 1
        %v7125 = vrot.slane %v6805, 1
        %v7190 = vsel %vm2249, %v7062, 0.0
        %v7191 = vsel %vm2249, %v7063, 0.0
        %v7192 = vsel %vm2249, %v7064, 0.0
        %v7193 = vsel %vm2249, %v7065, 0.0
        %v7194 = vsel %vm2249, %v7066, 0.0
        %v7195 = vsel %vm2249, %v7067, 0.0
        %v7196 = vsel %vm2249, %v7068, 0.0
        %v7197 = vsel %vm2249, %v7069, 0.0
        %v7198 = vsel %vm2249, %v7070, 0.0
        %v7199 = vsel %vm2249, %v7071, 0.0
        %v7200 = vsel %vm2249, %v7072, 0.0
        %v7201 = vsel %vm2249, %v7073, 0.0
        %v7202 = vsel %vm2249, %v7074, 0.0
        %v7203 = vsel %vm2249, %v7075, 0.0
        %v7204 = vsel %vm2249, %v7076, 0.0
        %v7205 = vsel %vm2249, %v7077, 0.0
        %v7206 = vsel %vm2249, %v7078, 0.0
        %v7207 = vsel %vm2249, %v7079, 0.0
        %v7208 = vsel %vm2249, %v7080, 0.0
        %v7209 = vsel %vm2249, %v7081, 0.0
        %v7210 = vsel %vm2249, %v7082, 0.0
        %v7211 = vsel %vm2249, %v7083, 0.0
        %v7212 = vsel %vm2249, %v7084, 0.0
        %v7213 = vsel %vm2249, %v7085, 0.0
        %v7214 = vsel %vm2249, %v7086, 0.0
        %v7215 = vsel %vm2249, %v7087, 0.0
        %v7216 = vsel %vm2249, %v7088, 0.0
        %v7217 = vsel %vm2249, %v7089, 0.0
        %v7218 = vsel %vm2249, %v7090, 0.0
        %v7219 = vsel %vm2249, %v7091, 0.0
        %v7220 = vsel %vm2249, %v7092, 0.0
        %v7221 = vsel %vm2249, %v7093, 0.0
        %v7222 = vsel %vm2249, %v7094, 0.0
        %v7223 = vsel %vm2249, %v7095, 0.0
        %v7224 = vsel %vm2249, %v7096, 0.0
        %v7225 = vsel %vm2249, %v7097, 0.0
        %v7226 = vsel %vm2249, %v7098, 0.0
        %v7227 = vsel %vm2249, %v7099, 0.0
        %v7228 = vsel %vm2249, %v7100, 0.0
        %v7229 = vsel %vm2249, %v7101, 0.0
        %v7230 = vsel %vm2249, %v7102, 0.0
        %v7231 = vsel %vm2249, %v7103, 0.0
        %v7232 = vsel %vm2249, %v7104, 0.0
        %v7233 = vsel %vm2249, %v7105, 0.0
        %v7234 = vsel %vm2249, %v7106, 0.0
        %v7235 = vsel %vm2249, %v7107, 0.0
        %v7236 = vsel %vm2249, %v7108, 0.0
        %v7237 = vsel %vm2249, %v7109, 0.0
        %v7238 = vsel %vm2249, %v7110, 0.0
        %v7239 = vsel %vm2249, %v7111, 0.0
        %v7240 = vsel %vm2249, %v7112, 0.0
        %v7241 = vsel %vm2249, %v7113, 0.0
        %v7242 = vsel %vm2249, %v7114, 0.0
        %v7243 = vsel %vm2249, %v7115, 0.0
        %v7244 = vsel %vm2249, %v7116, 0.0
        %v7245 = vsel %vm2249, %v7117, 0.0
        %v7246 = vsel %vm2249, %v7118, 0.0
        %v7247 = vsel %vm2249, %v7119, 0.0
        %v7248 = vsel %vm2249, %v7120, 0.0
        %v7249 = vsel %vm2249, %v7121, 0.0
        %v7250 = vsel %vm2249, %v7122, 0.0
        %v7251 = vsel %vm2249, %v7123, 0.0
        %v7252 = vsel %vm2249, %v7124, 0.0
        %v7253 = vsel %vm2249, %v7125, 0.0
        %v7254 = vpack.c.bf16 %v6998, %v6998
        %v7255 = vpack.c.bf16 %v6999, %v6999
        %v7256 = vpack.c.bf16 %v7000, %v7000
        %v7257 = vpack.c.bf16 %v7001, %v7001
        %v7258 = vpack.c.bf16 %v7002, %v7002
        %v7259 = vpack.c.bf16 %v7003, %v7003
        %v7260 = vpack.c.bf16 %v7004, %v7004
        %v7261 = vpack.c.bf16 %v7005, %v7005
        %v7262 = vpack.c.bf16 %v7006, %v7006
        %v7263 = vpack.c.bf16 %v7007, %v7007
        %v7264 = vpack.c.bf16 %v7008, %v7008
        %v7265 = vpack.c.bf16 %v7009, %v7009
        %v7266 = vpack.c.bf16 %v7010, %v7010
        %v7267 = vpack.c.bf16 %v7011, %v7011
        %v7268 = vpack.c.bf16 %v7012, %v7012
        %v7269 = vpack.c.bf16 %v7013, %v7013
        %v7270 = vpack.c.bf16 %v7014, %v7014
        %v7271 = vpack.c.bf16 %v7015, %v7015
        %v7272 = vpack.c.bf16 %v7016, %v7016
        %v7273 = vpack.c.bf16 %v7017, %v7017
        %v7274 = vpack.c.bf16 %v7018, %v7018
        %v7275 = vpack.c.bf16 %v7019, %v7019
        %v7276 = vpack.c.bf16 %v7020, %v7020
        %v7277 = vpack.c.bf16 %v7021, %v7021
        %v7278 = vpack.c.bf16 %v7022, %v7022
        %v7279 = vpack.c.bf16 %v7023, %v7023
        %v7280 = vpack.c.bf16 %v7024, %v7024
        %v7281 = vpack.c.bf16 %v7025, %v7025
        %v7282 = vpack.c.bf16 %v7026, %v7026
        %v7283 = vpack.c.bf16 %v7027, %v7027
        %v7284 = vpack.c.bf16 %v7028, %v7028
        %v7285 = vpack.c.bf16 %v7029, %v7029
        %v7286 = vpack.c.bf16 %v7030, %v7030
        %v7287 = vpack.c.bf16 %v7031, %v7031
        %v7288 = vpack.c.bf16 %v7032, %v7032
        %v7289 = vpack.c.bf16 %v7033, %v7033
        %v7290 = vpack.c.bf16 %v7034, %v7034
        %v7291 = vpack.c.bf16 %v7035, %v7035
        %v7292 = vpack.c.bf16 %v7036, %v7036
        %v7293 = vpack.c.bf16 %v7037, %v7037
        %v7294 = vpack.c.bf16 %v7038, %v7038
        %v7295 = vpack.c.bf16 %v7039, %v7039
        %v7296 = vpack.c.bf16 %v7040, %v7040
        %v7297 = vpack.c.bf16 %v7041, %v7041
        %v7298 = vpack.c.bf16 %v7042, %v7042
        %v7299 = vpack.c.bf16 %v7043, %v7043
        %v7300 = vpack.c.bf16 %v7044, %v7044
        %v7301 = vpack.c.bf16 %v7045, %v7045
        %v7302 = vpack.c.bf16 %v7046, %v7046
        %v7303 = vpack.c.bf16 %v7047, %v7047
        %v7304 = vpack.c.bf16 %v7048, %v7048
        %v7305 = vpack.c.bf16 %v7049, %v7049
        %v7306 = vpack.c.bf16 %v7050, %v7050
        %v7307 = vpack.c.bf16 %v7051, %v7051
        %v7308 = vpack.c.bf16 %v7052, %v7052
        %v7309 = vpack.c.bf16 %v7053, %v7053
        %v7310 = vpack.c.bf16 %v7054, %v7054
        %v7311 = vpack.c.bf16 %v7055, %v7055
        %v7312 = vpack.c.bf16 %v7056, %v7056
        %v7313 = vpack.c.bf16 %v7057, %v7057
        %v7314 = vpack.c.bf16 %v7058, %v7058
        %v7315 = vpack.c.bf16 %v7059, %v7059
        %v7316 = vpack.c.bf16 %v7060, %v7060
        %v7317 = vpack.c.bf16 %v7061, %v7061
        %v7318 = vpack.c.bf16 %v7190, %v7190
        %v7319 = vpack.c.bf16 %v7191, %v7191
        %v7320 = vpack.c.bf16 %v7192, %v7192
        %v7321 = vpack.c.bf16 %v7193, %v7193
        %v7322 = vpack.c.bf16 %v7194, %v7194
        %v7323 = vpack.c.bf16 %v7195, %v7195
        %v7324 = vpack.c.bf16 %v7196, %v7196
        %v7325 = vpack.c.bf16 %v7197, %v7197
        %v7326 = vpack.c.bf16 %v7198, %v7198
        %v7327 = vpack.c.bf16 %v7199, %v7199
        %v7328 = vpack.c.bf16 %v7200, %v7200
        %v7329 = vpack.c.bf16 %v7201, %v7201
        %v7330 = vpack.c.bf16 %v7202, %v7202
        %v7331 = vpack.c.bf16 %v7203, %v7203
        %v7332 = vpack.c.bf16 %v7204, %v7204
        %v7333 = vpack.c.bf16 %v7205, %v7205
        %v7334 = vpack.c.bf16 %v7206, %v7206
        %v7335 = vpack.c.bf16 %v7207, %v7207
        %v7336 = vpack.c.bf16 %v7208, %v7208
        %v7337 = vpack.c.bf16 %v7209, %v7209
        %v7338 = vpack.c.bf16 %v7210, %v7210
        %v7339 = vpack.c.bf16 %v7211, %v7211
        %v7340 = vpack.c.bf16 %v7212, %v7212
        %v7341 = vpack.c.bf16 %v7213, %v7213
        %v7342 = vpack.c.bf16 %v7214, %v7214
        %v7343 = vpack.c.bf16 %v7215, %v7215
        %v7344 = vpack.c.bf16 %v7216, %v7216
        %v7345 = vpack.c.bf16 %v7217, %v7217
        %v7346 = vpack.c.bf16 %v7218, %v7218
        %v7347 = vpack.c.bf16 %v7219, %v7219
        %v7348 = vpack.c.bf16 %v7220, %v7220
        %v7349 = vpack.c.bf16 %v7221, %v7221
        %v7350 = vpack.c.bf16 %v7222, %v7222
        %v7351 = vpack.c.bf16 %v7223, %v7223
        %v7352 = vpack.c.bf16 %v7224, %v7224
        %v7353 = vpack.c.bf16 %v7225, %v7225
        %v7354 = vpack.c.bf16 %v7226, %v7226
        %v7355 = vpack.c.bf16 %v7227, %v7227
        %v7356 = vpack.c.bf16 %v7228, %v7228
        %v7357 = vpack.c.bf16 %v7229, %v7229
        %v7358 = vpack.c.bf16 %v7230, %v7230
        %v7359 = vpack.c.bf16 %v7231, %v7231
        %v7360 = vpack.c.bf16 %v7232, %v7232
        %v7361 = vpack.c.bf16 %v7233, %v7233
        %v7362 = vpack.c.bf16 %v7234, %v7234
        %v7363 = vpack.c.bf16 %v7235, %v7235
        %v7364 = vpack.c.bf16 %v7236, %v7236
        %v7365 = vpack.c.bf16 %v7237, %v7237
        %v7366 = vpack.c.bf16 %v7238, %v7238
        %v7367 = vpack.c.bf16 %v7239, %v7239
        %v7368 = vpack.c.bf16 %v7240, %v7240
        %v7369 = vpack.c.bf16 %v7241, %v7241
        %v7370 = vpack.c.bf16 %v7242, %v7242
        %v7371 = vpack.c.bf16 %v7243, %v7243
        %v7372 = vpack.c.bf16 %v7244, %v7244
        %v7373 = vpack.c.bf16 %v7245, %v7245
        %v7374 = vpack.c.bf16 %v7246, %v7246
        %v7375 = vpack.c.bf16 %v7247, %v7247
        %v7376 = vpack.c.bf16 %v7248, %v7248
        %v7377 = vpack.c.bf16 %v7249, %v7249
        %v7378 = vpack.c.bf16 %v7250, %v7250
        %v7379 = vpack.c.bf16 %v7251, %v7251
        %v7380 = vpack.c.bf16 %v7252, %v7252
        %v7381 = vpack.c.bf16 %v7253, %v7253
        %s7382 = scalar_lea.vmem [#allocation15], 384
        %v7383 = vld [vmem:[%s7382] sm:$0xf]
        %v7384 = vld [vmem:[%s7382 + $0x4] sm:$0xf]
        %v7385 = vld [vmem:[%s7382 + $0x8] sm:$0xf]
        %v7386 = vld [vmem:[%s7382 + $0xc] sm:$0xf]
        %v7387 = vld [vmem:[%s7382 + $0x10] sm:$0xf]
        %v7388 = vld [vmem:[%s7382 + $0x14] sm:$0xf]
        %v7389 = vld [vmem:[%s7382 + $0x18] sm:$0xf]
        %v7390 = vld [vmem:[%s7382 + $0x1c] sm:$0xf]
        %v7391 = vld [vmem:[%s7382 + $0x20] sm:$0xf]
        %v7392 = vld [vmem:[%s7382 + $0x24] sm:$0xf]
        %v7393 = vld [vmem:[%s7382 + $0x28] sm:$0xf]
        %v7394 = vld [vmem:[%s7382 + $0x2c] sm:$0xf]
        %v7395 = vld [vmem:[%s7382 + $0x30] sm:$0xf]
        %v7396 = vld [vmem:[%s7382 + $0x34] sm:$0xf]
        %v7397 = vld [vmem:[%s7382 + $0x38] sm:$0xf]
        %v7398 = vld [vmem:[%s7382 + $0x3c] sm:$0xf]
        %v7463 = vunpack.c.l.b16 %v7254
        %v7464 = vunpack.c.l.b16 %v7255
        %v7465 = vunpack.c.l.b16 %v7256
        %v7466 = vunpack.c.l.b16 %v7257
        %v7467 = vunpack.c.l.b16 %v7258
        %v7468 = vunpack.c.l.b16 %v7259
        %v7469 = vunpack.c.l.b16 %v7260
        %v7470 = vunpack.c.l.b16 %v7261
        %v7471 = vunpack.c.l.b16 %v7262
        %v7472 = vunpack.c.l.b16 %v7263
        %v7473 = vunpack.c.l.b16 %v7264
        %v7474 = vunpack.c.l.b16 %v7265
        %v7475 = vunpack.c.l.b16 %v7266
        %v7476 = vunpack.c.l.b16 %v7267
        %v7477 = vunpack.c.l.b16 %v7268
        %v7478 = vunpack.c.l.b16 %v7269
        %v7479 = vunpack.c.l.b16 %v7270
        %v7480 = vunpack.c.l.b16 %v7271
        %v7481 = vunpack.c.l.b16 %v7272
        %v7482 = vunpack.c.l.b16 %v7273
        %v7483 = vunpack.c.l.b16 %v7274
        %v7484 = vunpack.c.l.b16 %v7275
        %v7485 = vunpack.c.l.b16 %v7276
        %v7486 = vunpack.c.l.b16 %v7277
        %v7487 = vunpack.c.l.b16 %v7278
        %v7488 = vunpack.c.l.b16 %v7279
        %v7489 = vunpack.c.l.b16 %v7280
        %v7490 = vunpack.c.l.b16 %v7281
        %v7491 = vunpack.c.l.b16 %v7282
        %v7492 = vunpack.c.l.b16 %v7283
        %v7493 = vunpack.c.l.b16 %v7284
        %v7494 = vunpack.c.l.b16 %v7285
        %v7495 = vunpack.c.l.b16 %v7286
        %v7496 = vunpack.c.l.b16 %v7287
        %v7497 = vunpack.c.l.b16 %v7288
        %v7498 = vunpack.c.l.b16 %v7289
        %v7499 = vunpack.c.l.b16 %v7290
        %v7500 = vunpack.c.l.b16 %v7291
        %v7501 = vunpack.c.l.b16 %v7292
        %v7502 = vunpack.c.l.b16 %v7293
        %v7503 = vunpack.c.l.b16 %v7294
        %v7504 = vunpack.c.l.b16 %v7295
        %v7505 = vunpack.c.l.b16 %v7296
        %v7506 = vunpack.c.l.b16 %v7297
        %v7507 = vunpack.c.l.b16 %v7298
        %v7508 = vunpack.c.l.b16 %v7299
        %v7509 = vunpack.c.l.b16 %v7300
        %v7510 = vunpack.c.l.b16 %v7301
        %v7511 = vunpack.c.l.b16 %v7302
        %v7512 = vunpack.c.l.b16 %v7303
        %v7513 = vunpack.c.l.b16 %v7304
        %v7514 = vunpack.c.l.b16 %v7305
        %v7515 = vunpack.c.l.b16 %v7306
        %v7516 = vunpack.c.l.b16 %v7307
        %v7517 = vunpack.c.l.b16 %v7308
        %v7518 = vunpack.c.l.b16 %v7309
        %v7519 = vunpack.c.l.b16 %v7310
        %v7520 = vunpack.c.l.b16 %v7311
        %v7521 = vunpack.c.l.b16 %v7312
        %v7522 = vunpack.c.l.b16 %v7313
        %v7523 = vunpack.c.l.b16 %v7314
        %v7524 = vunpack.c.l.b16 %v7315
        %v7525 = vunpack.c.l.b16 %v7316
        %v7526 = vunpack.c.l.b16 %v7317
        %v7527 = vpack.c.b16 %v7464, %v7463
        %v7528 = vpack.c.b16 %v7466, %v7465
        %v7529 = vpack.c.b16 %v7468, %v7467
        %v7530 = vpack.c.b16 %v7470, %v7469
        %v7531 = vpack.c.b16 %v7472, %v7471
        %v7532 = vpack.c.b16 %v7474, %v7473
        %v7533 = vpack.c.b16 %v7476, %v7475
        %v7534 = vpack.c.b16 %v7478, %v7477
        %v7535 = vpack.c.b16 %v7480, %v7479
        %v7536 = vpack.c.b16 %v7482, %v7481
        %v7537 = vpack.c.b16 %v7484, %v7483
        %v7538 = vpack.c.b16 %v7486, %v7485
        %v7539 = vpack.c.b16 %v7488, %v7487
        %v7540 = vpack.c.b16 %v7490, %v7489
        %v7541 = vpack.c.b16 %v7492, %v7491
        %v7542 = vpack.c.b16 %v7494, %v7493
        %v7543 = vpack.c.b16 %v7496, %v7495
        %v7544 = vpack.c.b16 %v7498, %v7497
        %v7545 = vpack.c.b16 %v7500, %v7499
        %v7546 = vpack.c.b16 %v7502, %v7501
        %v7547 = vpack.c.b16 %v7504, %v7503
        %v7548 = vpack.c.b16 %v7506, %v7505
        %v7549 = vpack.c.b16 %v7508, %v7507
        %v7550 = vpack.c.b16 %v7510, %v7509
        %v7551 = vpack.c.b16 %v7512, %v7511
        %v7552 = vpack.c.b16 %v7514, %v7513
        %v7553 = vpack.c.b16 %v7516, %v7515
        %v7554 = vpack.c.b16 %v7518, %v7517
        %v7555 = vpack.c.b16 %v7520, %v7519
        %v7556 = vpack.c.b16 %v7522, %v7521
        %v7557 = vpack.c.b16 %v7524, %v7523
        %v7558 = vpack.c.b16 %v7526, %v7525
        %v7607 = vunpack.c.l.b16 %v7383
        %v7608 = vunpack.c.l.b16 %v7384
        %v7609 = vunpack.c.l.b16 %v7385
        %v7610 = vunpack.c.l.b16 %v7386
        %v7611 = vunpack.c.l.b16 %v7387
        %v7612 = vunpack.c.l.b16 %v7388
        %v7613 = vunpack.c.l.b16 %v7389
        %v7614 = vunpack.c.l.b16 %v7390
        %v7615 = vunpack.c.l.b16 %v7391
        %v7616 = vunpack.c.l.b16 %v7392
        %v7617 = vunpack.c.l.b16 %v7393
        %v7618 = vunpack.c.l.b16 %v7394
        %v7619 = vunpack.c.l.b16 %v7395
        %v7620 = vunpack.c.l.b16 %v7396
        %v7621 = vunpack.c.l.b16 %v7397
        %v7622 = vunpack.c.l.b16 %v7398
        %v7623 = vpack.c.b16 %v7608, %v7607
        %v7624 = vpack.c.b16 %v7610, %v7609
        %v7625 = vpack.c.b16 %v7612, %v7611
        %v7626 = vpack.c.b16 %v7614, %v7613
        %v7627 = vpack.c.b16 %v7616, %v7615
        %v7628 = vpack.c.b16 %v7618, %v7617
        %v7629 = vpack.c.b16 %v7620, %v7619
        %v7630 = vpack.c.b16 %v7622, %v7621
        %7639 = vmatprep.subr.bf16.mxu0 0
        %7640 = vmatpush1.bf16.msra.mxu0 %v7623
        %7641 = vmatprep.subr.bf16.mxu0 0
        %7642 = vmatpush1.bf16.msra.mxu0 %v7624
        %7643 = vmatprep.subr.bf16.mxu0 0
        %7644 = vmatpush1.bf16.msra.mxu0 %v7625
        %7645 = vmatprep.subr.bf16.mxu0 0
        %7646 = vmatpush1.bf16.msra.mxu0 %v7626
        %7647 = vmatprep.subr.bf16.mxu0 0
        %7648 = vmatpush1.bf16.msra.mxu0 %v7627
        %7649 = vmatprep.subr.bf16.mxu0 0
        %7650 = vmatpush1.bf16.msra.mxu0 %v7628
        %7651 = vmatprep.subr.bf16.mxu0 0
        %7652 = vmatpush1.bf16.msra.mxu0 %v7629
        %7653 = vmatprep.subr.bf16.mxu0 0
        %7654 = vmatpush1.bf16.msra.mxu0 %v7630
        %7655 = vmatprep.subr.bf16.mxu0 0
        %7656 = vmatpush1.bf16.msra.mxu0 0
        %7657 = vmatprep.subr.bf16.mxu0 0
        %7658 = vmatpush1.bf16.msra.mxu0 0
        %7659 = vmatprep.subr.bf16.mxu0 0
        %7660 = vmatpush1.bf16.msra.mxu0 0
        %7661 = vmatprep.subr.bf16.mxu0 0
        %7662 = vmatpush1.bf16.msra.mxu0 0
        %7663 = vmatprep.subr.bf16.mxu0 0
        %7664 = vmatpush1.bf16.msra.mxu0 0
        %7665 = vmatprep.subr.bf16.mxu0 0
        %7666 = vmatpush1.bf16.msra.mxu0 0
        %7667 = vmatprep.subr.bf16.mxu0 0
        %7668 = vmatpush1.bf16.msra.mxu0 0
        %7669 = vmatprep.subr.bf16.mxu0 0
        %7670 = vmatpush1.bf16.msra.mxu0 0
        %7671 = vmatprep.mubr.bf16.mxu0 0
        %7672 = vmatmul.mubr.bf16.gmra.mrb[0].mxu0 %v7527
        %v7673 = vpop.f32.mrb[0].mxu0
        %v7674 = vadd.f32 0.0, %v7673
        %v7675 = vpop.f32.mrb[0].mxu0
        %v7676 = vpop.f32.mrb[0].mxu0
        %v7677 = vadd.f32 0.0, %v7676
        %v7678 = vpop.f32.mrb[0].mxu0
        %7679 = vmatprep.mubr.bf16.mxu0 0
        %7680 = vmatmul.mubr.bf16.gmra.mrb[0].mxu0 %v7528
        %v7681 = vpop.f32.mrb[0].mxu0
        %v7682 = vadd.f32 0.0, %v7681
        %v7683 = vpop.f32.mrb[0].mxu0
        %v7684 = vpop.f32.mrb[0].mxu0
        %v7685 = vadd.f32 0.0, %v7684
        %v7686 = vpop.f32.mrb[0].mxu0
        %7687 = vmatprep.mubr.bf16.mxu0 0
        %7688 = vmatmul.mubr.bf16.gmra.mrb[0].mxu0 %v7529
        %v7689 = vpop.f32.mrb[0].mxu0
        %v7690 = vadd.f32 0.0, %v7689
        %v7691 = vpop.f32.mrb[0].mxu0
        %v7692 = vpop.f32.mrb[0].mxu0
        %v7693 = vadd.f32 0.0, %v7692
        %v7694 = vpop.f32.mrb[0].mxu0
        %7695 = vmatprep.mubr.bf16.mxu0 0
        %7696 = vmatmul.mubr.bf16.gmra.mrb[0].mxu0 %v7530
        %v7697 = vpop.f32.mrb[0].mxu0
        %v7698 = vadd.f32 0.0, %v7697
        %v7699 = vpop.f32.mrb[0].mxu0
        %v7700 = vpop.f32.mrb[0].mxu0
        %v7701 = vadd.f32 0.0, %v7700
        %v7702 = vpop.f32.mrb[0].mxu0
        %7703 = vmatprep.mubr.bf16.mxu0 0
        %7704 = vmatmul.mubr.bf16.gmra.mrb[0].mxu0 %v7531
        %v7705 = vpop.f32.mrb[0].mxu0
        %v7706 = vadd.f32 0.0, %v7705
        %v7707 = vpop.f32.mrb[0].mxu0
        %v7708 = vpop.f32.mrb[0].mxu0
        %v7709 = vadd.f32 0.0, %v7708
        %v7710 = vpop.f32.mrb[0].mxu0
        %7711 = vmatprep.mubr.bf16.mxu0 0
        %7712 = vmatmul.mubr.bf16.gmra.mrb[0].mxu0 %v7532
        %v7713 = vpop.f32.mrb[0].mxu0
        %v7714 = vadd.f32 0.0, %v7713
        %v7715 = vpop.f32.mrb[0].mxu0
        %v7716 = vpop.f32.mrb[0].mxu0
        %v7717 = vadd.f32 0.0, %v7716
        %v7718 = vpop.f32.mrb[0].mxu0
        %7719 = vmatprep.mubr.bf16.mxu0 0
        %7720 = vmatmul.mubr.bf16.gmra.mrb[0].mxu0 %v7533
        %v7721 = vpop.f32.mrb[0].mxu0
        %v7722 = vadd.f32 0.0, %v7721
        %v7723 = vpop.f32.mrb[0].mxu0
        %v7724 = vpop.f32.mrb[0].mxu0
        %v7725 = vadd.f32 0.0, %v7724
        %v7726 = vpop.f32.mrb[0].mxu0
        %7727 = vmatprep.mubr.bf16.mxu0 0
        %7728 = vmatmul.mubr.bf16.gmra.mrb[0].mxu0 %v7534
        %v7729 = vpop.f32.mrb[0].mxu0
        %v7730 = vadd.f32 0.0, %v7729
        %v7731 = vpop.f32.mrb[0].mxu0
        %v7732 = vpop.f32.mrb[0].mxu0
        %v7733 = vadd.f32 0.0, %v7732
        %v7734 = vpop.f32.mrb[0].mxu0
        %7735 = vmatprep.mubr.bf16.mxu0 0
        %7736 = vmatmul.mubr.bf16.gmra.mrb[0].mxu0 %v7535
        %v7737 = vpop.f32.mrb[0].mxu0
        %v7738 = vadd.f32 0.0, %v7737
        %v7739 = vpop.f32.mrb[0].mxu0
        %v7740 = vpop.f32.mrb[0].mxu0
        %v7741 = vadd.f32 0.0, %v7740
        %v7742 = vpop.f32.mrb[0].mxu0
        %7743 = vmatprep.mubr.bf16.mxu0 0
        %7744 = vmatmul.mubr.bf16.gmra.mrb[0].mxu0 %v7536
        %v7745 = vpop.f32.mrb[0].mxu0
        %v7746 = vadd.f32 0.0, %v7745
        %v7747 = vpop.f32.mrb[0].mxu0
        %v7748 = vpop.f32.mrb[0].mxu0
        %v7749 = vadd.f32 0.0, %v7748
        %v7750 = vpop.f32.mrb[0].mxu0
        %7751 = vmatprep.mubr.bf16.mxu0 0
        %7752 = vmatmul.mubr.bf16.gmra.mrb[0].mxu0 %v7537
        %v7753 = vpop.f32.mrb[0].mxu0
        %v7754 = vadd.f32 0.0, %v7753
        %v7755 = vpop.f32.mrb[0].mxu0
        %v7756 = vpop.f32.mrb[0].mxu0
        %v7757 = vadd.f32 0.0, %v7756
        %v7758 = vpop.f32.mrb[0].mxu0
        %7759 = vmatprep.mubr.bf16.mxu0 0
        %7760 = vmatmul.mubr.bf16.gmra.mrb[0].mxu0 %v7538
        %v7761 = vpop.f32.mrb[0].mxu0
        %v7762 = vadd.f32 0.0, %v7761
        %v7763 = vpop.f32.mrb[0].mxu0
        %v7764 = vpop.f32.mrb[0].mxu0
        %v7765 = vadd.f32 0.0, %v7764
        %v7766 = vpop.f32.mrb[0].mxu0
        %7767 = vmatprep.mubr.bf16.mxu0 0
        %7768 = vmatmul.mubr.bf16.gmra.mrb[0].mxu0 %v7539
        %v7769 = vpop.f32.mrb[0].mxu0
        %v7770 = vadd.f32 0.0, %v7769
        %v7771 = vpop.f32.mrb[0].mxu0
        %v7772 = vpop.f32.mrb[0].mxu0
        %v7773 = vadd.f32 0.0, %v7772
        %v7774 = vpop.f32.mrb[0].mxu0
        %7775 = vmatprep.mubr.bf16.mxu0 0
        %7776 = vmatmul.mubr.bf16.gmra.mrb[0].mxu0 %v7540
        %v7777 = vpop.f32.mrb[0].mxu0
        %v7778 = vadd.f32 0.0, %v7777
        %v7779 = vpop.f32.mrb[0].mxu0
        %v7780 = vpop.f32.mrb[0].mxu0
        %v7781 = vadd.f32 0.0, %v7780
        %v7782 = vpop.f32.mrb[0].mxu0
        %7783 = vmatprep.mubr.bf16.mxu0 0
        %7784 = vmatmul.mubr.bf16.gmra.mrb[0].mxu0 %v7541
        %v7785 = vpop.f32.mrb[0].mxu0
        %v7786 = vadd.f32 0.0, %v7785
        %v7787 = vpop.f32.mrb[0].mxu0
        %v7788 = vpop.f32.mrb[0].mxu0
        %v7789 = vadd.f32 0.0, %v7788
        %v7790 = vpop.f32.mrb[0].mxu0
        %7791 = vmatprep.mubr.bf16.mxu0 0
        %7792 = vmatmul.mubr.bf16.gmra.mrb[0].mxu0 %v7542
        %v7793 = vpop.f32.mrb[0].mxu0
        %v7794 = vadd.f32 0.0, %v7793
        %v7795 = vpop.f32.mrb[0].mxu0
        %v7796 = vpop.f32.mrb[0].mxu0
        %v7797 = vadd.f32 0.0, %v7796
        %v7798 = vpop.f32.mrb[0].mxu0
        %7799 = vmatprep.mubr.bf16.mxu0 0
        %7800 = vmatmul.mubr.bf16.gmra.mrb[0].mxu0 %v7543
        %v7801 = vpop.f32.mrb[0].mxu0
        %v7802 = vadd.f32 0.0, %v7801
        %v7803 = vpop.f32.mrb[0].mxu0
        %v7804 = vpop.f32.mrb[0].mxu0
        %v7805 = vadd.f32 0.0, %v7804
        %v7806 = vpop.f32.mrb[0].mxu0
        %7807 = vmatprep.mubr.bf16.mxu0 0
        %7808 = vmatmul.mubr.bf16.gmra.mrb[0].mxu0 %v7544
        %v7809 = vpop.f32.mrb[0].mxu0
        %v7810 = vadd.f32 0.0, %v7809
        %v7811 = vpop.f32.mrb[0].mxu0
        %v7812 = vpop.f32.mrb[0].mxu0
        %v7813 = vadd.f32 0.0, %v7812
        %v7814 = vpop.f32.mrb[0].mxu0
        %7815 = vmatprep.mubr.bf16.mxu0 0
        %7816 = vmatmul.mubr.bf16.gmra.mrb[0].mxu0 %v7545
        %v7817 = vpop.f32.mrb[0].mxu0
        %v7818 = vadd.f32 0.0, %v7817
        %v7819 = vpop.f32.mrb[0].mxu0
        %v7820 = vpop.f32.mrb[0].mxu0
        %v7821 = vadd.f32 0.0, %v7820
        %v7822 = vpop.f32.mrb[0].mxu0
        %7823 = vmatprep.mubr.bf16.mxu0 0
        %7824 = vmatmul.mubr.bf16.gmra.mrb[0].mxu0 %v7546
        %v7825 = vpop.f32.mrb[0].mxu0
        %v7826 = vadd.f32 0.0, %v7825
        %v7827 = vpop.f32.mrb[0].mxu0
        %v7828 = vpop.f32.mrb[0].mxu0
        %v7829 = vadd.f32 0.0, %v7828
        %v7830 = vpop.f32.mrb[0].mxu0
        %7831 = vmatprep.mubr.bf16.mxu0 0
        %7832 = vmatmul.mubr.bf16.gmra.mrb[0].mxu0 %v7547
        %v7833 = vpop.f32.mrb[0].mxu0
        %v7834 = vadd.f32 0.0, %v7833
        %v7835 = vpop.f32.mrb[0].mxu0
        %v7836 = vpop.f32.mrb[0].mxu0
        %v7837 = vadd.f32 0.0, %v7836
        %v7838 = vpop.f32.mrb[0].mxu0
        %7839 = vmatprep.mubr.bf16.mxu0 0
        %7840 = vmatmul.mubr.bf16.gmra.mrb[0].mxu0 %v7548
        %v7841 = vpop.f32.mrb[0].mxu0
        %v7842 = vadd.f32 0.0, %v7841
        %v7843 = vpop.f32.mrb[0].mxu0
        %v7844 = vpop.f32.mrb[0].mxu0
        %v7845 = vadd.f32 0.0, %v7844
        %v7846 = vpop.f32.mrb[0].mxu0
        %7847 = vmatprep.mubr.bf16.mxu0 0
        %7848 = vmatmul.mubr.bf16.gmra.mrb[0].mxu0 %v7549
        %v7849 = vpop.f32.mrb[0].mxu0
        %v7850 = vadd.f32 0.0, %v7849
        %v7851 = vpop.f32.mrb[0].mxu0
        %v7852 = vpop.f32.mrb[0].mxu0
        %v7853 = vadd.f32 0.0, %v7852
        %v7854 = vpop.f32.mrb[0].mxu0
        %7855 = vmatprep.mubr.bf16.mxu0 0
        %7856 = vmatmul.mubr.bf16.gmra.mrb[0].mxu0 %v7550
        %v7857 = vpop.f32.mrb[0].mxu0
        %v7858 = vadd.f32 0.0, %v7857
        %v7859 = vpop.f32.mrb[0].mxu0
        %v7860 = vpop.f32.mrb[0].mxu0
        %v7861 = vadd.f32 0.0, %v7860
        %v7862 = vpop.f32.mrb[0].mxu0
        %7863 = vmatprep.mubr.bf16.mxu0 0
        %7864 = vmatmul.mubr.bf16.gmra.mrb[0].mxu0 %v7551
        %v7865 = vpop.f32.mrb[0].mxu0
        %v7866 = vadd.f32 0.0, %v7865
        %v7867 = vpop.f32.mrb[0].mxu0
        %v7868 = vpop.f32.mrb[0].mxu0
        %v7869 = vadd.f32 0.0, %v7868
        %v7870 = vpop.f32.mrb[0].mxu0
        %7871 = vmatprep.mubr.bf16.mxu0 0
        %7872 = vmatmul.mubr.bf16.gmra.mrb[0].mxu0 %v7552
        %v7873 = vpop.f32.mrb[0].mxu0
        %v7874 = vadd.f32 0.0, %v7873
        %v7875 = vpop.f32.mrb[0].mxu0
        %v7876 = vpop.f32.mrb[0].mxu0
        %v7877 = vadd.f32 0.0, %v7876
        %v7878 = vpop.f32.mrb[0].mxu0
        %7879 = vmatprep.mubr.bf16.mxu0 0
        %7880 = vmatmul.mubr.bf16.gmra.mrb[0].mxu0 %v7553
        %v7881 = vpop.f32.mrb[0].mxu0
        %v7882 = vadd.f32 0.0, %v7881
        %v7883 = vpop.f32.mrb[0].mxu0
        %v7884 = vpop.f32.mrb[0].mxu0
        %v7885 = vadd.f32 0.0, %v7884
        %v7886 = vpop.f32.mrb[0].mxu0
        %7887 = vmatprep.mubr.bf16.mxu0 0
        %7888 = vmatmul.mubr.bf16.gmra.mrb[0].mxu0 %v7554
        %v7889 = vpop.f32.mrb[0].mxu0
        %v7890 = vadd.f32 0.0, %v7889
        %v7891 = vpop.f32.mrb[0].mxu0
        %v7892 = vpop.f32.mrb[0].mxu0
        %v7893 = vadd.f32 0.0, %v7892
        %v7894 = vpop.f32.mrb[0].mxu0
        %7895 = vmatprep.mubr.bf16.mxu0 0
        %7896 = vmatmul.mubr.bf16.gmra.mrb[0].mxu0 %v7555
        %v7897 = vpop.f32.mrb[0].mxu0
        %v7898 = vadd.f32 0.0, %v7897
        %v7899 = vpop.f32.mrb[0].mxu0
        %v7900 = vpop.f32.mrb[0].mxu0
        %v7901 = vadd.f32 0.0, %v7900
        %v7902 = vpop.f32.mrb[0].mxu0
        %7903 = vmatprep.mubr.bf16.mxu0 0
        %7904 = vmatmul.mubr.bf16.gmra.mrb[0].mxu0 %v7556
        %v7905 = vpop.f32.mrb[0].mxu0
        %v7906 = vadd.f32 0.0, %v7905
        %v7907 = vpop.f32.mrb[0].mxu0
        %v7908 = vpop.f32.mrb[0].mxu0
        %v7909 = vadd.f32 0.0, %v7908
        %v7910 = vpop.f32.mrb[0].mxu0
        %7911 = vmatprep.mubr.bf16.mxu0 0
        %7912 = vmatmul.mubr.bf16.gmra.mrb[0].mxu0 %v7557
        %v7913 = vpop.f32.mrb[0].mxu0
        %v7914 = vadd.f32 0.0, %v7913
        %v7915 = vpop.f32.mrb[0].mxu0
        %v7916 = vpop.f32.mrb[0].mxu0
        %v7917 = vadd.f32 0.0, %v7916
        %v7918 = vpop.f32.mrb[0].mxu0
        %7919 = vmatprep.mubr.bf16.mxu0 0
        %7920 = vmatmul.mubr.bf16.gmra.mrb[0].mxu0 %v7558
        %v7921 = vpop.f32.mrb[0].mxu0
        %v7922 = vadd.f32 0.0, %v7921
        %v7923 = vpop.f32.mrb[0].mxu0
        %v7924 = vpop.f32.mrb[0].mxu0
        %v7925 = vadd.f32 0.0, %v7924
        %v7926 = vpop.f32.mrb[0].mxu0
        %7927 = vdwg.mxu0
        %v7928 = vadd.f32 %v6613, %v7674
        %v7929 = vadd.f32 %v6614, %v7677
        %v7930 = vadd.f32 %v6615, %v7682
        %v7931 = vadd.f32 %v6616, %v7685
        %v7932 = vadd.f32 %v6617, %v7690
        %v7933 = vadd.f32 %v6618, %v7693
        %v7934 = vadd.f32 %v6619, %v7698
        %v7935 = vadd.f32 %v6620, %v7701
        %v7936 = vadd.f32 %v6621, %v7706
        %v7937 = vadd.f32 %v6622, %v7709
        %v7938 = vadd.f32 %v6623, %v7714
        %v7939 = vadd.f32 %v6624, %v7717
        %v7940 = vadd.f32 %v6625, %v7722
        %v7941 = vadd.f32 %v6626, %v7725
        %v7942 = vadd.f32 %v6627, %v7730
        %v7943 = vadd.f32 %v6628, %v7733
        %v7944 = vadd.f32 %v6629, %v7738
        %v7945 = vadd.f32 %v6630, %v7741
        %v7946 = vadd.f32 %v6631, %v7746
        %v7947 = vadd.f32 %v6632, %v7749
        %v7948 = vadd.f32 %v6633, %v7754
        %v7949 = vadd.f32 %v6634, %v7757
        %v7950 = vadd.f32 %v6635, %v7762
        %v7951 = vadd.f32 %v6636, %v7765
        %v7952 = vadd.f32 %v6637, %v7770
        %v7953 = vadd.f32 %v6638, %v7773
        %v7954 = vadd.f32 %v6639, %v7778
        %v7955 = vadd.f32 %v6640, %v7781
        %v7956 = vadd.f32 %v6641, %v7786
        %v7957 = vadd.f32 %v6642, %v7789
        %v7958 = vadd.f32 %v6643, %v7794
        %v7959 = vadd.f32 %v6644, %v7797
        %v7960 = vadd.f32 %v6645, %v7802
        %v7961 = vadd.f32 %v6646, %v7805
        %v7962 = vadd.f32 %v6647, %v7810
        %v7963 = vadd.f32 %v6648, %v7813
        %v7964 = vadd.f32 %v6649, %v7818
        %v7965 = vadd.f32 %v6650, %v7821
        %v7966 = vadd.f32 %v6651, %v7826
        %v7967 = vadd.f32 %v6652, %v7829
        %v7968 = vadd.f32 %v6653, %v7834
        %v7969 = vadd.f32 %v6654, %v7837
        %v7970 = vadd.f32 %v6655, %v7842
        %v7971 = vadd.f32 %v6656, %v7845
        %v7972 = vadd.f32 %v6657, %v7850
        %v7973 = vadd.f32 %v6658, %v7853
        %v7974 = vadd.f32 %v6659, %v7858
        %v7975 = vadd.f32 %v6660, %v7861
        %v7976 = vadd.f32 %v6661, %v7866
        %v7977 = vadd.f32 %v6662, %v7869
        %v7978 = vadd.f32 %v6663, %v7874
        %v7979 = vadd.f32 %v6664, %v7877
        %v7980 = vadd.f32 %v6665, %v7882
        %v7981 = vadd.f32 %v6666, %v7885
        %v7982 = vadd.f32 %v6667, %v7890
        %v7983 = vadd.f32 %v6668, %v7893
        %v7984 = vadd.f32 %v6669, %v7898
        %v7985 = vadd.f32 %v6670, %v7901
        %v7986 = vadd.f32 %v6671, %v7906
        %v7987 = vadd.f32 %v6672, %v7909
        %v7988 = vadd.f32 %v6673, %v7914
        %v7989 = vadd.f32 %v6674, %v7917
        %v7990 = vadd.f32 %v6675, %v7922
        %v7991 = vadd.f32 %v6676, %v7925
        %s7992 = scalar_lea.vmem [#allocation15], 448
        %v7993 = vld [vmem:[%s7992] sm:$0xf]
        %v7994 = vld [vmem:[%s7992 + $0x4] sm:$0xf]
        %v7995 = vld [vmem:[%s7992 + $0x8] sm:$0xf]
        %v7996 = vld [vmem:[%s7992 + $0xc] sm:$0xf]
        %v7997 = vld [vmem:[%s7992 + $0x10] sm:$0xf]
        %v7998 = vld [vmem:[%s7992 + $0x14] sm:$0xf]
        %v7999 = vld [vmem:[%s7992 + $0x18] sm:$0xf]
        %v8000 = vld [vmem:[%s7992 + $0x1c] sm:$0xf]
        %v8001 = vld [vmem:[%s7992 + $0x20] sm:$0xf]
        %v8002 = vld [vmem:[%s7992 + $0x24] sm:$0xf]
        %v8003 = vld [vmem:[%s7992 + $0x28] sm:$0xf]
        %v8004 = vld [vmem:[%s7992 + $0x2c] sm:$0xf]
        %v8005 = vld [vmem:[%s7992 + $0x30] sm:$0xf]
        %v8006 = vld [vmem:[%s7992 + $0x34] sm:$0xf]
        %v8007 = vld [vmem:[%s7992 + $0x38] sm:$0xf]
        %v8008 = vld [vmem:[%s7992 + $0x3c] sm:$0xf]
        %v8073 = vunpack.c.l.b16 %v6678
        %v8074 = vunpack.c.l.b16 %v6679
        %v8075 = vunpack.c.l.b16 %v6680
        %v8076 = vunpack.c.l.b16 %v6681
        %v8077 = vunpack.c.l.b16 %v6682
        %v8078 = vunpack.c.l.b16 %v6683
        %v8079 = vunpack.c.l.b16 %v6684
        %v8080 = vunpack.c.l.b16 %v6685
        %v8081 = vunpack.c.l.b16 %v6686
        %v8082 = vunpack.c.l.b16 %v6687
        %v8083 = vunpack.c.l.b16 %v6688
        %v8084 = vunpack.c.l.b16 %v6689
        %v8085 = vunpack.c.l.b16 %v6690
        %v8086 = vunpack.c.l.b16 %v6691
        %v8087 = vunpack.c.l.b16 %v6692
        %v8088 = vunpack.c.l.b16 %v6693
        %v8089 = vunpack.c.l.b16 %v6694
        %v8090 = vunpack.c.l.b16 %v6695
        %v8091 = vunpack.c.l.b16 %v6696
        %v8092 = vunpack.c.l.b16 %v6697
        %v8093 = vunpack.c.l.b16 %v6698
        %v8094 = vunpack.c.l.b16 %v6699
        %v8095 = vunpack.c.l.b16 %v6700
        %v8096 = vunpack.c.l.b16 %v6701
        %v8097 = vunpack.c.l.b16 %v6702
        %v8098 = vunpack.c.l.b16 %v6703
        %v8099 = vunpack.c.l.b16 %v6704
        %v8100 = vunpack.c.l.b16 %v6705
        %v8101 = vunpack.c.l.b16 %v6706
        %v8102 = vunpack.c.l.b16 %v6707
        %v8103 = vunpack.c.l.b16 %v6708
        %v8104 = vunpack.c.l.b16 %v6709
        %v8105 = vunpack.c.l.b16 %v6710
        %v8106 = vunpack.c.l.b16 %v6711
        %v8107 = vunpack.c.l.b16 %v6712
        %v8108 = vunpack.c.l.b16 %v6713
        %v8109 = vunpack.c.l.b16 %v6714
        %v8110 = vunpack.c.l.b16 %v6715
        %v8111 = vunpack.c.l.b16 %v6716
        %v8112 = vunpack.c.l.b16 %v6717
        %v8113 = vunpack.c.l.b16 %v6718
        %v8114 = vunpack.c.l.b16 %v6719
        %v8115 = vunpack.c.l.b16 %v6720
        %v8116 = vunpack.c.l.b16 %v6721
        %v8117 = vunpack.c.l.b16 %v6722
        %v8118 = vunpack.c.l.b16 %v6723
        %v8119 = vunpack.c.l.b16 %v6724
        %v8120 = vunpack.c.l.b16 %v6725
        %v8121 = vunpack.c.l.b16 %v6726
        %v8122 = vunpack.c.l.b16 %v6727
        %v8123 = vunpack.c.l.b16 %v6728
        %v8124 = vunpack.c.l.b16 %v6729
        %v8125 = vunpack.c.l.b16 %v6730
        %v8126 = vunpack.c.l.b16 %v6731
        %v8127 = vunpack.c.l.b16 %v6732
        %v8128 = vunpack.c.l.b16 %v6733
        %v8129 = vunpack.c.l.b16 %v6734
        %v8130 = vunpack.c.l.b16 %v6735
        %v8131 = vunpack.c.l.b16 %v6736
        %v8132 = vunpack.c.l.b16 %v6737
        %v8133 = vunpack.c.l.b16 %v6738
        %v8134 = vunpack.c.l.b16 %v6739
        %v8135 = vunpack.c.l.b16 %v6740
        %v8136 = vunpack.c.l.b16 %v6741
        %v8137 = vpack.c.b16 %v8074, %v8073
        %v8138 = vpack.c.b16 %v8076, %v8075
        %v8139 = vpack.c.b16 %v8078, %v8077
        %v8140 = vpack.c.b16 %v8080, %v8079
        %v8141 = vpack.c.b16 %v8082, %v8081
        %v8142 = vpack.c.b16 %v8084, %v8083
        %v8143 = vpack.c.b16 %v8086, %v8085
        %v8144 = vpack.c.b16 %v8088, %v8087
        %v8145 = vpack.c.b16 %v8090, %v8089
        %v8146 = vpack.c.b16 %v8092, %v8091
        %v8147 = vpack.c.b16 %v8094, %v8093
        %v8148 = vpack.c.b16 %v8096, %v8095
        %v8149 = vpack.c.b16 %v8098, %v8097
        %v8150 = vpack.c.b16 %v8100, %v8099
        %v8151 = vpack.c.b16 %v8102, %v8101
        %v8152 = vpack.c.b16 %v8104, %v8103
        %v8153 = vpack.c.b16 %v8106, %v8105
        %v8154 = vpack.c.b16 %v8108, %v8107
        %v8155 = vpack.c.b16 %v8110, %v8109
        %v8156 = vpack.c.b16 %v8112, %v8111
        %v8157 = vpack.c.b16 %v8114, %v8113
        %v8158 = vpack.c.b16 %v8116, %v8115
        %v8159 = vpack.c.b16 %v8118, %v8117
        %v8160 = vpack.c.b16 %v8120, %v8119
        %v8161 = vpack.c.b16 %v8122, %v8121
        %v8162 = vpack.c.b16 %v8124, %v8123
        %v8163 = vpack.c.b16 %v8126, %v8125
        %v8164 = vpack.c.b16 %v8128, %v8127
        %v8165 = vpack.c.b16 %v8130, %v8129
        %v8166 = vpack.c.b16 %v8132, %v8131
        %v8167 = vpack.c.b16 %v8134, %v8133
        %v8168 = vpack.c.b16 %v8136, %v8135
        %v8217 = vunpack.c.l.b16 %v7993
        %v8218 = vunpack.c.l.b16 %v7994
        %v8219 = vunpack.c.l.b16 %v7995
        %v8220 = vunpack.c.l.b16 %v7996
        %v8221 = vunpack.c.l.b16 %v7997
        %v8222 = vunpack.c.l.b16 %v7998
        %v8223 = vunpack.c.l.b16 %v7999
        %v8224 = vunpack.c.l.b16 %v8000
        %v8225 = vunpack.c.l.b16 %v8001
        %v8226 = vunpack.c.l.b16 %v8002
        %v8227 = vunpack.c.l.b16 %v8003
        %v8228 = vunpack.c.l.b16 %v8004
        %v8229 = vunpack.c.l.b16 %v8005
        %v8230 = vunpack.c.l.b16 %v8006
        %v8231 = vunpack.c.l.b16 %v8007
        %v8232 = vunpack.c.l.b16 %v8008
        %v8233 = vpack.c.b16 %v8218, %v8217
        %v8234 = vpack.c.b16 %v8220, %v8219
        %v8235 = vpack.c.b16 %v8222, %v8221
        %v8236 = vpack.c.b16 %v8224, %v8223
        %v8237 = vpack.c.b16 %v8226, %v8225
        %v8238 = vpack.c.b16 %v8228, %v8227
        %v8239 = vpack.c.b16 %v8230, %v8229
        %v8240 = vpack.c.b16 %v8232, %v8231
        %8249 = vmatprep.subr.bf16.mxu0 0
        %8250 = vmatpush1.bf16.msra.mxu0 %v8233
        %8251 = vmatprep.subr.bf16.mxu0 0
        %8252 = vmatpush1.bf16.msra.mxu0 %v8234
        %8253 = vmatprep.subr.bf16.mxu0 0
        %8254 = vmatpush1.bf16.msra.mxu0 %v8235
        %8255 = vmatprep.subr.bf16.mxu0 0
        %8256 = vmatpush1.bf16.msra.mxu0 %v8236
        %8257 = vmatprep.subr.bf16.mxu0 0
        %8258 = vmatpush1.bf16.msra.mxu0 %v8237
        %8259 = vmatprep.subr.bf16.mxu0 0
        %8260 = vmatpush1.bf16.msra.mxu0 %v8238
        %8261 = vmatprep.subr.bf16.mxu0 0
        %8262 = vmatpush1.bf16.msra.mxu0 %v8239
        %8263 = vmatprep.subr.bf16.mxu0 0
        %8264 = vmatpush1.bf16.msra.mxu0 %v8240
        %8265 = vmatprep.subr.bf16.mxu0 0
        %8266 = vmatpush1.bf16.msra.mxu0 0
        %8267 = vmatprep.subr.bf16.mxu0 0
        %8268 = vmatpush1.bf16.msra.mxu0 0
        %8269 = vmatprep.subr.bf16.mxu0 0
        %8270 = vmatpush1.bf16.msra.mxu0 0
        %8271 = vmatprep.subr.bf16.mxu0 0
        %8272 = vmatpush1.bf16.msra.mxu0 0
        %8273 = vmatprep.subr.bf16.mxu0 0
        %8274 = vmatpush1.bf16.msra.mxu0 0
        %8275 = vmatprep.subr.bf16.mxu0 0
        %8276 = vmatpush1.bf16.msra.mxu0 0
        %8277 = vmatprep.subr.bf16.mxu0 0
        %8278 = vmatpush1.bf16.msra.mxu0 0
        %8279 = vmatprep.subr.bf16.mxu0 0
        %8280 = vmatpush1.bf16.msra.mxu0 0
        %8281 = vmatprep.mubr.bf16.mxu0 0
        %8282 = vmatmul.mubr.bf16.gmra.mrb[0].mxu0 %v8137
        %v8283 = vpop.f32.mrb[0].mxu0
        %v8284 = vadd.f32 0.0, %v8283
        %v8285 = vpop.f32.mrb[0].mxu0
        %v8286 = vpop.f32.mrb[0].mxu0
        %v8287 = vadd.f32 0.0, %v8286
        %v8288 = vpop.f32.mrb[0].mxu0
        %8289 = vmatprep.mubr.bf16.mxu0 0
        %8290 = vmatmul.mubr.bf16.gmra.mrb[0].mxu0 %v8138
        %v8291 = vpop.f32.mrb[0].mxu0
        %v8292 = vadd.f32 0.0, %v8291
        %v8293 = vpop.f32.mrb[0].mxu0
        %v8294 = vpop.f32.mrb[0].mxu0
        %v8295 = vadd.f32 0.0, %v8294
        %v8296 = vpop.f32.mrb[0].mxu0
        %8297 = vmatprep.mubr.bf16.mxu0 0
        %8298 = vmatmul.mubr.bf16.gmra.mrb[0].mxu0 %v8139
        %v8299 = vpop.f32.mrb[0].mxu0
        %v8300 = vadd.f32 0.0, %v8299
        %v8301 = vpop.f32.mrb[0].mxu0
        %v8302 = vpop.f32.mrb[0].mxu0
        %v8303 = vadd.f32 0.0, %v8302
        %v8304 = vpop.f32.mrb[0].mxu0
        %8305 = vmatprep.mubr.bf16.mxu0 0
        %8306 = vmatmul.mubr.bf16.gmra.mrb[0].mxu0 %v8140
        %v8307 = vpop.f32.mrb[0].mxu0
        %v8308 = vadd.f32 0.0, %v8307
        %v8309 = vpop.f32.mrb[0].mxu0
        %v8310 = vpop.f32.mrb[0].mxu0
        %v8311 = vadd.f32 0.0, %v8310
        %v8312 = vpop.f32.mrb[0].mxu0
        %8313 = vmatprep.mubr.bf16.mxu0 0
        %8314 = vmatmul.mubr.bf16.gmra.mrb[0].mxu0 %v8141
        %v8315 = vpop.f32.mrb[0].mxu0
        %v8316 = vadd.f32 0.0, %v8315
        %v8317 = vpop.f32.mrb[0].mxu0
        %v8318 = vpop.f32.mrb[0].mxu0
        %v8319 = vadd.f32 0.0, %v8318
        %v8320 = vpop.f32.mrb[0].mxu0
        %8321 = vmatprep.mubr.bf16.mxu0 0
        %8322 = vmatmul.mubr.bf16.gmra.mrb[0].mxu0 %v8142
        %v8323 = vpop.f32.mrb[0].mxu0
        %v8324 = vadd.f32 0.0, %v8323
        %v8325 = vpop.f32.mrb[0].mxu0
        %v8326 = vpop.f32.mrb[0].mxu0
        %v8327 = vadd.f32 0.0, %v8326
        %v8328 = vpop.f32.mrb[0].mxu0
        %8329 = vmatprep.mubr.bf16.mxu0 0
        %8330 = vmatmul.mubr.bf16.gmra.mrb[0].mxu0 %v8143
        %v8331 = vpop.f32.mrb[0].mxu0
        %v8332 = vadd.f32 0.0, %v8331
        %v8333 = vpop.f32.mrb[0].mxu0
        %v8334 = vpop.f32.mrb[0].mxu0
        %v8335 = vadd.f32 0.0, %v8334
        %v8336 = vpop.f32.mrb[0].mxu0
        %8337 = vmatprep.mubr.bf16.mxu0 0
        %8338 = vmatmul.mubr.bf16.gmra.mrb[0].mxu0 %v8144
        %v8339 = vpop.f32.mrb[0].mxu0
        %v8340 = vadd.f32 0.0, %v8339
        %v8341 = vpop.f32.mrb[0].mxu0
        %v8342 = vpop.f32.mrb[0].mxu0
        %v8343 = vadd.f32 0.0, %v8342
        %v8344 = vpop.f32.mrb[0].mxu0
        %8345 = vmatprep.mubr.bf16.mxu0 0
        %8346 = vmatmul.mubr.bf16.gmra.mrb[0].mxu0 %v8145
        %v8347 = vpop.f32.mrb[0].mxu0
        %v8348 = vadd.f32 0.0, %v8347
        %v8349 = vpop.f32.mrb[0].mxu0
        %v8350 = vpop.f32.mrb[0].mxu0
        %v8351 = vadd.f32 0.0, %v8350
        %v8352 = vpop.f32.mrb[0].mxu0
        %8353 = vmatprep.mubr.bf16.mxu0 0
        %8354 = vmatmul.mubr.bf16.gmra.mrb[0].mxu0 %v8146
        %v8355 = vpop.f32.mrb[0].mxu0
        %v8356 = vadd.f32 0.0, %v8355
        %v8357 = vpop.f32.mrb[0].mxu0
        %v8358 = vpop.f32.mrb[0].mxu0
        %v8359 = vadd.f32 0.0, %v8358
        %v8360 = vpop.f32.mrb[0].mxu0
        %8361 = vmatprep.mubr.bf16.mxu0 0
        %8362 = vmatmul.mubr.bf16.gmra.mrb[0].mxu0 %v8147
        %v8363 = vpop.f32.mrb[0].mxu0
        %v8364 = vadd.f32 0.0, %v8363
        %v8365 = vpop.f32.mrb[0].mxu0
        %v8366 = vpop.f32.mrb[0].mxu0
        %v8367 = vadd.f32 0.0, %v8366
        %v8368 = vpop.f32.mrb[0].mxu0
        %8369 = vmatprep.mubr.bf16.mxu0 0
        %8370 = vmatmul.mubr.bf16.gmra.mrb[0].mxu0 %v8148
        %v8371 = vpop.f32.mrb[0].mxu0
        %v8372 = vadd.f32 0.0, %v8371
        %v8373 = vpop.f32.mrb[0].mxu0
        %v8374 = vpop.f32.mrb[0].mxu0
        %v8375 = vadd.f32 0.0, %v8374
        %v8376 = vpop.f32.mrb[0].mxu0
        %8377 = vmatprep.mubr.bf16.mxu0 0
        %8378 = vmatmul.mubr.bf16.gmra.mrb[0].mxu0 %v8149
        %v8379 = vpop.f32.mrb[0].mxu0
        %v8380 = vadd.f32 0.0, %v8379
        %v8381 = vpop.f32.mrb[0].mxu0
        %v8382 = vpop.f32.mrb[0].mxu0
        %v8383 = vadd.f32 0.0, %v8382
        %v8384 = vpop.f32.mrb[0].mxu0
        %8385 = vmatprep.mubr.bf16.mxu0 0
        %8386 = vmatmul.mubr.bf16.gmra.mrb[0].mxu0 %v8150
        %v8387 = vpop.f32.mrb[0].mxu0
        %v8388 = vadd.f32 0.0, %v8387
        %v8389 = vpop.f32.mrb[0].mxu0
        %v8390 = vpop.f32.mrb[0].mxu0
        %v8391 = vadd.f32 0.0, %v8390
        %v8392 = vpop.f32.mrb[0].mxu0
        %8393 = vmatprep.mubr.bf16.mxu0 0
        %8394 = vmatmul.mubr.bf16.gmra.mrb[0].mxu0 %v8151
        %v8395 = vpop.f32.mrb[0].mxu0
        %v8396 = vadd.f32 0.0, %v8395
        %v8397 = vpop.f32.mrb[0].mxu0
        %v8398 = vpop.f32.mrb[0].mxu0
        %v8399 = vadd.f32 0.0, %v8398
        %v8400 = vpop.f32.mrb[0].mxu0
        %8401 = vmatprep.mubr.bf16.mxu0 0
        %8402 = vmatmul.mubr.bf16.gmra.mrb[0].mxu0 %v8152
        %v8403 = vpop.f32.mrb[0].mxu0
        %v8404 = vadd.f32 0.0, %v8403
        %v8405 = vpop.f32.mrb[0].mxu0
        %v8406 = vpop.f32.mrb[0].mxu0
        %v8407 = vadd.f32 0.0, %v8406
        %v8408 = vpop.f32.mrb[0].mxu0
        %8409 = vmatprep.mubr.bf16.mxu0 0
        %8410 = vmatmul.mubr.bf16.gmra.mrb[0].mxu0 %v8153
        %v8411 = vpop.f32.mrb[0].mxu0
        %v8412 = vadd.f32 0.0, %v8411
        %v8413 = vpop.f32.mrb[0].mxu0
        %v8414 = vpop.f32.mrb[0].mxu0
        %v8415 = vadd.f32 0.0, %v8414
        %v8416 = vpop.f32.mrb[0].mxu0
        %8417 = vmatprep.mubr.bf16.mxu0 0
        %8418 = vmatmul.mubr.bf16.gmra.mrb[0].mxu0 %v8154
        %v8419 = vpop.f32.mrb[0].mxu0
        %v8420 = vadd.f32 0.0, %v8419
        %v8421 = vpop.f32.mrb[0].mxu0
        %v8422 = vpop.f32.mrb[0].mxu0
        %v8423 = vadd.f32 0.0, %v8422
        %v8424 = vpop.f32.mrb[0].mxu0
        %8425 = vmatprep.mubr.bf16.mxu0 0
        %8426 = vmatmul.mubr.bf16.gmra.mrb[0].mxu0 %v8155
        %v8427 = vpop.f32.mrb[0].mxu0
        %v8428 = vadd.f32 0.0, %v8427
        %v8429 = vpop.f32.mrb[0].mxu0
        %v8430 = vpop.f32.mrb[0].mxu0
        %v8431 = vadd.f32 0.0, %v8430
        %v8432 = vpop.f32.mrb[0].mxu0
        %8433 = vmatprep.mubr.bf16.mxu0 0
        %8434 = vmatmul.mubr.bf16.gmra.mrb[0].mxu0 %v8156
        %v8435 = vpop.f32.mrb[0].mxu0
        %v8436 = vadd.f32 0.0, %v8435
        %v8437 = vpop.f32.mrb[0].mxu0
        %v8438 = vpop.f32.mrb[0].mxu0
        %v8439 = vadd.f32 0.0, %v8438
        %v8440 = vpop.f32.mrb[0].mxu0
        %8441 = vmatprep.mubr.bf16.mxu0 0
        %8442 = vmatmul.mubr.bf16.gmra.mrb[0].mxu0 %v8157
        %v8443 = vpop.f32.mrb[0].mxu0
        %v8444 = vadd.f32 0.0, %v8443
        %v8445 = vpop.f32.mrb[0].mxu0
        %v8446 = vpop.f32.mrb[0].mxu0
        %v8447 = vadd.f32 0.0, %v8446
        %v8448 = vpop.f32.mrb[0].mxu0
        %8449 = vmatprep.mubr.bf16.mxu0 0
        %8450 = vmatmul.mubr.bf16.gmra.mrb[0].mxu0 %v8158
        %v8451 = vpop.f32.mrb[0].mxu0
        %v8452 = vadd.f32 0.0, %v8451
        %v8453 = vpop.f32.mrb[0].mxu0
        %v8454 = vpop.f32.mrb[0].mxu0
        %v8455 = vadd.f32 0.0, %v8454
        %v8456 = vpop.f32.mrb[0].mxu0
        %8457 = vmatprep.mubr.bf16.mxu0 0
        %8458 = vmatmul.mubr.bf16.gmra.mrb[0].mxu0 %v8159
        %v8459 = vpop.f32.mrb[0].mxu0
        %v8460 = vadd.f32 0.0, %v8459
        %v8461 = vpop.f32.mrb[0].mxu0
        %v8462 = vpop.f32.mrb[0].mxu0
        %v8463 = vadd.f32 0.0, %v8462
        %v8464 = vpop.f32.mrb[0].mxu0
        %8465 = vmatprep.mubr.bf16.mxu0 0
        %8466 = vmatmul.mubr.bf16.gmra.mrb[0].mxu0 %v8160
        %v8467 = vpop.f32.mrb[0].mxu0
        %v8468 = vadd.f32 0.0, %v8467
        %v8469 = vpop.f32.mrb[0].mxu0
        %v8470 = vpop.f32.mrb[0].mxu0
        %v8471 = vadd.f32 0.0, %v8470
        %v8472 = vpop.f32.mrb[0].mxu0
        %8473 = vmatprep.mubr.bf16.mxu0 0
        %8474 = vmatmul.mubr.bf16.gmra.mrb[0].mxu0 %v8161
        %v8475 = vpop.f32.mrb[0].mxu0
        %v8476 = vadd.f32 0.0, %v8475
        %v8477 = vpop.f32.mrb[0].mxu0
        %v8478 = vpop.f32.mrb[0].mxu0
        %v8479 = vadd.f32 0.0, %v8478
        %v8480 = vpop.f32.mrb[0].mxu0
        %8481 = vmatprep.mubr.bf16.mxu0 0
        %8482 = vmatmul.mubr.bf16.gmra.mrb[0].mxu0 %v8162
        %v8483 = vpop.f32.mrb[0].mxu0
        %v8484 = vadd.f32 0.0, %v8483
        %v8485 = vpop.f32.mrb[0].mxu0
        %v8486 = vpop.f32.mrb[0].mxu0
        %v8487 = vadd.f32 0.0, %v8486
        %v8488 = vpop.f32.mrb[0].mxu0
        %8489 = vmatprep.mubr.bf16.mxu0 0
        %8490 = vmatmul.mubr.bf16.gmra.mrb[0].mxu0 %v8163
        %v8491 = vpop.f32.mrb[0].mxu0
        %v8492 = vadd.f32 0.0, %v8491
        %v8493 = vpop.f32.mrb[0].mxu0
        %v8494 = vpop.f32.mrb[0].mxu0
        %v8495 = vadd.f32 0.0, %v8494
        %v8496 = vpop.f32.mrb[0].mxu0
        %8497 = vmatprep.mubr.bf16.mxu0 0
        %8498 = vmatmul.mubr.bf16.gmra.mrb[0].mxu0 %v8164
        %v8499 = vpop.f32.mrb[0].mxu0
        %v8500 = vadd.f32 0.0, %v8499
        %v8501 = vpop.f32.mrb[0].mxu0
        %v8502 = vpop.f32.mrb[0].mxu0
        %v8503 = vadd.f32 0.0, %v8502
        %v8504 = vpop.f32.mrb[0].mxu0
        %8505 = vmatprep.mubr.bf16.mxu0 0
        %8506 = vmatmul.mubr.bf16.gmra.mrb[0].mxu0 %v8165
        %v8507 = vpop.f32.mrb[0].mxu0
        %v8508 = vadd.f32 0.0, %v8507
        %v8509 = vpop.f32.mrb[0].mxu0
        %v8510 = vpop.f32.mrb[0].mxu0
        %v8511 = vadd.f32 0.0, %v8510
        %v8512 = vpop.f32.mrb[0].mxu0
        %8513 = vmatprep.mubr.bf16.mxu0 0
        %8514 = vmatmul.mubr.bf16.gmra.mrb[0].mxu0 %v8166
        %v8515 = vpop.f32.mrb[0].mxu0
        %v8516 = vadd.f32 0.0, %v8515
        %v8517 = vpop.f32.mrb[0].mxu0
        %v8518 = vpop.f32.mrb[0].mxu0
        %v8519 = vadd.f32 0.0, %v8518
        %v8520 = vpop.f32.mrb[0].mxu0
        %8521 = vmatprep.mubr.bf16.mxu0 0
        %8522 = vmatmul.mubr.bf16.gmra.mrb[0].mxu0 %v8167
        %v8523 = vpop.f32.mrb[0].mxu0
        %v8524 = vadd.f32 0.0, %v8523
        %v8525 = vpop.f32.mrb[0].mxu0
        %v8526 = vpop.f32.mrb[0].mxu0
        %v8527 = vadd.f32 0.0, %v8526
        %v8528 = vpop.f32.mrb[0].mxu0
        %8529 = vmatprep.mubr.bf16.mxu0 0
        %8530 = vmatmul.mubr.bf16.gmra.mrb[0].mxu0 %v8168
        %v8531 = vpop.f32.mrb[0].mxu0
        %v8532 = vadd.f32 0.0, %v8531
        %v8533 = vpop.f32.mrb[0].mxu0
        %v8534 = vpop.f32.mrb[0].mxu0
        %v8535 = vadd.f32 0.0, %v8534
        %v8536 = vpop.f32.mrb[0].mxu0
        %8537 = vdwg.mxu0
        %v8538 = vadd.f32 %v7928, %v8284
        %v8539 = vadd.f32 %v7929, %v8287
        %v8540 = vadd.f32 %v7930, %v8292
        %v8541 = vadd.f32 %v7931, %v8295
        %v8542 = vadd.f32 %v7932, %v8300
        %v8543 = vadd.f32 %v7933, %v8303
        %v8544 = vadd.f32 %v7934, %v8308
        %v8545 = vadd.f32 %v7935, %v8311
        %v8546 = vadd.f32 %v7936, %v8316
        %v8547 = vadd.f32 %v7937, %v8319
        %v8548 = vadd.f32 %v7938, %v8324
        %v8549 = vadd.f32 %v7939, %v8327
        %v8550 = vadd.f32 %v7940, %v8332
        %v8551 = vadd.f32 %v7941, %v8335
        %v8552 = vadd.f32 %v7942, %v8340
        %v8553 = vadd.f32 %v7943, %v8343
        %v8554 = vadd.f32 %v7944, %v8348
        %v8555 = vadd.f32 %v7945, %v8351
        %v8556 = vadd.f32 %v7946, %v8356
        %v8557 = vadd.f32 %v7947, %v8359
        %v8558 = vadd.f32 %v7948, %v8364
        %v8559 = vadd.f32 %v7949, %v8367
        %v8560 = vadd.f32 %v7950, %v8372
        %v8561 = vadd.f32 %v7951, %v8375
        %v8562 = vadd.f32 %v7952, %v8380
        %v8563 = vadd.f32 %v7953, %v8383
        %v8564 = vadd.f32 %v7954, %v8388
        %v8565 = vadd.f32 %v7955, %v8391
        %v8566 = vadd.f32 %v7956, %v8396
        %v8567 = vadd.f32 %v7957, %v8399
        %v8568 = vadd.f32 %v7958, %v8404
        %v8569 = vadd.f32 %v7959, %v8407
        %v8570 = vadd.f32 %v7960, %v8412
        %v8571 = vadd.f32 %v7961, %v8415
        %v8572 = vadd.f32 %v7962, %v8420
        %v8573 = vadd.f32 %v7963, %v8423
        %v8574 = vadd.f32 %v7964, %v8428
        %v8575 = vadd.f32 %v7965, %v8431
        %v8576 = vadd.f32 %v7966, %v8436
        %v8577 = vadd.f32 %v7967, %v8439
        %v8578 = vadd.f32 %v7968, %v8444
        %v8579 = vadd.f32 %v7969, %v8447
        %v8580 = vadd.f32 %v7970, %v8452
        %v8581 = vadd.f32 %v7971, %v8455
        %v8582 = vadd.f32 %v7972, %v8460
        %v8583 = vadd.f32 %v7973, %v8463
        %v8584 = vadd.f32 %v7974, %v8468
        %v8585 = vadd.f32 %v7975, %v8471
        %v8586 = vadd.f32 %v7976, %v8476
        %v8587 = vadd.f32 %v7977, %v8479
        %v8588 = vadd.f32 %v7978, %v8484
        %v8589 = vadd.f32 %v7979, %v8487
        %v8590 = vadd.f32 %v7980, %v8492
        %v8591 = vadd.f32 %v7981, %v8495
        %v8592 = vadd.f32 %v7982, %v8500
        %v8593 = vadd.f32 %v7983, %v8503
        %v8594 = vadd.f32 %v7984, %v8508
        %v8595 = vadd.f32 %v7985, %v8511
        %v8596 = vadd.f32 %v7986, %v8516
        %v8597 = vadd.f32 %v7987, %v8519
        %v8598 = vadd.f32 %v7988, %v8524
        %v8599 = vadd.f32 %v7989, %v8527
        %v8600 = vadd.f32 %v7990, %v8532
        %v8601 = vadd.f32 %v7991, %v8535
        %s8602 = scalar_lea.vmem [#allocation15], 512
        %v8603 = vld [vmem:[%s8602] sm:$0xf]
        %v8604 = vld [vmem:[%s8602 + $0x4] sm:$0xf]
        %v8605 = vld [vmem:[%s8602 + $0x8] sm:$0xf]
        %v8606 = vld [vmem:[%s8602 + $0xc] sm:$0xf]
        %v8607 = vld [vmem:[%s8602 + $0x10] sm:$0xf]
        %v8608 = vld [vmem:[%s8602 + $0x14] sm:$0xf]
        %v8609 = vld [vmem:[%s8602 + $0x18] sm:$0xf]
        %v8610 = vld [vmem:[%s8602 + $0x1c] sm:$0xf]
        %v8611 = vld [vmem:[%s8602 + $0x20] sm:$0xf]
        %v8612 = vld [vmem:[%s8602 + $0x24] sm:$0xf]
        %v8613 = vld [vmem:[%s8602 + $0x28] sm:$0xf]
        %v8614 = vld [vmem:[%s8602 + $0x2c] sm:$0xf]
        %v8615 = vld [vmem:[%s8602 + $0x30] sm:$0xf]
        %v8616 = vld [vmem:[%s8602 + $0x34] sm:$0xf]
        %v8617 = vld [vmem:[%s8602 + $0x38] sm:$0xf]
        %v8618 = vld [vmem:[%s8602 + $0x3c] sm:$0xf]
        %v8683 = vunpack.c.l.b16 %v7318
        %v8684 = vunpack.c.l.b16 %v7319
        %v8685 = vunpack.c.l.b16 %v7320
        %v8686 = vunpack.c.l.b16 %v7321
        %v8687 = vunpack.c.l.b16 %v7322
        %v8688 = vunpack.c.l.b16 %v7323
        %v8689 = vunpack.c.l.b16 %v7324
        %v8690 = vunpack.c.l.b16 %v7325
        %v8691 = vunpack.c.l.b16 %v7326
        %v8692 = vunpack.c.l.b16 %v7327
        %v8693 = vunpack.c.l.b16 %v7328
        %v8694 = vunpack.c.l.b16 %v7329
        %v8695 = vunpack.c.l.b16 %v7330
        %v8696 = vunpack.c.l.b16 %v7331
        %v8697 = vunpack.c.l.b16 %v7332
        %v8698 = vunpack.c.l.b16 %v7333
        %v8699 = vunpack.c.l.b16 %v7334
        %v8700 = vunpack.c.l.b16 %v7335
        %v8701 = vunpack.c.l.b16 %v7336
        %v8702 = vunpack.c.l.b16 %v7337
        %v8703 = vunpack.c.l.b16 %v7338
        %v8704 = vunpack.c.l.b16 %v7339
        %v8705 = vunpack.c.l.b16 %v7340
        %v8706 = vunpack.c.l.b16 %v7341
        %v8707 = vunpack.c.l.b16 %v7342
        %v8708 = vunpack.c.l.b16 %v7343
        %v8709 = vunpack.c.l.b16 %v7344
        %v8710 = vunpack.c.l.b16 %v7345
        %v8711 = vunpack.c.l.b16 %v7346
        %v8712 = vunpack.c.l.b16 %v7347
        %v8713 = vunpack.c.l.b16 %v7348
        %v8714 = vunpack.c.l.b16 %v7349
        %v8715 = vunpack.c.l.b16 %v7350
        %v8716 = vunpack.c.l.b16 %v7351
        %v8717 = vunpack.c.l.b16 %v7352
        %v8718 = vunpack.c.l.b16 %v7353
        %v8719 = vunpack.c.l.b16 %v7354
        %v8720 = vunpack.c.l.b16 %v7355
        %v8721 = vunpack.c.l.b16 %v7356
        %v8722 = vunpack.c.l.b16 %v7357
        %v8723 = vunpack.c.l.b16 %v7358
        %v8724 = vunpack.c.l.b16 %v7359
        %v8725 = vunpack.c.l.b16 %v7360
        %v8726 = vunpack.c.l.b16 %v7361
        %v8727 = vunpack.c.l.b16 %v7362
        %v8728 = vunpack.c.l.b16 %v7363
        %v8729 = vunpack.c.l.b16 %v7364
        %v8730 = vunpack.c.l.b16 %v7365
        %v8731 = vunpack.c.l.b16 %v7366
        %v8732 = vunpack.c.l.b16 %v7367
        %v8733 = vunpack.c.l.b16 %v7368
        %v8734 = vunpack.c.l.b16 %v7369
        %v8735 = vunpack.c.l.b16 %v7370
        %v8736 = vunpack.c.l.b16 %v7371
        %v8737 = vunpack.c.l.b16 %v7372
        %v8738 = vunpack.c.l.b16 %v7373
        %v8739 = vunpack.c.l.b16 %v7374
        %v8740 = vunpack.c.l.b16 %v7375
        %v8741 = vunpack.c.l.b16 %v7376
        %v8742 = vunpack.c.l.b16 %v7377
        %v8743 = vunpack.c.l.b16 %v7378
        %v8744 = vunpack.c.l.b16 %v7379
        %v8745 = vunpack.c.l.b16 %v7380
        %v8746 = vunpack.c.l.b16 %v7381
        %v8747 = vpack.c.b16 %v8684, %v8683
        %v8748 = vpack.c.b16 %v8686, %v8685
        %v8749 = vpack.c.b16 %v8688, %v8687
        %v8750 = vpack.c.b16 %v8690, %v8689
        %v8751 = vpack.c.b16 %v8692, %v8691
        %v8752 = vpack.c.b16 %v8694, %v8693
        %v8753 = vpack.c.b16 %v8696, %v8695
        %v8754 = vpack.c.b16 %v8698, %v8697
        %v8755 = vpack.c.b16 %v8700, %v8699
        %v8756 = vpack.c.b16 %v8702, %v8701
        %v8757 = vpack.c.b16 %v8704, %v8703
        %v8758 = vpack.c.b16 %v8706, %v8705
        %v8759 = vpack.c.b16 %v8708, %v8707
        %v8760 = vpack.c.b16 %v8710, %v8709
        %v8761 = vpack.c.b16 %v8712, %v8711
        %v8762 = vpack.c.b16 %v8714, %v8713
        %v8763 = vpack.c.b16 %v8716, %v8715
        %v8764 = vpack.c.b16 %v8718, %v8717
        %v8765 = vpack.c.b16 %v8720, %v8719
        %v8766 = vpack.c.b16 %v8722, %v8721
        %v8767 = vpack.c.b16 %v8724, %v8723
        %v8768 = vpack.c.b16 %v8726, %v8725
        %v8769 = vpack.c.b16 %v8728, %v8727
        %v8770 = vpack.c.b16 %v8730, %v8729
        %v8771 = vpack.c.b16 %v8732, %v8731
        %v8772 = vpack.c.b16 %v8734, %v8733
        %v8773 = vpack.c.b16 %v8736, %v8735
        %v8774 = vpack.c.b16 %v8738, %v8737
        %v8775 = vpack.c.b16 %v8740, %v8739
        %v8776 = vpack.c.b16 %v8742, %v8741
        %v8777 = vpack.c.b16 %v8744, %v8743
        %v8778 = vpack.c.b16 %v8746, %v8745
        %v8827 = vunpack.c.l.b16 %v8603
        %v8828 = vunpack.c.l.b16 %v8604
        %v8829 = vunpack.c.l.b16 %v8605
        %v8830 = vunpack.c.l.b16 %v8606
        %v8831 = vunpack.c.l.b16 %v8607
        %v8832 = vunpack.c.l.b16 %v8608
        %v8833 = vunpack.c.l.b16 %v8609
        %v8834 = vunpack.c.l.b16 %v8610
        %v8835 = vunpack.c.l.b16 %v8611
        %v8836 = vunpack.c.l.b16 %v8612
        %v8837 = vunpack.c.l.b16 %v8613
        %v8838 = vunpack.c.l.b16 %v8614
        %v8839 = vunpack.c.l.b16 %v8615
        %v8840 = vunpack.c.l.b16 %v8616
        %v8841 = vunpack.c.l.b16 %v8617
        %v8842 = vunpack.c.l.b16 %v8618
        %v8843 = vpack.c.b16 %v8828, %v8827
        %v8844 = vpack.c.b16 %v8830, %v8829
        %v8845 = vpack.c.b16 %v8832, %v8831
        %v8846 = vpack.c.b16 %v8834, %v8833
        %v8847 = vpack.c.b16 %v8836, %v8835
        %v8848 = vpack.c.b16 %v8838, %v8837
        %v8849 = vpack.c.b16 %v8840, %v8839
        %v8850 = vpack.c.b16 %v8842, %v8841
        %8859 = vmatprep.subr.bf16.mxu0 0
        %8860 = vmatpush1.bf16.msra.mxu0 %v8843
        %8861 = vmatprep.subr.bf16.mxu0 0
        %8862 = vmatpush1.bf16.msra.mxu0 %v8844
        %8863 = vmatprep.subr.bf16.mxu0 0
        %8864 = vmatpush1.bf16.msra.mxu0 %v8845
        %8865 = vmatprep.subr.bf16.mxu0 0
        %8866 = vmatpush1.bf16.msra.mxu0 %v8846
        %8867 = vmatprep.subr.bf16.mxu0 0
        %8868 = vmatpush1.bf16.msra.mxu0 %v8847
        %8869 = vmatprep.subr.bf16.mxu0 0
        %8870 = vmatpush1.bf16.msra.mxu0 %v8848
        %8871 = vmatprep.subr.bf16.mxu0 0
        %8872 = vmatpush1.bf16.msra.mxu0 %v8849
        %8873 = vmatprep.subr.bf16.mxu0 0
        %8874 = vmatpush1.bf16.msra.mxu0 %v8850
        %8875 = vmatprep.subr.bf16.mxu0 0
        %8876 = vmatpush1.bf16.msra.mxu0 0
        %8877 = vmatprep.subr.bf16.mxu0 0
        %8878 = vmatpush1.bf16.msra.mxu0 0
        %8879 = vmatprep.subr.bf16.mxu0 0
        %8880 = vmatpush1.bf16.msra.mxu0 0
        %8881 = vmatprep.subr.bf16.mxu0 0
        %8882 = vmatpush1.bf16.msra.mxu0 0
        %8883 = vmatprep.subr.bf16.mxu0 0
        %8884 = vmatpush1.bf16.msra.mxu0 0
        %8885 = vmatprep.subr.bf16.mxu0 0
        %8886 = vmatpush1.bf16.msra.mxu0 0
        %8887 = vmatprep.subr.bf16.mxu0 0
        %8888 = vmatpush1.bf16.msra.mxu0 0
        %8889 = vmatprep.subr.bf16.mxu0 0
        %8890 = vmatpush1.bf16.msra.mxu0 0
        %8891 = vmatprep.mubr.bf16.mxu0 0
        %8892 = vmatmul.mubr.bf16.gmra.mrb[0].mxu0 %v8747
        %v8893 = vpop.f32.mrb[0].mxu0
        %v8894 = vadd.f32 0.0, %v8893
        %v8895 = vpop.f32.mrb[0].mxu0
        %v8896 = vpop.f32.mrb[0].mxu0
        %v8897 = vadd.f32 0.0, %v8896
        %v8898 = vpop.f32.mrb[0].mxu0
        %8899 = vmatprep.mubr.bf16.mxu0 0
        %8900 = vmatmul.mubr.bf16.gmra.mrb[0].mxu0 %v8748
        %v8901 = vpop.f32.mrb[0].mxu0
        %v8902 = vadd.f32 0.0, %v8901
        %v8903 = vpop.f32.mrb[0].mxu0
        %v8904 = vpop.f32.mrb[0].mxu0
        %v8905 = vadd.f32 0.0, %v8904
        %v8906 = vpop.f32.mrb[0].mxu0
        %8907 = vmatprep.mubr.bf16.mxu0 0
        %8908 = vmatmul.mubr.bf16.gmra.mrb[0].mxu0 %v8749
        %v8909 = vpop.f32.mrb[0].mxu0
        %v8910 = vadd.f32 0.0, %v8909
        %v8911 = vpop.f32.mrb[0].mxu0
        %v8912 = vpop.f32.mrb[0].mxu0
        %v8913 = vadd.f32 0.0, %v8912
        %v8914 = vpop.f32.mrb[0].mxu0
        %8915 = vmatprep.mubr.bf16.mxu0 0
        %8916 = vmatmul.mubr.bf16.gmra.mrb[0].mxu0 %v8750
        %v8917 = vpop.f32.mrb[0].mxu0
        %v8918 = vadd.f32 0.0, %v8917
        %v8919 = vpop.f32.mrb[0].mxu0
        %v8920 = vpop.f32.mrb[0].mxu0
        %v8921 = vadd.f32 0.0, %v8920
        %v8922 = vpop.f32.mrb[0].mxu0
        %8923 = vmatprep.mubr.bf16.mxu0 0
        %8924 = vmatmul.mubr.bf16.gmra.mrb[0].mxu0 %v8751
        %v8925 = vpop.f32.mrb[0].mxu0
        %v8926 = vadd.f32 0.0, %v8925
        %v8927 = vpop.f32.mrb[0].mxu0
        %v8928 = vpop.f32.mrb[0].mxu0
        %v8929 = vadd.f32 0.0, %v8928
        %v8930 = vpop.f32.mrb[0].mxu0
        %8931 = vmatprep.mubr.bf16.mxu0 0
        %8932 = vmatmul.mubr.bf16.gmra.mrb[0].mxu0 %v8752
        %v8933 = vpop.f32.mrb[0].mxu0
        %v8934 = vadd.f32 0.0, %v8933
        %v8935 = vpop.f32.mrb[0].mxu0
        %v8936 = vpop.f32.mrb[0].mxu0
        %v8937 = vadd.f32 0.0, %v8936
        %v8938 = vpop.f32.mrb[0].mxu0
        %8939 = vmatprep.mubr.bf16.mxu0 0
        %8940 = vmatmul.mubr.bf16.gmra.mrb[0].mxu0 %v8753
        %v8941 = vpop.f32.mrb[0].mxu0
        %v8942 = vadd.f32 0.0, %v8941
        %v8943 = vpop.f32.mrb[0].mxu0
        %v8944 = vpop.f32.mrb[0].mxu0
        %v8945 = vadd.f32 0.0, %v8944
        %v8946 = vpop.f32.mrb[0].mxu0
        %8947 = vmatprep.mubr.bf16.mxu0 0
        %8948 = vmatmul.mubr.bf16.gmra.mrb[0].mxu0 %v8754
        %v8949 = vpop.f32.mrb[0].mxu0
        %v8950 = vadd.f32 0.0, %v8949
        %v8951 = vpop.f32.mrb[0].mxu0
        %v8952 = vpop.f32.mrb[0].mxu0
        %v8953 = vadd.f32 0.0, %v8952
        %v8954 = vpop.f32.mrb[0].mxu0
        %8955 = vmatprep.mubr.bf16.mxu0 0
        %8956 = vmatmul.mubr.bf16.gmra.mrb[0].mxu0 %v8755
        %v8957 = vpop.f32.mrb[0].mxu0
        %v8958 = vadd.f32 0.0, %v8957
        %v8959 = vpop.f32.mrb[0].mxu0
        %v8960 = vpop.f32.mrb[0].mxu0
        %v8961 = vadd.f32 0.0, %v8960
        %v8962 = vpop.f32.mrb[0].mxu0
        %8963 = vmatprep.mubr.bf16.mxu0 0
        %8964 = vmatmul.mubr.bf16.gmra.mrb[0].mxu0 %v8756
        %v8965 = vpop.f32.mrb[0].mxu0
        %v8966 = vadd.f32 0.0, %v8965
        %v8967 = vpop.f32.mrb[0].mxu0
        %v8968 = vpop.f32.mrb[0].mxu0
        %v8969 = vadd.f32 0.0, %v8968
        %v8970 = vpop.f32.mrb[0].mxu0
        %8971 = vmatprep.mubr.bf16.mxu0 0
        %8972 = vmatmul.mubr.bf16.gmra.mrb[0].mxu0 %v8757
        %v8973 = vpop.f32.mrb[0].mxu0
        %v8974 = vadd.f32 0.0, %v8973
        %v8975 = vpop.f32.mrb[0].mxu0
        %v8976 = vpop.f32.mrb[0].mxu0
        %v8977 = vadd.f32 0.0, %v8976
        %v8978 = vpop.f32.mrb[0].mxu0
        %8979 = vmatprep.mubr.bf16.mxu0 0
        %8980 = vmatmul.mubr.bf16.gmra.mrb[0].mxu0 %v8758
        %v8981 = vpop.f32.mrb[0].mxu0
        %v8982 = vadd.f32 0.0, %v8981
        %v8983 = vpop.f32.mrb[0].mxu0
        %v8984 = vpop.f32.mrb[0].mxu0
        %v8985 = vadd.f32 0.0, %v8984
        %v8986 = vpop.f32.mrb[0].mxu0
        %8987 = vmatprep.mubr.bf16.mxu0 0
        %8988 = vmatmul.mubr.bf16.gmra.mrb[0].mxu0 %v8759
        %v8989 = vpop.f32.mrb[0].mxu0
        %v8990 = vadd.f32 0.0, %v8989
        %v8991 = vpop.f32.mrb[0].mxu0
        %v8992 = vpop.f32.mrb[0].mxu0
        %v8993 = vadd.f32 0.0, %v8992
        %v8994 = vpop.f32.mrb[0].mxu0
        %8995 = vmatprep.mubr.bf16.mxu0 0
        %8996 = vmatmul.mubr.bf16.gmra.mrb[0].mxu0 %v8760
        %v8997 = vpop.f32.mrb[0].mxu0
        %v8998 = vadd.f32 0.0, %v8997
        %v8999 = vpop.f32.mrb[0].mxu0
        %v9000 = vpop.f32.mrb[0].mxu0
        %v9001 = vadd.f32 0.0, %v9000
        %v9002 = vpop.f32.mrb[0].mxu0
        %9003 = vmatprep.mubr.bf16.mxu0 0
        %9004 = vmatmul.mubr.bf16.gmra.mrb[0].mxu0 %v8761
        %v9005 = vpop.f32.mrb[0].mxu0
        %v9006 = vadd.f32 0.0, %v9005
        %v9007 = vpop.f32.mrb[0].mxu0
        %v9008 = vpop.f32.mrb[0].mxu0
        %v9009 = vadd.f32 0.0, %v9008
        %v9010 = vpop.f32.mrb[0].mxu0
        %9011 = vmatprep.mubr.bf16.mxu0 0
        %9012 = vmatmul.mubr.bf16.gmra.mrb[0].mxu0 %v8762
        %v9013 = vpop.f32.mrb[0].mxu0
        %v9014 = vadd.f32 0.0, %v9013
        %v9015 = vpop.f32.mrb[0].mxu0
        %v9016 = vpop.f32.mrb[0].mxu0
        %v9017 = vadd.f32 0.0, %v9016
        %v9018 = vpop.f32.mrb[0].mxu0
        %9019 = vmatprep.mubr.bf16.mxu0 0
        %9020 = vmatmul.mubr.bf16.gmra.mrb[0].mxu0 %v8763
        %v9021 = vpop.f32.mrb[0].mxu0
        %v9022 = vadd.f32 0.0, %v9021
        %v9023 = vpop.f32.mrb[0].mxu0
        %v9024 = vpop.f32.mrb[0].mxu0
        %v9025 = vadd.f32 0.0, %v9024
        %v9026 = vpop.f32.mrb[0].mxu0
        %9027 = vmatprep.mubr.bf16.mxu0 0
        %9028 = vmatmul.mubr.bf16.gmra.mrb[0].mxu0 %v8764
        %v9029 = vpop.f32.mrb[0].mxu0
        %v9030 = vadd.f32 0.0, %v9029
        %v9031 = vpop.f32.mrb[0].mxu0
        %v9032 = vpop.f32.mrb[0].mxu0
        %v9033 = vadd.f32 0.0, %v9032
        %v9034 = vpop.f32.mrb[0].mxu0
        %9035 = vmatprep.mubr.bf16.mxu0 0
        %9036 = vmatmul.mubr.bf16.gmra.mrb[0].mxu0 %v8765
        %v9037 = vpop.f32.mrb[0].mxu0
        %v9038 = vadd.f32 0.0, %v9037
        %v9039 = vpop.f32.mrb[0].mxu0
        %v9040 = vpop.f32.mrb[0].mxu0
        %v9041 = vadd.f32 0.0, %v9040
        %v9042 = vpop.f32.mrb[0].mxu0
        %9043 = vmatprep.mubr.bf16.mxu0 0
        %9044 = vmatmul.mubr.bf16.gmra.mrb[0].mxu0 %v8766
        %v9045 = vpop.f32.mrb[0].mxu0
        %v9046 = vadd.f32 0.0, %v9045
        %v9047 = vpop.f32.mrb[0].mxu0
        %v9048 = vpop.f32.mrb[0].mxu0
        %v9049 = vadd.f32 0.0, %v9048
        %v9050 = vpop.f32.mrb[0].mxu0
        %9051 = vmatprep.mubr.bf16.mxu0 0
        %9052 = vmatmul.mubr.bf16.gmra.mrb[0].mxu0 %v8767
        %v9053 = vpop.f32.mrb[0].mxu0
        %v9054 = vadd.f32 0.0, %v9053
        %v9055 = vpop.f32.mrb[0].mxu0
        %v9056 = vpop.f32.mrb[0].mxu0
        %v9057 = vadd.f32 0.0, %v9056
        %v9058 = vpop.f32.mrb[0].mxu0
        %9059 = vmatprep.mubr.bf16.mxu0 0
        %9060 = vmatmul.mubr.bf16.gmra.mrb[0].mxu0 %v8768
        %v9061 = vpop.f32.mrb[0].mxu0
        %v9062 = vadd.f32 0.0, %v9061
        %v9063 = vpop.f32.mrb[0].mxu0
        %v9064 = vpop.f32.mrb[0].mxu0
        %v9065 = vadd.f32 0.0, %v9064
        %v9066 = vpop.f32.mrb[0].mxu0
        %9067 = vmatprep.mubr.bf16.mxu0 0
        %9068 = vmatmul.mubr.bf16.gmra.mrb[0].mxu0 %v8769
        %v9069 = vpop.f32.mrb[0].mxu0
        %v9070 = vadd.f32 0.0, %v9069
        %v9071 = vpop.f32.mrb[0].mxu0
        %v9072 = vpop.f32.mrb[0].mxu0
        %v9073 = vadd.f32 0.0, %v9072
        %v9074 = vpop.f32.mrb[0].mxu0
        %9075 = vmatprep.mubr.bf16.mxu0 0
        %9076 = vmatmul.mubr.bf16.gmra.mrb[0].mxu0 %v8770
        %v9077 = vpop.f32.mrb[0].mxu0
        %v9078 = vadd.f32 0.0, %v9077
        %v9079 = vpop.f32.mrb[0].mxu0
        %v9080 = vpop.f32.mrb[0].mxu0
        %v9081 = vadd.f32 0.0, %v9080
        %v9082 = vpop.f32.mrb[0].mxu0
        %9083 = vmatprep.mubr.bf16.mxu0 0
        %9084 = vmatmul.mubr.bf16.gmra.mrb[0].mxu0 %v8771
        %v9085 = vpop.f32.mrb[0].mxu0
        %v9086 = vadd.f32 0.0, %v9085
        %v9087 = vpop.f32.mrb[0].mxu0
        %v9088 = vpop.f32.mrb[0].mxu0
        %v9089 = vadd.f32 0.0, %v9088
        %v9090 = vpop.f32.mrb[0].mxu0
        %9091 = vmatprep.mubr.bf16.mxu0 0
        %9092 = vmatmul.mubr.bf16.gmra.mrb[0].mxu0 %v8772
        %v9093 = vpop.f32.mrb[0].mxu0
        %v9094 = vadd.f32 0.0, %v9093
        %v9095 = vpop.f32.mrb[0].mxu0
        %v9096 = vpop.f32.mrb[0].mxu0
        %v9097 = vadd.f32 0.0, %v9096
        %v9098 = vpop.f32.mrb[0].mxu0
        %9099 = vmatprep.mubr.bf16.mxu0 0
        %9100 = vmatmul.mubr.bf16.gmra.mrb[0].mxu0 %v8773
        %v9101 = vpop.f32.mrb[0].mxu0
        %v9102 = vadd.f32 0.0, %v9101
        %v9103 = vpop.f32.mrb[0].mxu0
        %v9104 = vpop.f32.mrb[0].mxu0
        %v9105 = vadd.f32 0.0, %v9104
        %v9106 = vpop.f32.mrb[0].mxu0
        %9107 = vmatprep.mubr.bf16.mxu0 0
        %9108 = vmatmul.mubr.bf16.gmra.mrb[0].mxu0 %v8774
        %v9109 = vpop.f32.mrb[0].mxu0
        %v9110 = vadd.f32 0.0, %v9109
        %v9111 = vpop.f32.mrb[0].mxu0
        %v9112 = vpop.f32.mrb[0].mxu0
        %v9113 = vadd.f32 0.0, %v9112
        %v9114 = vpop.f32.mrb[0].mxu0
        %9115 = vmatprep.mubr.bf16.mxu0 0
        %9116 = vmatmul.mubr.bf16.gmra.mrb[0].mxu0 %v8775
        %v9117 = vpop.f32.mrb[0].mxu0
        %v9118 = vadd.f32 0.0, %v9117
        %v9119 = vpop.f32.mrb[0].mxu0
        %v9120 = vpop.f32.mrb[0].mxu0
        %v9121 = vadd.f32 0.0, %v9120
        %v9122 = vpop.f32.mrb[0].mxu0
        %9123 = vmatprep.mubr.bf16.mxu0 0
        %9124 = vmatmul.mubr.bf16.gmra.mrb[0].mxu0 %v8776
        %v9125 = vpop.f32.mrb[0].mxu0
        %v9126 = vadd.f32 0.0, %v9125
        %v9127 = vpop.f32.mrb[0].mxu0
        %v9128 = vpop.f32.mrb[0].mxu0
        %v9129 = vadd.f32 0.0, %v9128
        %v9130 = vpop.f32.mrb[0].mxu0
        %9131 = vmatprep.mubr.bf16.mxu0 0
        %9132 = vmatmul.mubr.bf16.gmra.mrb[0].mxu0 %v8777
        %v9133 = vpop.f32.mrb[0].mxu0
        %v9134 = vadd.f32 0.0, %v9133
        %v9135 = vpop.f32.mrb[0].mxu0
        %v9136 = vpop.f32.mrb[0].mxu0
        %v9137 = vadd.f32 0.0, %v9136
        %v9138 = vpop.f32.mrb[0].mxu0
        %9139 = vmatprep.mubr.bf16.mxu0 0
        %9140 = vmatmul.mubr.bf16.gmra.mrb[0].mxu0 %v8778
        %v9141 = vpop.f32.mrb[0].mxu0
        %v9142 = vadd.f32 0.0, %v9141
        %v9143 = vpop.f32.mrb[0].mxu0
        %v9144 = vpop.f32.mrb[0].mxu0
        %v9145 = vadd.f32 0.0, %v9144
        %v9146 = vpop.f32.mrb[0].mxu0
        %9147 = vdwg.mxu0
        %v9148 = vadd.f32 %v8538, %v8894
        %v9149 = vadd.f32 %v8539, %v8897
        %v9150 = vadd.f32 %v8540, %v8902
        %v9151 = vadd.f32 %v8541, %v8905
        %v9152 = vadd.f32 %v8542, %v8910
        %v9153 = vadd.f32 %v8543, %v8913
        %v9154 = vadd.f32 %v8544, %v8918
        %v9155 = vadd.f32 %v8545, %v8921
        %v9156 = vadd.f32 %v8546, %v8926
        %v9157 = vadd.f32 %v8547, %v8929
        %v9158 = vadd.f32 %v8548, %v8934
        %v9159 = vadd.f32 %v8549, %v8937
        %v9160 = vadd.f32 %v8550, %v8942
        %v9161 = vadd.f32 %v8551, %v8945
        %v9162 = vadd.f32 %v8552, %v8950
        %v9163 = vadd.f32 %v8553, %v8953
        %v9164 = vadd.f32 %v8554, %v8958
        %v9165 = vadd.f32 %v8555, %v8961
        %v9166 = vadd.f32 %v8556, %v8966
        %v9167 = vadd.f32 %v8557, %v8969
        %v9168 = vadd.f32 %v8558, %v8974
        %v9169 = vadd.f32 %v8559, %v8977
        %v9170 = vadd.f32 %v8560, %v8982
        %v9171 = vadd.f32 %v8561, %v8985
        %v9172 = vadd.f32 %v8562, %v8990
        %v9173 = vadd.f32 %v8563, %v8993
        %v9174 = vadd.f32 %v8564, %v8998
        %v9175 = vadd.f32 %v8565, %v9001
        %v9176 = vadd.f32 %v8566, %v9006
        %v9177 = vadd.f32 %v8567, %v9009
        %v9178 = vadd.f32 %v8568, %v9014
        %v9179 = vadd.f32 %v8569, %v9017
        %v9180 = vadd.f32 %v8570, %v9022
        %v9181 = vadd.f32 %v8571, %v9025
        %v9182 = vadd.f32 %v8572, %v9030
        %v9183 = vadd.f32 %v8573, %v9033
        %v9184 = vadd.f32 %v8574, %v9038
        %v9185 = vadd.f32 %v8575, %v9041
        %v9186 = vadd.f32 %v8576, %v9046
        %v9187 = vadd.f32 %v8577, %v9049
        %v9188 = vadd.f32 %v8578, %v9054
        %v9189 = vadd.f32 %v8579, %v9057
        %v9190 = vadd.f32 %v8580, %v9062
        %v9191 = vadd.f32 %v8581, %v9065
        %v9192 = vadd.f32 %v8582, %v9070
        %v9193 = vadd.f32 %v8583, %v9073
        %v9194 = vadd.f32 %v8584, %v9078
        %v9195 = vadd.f32 %v8585, %v9081
        %v9196 = vadd.f32 %v8586, %v9086
        %v9197 = vadd.f32 %v8587, %v9089
        %v9198 = vadd.f32 %v8588, %v9094
        %v9199 = vadd.f32 %v8589, %v9097
        %v9200 = vadd.f32 %v8590, %v9102
        %v9201 = vadd.f32 %v8591, %v9105
        %v9202 = vadd.f32 %v8592, %v9110
        %v9203 = vadd.f32 %v8593, %v9113
        %v9204 = vadd.f32 %v8594, %v9118
        %v9205 = vadd.f32 %v8595, %v9121
        %v9206 = vadd.f32 %v8596, %v9126
        %v9207 = vadd.f32 %v8597, %v9129
        %v9208 = vadd.f32 %v8598, %v9134
        %v9209 = vadd.f32 %v8599, %v9137
        %v9210 = vadd.f32 %v8600, %v9142
        %v9211 = vadd.f32 %v8601, %v9145
        %v9212 = vld [vmem:[#allocation17] sm:$0x1]
        %v9214 = vlaneseq
        %v9215 = vshrl.u32 %v9214, 7
        %v9216 = vsub.s32 0, %v9215
        %v9217 = vrot.slane %v9212, %v9216
        %v9219 = vadd.f32 %v9148, %v9217
        %v9220 = vadd.f32 %v9149, %v9217
        %v9221 = vadd.f32 %v9150, %v9217
        %v9222 = vadd.f32 %v9151, %v9217
        %v9223 = vadd.f32 %v9152, %v9217
        %v9224 = vadd.f32 %v9153, %v9217
        %v9225 = vadd.f32 %v9154, %v9217
        %v9226 = vadd.f32 %v9155, %v9217
        %v9227 = vadd.f32 %v9156, %v9217
        %v9228 = vadd.f32 %v9157, %v9217
        %v9229 = vadd.f32 %v9158, %v9217
        %v9230 = vadd.f32 %v9159, %v9217
        %v9231 = vadd.f32 %v9160, %v9217
        %v9232 = vadd.f32 %v9161, %v9217
        %v9233 = vadd.f32 %v9162, %v9217
        %v9234 = vadd.f32 %v9163, %v9217
        %v9235 = vadd.f32 %v9164, %v9217
        %v9236 = vadd.f32 %v9165, %v9217
        %v9237 = vadd.f32 %v9166, %v9217
        %v9238 = vadd.f32 %v9167, %v9217
        %v9239 = vadd.f32 %v9168, %v9217
        %v9240 = vadd.f32 %v9169, %v9217
        %v9241 = vadd.f32 %v9170, %v9217
        %v9242 = vadd.f32 %v9171, %v9217
        %v9243 = vadd.f32 %v9172, %v9217
        %v9244 = vadd.f32 %v9173, %v9217
        %v9245 = vadd.f32 %v9174, %v9217
        %v9246 = vadd.f32 %v9175, %v9217
        %v9247 = vadd.f32 %v9176, %v9217
        %v9248 = vadd.f32 %v9177, %v9217
        %v9249 = vadd.f32 %v9178, %v9217
        %v9250 = vadd.f32 %v9179, %v9217
        %v9251 = vadd.f32 %v9180, %v9217
        %v9252 = vadd.f32 %v9181, %v9217
        %v9253 = vadd.f32 %v9182, %v9217
        %v9254 = vadd.f32 %v9183, %v9217
        %v9255 = vadd.f32 %v9184, %v9217
        %v9256 = vadd.f32 %v9185, %v9217
        %v9257 = vadd.f32 %v9186, %v9217
        %v9258 = vadd.f32 %v9187, %v9217
        %v9259 = vadd.f32 %v9188, %v9217
        %v9260 = vadd.f32 %v9189, %v9217
        %v9261 = vadd.f32 %v9190, %v9217
        %v9262 = vadd.f32 %v9191, %v9217
        %v9263 = vadd.f32 %v9192, %v9217
        %v9264 = vadd.f32 %v9193, %v9217
        %v9265 = vadd.f32 %v9194, %v9217
        %v9266 = vadd.f32 %v9195, %v9217
        %v9267 = vadd.f32 %v9196, %v9217
        %v9268 = vadd.f32 %v9197, %v9217
        %v9269 = vadd.f32 %v9198, %v9217
        %v9270 = vadd.f32 %v9199, %v9217
        %v9271 = vadd.f32 %v9200, %v9217
        %v9272 = vadd.f32 %v9201, %v9217
        %v9273 = vadd.f32 %v9202, %v9217
        %v9274 = vadd.f32 %v9203, %v9217
        %v9275 = vadd.f32 %v9204, %v9217
        %v9276 = vadd.f32 %v9205, %v9217
        %v9277 = vadd.f32 %v9206, %v9217
        %v9278 = vadd.f32 %v9207, %v9217
        %v9279 = vadd.f32 %v9208, %v9217
        %v9280 = vadd.f32 %v9209, %v9217
        %v9281 = vadd.f32 %v9210, %v9217
        %v9282 = vadd.f32 %v9211, %v9217
        %v9283 = vpack.c.bf16 %v9219, %v9219
        %v9284 = vpack.c.bf16 %v9220, %v9220
        %v9285 = vpack.c.bf16 %v9221, %v9221
        %v9286 = vpack.c.bf16 %v9222, %v9222
        %v9287 = vpack.c.bf16 %v9223, %v9223
        %v9288 = vpack.c.bf16 %v9224, %v9224
        %v9289 = vpack.c.bf16 %v9225, %v9225
        %v9290 = vpack.c.bf16 %v9226, %v9226
        %v9291 = vpack.c.bf16 %v9227, %v9227
        %v9292 = vpack.c.bf16 %v9228, %v9228
        %v9293 = vpack.c.bf16 %v9229, %v9229
        %v9294 = vpack.c.bf16 %v9230, %v9230
        %v9295 = vpack.c.bf16 %v9231, %v9231
        %v9296 = vpack.c.bf16 %v9232, %v9232
        %v9297 = vpack.c.bf16 %v9233, %v9233
        %v9298 = vpack.c.bf16 %v9234, %v9234
        %v9299 = vpack.c.bf16 %v9235, %v9235
        %v9300 = vpack.c.bf16 %v9236, %v9236
        %v9301 = vpack.c.bf16 %v9237, %v9237
        %v9302 = vpack.c.bf16 %v9238, %v9238
        %v9303 = vpack.c.bf16 %v9239, %v9239
        %v9304 = vpack.c.bf16 %v9240, %v9240
        %v9305 = vpack.c.bf16 %v9241, %v9241
        %v9306 = vpack.c.bf16 %v9242, %v9242
        %v9307 = vpack.c.bf16 %v9243, %v9243
        %v9308 = vpack.c.bf16 %v9244, %v9244
        %v9309 = vpack.c.bf16 %v9245, %v9245
        %v9310 = vpack.c.bf16 %v9246, %v9246
        %v9311 = vpack.c.bf16 %v9247, %v9247
        %v9312 = vpack.c.bf16 %v9248, %v9248
        %v9313 = vpack.c.bf16 %v9249, %v9249
        %v9314 = vpack.c.bf16 %v9250, %v9250
        %v9315 = vpack.c.bf16 %v9251, %v9251
        %v9316 = vpack.c.bf16 %v9252, %v9252
        %v9317 = vpack.c.bf16 %v9253, %v9253
        %v9318 = vpack.c.bf16 %v9254, %v9254
        %v9319 = vpack.c.bf16 %v9255, %v9255
        %v9320 = vpack.c.bf16 %v9256, %v9256
        %v9321 = vpack.c.bf16 %v9257, %v9257
        %v9322 = vpack.c.bf16 %v9258, %v9258
        %v9323 = vpack.c.bf16 %v9259, %v9259
        %v9324 = vpack.c.bf16 %v9260, %v9260
        %v9325 = vpack.c.bf16 %v9261, %v9261
        %v9326 = vpack.c.bf16 %v9262, %v9262
        %v9327 = vpack.c.bf16 %v9263, %v9263
        %v9328 = vpack.c.bf16 %v9264, %v9264
        %v9329 = vpack.c.bf16 %v9265, %v9265
        %v9330 = vpack.c.bf16 %v9266, %v9266
        %v9331 = vpack.c.bf16 %v9267, %v9267
        %v9332 = vpack.c.bf16 %v9268, %v9268
        %v9333 = vpack.c.bf16 %v9269, %v9269
        %v9334 = vpack.c.bf16 %v9270, %v9270
        %v9335 = vpack.c.bf16 %v9271, %v9271
        %v9336 = vpack.c.bf16 %v9272, %v9272
        %v9337 = vpack.c.bf16 %v9273, %v9273
        %v9338 = vpack.c.bf16 %v9274, %v9274
        %v9339 = vpack.c.bf16 %v9275, %v9275
        %v9340 = vpack.c.bf16 %v9276, %v9276
        %v9341 = vpack.c.bf16 %v9277, %v9277
        %v9342 = vpack.c.bf16 %v9278, %v9278
        %v9343 = vpack.c.bf16 %v9279, %v9279
        %v9344 = vpack.c.bf16 %v9280, %v9280
        %v9345 = vpack.c.bf16 %v9281, %v9281
        %v9346 = vpack.c.bf16 %v9282, %v9282
        %9347 = vst [vmem:[%s458] sm:$0xf] %v9283
        %9348 = vst [vmem:[%s458 + $0x4] sm:$0xf] %v9284
        %9349 = vst [vmem:[%s458 + $0x8] sm:$0xf] %v9285
        %9350 = vst [vmem:[%s458 + $0xc] sm:$0xf] %v9286
        %9351 = vst [vmem:[%s458 + $0x10] sm:$0xf] %v9287
        %9352 = vst [vmem:[%s458 + $0x14] sm:$0xf] %v9288
        %9353 = vst [vmem:[%s458 + $0x18] sm:$0xf] %v9289
        %9354 = vst [vmem:[%s458 + $0x1c] sm:$0xf] %v9290
        %9355 = vst [vmem:[%s458 + $0x20] sm:$0xf] %v9291
        %9356 = vst [vmem:[%s458 + $0x24] sm:$0xf] %v9292
        %9357 = vst [vmem:[%s458 + $0x28] sm:$0xf] %v9293
        %9358 = vst [vmem:[%s458 + $0x2c] sm:$0xf] %v9294
        %9359 = vst [vmem:[%s458 + $0x30] sm:$0xf] %v9295
        %9360 = vst [vmem:[%s458 + $0x34] sm:$0xf] %v9296
        %9361 = vst [vmem:[%s458 + $0x38] sm:$0xf] %v9297
        %9362 = vst [vmem:[%s458 + $0x3c] sm:$0xf] %v9298
        %9363 = vst [vmem:[%s458 + $0x40] sm:$0xf] %v9299
        %9364 = vst [vmem:[%s458 + $0x44] sm:$0xf] %v9300
        %9365 = vst [vmem:[%s458 + $0x48] sm:$0xf] %v9301
        %9366 = vst [vmem:[%s458 + $0x4c] sm:$0xf] %v9302
        %9367 = vst [vmem:[%s458 + $0x50] sm:$0xf] %v9303
        %9368 = vst [vmem:[%s458 + $0x54] sm:$0xf] %v9304
        %9369 = vst [vmem:[%s458 + $0x58] sm:$0xf] %v9305
        %9370 = vst [vmem:[%s458 + $0x5c] sm:$0xf] %v9306
        %9371 = vst [vmem:[%s458 + $0x60] sm:$0xf] %v9307
        %9372 = vst [vmem:[%s458 + $0x64] sm:$0xf] %v9308
        %9373 = vst [vmem:[%s458 + $0x68] sm:$0xf] %v9309
        %9374 = vst [vmem:[%s458 + $0x6c] sm:$0xf] %v9310
        %9375 = vst [vmem:[%s458 + $0x70] sm:$0xf] %v9311
        %9376 = vst [vmem:[%s458 + $0x74] sm:$0xf] %v9312
        %9377 = vst [vmem:[%s458 + $0x78] sm:$0xf] %v9313
        %9378 = vst [vmem:[%s458 + $0x7c] sm:$0xf] %v9314
        %9379 = vst [vmem:[%s458 + $0x80] sm:$0xf] %v9315
        %9380 = vst [vmem:[%s458 + $0x84] sm:$0xf] %v9316
        %9381 = vst [vmem:[%s458 + $0x88] sm:$0xf] %v9317
        %9382 = vst [vmem:[%s458 + $0x8c] sm:$0xf] %v9318
        %9383 = vst [vmem:[%s458 + $0x90] sm:$0xf] %v9319
        %9384 = vst [vmem:[%s458 + $0x94] sm:$0xf] %v9320
        %9385 = vst [vmem:[%s458 + $0x98] sm:$0xf] %v9321
        %9386 = vst [vmem:[%s458 + $0x9c] sm:$0xf] %v9322
        %9387 = vst [vmem:[%s458 + $0xa0] sm:$0xf] %v9323
        %9388 = vst [vmem:[%s458 + $0xa4] sm:$0xf] %v9324
        %9389 = vst [vmem:[%s458 + $0xa8] sm:$0xf] %v9325
        %9390 = vst [vmem:[%s458 + $0xac] sm:$0xf] %v9326
        %9391 = vst [vmem:[%s458 + $0xb0] sm:$0xf] %v9327
        %9392 = vst [vmem:[%s458 + $0xb4] sm:$0xf] %v9328
        %9393 = vst [vmem:[%s458 + $0xb8] sm:$0xf] %v9329
        %9394 = vst [vmem:[%s458 + $0xbc] sm:$0xf] %v9330
        %9395 = vst [vmem:[%s458 + $0xc0] sm:$0xf] %v9331
        %9396 = vst [vmem:[%s458 + $0xc4] sm:$0xf] %v9332
        %9397 = vst [vmem:[%s458 + $0xc8] sm:$0xf] %v9333
        %9398 = vst [vmem:[%s458 + $0xcc] sm:$0xf] %v9334
        %9399 = vst [vmem:[%s458 + $0xd0] sm:$0xf] %v9335
        %9400 = vst [vmem:[%s458 + $0xd4] sm:$0xf] %v9336
        %9401 = vst [vmem:[%s458 + $0xd8] sm:$0xf] %v9337
        %9402 = vst [vmem:[%s458 + $0xdc] sm:$0xf] %v9338
        %9403 = vst [vmem:[%s458 + $0xe0] sm:$0xf] %v9339
        %9404 = vst [vmem:[%s458 + $0xe4] sm:$0xf] %v9340
        %9405 = vst [vmem:[%s458 + $0xe8] sm:$0xf] %v9341
        %9406 = vst [vmem:[%s458 + $0xec] sm:$0xf] %v9342
        %9407 = vst [vmem:[%s458 + $0xf0] sm:$0xf] %v9343
        %9408 = vst [vmem:[%s458 + $0xf4] sm:$0xf] %v9344
        %9409 = vst [vmem:[%s458 + $0xf8] sm:$0xf] %v9345
        %9410 = vst [vmem:[%s458 + $0xfc] sm:$0xf] %v9346
        %s9411 = sand.u32 %s232, 1
        %s9412 = scalar_lea.sflag [#allocation5], %s9411
        %s9413 = sand.u32 %s232, 1
        %s9414 = smul.addr %s9413, 256
        %s9415 = scalar_lea.vmem [#allocation18], %s9414
        // Predicated region
        $region93: #{vit_decoder_forward.1} parent=55 // pred_check
          %p9416 = pneg %p242
        $region94: #{vit_decoder_forward.1} parent=55 // pred_check_branch
          %9418 = sbr.rel (%p9416) target = $region96
        $region95: #{vit_decoder_forward.1} parent=55 // pred_region
          %s9420 = ssub.s32 4096, 4096
          %9421 = vsyncadd %s9412, %s9420
          %s9422 = smul.addr %s30, 64
          %s9423 = smul.addr %s9422, 64
          %s9424 = scalar_lea.hbm %s9, %s9423
          %s9425 = sshll.u32 %s9415, 4
          %s9426 = int_to_ptr.vmem [resolvable:$true] %s9425
          %9431 = dma.vmem_to_hbm [thread:$0]  %s9426, 4096, %s9424, %s9412, 64, 64, 4
        $region96: #{vit_decoder_forward.1} parent=55 // pred_fallthru
          _
      $region56: #{vit_decoder_forward.1} parent=5 // pred_fallthru
        _
      %p9432 = scmp.le.s32.totalorder 2, %s25
      // Predicated region
      $region97: #{vit_decoder_forward.1} parent=5 // pred_check
        %p9433 = pneg %p9432
      $region98: #{vit_decoder_forward.1} parent=5 // pred_check_branch
        %9435 = sbr.rel (%p9433) target = $region100
      $region99: #{vit_decoder_forward.1} parent=5 // pred_region
        %s9436 = ssub.s32 %s25, 2
        // Predicated region
        $region101: #{vit_decoder_forward.1} parent=99 // pred_check
          %p9437 = pneg %p248
        $region102: #{vit_decoder_forward.1} parent=99 // pred_check_branch
          %9439 = sbr.rel (%p9437) target = $region104
        $region103: #{vit_decoder_forward.1} parent=99 // pred_region
          %s9440 = sand.u32 %s233, 1
          %s9441 = scalar_lea.sflag [#allocation5], %s9440
          %s9442 = sand.u32 %s233, 1
          %s9443 = smul.addr %s9442, 256
          %s9444 = scalar_lea.vmem [#allocation18], %s9443
          %9445 = dma.done %s9441, 4096
        $region104: #{vit_decoder_forward.1} parent=99 // pred_fallthru
          _
      $region100: #{vit_decoder_forward.1} parent=5 // pred_fallthru
        _
    $region6: #{vit_decoder_forward.1} parent=1 // loop_footer
      %s29 = sadd.s32 1, %s25
    $region7: #{vit_decoder_forward.1} parent=1 // loop_footer_branch
      %24 = sbr.rel target = $region3
    $region8: #{vit_decoder_forward.1} parent=1 // loop_exit
      _
    %9446 = vsyncpa [#allocation4], 1
    %s9447 = scalar_lea.sflag [#allocation4], 1
    %9448 = vsyncpa %s9447, 1
    %9449 = vsyncpa [#allocation7], 1
    %9450 = vsyncpa [#allocation10], 1
    %9451 = vsyncpa [#allocation13], 1
    %9452 = vsyncpa [#allocation16], 1
    %9453 = vsyncpa [#allocation5], 1
    %s9454 = scalar_lea.sflag [#allocation5], 1
    %9455 = vsyncpa %s9454, 1

</llo_original>
